<compile_context>
chip_gen: v7x
topology: tpu7x:2x2x1
jax: 0.10.0
libtpu: 0.0.40
codegen_flags: <defaults>
</compile_context>

<pallas_src>
import functools

import jax
import jax.numpy as jnp
from jax.experimental import pallas as pl
from jax.experimental.pallas import tpu as pltpu


def _pasa_kernel(x_ref, w_ref, out_ref, xp_scr, *, k, group):
    """One batch image per grid step (NHWC inside the kernel).

    x_ref   : (1, H, W, C)        input image
    w_ref   : (k*k*C, G*k*k)      conv weight, row index = tap*C + in_channel
    out_ref : (1, H, W, C)        full-resolution filtered output
    xp_scr  : VMEM (H+2P, W+2P, C) reflect-padded copy of the image
    """
    _, H, W, C = x_ref.shape
    P = k // 2
    KK = k * k
    Cg = C // group
    HW = H * W

    # ---- reflect-pad the image into the VMEM scratch -----------------------
    xp_scr[P:P + H, P:P + W, :] = x_ref[0]
    for i in range(P):  # mirror rows (reflection excludes the edge row)
        xp_scr[P - 1 - i:P - i, P:P + W, :] = \
            xp_scr[P + 1 + i:P + 2 + i, P:P + W, :]
        xp_scr[P + H + i:P + H + i + 1, P:P + W, :] = \
            xp_scr[P + H - 2 - i:P + H - 1 - i, P:P + W, :]
    for j in range(P):  # mirror columns (pad rows included -> corners correct)
        xp_scr[:, P - 1 - j:P - j, :] = xp_scr[:, P + 1 + j:P + 2 + j, :]
        xp_scr[:, P + W + j:P + W + j + 1, :] = \
            xp_scr[:, P + W - 2 - j:P + W - 1 - j, :]

    # ---- im2col slab: (H*W, k*k*C), column index = tap*C + channel ----------
    taps = [xp_scr[kh:kh + H, kw:kw + W, :]
            for kh in range(k) for kw in range(k)]
    patches = jnp.concatenate(taps, axis=-1).reshape(HW, KK * C)

    # ---- sigma conv: a single im2col matmul on the MXU ---------------------
    sig = jnp.dot(patches, w_ref[...],
                  preferred_element_type=jnp.float32)          # (HW, G*k*k)

    # ---- InstanceNorm2d (affine=False, eps=1e-5): stats over all H*W -------
    mu = jnp.mean(sig, axis=0, keepdims=True)
    cen = sig - mu
    var = jnp.mean(cen * cen, axis=0, keepdims=True)
    sig = cen / jnp.sqrt(var + 1e-5)

    # ---- softmax over the G*k*k channel axis, per pixel --------------------
    m = jnp.max(sig, axis=-1, keepdims=True)
    e = jnp.exp(sig - m)
    sig = e / jnp.sum(e, axis=-1, keepdims=True)

    # ---- pixel-adaptive filtering: the k*k softmax weights of group g are
    # shared by that group's Cg channels (reuses the im2col slab) ------------
    group_out = []
    for g in range(group):
        acc = jnp.zeros((HW, Cg), jnp.float32)
        for p in range(KK):
            tap = patches[:, p * C + g * Cg:p * C + g * Cg + Cg]  # (HW, Cg)
            wgt = sig[:, g * KK + p:g * KK + p + 1]               # (HW, 1)
            acc = acc + tap * wgt
        group_out.append(acc)
    out = jnp.concatenate(group_out, axis=-1)                     # (HW, C)

    out_ref[0] = out.reshape(H, W, C).astype(out_ref.dtype)


@functools.partial(jax.jit, static_argnames=("kernel_size", "stride", "group"))
def pasa_downsample(x_nchw, weight, *, kernel_size, stride=1, group=2):
    """x_nchw: (B, C, H, W) f32; weight: (group*k*k, C, k, k) f32 (PyTorch OIHW)."""
    B, C, H, W = x_nchw.shape
    k = kernel_size
    P = k // 2
    KK = k * k
    GKK = group * KK
    assert C % group == 0
    assert weight.shape == (GKK, C, k, k)

    # Layout glue at the boundary (NCHW -> NHWC, OIHW -> im2col matmul weight).
    x_nhwc = jnp.transpose(x_nchw, (0, 2, 3, 1))
    # (O, I, kh, kw) -> (kh, kw, I, O) -> (k*k*C, G*k*k): row index = tap*C + c.
    w_mat = jnp.transpose(weight, (2, 3, 1, 0)).reshape(KK * C, GKK)

    kern = functools.partial(_pasa_kernel, k=k, group=group)
    out_nhwc = pl.pallas_call(
        kern,
        out_shape=jax.ShapeDtypeStruct((B, H, W, C), jnp.float32),
        grid_spec=pltpu.PrefetchScalarGridSpec(
            num_scalar_prefetch=0,
            grid=(B,),
            in_specs=[
                pl.BlockSpec((1, H, W, C), lambda b: (b, 0, 0, 0)),
                pl.BlockSpec((KK * C, GKK), lambda b: (0, 0)),
            ],
            out_specs=pl.BlockSpec((1, H, W, C), lambda b: (b, 0, 0, 0)),
            scratch_shapes=[
                pltpu.VMEM((H + 2 * P, W + 2 * P, C), jnp.float32),
            ],
        ),
        compiler_params=pltpu.CompilerParams(
            dimension_semantics=("parallel",)),
    )(x_nhwc, w_mat)

    # Keep rows/cols where index % stride == 0 (== PyTorch's arange(h)%s==0).
    # TODO(synk): fold this subsample into the kernel (strided pl.ds reads) for
    # production sizes so only (Ho, Wo, C) per image is written back to HBM.
    out_nhwc = out_nhwc[:, ::stride, ::stride, :]
    return jnp.transpose(out_nhwc, (0, 3, 1, 2))  # back to NCHW


def _reference(x, weight, *, kernel_size, stride, group):
    """Pure-JAX reference of Downsample_PASA_group_softmax.forward."""
    B, C, H, W = x.shape
    k = kernel_size
    P = k // 2
    KK = k * k
    Cg = C // group
    xp = jnp.pad(x, ((0, 0), (0, 0), (P, P), (P, P)), mode="reflect")
    sigma = jax.lax.conv_general_dilated(
        xp, weight, window_strides=(1, 1), padding="VALID",
        dimension_numbers=("NCHW", "OIHW", "NCHW"),
        precision=jax.lax.Precision.HIGHEST)               # (B, G*k*k, H, W)
    mu = jnp.mean(sigma, axis=(2, 3), keepdims=True)
    var = jnp.mean((sigma - mu) ** 2, axis=(2, 3), keepdims=True)
    sigma = (sigma - mu) / jnp.sqrt(var + 1e-5)             # InstanceNorm2d
    sigma = jax.nn.softmax(sigma, axis=1)                   # over G*k*k channels
    pats = jnp.stack([xp[:, :, kh:kh + H, kw:kw + W]
                      for kh in range(k) for kw in range(k)], axis=2)
    pats = pats.reshape(B, group, Cg, KK, H, W)
    sig = sigma.reshape(B, group, 1, KK, H, W)
    out = jnp.sum(pats * sig, axis=3).reshape(B, C, H, W)
    return out[:, :, ::stride, ::stride]


if __name__ == "__main__":
    B, C, H, W = 2, 4, 16, 16
    kernel_size, stride, group = 3, 2, 2

    key = jax.random.PRNGKey(0)
    kx, kw = jax.random.split(key)
    x = jax.random.normal(kx, (B, C, H, W), jnp.float32)
    # conv weight, PyTorch layout (out=G*k*k, in=C, kh, kw), kaiming-ish scale.
    weight = 0.1 * jax.random.normal(
        kw, (group * kernel_size * kernel_size, C, kernel_size, kernel_size),
        jnp.float32)

    out = pasa_downsample(x, weight, kernel_size=kernel_size,
                          stride=stride, group=group)
    out = jax.block_until_ready(out)

    ref = _reference(x, weight, kernel_size=kernel_size,
                     stride=stride, group=group)
    assert out.shape == (B, C, H // stride, W // stride), out.shape
    # Loose-ish tolerance: absorbs MXU f32 multi-pass vs XLA conv differences
    # while still catching any structural / indexing error (those are O(1)).
    err = float(jnp.max(jnp.abs(out - ref)))
    assert err < 1e-2, err

    print("KERNEL_OK")
</pallas_src>

<mosaic_0001>
module attributes {stable_mosaic.version = 11 : i64} {
  func.func @_pasa_kernel(%arg0: i32, %arg1: memref<1x16x16x4xf32, #tpu.memory_space<vmem>>, %arg2: memref<36x18xf32, #tpu.memory_space<vmem>>, %arg3: memref<1x16x16x4xf32, #tpu.memory_space<vmem>>, %arg4: memref<18x18x4xf32, #tpu.memory_space<vmem>>) attributes {dimension_semantics = [#tpu.dimension_semantics<parallel>], iteration_bounds = array<i64: 2>, scalar_prefetch = 0 : i64, scratch_operands = 1 : i64, tpu.core_type = #tpu.core_type<tc>, window_params = [{transform_indices = @transform_0, window_bounds = array<i64: 1, 16, 16, 4>}, {pipeline_mode = #tpu.pipeline_mode<synchronous>, transform_indices = @transform_1, window_bounds = array<i64: 36, 18>}, {transform_indices = @transform_2, window_bounds = array<i64: 1, 16, 16, 4>}]} {
    %c0 = arith.constant 0 : index
    %c0_0 = arith.constant 0 : index
    %c0_1 = arith.constant 0 : index
    %c0_2 = arith.constant 0 : index
    %0 = vector.load %arg1[%c0, %c0_0, %c0_1, %c0_2] : memref<1x16x16x4xf32, #tpu.memory_space<vmem>>, vector<1x16x16x4xf32>
    %1 = vector.shape_cast %0 : vector<1x16x16x4xf32> to vector<16x16x4xf32>
    %c1 = arith.constant 1 : index
    %c1_3 = arith.constant 1 : index
    %c0_4 = arith.constant 0 : index
    %2 = vector.load %arg4[%c1, %c1_3, %c0_4] : memref<18x18x4xf32, #tpu.memory_space<vmem>>, vector<16x16x4xf32>
    tpu.vector_store %arg4[%c1, %c1_3, %c0_4], %1 {strides = array<i32>} : memref<18x18x4xf32, #tpu.memory_space<vmem>>, vector<16x16x4xf32>,
    %c2 = arith.constant 2 : index
    %c1_5 = arith.constant 1 : index
    %c0_6 = arith.constant 0 : index
    %3 = vector.load %arg4[%c2, %c1_5, %c0_6] : memref<18x18x4xf32, #tpu.memory_space<vmem>>, vector<1x16x4xf32>
    %c0_7 = arith.constant 0 : index
    %c1_8 = arith.constant 1 : index
    %c0_9 = arith.constant 0 : index
    %4 = vector.load %arg4[%c0_7, %c1_8, %c0_9] : memref<18x18x4xf32, #tpu.memory_space<vmem>>, vector<1x16x4xf32>
    tpu.vector_store %arg4[%c0_7, %c1_8, %c0_9], %3 {strides = array<i32>} : memref<18x18x4xf32, #tpu.memory_space<vmem>>, vector<1x16x4xf32>,
    %c15 = arith.constant 15 : index
    %c1_10 = arith.constant 1 : index
    %c0_11 = arith.constant 0 : index
    %5 = vector.load %arg4[%c15, %c1_10, %c0_11] : memref<18x18x4xf32, #tpu.memory_space<vmem>>, vector<1x16x4xf32>
    %c17 = arith.constant 17 : index
    %c1_12 = arith.constant 1 : index
    %c0_13 = arith.constant 0 : index
    %6 = vector.load %arg4[%c17, %c1_12, %c0_13] : memref<18x18x4xf32, #tpu.memory_space<vmem>>, vector<1x16x4xf32>
    tpu.vector_store %arg4[%c17, %c1_12, %c0_13], %5 {strides = array<i32>} : memref<18x18x4xf32, #tpu.memory_space<vmem>>, vector<1x16x4xf32>,
    %c0_14 = arith.constant 0 : index
    %c2_15 = arith.constant 2 : index
    %c0_16 = arith.constant 0 : index
    %7 = vector.load %arg4[%c0_14, %c2_15, %c0_16] : memref<18x18x4xf32, #tpu.memory_space<vmem>>, vector<18x1x4xf32>
    %c0_17 = arith.constant 0 : index
    %c0_18 = arith.constant 0 : index
    %c0_19 = arith.constant 0 : index
    %8 = vector.load %arg4[%c0_17, %c0_18, %c0_19] : memref<18x18x4xf32, #tpu.memory_space<vmem>>, vector<18x1x4xf32>
    tpu.vector_store %arg4[%c0_17, %c0_18, %c0_19], %7 {strides = array<i32>} : memref<18x18x4xf32, #tpu.memory_space<vmem>>, vector<18x1x4xf32>,
    %c0_20 = arith.constant 0 : index
    %c15_21 = arith.constant 15 : index
    %c0_22 = arith.constant 0 : index
    %9 = vector.load %arg4[%c0_20, %c15_21, %c0_22] : memref<18x18x4xf32, #tpu.memory_space<vmem>>, vector<18x1x4xf32>
    %c0_23 = arith.constant 0 : index
    %c17_24 = arith.constant 17 : index
    %c0_25 = arith.constant 0 : index
    %10 = vector.load %arg4[%c0_23, %c17_24, %c0_25] : memref<18x18x4xf32, #tpu.memory_space<vmem>>, vector<18x1x4xf32>
    tpu.vector_store %arg4[%c0_23, %c17_24, %c0_25], %9 {strides = array<i32>} : memref<18x18x4xf32, #tpu.memory_space<vmem>>, vector<18x1x4xf32>,
    %c0_26 = arith.constant 0 : index
    %c0_27 = arith.constant 0 : index
    %c0_28 = arith.constant 0 : index
    %11 = vector.load %arg4[%c0_26, %c0_27, %c0_28] : memref<18x18x4xf32, #tpu.memory_space<vmem>>, vector<16x16x4xf32>
    %c0_29 = arith.constant 0 : index
    %c1_30 = arith.constant 1 : index
    %c0_31 = arith.constant 0 : index
    %12 = vector.load %arg4[%c0_29, %c1_30, %c0_31] : memref<18x18x4xf32, #tpu.memory_space<vmem>>, vector<16x16x4xf32>
    %c0_32 = arith.constant 0 : index
    %c2_33 = arith.constant 2 : index
    %c0_34 = arith.constant 0 : index
    %13 = vector.load %arg4[%c0_32, %c2_33, %c0_34] : memref<18x18x4xf32, #tpu.memory_space<vmem>>, vector<16x16x4xf32>
    %c1_35 = arith.constant 1 : index
    %c0_36 = arith.constant 0 : index
    %c0_37 = arith.constant 0 : index
    %14 = vector.load %arg4[%c1_35, %c0_36, %c0_37] : memref<18x18x4xf32, #tpu.memory_space<vmem>>, vector<16x16x4xf32>
    %c1_38 = arith.constant 1 : index
    %c1_39 = arith.constant 1 : index
    %c0_40 = arith.constant 0 : index
    %15 = vector.load %arg4[%c1_38, %c1_39, %c0_40] : memref<18x18x4xf32, #tpu.memory_space<vmem>>, vector<16x16x4xf32>
    %c1_41 = arith.constant 1 : index
    %c2_42 = arith.constant 2 : index
    %c0_43 = arith.constant 0 : index
    %16 = vector.load %arg4[%c1_41, %c2_42, %c0_43] : memref<18x18x4xf32, #tpu.memory_space<vmem>>, vector<16x16x4xf32>
    %c2_44 = arith.constant 2 : index
    %c0_45 = arith.constant 0 : index
    %c0_46 = arith.constant 0 : index
    %17 = vector.load %arg4[%c2_44, %c0_45, %c0_46] : memref<18x18x4xf32, #tpu.memory_space<vmem>>, vector<16x16x4xf32>
    %c2_47 = arith.constant 2 : index
    %c1_48 = arith.constant 1 : index
    %c0_49 = arith.constant 0 : index
    %18 = vector.load %arg4[%c2_47, %c1_48, %c0_49] : memref<18x18x4xf32, #tpu.memory_space<vmem>>, vector<16x16x4xf32>
    %c2_50 = arith.constant 2 : index
    %c2_51 = arith.constant 2 : index
    %c0_52 = arith.constant 0 : index
    %19 = vector.load %arg4[%c2_50, %c2_51, %c0_52] : memref<18x18x4xf32, #tpu.memory_space<vmem>>, vector<16x16x4xf32>
    %20 = tpu.concatenate %11, %12, %13, %14, %15, %16, %17, %18, %19 in 2 : vector<16x16x4xf32>, vector<16x16x4xf32>, vector<16x16x4xf32>, vector<16x16x4xf32>, vector<16x16x4xf32>, vector<16x16x4xf32>, vector<16x16x4xf32>, vector<16x16x4xf32>, vector<16x16x4xf32> -> vector<16x16x36xf32>
    %21 = vector.shape_cast %20 : vector<16x16x36xf32> to vector<256x36xf32>
    %c0_53 = arith.constant 0 : index
    %c0_54 = arith.constant 0 : index
    %22 = vector.load %arg2[%c0_53, %c0_54] : memref<36x18xf32, #tpu.memory_space<vmem>>, vector<36x18xf32>
    %cst = arith.constant dense<0.000000e+00> : vector<256x18xf32>
    %23 = tpu.matmul %21, %22, %cst {dimension_numbers = #tpu.dot_dimension_numbers<[1], [0], [0], [1], [0, 0, 1, 1], [], []>} : vector<256x36xf32>, vector<36x18xf32>, vector<256x18xf32> -> vector<256x18xf32>
    %cst_55 = arith.constant dense<0.000000e+00> : vector<18xf32>
    %24 = vector.multi_reduction <add>, %23, %cst_55 [0] : vector<256x18xf32> to vector<18xf32>
    %25 = vector.shape_cast %24 : vector<18xf32> to vector<1x18xf32>
    %cst_56 = arith.constant 2.560000e+02 : f32
    %26 = vector.broadcast %cst_56 : f32 to vector<1x18xf32>
    %27 = arith.divf %25, %26 : vector<1x18xf32>
    %28 = vector.broadcast %27 : vector<1x18xf32> to vector<256x18xf32>
    %29 = arith.subf %23, %28 : vector<256x18xf32>
    %30 = arith.mulf %29, %29 : vector<256x18xf32>
    %cst_57 = arith.constant dense<0.000000e+00> : vector<18xf32>
    %31 = vector.multi_reduction <add>, %30, %cst_57 [0] : vector<256x18xf32> to vector<18xf32>
    %32 = vector.shape_cast %31 : vector<18xf32> to vector<1x18xf32>
    %cst_58 = arith.constant 2.560000e+02 : f32
    %33 = vector.broadcast %cst_58 : f32 to vector<1x18xf32>
    %34 = arith.divf %32, %33 : vector<1x18xf32>
    %cst_59 = arith.constant 9.99999974E-6 : f32
    %35 = vector.broadcast %cst_59 : f32 to vector<1x18xf32>
    %36 = arith.addf %34, %35 : vector<1x18xf32>
    %37 = math.sqrt %36 : vector<1x18xf32>
    %38 = vector.broadcast %37 : vector<1x18xf32> to vector<256x18xf32>
    %39 = arith.divf %29, %38 : vector<256x18xf32>
    %cst_60 = arith.constant dense<0xFF800000> : vector<256xf32>
    %40 = vector.multi_reduction <maximumf>, %39, %cst_60 [1] : vector<256x18xf32> to vector<256xf32>
    %41 = vector.shape_cast %40 : vector<256xf32> to vector<256x1xf32>
    %42 = vector.broadcast %41 : vector<256x1xf32> to vector<256x18xf32>
    %43 = arith.subf %39, %42 : vector<256x18xf32>
    %44 = math.exp %43 : vector<256x18xf32>
    %cst_61 = arith.constant dense<0.000000e+00> : vector<256xf32>
    %45 = vector.multi_reduction <add>, %44, %cst_61 [1] : vector<256x18xf32> to vector<256xf32>
    %46 = vector.shape_cast %45 : vector<256xf32> to vector<256x1xf32>
    %47 = vector.broadcast %46 : vector<256x1xf32> to vector<256x18xf32>
    %48 = arith.divf %44, %47 : vector<256x18xf32>
    %cst_62 = arith.constant 0.000000e+00 : f32
    %49 = vector.broadcast %cst_62 : f32 to vector<256x2xf32>
    %50 = vector.extract_strided_slice %21 {offsets = [0, 0], sizes = [256, 2], strides = [1, 1]} : vector<256x36xf32> to vector<256x2xf32>
    %51 = vector.extract_strided_slice %48 {offsets = [0, 0], sizes = [256, 1], strides = [1, 1]} : vector<256x18xf32> to vector<256x1xf32>
    %52 = vector.broadcast %51 : vector<256x1xf32> to vector<256x2xf32>
    %53 = arith.mulf %50, %52 : vector<256x2xf32>
    %54 = arith.addf %49, %53 : vector<256x2xf32>
    %55 = vector.extract_strided_slice %21 {offsets = [0, 4], sizes = [256, 2], strides = [1, 1]} : vector<256x36xf32> to vector<256x2xf32>
    %56 = vector.extract_strided_slice %48 {offsets = [0, 1], sizes = [256, 1], strides = [1, 1]} : vector<256x18xf32> to vector<256x1xf32>
    %57 = vector.broadcast %56 : vector<256x1xf32> to vector<256x2xf32>
    %58 = arith.mulf %55, %57 : vector<256x2xf32>
    %59 = arith.addf %54, %58 : vector<256x2xf32>
    %60 = vector.extract_strided_slice %21 {offsets = [0, 8], sizes = [256, 2], strides = [1, 1]} : vector<256x36xf32> to vector<256x2xf32>
    %61 = vector.extract_strided_slice %48 {offsets = [0, 2], sizes = [256, 1], strides = [1, 1]} : vector<256x18xf32> to vector<256x1xf32>
    %62 = vector.broadcast %61 : vector<256x1xf32> to vector<256x2xf32>
    %63 = arith.mulf %60, %62 : vector<256x2xf32>
    %64 = arith.addf %59, %63 : vector<256x2xf32>
    %65 = vector.extract_strided_slice %21 {offsets = [0, 12], sizes = [256, 2], strides = [1, 1]} : vector<256x36xf32> to vector<256x2xf32>
    %66 = vector.extract_strided_slice %48 {offsets = [0, 3], sizes = [256, 1], strides = [1, 1]} : vector<256x18xf32> to vector<256x1xf32>
    %67 = vector.broadcast %66 : vector<256x1xf32> to vector<256x2xf32>
    %68 = arith.mulf %65, %67 : vector<256x2xf32>
    %69 = arith.addf %64, %68 : vector<256x2xf32>
    %70 = vector.extract_strided_slice %21 {offsets = [0, 16], sizes = [256, 2], strides = [1, 1]} : vector<256x36xf32> to vector<256x2xf32>
    %71 = vector.extract_strided_slice %48 {offsets = [0, 4], sizes = [256, 1], strides = [1, 1]} : vector<256x18xf32> to vector<256x1xf32>
    %72 = vector.broadcast %71 : vector<256x1xf32> to vector<256x2xf32>
    %73 = arith.mulf %70, %72 : vector<256x2xf32>
    %74 = arith.addf %69, %73 : vector<256x2xf32>
    %75 = vector.extract_strided_slice %21 {offsets = [0, 20], sizes = [256, 2], strides = [1, 1]} : vector<256x36xf32> to vector<256x2xf32>
    %76 = vector.extract_strided_slice %48 {offsets = [0, 5], sizes = [256, 1], strides = [1, 1]} : vector<256x18xf32> to vector<256x1xf32>
    %77 = vector.broadcast %76 : vector<256x1xf32> to vector<256x2xf32>
    %78 = arith.mulf %75, %77 : vector<256x2xf32>
    %79 = arith.addf %74, %78 : vector<256x2xf32>
    %80 = vector.extract_strided_slice %21 {offsets = [0, 24], sizes = [256, 2], strides = [1, 1]} : vector<256x36xf32> to vector<256x2xf32>
    %81 = vector.extract_strided_slice %48 {offsets = [0, 6], sizes = [256, 1], strides = [1, 1]} : vector<256x18xf32> to vector<256x1xf32>
    %82 = vector.broadcast %81 : vector<256x1xf32> to vector<256x2xf32>
    %83 = arith.mulf %80, %82 : vector<256x2xf32>
    %84 = arith.addf %79, %83 : vector<256x2xf32>
    %85 = vector.extract_strided_slice %21 {offsets = [0, 28], sizes = [256, 2], strides = [1, 1]} : vector<256x36xf32> to vector<256x2xf32>
    %86 = vector.extract_strided_slice %48 {offsets = [0, 7], sizes = [256, 1], strides = [1, 1]} : vector<256x18xf32> to vector<256x1xf32>
    %87 = vector.broadcast %86 : vector<256x1xf32> to vector<256x2xf32>
    %88 = arith.mulf %85, %87 : vector<256x2xf32>
    %89 = arith.addf %84, %88 : vector<256x2xf32>
    %90 = vector.extract_strided_slice %21 {offsets = [0, 32], sizes = [256, 2], strides = [1, 1]} : vector<256x36xf32> to vector<256x2xf32>
    %91 = vector.extract_strided_slice %48 {offsets = [0, 8], sizes = [256, 1], strides = [1, 1]} : vector<256x18xf32> to vector<256x1xf32>
    %92 = vector.broadcast %91 : vector<256x1xf32> to vector<256x2xf32>
    %93 = arith.mulf %90, %92 : vector<256x2xf32>
    %94 = arith.addf %89, %93 : vector<256x2xf32>
    %cst_63 = arith.constant 0.000000e+00 : f32
    %95 = vector.broadcast %cst_63 : f32 to vector<256x2xf32>
    %96 = vector.extract_strided_slice %21 {offsets = [0, 2], sizes = [256, 2], strides = [1, 1]} : vector<256x36xf32> to vector<256x2xf32>
    %97 = vector.extract_strided_slice %48 {offsets = [0, 9], sizes = [256, 1], strides = [1, 1]} : vector<256x18xf32> to vector<256x1xf32>
    %98 = vector.broadcast %97 : vector<256x1xf32> to vector<256x2xf32>
    %99 = arith.mulf %96, %98 : vector<256x2xf32>
    %100 = arith.addf %95, %99 : vector<256x2xf32>
    %101 = vector.extract_strided_slice %21 {offsets = [0, 6], sizes = [256, 2], strides = [1, 1]} : vector<256x36xf32> to vector<256x2xf32>
    %102 = vector.extract_strided_slice %48 {offsets = [0, 10], sizes = [256, 1], strides = [1, 1]} : vector<256x18xf32> to vector<256x1xf32>
    %103 = vector.broadcast %102 : vector<256x1xf32> to vector<256x2xf32>
    %104 = arith.mulf %101, %103 : vector<256x2xf32>
    %105 = arith.addf %100, %104 : vector<256x2xf32>
    %106 = vector.extract_strided_slice %21 {offsets = [0, 10], sizes = [256, 2], strides = [1, 1]} : vector<256x36xf32> to vector<256x2xf32>
    %107 = vector.extract_strided_slice %48 {offsets = [0, 11], sizes = [256, 1], strides = [1, 1]} : vector<256x18xf32> to vector<256x1xf32>
    %108 = vector.broadcast %107 : vector<256x1xf32> to vector<256x2xf32>
    %109 = arith.mulf %106, %108 : vector<256x2xf32>
    %110 = arith.addf %105, %109 : vector<256x2xf32>
    %111 = vector.extract_strided_slice %21 {offsets = [0, 14], sizes = [256, 2], strides = [1, 1]} : vector<256x36xf32> to vector<256x2xf32>
    %112 = vector.extract_strided_slice %48 {offsets = [0, 12], sizes = [256, 1], strides = [1, 1]} : vector<256x18xf32> to vector<256x1xf32>
    %113 = vector.broadcast %112 : vector<256x1xf32> to vector<256x2xf32>
    %114 = arith.mulf %111, %113 : vector<256x2xf32>
    %115 = arith.addf %110, %114 : vector<256x2xf32>
    %116 = vector.extract_strided_slice %21 {offsets = [0, 18], sizes = [256, 2], strides = [1, 1]} : vector<256x36xf32> to vector<256x2xf32>
    %117 = vector.extract_strided_slice %48 {offsets = [0, 13], sizes = [256, 1], strides = [1, 1]} : vector<256x18xf32> to vector<256x1xf32>
    %118 = vector.broadcast %117 : vector<256x1xf32> to vector<256x2xf32>
    %119 = arith.mulf %116, %118 : vector<256x2xf32>
    %120 = arith.addf %115, %119 : vector<256x2xf32>
    %121 = vector.extract_strided_slice %21 {offsets = [0, 22], sizes = [256, 2], strides = [1, 1]} : vector<256x36xf32> to vector<256x2xf32>
    %122 = vector.extract_strided_slice %48 {offsets = [0, 14], sizes = [256, 1], strides = [1, 1]} : vector<256x18xf32> to vector<256x1xf32>
    %123 = vector.broadcast %122 : vector<256x1xf32> to vector<256x2xf32>
    %124 = arith.mulf %121, %123 : vector<256x2xf32>
    %125 = arith.addf %120, %124 : vector<256x2xf32>
    %126 = vector.extract_strided_slice %21 {offsets = [0, 26], sizes = [256, 2], strides = [1, 1]} : vector<256x36xf32> to vector<256x2xf32>
    %127 = vector.extract_strided_slice %48 {offsets = [0, 15], sizes = [256, 1], strides = [1, 1]} : vector<256x18xf32> to vector<256x1xf32>
    %128 = vector.broadcast %127 : vector<256x1xf32> to vector<256x2xf32>
    %129 = arith.mulf %126, %128 : vector<256x2xf32>
    %130 = arith.addf %125, %129 : vector<256x2xf32>
    %131 = vector.extract_strided_slice %21 {offsets = [0, 30], sizes = [256, 2], strides = [1, 1]} : vector<256x36xf32> to vector<256x2xf32>
    %132 = vector.extract_strided_slice %48 {offsets = [0, 16], sizes = [256, 1], strides = [1, 1]} : vector<256x18xf32> to vector<256x1xf32>
    %133 = vector.broadcast %132 : vector<256x1xf32> to vector<256x2xf32>
    %134 = arith.mulf %131, %133 : vector<256x2xf32>
    %135 = arith.addf %130, %134 : vector<256x2xf32>
    %136 = vector.extract_strided_slice %21 {offsets = [0, 34], sizes = [256, 2], strides = [1, 1]} : vector<256x36xf32> to vector<256x2xf32>
    %137 = vector.extract_strided_slice %48 {offsets = [0, 17], sizes = [256, 1], strides = [1, 1]} : vector<256x18xf32> to vector<256x1xf32>
    %138 = vector.broadcast %137 : vector<256x1xf32> to vector<256x2xf32>
    %139 = arith.mulf %136, %138 : vector<256x2xf32>
    %140 = arith.addf %135, %139 : vector<256x2xf32>
    %141 = tpu.concatenate %94, %140 in 1 : vector<256x2xf32>, vector<256x2xf32> -> vector<256x4xf32>
    %142 = vector.shape_cast %141 : vector<256x4xf32> to vector<16x16x4xf32>
    %c0_64 = arith.constant 0 : index
    %c0_65 = arith.constant 0 : index
    %c0_66 = arith.constant 0 : index
    %c0_67 = arith.constant 0 : index
    %143 = vector.load %arg3[%c0_64, %c0_65, %c0_66, %c0_67] : memref<1x16x16x4xf32, #tpu.memory_space<vmem>>, vector<1x16x16x4xf32>
    %144 = vector.shape_cast %143 : vector<1x16x16x4xf32> to vector<16x16x4xf32>
    %145 = vector.shape_cast %142 : vector<16x16x4xf32> to vector<1x16x16x4xf32>
    tpu.vector_store %arg3[%c0_64, %c0_65, %c0_66, %c0_67], %145 {strides = array<i32>} : memref<1x16x16x4xf32, #tpu.memory_space<vmem>>, vector<1x16x16x4xf32>,
    return
  }
  func.func @transform_0(%arg0: i32) -> (i32, i32, i32, i32) {
    %c0_i32 = arith.constant 0 : i32
    %c0_i32_0 = arith.constant 0 : i32
    %c0_i32_1 = arith.constant 0 : i32
    %c0_i32_2 = arith.constant 0 : i32
    return %arg0, %c0_i32, %c0_i32_0, %c0_i32_1 : i32, i32, i32, i32
  }
  func.func @transform_1(%arg0: i32) -> (i32, i32) {
    %c0_i32 = arith.constant 0 : i32
    %c0_i32_0 = arith.constant 0 : i32
    %c0_i32_1 = arith.constant 0 : i32
    return %c0_i32, %c0_i32_0 : i32, i32
  }
  func.func @transform_2(%arg0: i32) -> (i32, i32, i32, i32) {
    %c0_i32 = arith.constant 0 : i32
    %c0_i32_0 = arith.constant 0 : i32
    %c0_i32_1 = arith.constant 0 : i32
    %c0_i32_2 = arith.constant 0 : i32
    return %arg0, %c0_i32, %c0_i32_0, %c0_i32_1 : i32, i32, i32, i32
  }
}

</mosaic_0001>

<llo_original>
// kernel: pasa_downsample.1
$region0: #{pasa_downsample.1}
  #allocation0 [shape = 'u32[]', space=smem, size = 0x4, offset = 0x4, fixed_abs, tag = 'smem constant byte address 0x4 - core index']
  #allocation1 [shape = 'u32[144,128]{1,0:T(1,128)}', space=vmem, size = 0x12000, scoped, tag = 'internal scratch']
  #allocation2 [shape = 'f32[18,18,4]{2,1,0:T(8,128)}', space=vmem, size = 0x36000, scoped, tag = 'scratch operand']
  %s0 = inlined_call_operand.vmem [shape: f32[2,16,16,4], index: 0, kind: input, shape index: {}]
  %s1 = inlined_call_operand.vmem [shape: f32[36,18], index: 1, kind: input, shape index: {}]
  %s2 = inlined_call_operand.vmem [shape: f32[2,16,16,4], index: 2, kind: output, shape index: {}]
  %s3 = sld [smem:[#allocation0]]
  $region41: #{pasa_downsample.1} parent=0
    _
  %s5 = ssub.s32 1, %s3
  %s6 = scalar_select 0, %s5, %s3
  loop: start=0, step=1, limit=4
  $region2: #{pasa_downsample.1} parent=0 // loop_pre_header
    _
  $region3: #{pasa_downsample.1} parent=0 // loop_header
    %s8 = sphi 0, %s12
    %p9 = scmp.ge.s32.totalorder %s8, 4
    %s18 = sphi 0, %s20
    %s21 = sphi 0, %s18
    %s22 = sphi 0, %s21
    %s38 = sphi 0, %s22
    %s42 = sphi 0, %s42
    %s44 = sphi 0, %s42
    %s45 = sphi 0, %s44
    %s59 = sphi 0, %s45
    %s65 = sphi 0, %s67
    %s68 = sphi 0, %s65
    %s69 = sphi 0, %s68
    %s85 = sphi 0, %s69
  $region4: #{pasa_downsample.1} parent=0 // loop_header_branch
    %11 = sbr.rel (%p9) target = $region8
  $region5: #{pasa_downsample.1} parent=0 // loop_body
    %s13 = ssub.s32 %s8, 1
    %s14 = ssub.s32 %s8, 2
    %s15 = sadd.s32 %s8, 1
    %s16 = ssub.s32 %s8, %s15
    %p17 = scmp.eq.s32.totalorder %s16, 0
    %s19 = sadd.s32 %s18, 1
    %s20 = scalar_select %p17, %s18, %s19
    %p23 = pneg %p17
    %p24 = scmp.eq.s32.totalorder %s8, 1
    %p25 = por %p23, %p24
    %p26 = scmp.ne.s32.totalorder %s18, %s21
    %p27 = scmp.eq.s32.totalorder %s8, 0
    %p28 = por %p26, %p27
    %p29 = scmp.ne.s32.totalorder %s18, %s21
    %p30 = scmp.eq.s32.totalorder %s13, 1
    %p31 = por %p29, %p30
    %p32 = scmp.ne.s32.totalorder %s21, %s22
    %p33 = scmp.eq.s32.totalorder %s13, 0
    %p34 = por %p32, %p33
    %p35 = scmp.ne.s32.totalorder %s21, %s22
    %p36 = scmp.eq.s32.totalorder %s14, 1
    %p37 = por %p35, %p36
    %p39 = scmp.ne.s32.totalorder %s22, %s38
    %p40 = scmp.eq.s32.totalorder %s14, 0
    %p41 = por %p39, %p40
    %s43 = sadd.s32 %s42, 1
    %p46 = scmp.eq.s32.totalorder %s8, 1
    %p47 = scmp.ne.s32.totalorder %s42, %s44
    %p48 = scmp.eq.s32.totalorder %s8, 0
    %p49 = por %p47, %p48
    %p50 = scmp.ne.s32.totalorder %s42, %s44
    %p51 = scmp.eq.s32.totalorder %s13, 1
    %p52 = por %p50, %p51
    %p53 = scmp.ne.s32.totalorder %s44, %s45
    %p54 = scmp.eq.s32.totalorder %s13, 0
    %p55 = por %p53, %p54
    %p56 = scmp.ne.s32.totalorder %s44, %s45
    %p57 = scmp.eq.s32.totalorder %s14, 1
    %p58 = por %p56, %p57
    %p60 = scmp.ne.s32.totalorder %s45, %s59
    %p61 = scmp.eq.s32.totalorder %s14, 0
    %p62 = por %p60, %p61
    %s63 = ssub.s32 %s8, %s15
    %p64 = scmp.eq.s32.totalorder %s63, 0
    %s66 = sadd.s32 %s65, 1
    %s67 = scalar_select %p64, %s65, %s66
    %p70 = pneg %p64
    %p71 = scmp.eq.s32.totalorder %s8, 1
    %p72 = por %p70, %p71
    %p73 = scmp.ne.s32.totalorder %s65, %s68
    %p74 = scmp.eq.s32.totalorder %s8, 0
    %p75 = por %p73, %p74
    %p76 = scmp.ne.s32.totalorder %s65, %s68
    %p77 = scmp.eq.s32.totalorder %s13, 1
    %p78 = por %p76, %p77
    %p79 = scmp.ne.s32.totalorder %s68, %s69
    %p80 = scmp.eq.s32.totalorder %s13, 0
    %p81 = por %p79, %p80
    %p82 = scmp.ne.s32.totalorder %s68, %s69
    %p83 = scmp.eq.s32.totalorder %s14, 1
    %p84 = por %p82, %p83
    %p86 = scmp.ne.s32.totalorder %s69, %s85
    %p87 = scmp.eq.s32.totalorder %s14, 0
    %p88 = por %p86, %p87
    %p89 = scmp.le.s32.totalorder 1, %s8
    %p90 = scmp.lt.s32.totalorder %s8, 3
    %p91 = pnand %p89, %p90
    %p92 = pneg %p91
    // Predicated region
    $region9: #{pasa_downsample.1} parent=5 // pred_check
      _
    $region10: #{pasa_downsample.1} parent=5 // pred_check_branch
      %94 = sbr.rel (%p91) target = $region12
    $region11: #{pasa_downsample.1} parent=5 // pred_region
      %s95 = ssub.s32 %s8, 1
      // Predicated region
      $region13: #{pasa_downsample.1} parent=11 // pred_check
        %p96 = pneg %p55
      $region14: #{pasa_downsample.1} parent=11 // pred_check_branch
        %98 = sbr.rel (%p96) target = $region16
      $region15: #{pasa_downsample.1} parent=11 // pred_region
        _
      $region16: #{pasa_downsample.1} parent=11 // pred_fallthru
        _
    $region12: #{pasa_downsample.1} parent=5 // pred_fallthru
      _
    %p99 = scmp.lt.s32.totalorder %s8, 2
    // Predicated region
    $region17: #{pasa_downsample.1} parent=5 // pred_check
      %p100 = pneg %p99
    $region18: #{pasa_downsample.1} parent=5 // pred_check_branch
      %102 = sbr.rel (%p100) target = $region20
    $region19: #{pasa_downsample.1} parent=5 // pred_region
      // Predicated region
      $region21: #{pasa_downsample.1} parent=19 // pred_check
        %p103 = pneg %p28
      $region22: #{pasa_downsample.1} parent=19 // pred_check_branch
        %105 = sbr.rel (%p103) target = $region24
      $region23: #{pasa_downsample.1} parent=19 // pred_region
        %p106 = scmp.lt.s32.totalorder %s8, 1
        %s107 = scalar_select %p106, %s8, 1
        %s108 = smul.addr %s107, 32
        %s109 = smul.addr %s108, 8
        %s110 = scalar_lea.vmem %s0, %s109
      $region24: #{pasa_downsample.1} parent=19 // pred_fallthru
        _
    $region20: #{pasa_downsample.1} parent=5 // pred_fallthru
      _
    %p111 = scmp.le.s32.totalorder 1, %s8
    %p112 = scmp.lt.s32.totalorder %s8, 3
    %p113 = pnand %p111, %p112
    %p114 = pneg %p113
    // Predicated region
    $region25: #{pasa_downsample.1} parent=5 // pred_check
      _
    $region26: #{pasa_downsample.1} parent=5 // pred_check_branch
      %116 = sbr.rel (%p113) target = $region28
    $region27: #{pasa_downsample.1} parent=5 // pred_region
      %s117 = ssub.s32 %s8, 1
      %p118 = scmp.lt.s32.totalorder %s13, 1
      %s119 = scalar_select %p118, %s13, 1
      %s120 = smul.addr %s119, 32
      %s121 = smul.addr %s120, 8
      %s122 = scalar_lea.vmem %s0, %s121
      %p123 = pneg %p34
      %p124 = pneg %p31
      %p125 = pneg %p55
      %p126 = pneg %p52
      %p127 = pneg %p81
      %p128 = pneg %p78
      %p129 = scmp.lt.s32.totalorder %s13, 1
      %s130 = scalar_select %p129, %s13, 1
      %s131 = smul.addr %s130, 32
      %s132 = smul.addr %s131, 8
      %s133 = scalar_lea.vmem %s2, %s132
      %p134 = scmp.lt.s32.totalorder %s13, 1
      %s135 = scalar_select %p134, %s13, 1
      %s136 = smul.addr %s135, 32
      %s137 = smul.addr %s136, 8
      %s138 = scalar_lea.vmem %s0, %s137
      %p139 = scmp.lt.s32.totalorder %s13, 1
      %s140 = scalar_select %p139, %s13, 1
      %s141 = smul.addr %s140, 32
      %s142 = smul.addr %s141, 8
      %s143 = scalar_lea.vmem %s2, %s142
      %v144 = vld [vmem:[%s138] sm:$0xff]
      %v145 = vld [vmem:[%s138 + $0x8] sm:$0xff]
      %v146 = vld [vmem:[%s138 + $0x10] sm:$0xff]
      %v147 = vld [vmem:[%s138 + $0x18] sm:$0xff]
      %v148 = vld [vmem:[%s138 + $0x20] sm:$0xff]
      %v149 = vld [vmem:[%s138 + $0x28] sm:$0xff]
      %v150 = vld [vmem:[%s138 + $0x30] sm:$0xff]
      %v151 = vld [vmem:[%s138 + $0x38] sm:$0xff]
      %v152 = vld [vmem:[%s138 + $0x40] sm:$0xff]
      %v153 = vld [vmem:[%s138 + $0x48] sm:$0xff]
      %v154 = vld [vmem:[%s138 + $0x50] sm:$0xff]
      %v155 = vld [vmem:[%s138 + $0x58] sm:$0xff]
      %v156 = vld [vmem:[%s138 + $0x60] sm:$0xff]
      %v157 = vld [vmem:[%s138 + $0x68] sm:$0xff]
      %v158 = vld [vmem:[%s138 + $0x70] sm:$0xff]
      %v159 = vld [vmem:[%s138 + $0x78] sm:$0xff]
      %v160 = vld [vmem:[%s138 + $0x80] sm:$0xff]
      %v161 = vld [vmem:[%s138 + $0x88] sm:$0xff]
      %v162 = vld [vmem:[%s138 + $0x90] sm:$0xff]
      %v163 = vld [vmem:[%s138 + $0x98] sm:$0xff]
      %v164 = vld [vmem:[%s138 + $0xa0] sm:$0xff]
      %v165 = vld [vmem:[%s138 + $0xa8] sm:$0xff]
      %v166 = vld [vmem:[%s138 + $0xb0] sm:$0xff]
      %v167 = vld [vmem:[%s138 + $0xb8] sm:$0xff]
      %v168 = vld [vmem:[%s138 + $0xc0] sm:$0xff]
      %v169 = vld [vmem:[%s138 + $0xc8] sm:$0xff]
      %v170 = vld [vmem:[%s138 + $0xd0] sm:$0xff]
      %v171 = vld [vmem:[%s138 + $0xd8] sm:$0xff]
      %v172 = vld [vmem:[%s138 + $0xe0] sm:$0xff]
      %v173 = vld [vmem:[%s138 + $0xe8] sm:$0xff]
      %v174 = vld [vmem:[%s138 + $0xf0] sm:$0xff]
      %v175 = vld [vmem:[%s138 + $0xf8] sm:$0xff]
      %s176 = scalar_lea.vmem [#allocation2], 24
      %vm177 = vcmask 31744
      %178 = vst.msk [vmem:[%s176 + $0x1] sm:$0xff] %vm177, %v144
      %179 = vst.msk [vmem:[%s176 + $0x9] sm:$0xff] %vm177, %v145
      %180 = vst.msk [vmem:[%s176 + $0x19] sm:$0xff] %vm177, %v146
      %181 = vst.msk [vmem:[%s176 + $0x21] sm:$0xff] %vm177, %v147
      %182 = vst.msk [vmem:[%s176 + $0x31] sm:$0xff] %vm177, %v148
      %183 = vst.msk [vmem:[%s176 + $0x39] sm:$0xff] %vm177, %v149
      %184 = vst.msk [vmem:[%s176 + $0x49] sm:$0xff] %vm177, %v150
      %185 = vst.msk [vmem:[%s176 + $0x51] sm:$0xff] %vm177, %v151
      %186 = vst.msk [vmem:[%s176 + $0x61] sm:$0xff] %vm177, %v152
      %187 = vst.msk [vmem:[%s176 + $0x69] sm:$0xff] %vm177, %v153
      %188 = vst.msk [vmem:[%s176 + $0x79] sm:$0xff] %vm177, %v154
      %189 = vst.msk [vmem:[%s176 + $0x81] sm:$0xff] %vm177, %v155
      %190 = vst.msk [vmem:[%s176 + $0x91] sm:$0xff] %vm177, %v156
      %191 = vst.msk [vmem:[%s176 + $0x99] sm:$0xff] %vm177, %v157
      %192 = vst.msk [vmem:[%s176 + $0xa9] sm:$0xff] %vm177, %v158
      %193 = vst.msk [vmem:[%s176 + $0xb1] sm:$0xff] %vm177, %v159
      %194 = vst.msk [vmem:[%s176 + $0xc1] sm:$0xff] %vm177, %v160
      %195 = vst.msk [vmem:[%s176 + $0xc9] sm:$0xff] %vm177, %v161
      %196 = vst.msk [vmem:[%s176 + $0xd9] sm:$0xff] %vm177, %v162
      %197 = vst.msk [vmem:[%s176 + $0xe1] sm:$0xff] %vm177, %v163
      %198 = vst.msk [vmem:[%s176 + $0xf1] sm:$0xff] %vm177, %v164
      %199 = vst.msk [vmem:[%s176 + $0xf9] sm:$0xff] %vm177, %v165
      %200 = vst.msk [vmem:[%s176 + $0x109] sm:$0xff] %vm177, %v166
      %201 = vst.msk [vmem:[%s176 + $0x111] sm:$0xff] %vm177, %v167
      %202 = vst.msk [vmem:[%s176 + $0x121] sm:$0xff] %vm177, %v168
      %203 = vst.msk [vmem:[%s176 + $0x129] sm:$0xff] %vm177, %v169
      %204 = vst.msk [vmem:[%s176 + $0x139] sm:$0xff] %vm177, %v170
      %205 = vst.msk [vmem:[%s176 + $0x141] sm:$0xff] %vm177, %v171
      %206 = vst.msk [vmem:[%s176 + $0x151] sm:$0xff] %vm177, %v172
      %207 = vst.msk [vmem:[%s176 + $0x159] sm:$0xff] %vm177, %v173
      %208 = vst.msk [vmem:[%s176 + $0x169] sm:$0xff] %vm177, %v174
      %209 = vst.msk [vmem:[%s176 + $0x171] sm:$0xff] %vm177, %v175
      %s210 = scalar_lea.vmem [#allocation2], 48
      %v211 = vld [vmem:[%s210 + $0x1] sm:$0xff]
      %v212 = vld [vmem:[%s210 + $0x9] sm:$0xff]
      %213 = vst.msk [vmem:[#allocation2 + $0x1] sm:$0xff] %vm177, %v211
      %214 = vst.msk [vmem:[#allocation2 + $0x9] sm:$0xff] %vm177, %v212
      %s215 = scalar_lea.vmem [#allocation2], 360
      %v216 = vld [vmem:[%s215 + $0x1] sm:$0xff]
      %v217 = vld [vmem:[%s215 + $0x9] sm:$0xff]
      %s218 = scalar_lea.vmem [#allocation2], 408
      %219 = vst.msk [vmem:[%s218 + $0x1] sm:$0xff] %vm177, %v216
      %220 = vst.msk [vmem:[%s218 + $0x9] sm:$0xff] %vm177, %v217
      %v221 = vld [vmem:[#allocation2 + $0x2] sm:$0x1]
      %v222 = vld [vmem:[#allocation2 + $0x1a] sm:$0x1]
      %v223 = vld [vmem:[#allocation2 + $0x32] sm:$0x1]
      %v224 = vld [vmem:[#allocation2 + $0x4a] sm:$0x1]
      %v225 = vld [vmem:[#allocation2 + $0x62] sm:$0x1]
      %v226 = vld [vmem:[#allocation2 + $0x7a] sm:$0x1]
      %v227 = vld [vmem:[#allocation2 + $0x92] sm:$0x1]
      %v228 = vld [vmem:[#allocation2 + $0xaa] sm:$0x1]
      %v229 = vld [vmem:[#allocation2 + $0xc2] sm:$0x1]
      %v230 = vld [vmem:[#allocation2 + $0xda] sm:$0x1]
      %v231 = vld [vmem:[#allocation2 + $0xf2] sm:$0x1]
      %v232 = vld [vmem:[#allocation2 + $0x10a] sm:$0x1]
      %v233 = vld [vmem:[#allocation2 + $0x122] sm:$0x1]
      %v234 = vld [vmem:[#allocation2 + $0x13a] sm:$0x1]
      %v235 = vld [vmem:[#allocation2 + $0x152] sm:$0x1]
      %v236 = vld [vmem:[#allocation2 + $0x16a] sm:$0x1]
      %v237 = vld [vmem:[#allocation2 + $0x182] sm:$0x1]
      %v238 = vld [vmem:[#allocation2 + $0x19a] sm:$0x1]
      %vm239 = vcmask 24576
      %240 = vst.msk [vmem:[#allocation2] sm:$0x1] %vm239, %v221
      %241 = vst.msk [vmem:[#allocation2 + $0x18] sm:$0x1] %vm239, %v222
      %242 = vst.msk [vmem:[#allocation2 + $0x30] sm:$0x1] %vm239, %v223
      %243 = vst.msk [vmem:[#allocation2 + $0x48] sm:$0x1] %vm239, %v224
      %244 = vst.msk [vmem:[#allocation2 + $0x60] sm:$0x1] %vm239, %v225
      %245 = vst.msk [vmem:[#allocation2 + $0x78] sm:$0x1] %vm239, %v226
      %246 = vst.msk [vmem:[#allocation2 + $0x90] sm:$0x1] %vm239, %v227
      %247 = vst.msk [vmem:[#allocation2 + $0xa8] sm:$0x1] %vm239, %v228
      %248 = vst.msk [vmem:[#allocation2 + $0xc0] sm:$0x1] %vm239, %v229
      %249 = vst.msk [vmem:[#allocation2 + $0xd8] sm:$0x1] %vm239, %v230
      %250 = vst.msk [vmem:[#allocation2 + $0xf0] sm:$0x1] %vm239, %v231
      %251 = vst.msk [vmem:[#allocation2 + $0x108] sm:$0x1] %vm239, %v232
      %252 = vst.msk [vmem:[#allocation2 + $0x120] sm:$0x1] %vm239, %v233
      %253 = vst.msk [vmem:[#allocation2 + $0x138] sm:$0x1] %vm239, %v234
      %254 = vst.msk [vmem:[#allocation2 + $0x150] sm:$0x1] %vm239, %v235
      %255 = vst.msk [vmem:[#allocation2 + $0x168] sm:$0x1] %vm239, %v236
      %256 = vst.msk [vmem:[#allocation2 + $0x180] sm:$0x1] %vm239, %v237
      %257 = vst.msk [vmem:[#allocation2 + $0x198] sm:$0x1] %vm239, %v238
      %v258 = vld [vmem:[#allocation2 + $0xf] sm:$0x1]
      %v259 = vld [vmem:[#allocation2 + $0x27] sm:$0x1]
      %v260 = vld [vmem:[#allocation2 + $0x3f] sm:$0x1]
      %v261 = vld [vmem:[#allocation2 + $0x57] sm:$0x1]
      %v262 = vld [vmem:[#allocation2 + $0x6f] sm:$0x1]
      %v263 = vld [vmem:[#allocation2 + $0x87] sm:$0x1]
      %v264 = vld [vmem:[#allocation2 + $0x9f] sm:$0x1]
      %v265 = vld [vmem:[#allocation2 + $0xb7] sm:$0x1]
      %v266 = vld [vmem:[#allocation2 + $0xcf] sm:$0x1]
      %v267 = vld [vmem:[#allocation2 + $0xe7] sm:$0x1]
      %v268 = vld [vmem:[#allocation2 + $0xff] sm:$0x1]
      %v269 = vld [vmem:[#allocation2 + $0x117] sm:$0x1]
      %v270 = vld [vmem:[#allocation2 + $0x12f] sm:$0x1]
      %v271 = vld [vmem:[#allocation2 + $0x147] sm:$0x1]
      %v272 = vld [vmem:[#allocation2 + $0x15f] sm:$0x1]
      %v273 = vld [vmem:[#allocation2 + $0x177] sm:$0x1]
      %v274 = vld [vmem:[#allocation2 + $0x18f] sm:$0x1]
      %v275 = vld [vmem:[#allocation2 + $0x1a7] sm:$0x1]
      %276 = vst.msk [vmem:[#allocation2 + $0x11] sm:$0x1] %vm239, %v258
      %277 = vst.msk [vmem:[#allocation2 + $0x29] sm:$0x1] %vm239, %v259
      %278 = vst.msk [vmem:[#allocation2 + $0x41] sm:$0x1] %vm239, %v260
      %279 = vst.msk [vmem:[#allocation2 + $0x59] sm:$0x1] %vm239, %v261
      %280 = vst.msk [vmem:[#allocation2 + $0x71] sm:$0x1] %vm239, %v262
      %281 = vst.msk [vmem:[#allocation2 + $0x89] sm:$0x1] %vm239, %v263
      %282 = vst.msk [vmem:[#allocation2 + $0xa1] sm:$0x1] %vm239, %v264
      %283 = vst.msk [vmem:[#allocation2 + $0xb9] sm:$0x1] %vm239, %v265
      %284 = vst.msk [vmem:[#allocation2 + $0xd1] sm:$0x1] %vm239, %v266
      %285 = vst.msk [vmem:[#allocation2 + $0xe9] sm:$0x1] %vm239, %v267
      %286 = vst.msk [vmem:[#allocation2 + $0x101] sm:$0x1] %vm239, %v268
      %287 = vst.msk [vmem:[#allocation2 + $0x119] sm:$0x1] %vm239, %v269
      %288 = vst.msk [vmem:[#allocation2 + $0x131] sm:$0x1] %vm239, %v270
      %289 = vst.msk [vmem:[#allocation2 + $0x149] sm:$0x1] %vm239, %v271
      %290 = vst.msk [vmem:[#allocation2 + $0x161] sm:$0x1] %vm239, %v272
      %291 = vst.msk [vmem:[#allocation2 + $0x179] sm:$0x1] %vm239, %v273
      %292 = vst.msk [vmem:[#allocation2 + $0x191] sm:$0x1] %vm239, %v274
      %293 = vst.msk [vmem:[#allocation2 + $0x1a9] sm:$0x1] %vm239, %v275
      %v294 = vld [vmem:[#allocation2] sm:$0xff]
      %v295 = vld [vmem:[#allocation2 + $0x8] sm:$0xff]
      %v296 = vld [vmem:[#allocation2 + $0x18] sm:$0xff]
      %v297 = vld [vmem:[#allocation2 + $0x20] sm:$0xff]
      %v298 = vld [vmem:[#allocation2 + $0x30] sm:$0xff]
      %v299 = vld [vmem:[#allocation2 + $0x38] sm:$0xff]
      %v300 = vld [vmem:[#allocation2 + $0x48] sm:$0xff]
      %v301 = vld [vmem:[#allocation2 + $0x50] sm:$0xff]
      %v302 = vld [vmem:[#allocation2 + $0x60] sm:$0xff]
      %v303 = vld [vmem:[#allocation2 + $0x68] sm:$0xff]
      %v304 = vld [vmem:[#allocation2 + $0x78] sm:$0xff]
      %v305 = vld [vmem:[#allocation2 + $0x80] sm:$0xff]
      %v306 = vld [vmem:[#allocation2 + $0x90] sm:$0xff]
      %v307 = vld [vmem:[#allocation2 + $0x98] sm:$0xff]
      %v308 = vld [vmem:[#allocation2 + $0xa8] sm:$0xff]
      %v309 = vld [vmem:[#allocation2 + $0xb0] sm:$0xff]
      %v310 = vld [vmem:[#allocation2 + $0xc0] sm:$0xff]
      %v311 = vld [vmem:[#allocation2 + $0xc8] sm:$0xff]
      %v312 = vld [vmem:[#allocation2 + $0xd8] sm:$0xff]
      %v313 = vld [vmem:[#allocation2 + $0xe0] sm:$0xff]
      %v314 = vld [vmem:[#allocation2 + $0xf0] sm:$0xff]
      %v315 = vld [vmem:[#allocation2 + $0xf8] sm:$0xff]
      %v316 = vld [vmem:[#allocation2 + $0x108] sm:$0xff]
      %v317 = vld [vmem:[#allocation2 + $0x110] sm:$0xff]
      %v318 = vld [vmem:[#allocation2 + $0x120] sm:$0xff]
      %v319 = vld [vmem:[#allocation2 + $0x128] sm:$0xff]
      %v320 = vld [vmem:[#allocation2 + $0x138] sm:$0xff]
      %v321 = vld [vmem:[#allocation2 + $0x140] sm:$0xff]
      %v322 = vld [vmem:[#allocation2 + $0x150] sm:$0xff]
      %v323 = vld [vmem:[#allocation2 + $0x158] sm:$0xff]
      %v324 = vld [vmem:[#allocation2 + $0x168] sm:$0xff]
      %v325 = vld [vmem:[#allocation2 + $0x170] sm:$0xff]
      %v326 = vld [vmem:[#allocation2 + $0x1] sm:$0xff]
      %v327 = vld [vmem:[#allocation2 + $0x9] sm:$0xff]
      %v328 = vld [vmem:[#allocation2 + $0x19] sm:$0xff]
      %v329 = vld [vmem:[#allocation2 + $0x21] sm:$0xff]
      %v330 = vld [vmem:[#allocation2 + $0x31] sm:$0xff]
      %v331 = vld [vmem:[#allocation2 + $0x39] sm:$0xff]
      %v332 = vld [vmem:[#allocation2 + $0x49] sm:$0xff]
      %v333 = vld [vmem:[#allocation2 + $0x51] sm:$0xff]
      %v334 = vld [vmem:[#allocation2 + $0x61] sm:$0xff]
      %v335 = vld [vmem:[#allocation2 + $0x69] sm:$0xff]
      %v336 = vld [vmem:[#allocation2 + $0x79] sm:$0xff]
      %v337 = vld [vmem:[#allocation2 + $0x81] sm:$0xff]
      %v338 = vld [vmem:[#allocation2 + $0x91] sm:$0xff]
      %v339 = vld [vmem:[#allocation2 + $0x99] sm:$0xff]
      %v340 = vld [vmem:[#allocation2 + $0xa9] sm:$0xff]
      %v341 = vld [vmem:[#allocation2 + $0xb1] sm:$0xff]
      %v342 = vld [vmem:[#allocation2 + $0xc1] sm:$0xff]
      %v343 = vld [vmem:[#allocation2 + $0xc9] sm:$0xff]
      %v344 = vld [vmem:[#allocation2 + $0xd9] sm:$0xff]
      %v345 = vld [vmem:[#allocation2 + $0xe1] sm:$0xff]
      %v346 = vld [vmem:[#allocation2 + $0xf1] sm:$0xff]
      %v347 = vld [vmem:[#allocation2 + $0xf9] sm:$0xff]
      %v348 = vld [vmem:[#allocation2 + $0x109] sm:$0xff]
      %v349 = vld [vmem:[#allocation2 + $0x111] sm:$0xff]
      %v350 = vld [vmem:[#allocation2 + $0x121] sm:$0xff]
      %v351 = vld [vmem:[#allocation2 + $0x129] sm:$0xff]
      %v352 = vld [vmem:[#allocation2 + $0x139] sm:$0xff]
      %v353 = vld [vmem:[#allocation2 + $0x141] sm:$0xff]
      %v354 = vld [vmem:[#allocation2 + $0x151] sm:$0xff]
      %v355 = vld [vmem:[#allocation2 + $0x159] sm:$0xff]
      %v356 = vld [vmem:[#allocation2 + $0x169] sm:$0xff]
      %v357 = vld [vmem:[#allocation2 + $0x171] sm:$0xff]
      %v358 = vld [vmem:[#allocation2 + $0x2] sm:$0xff]
      %v359 = vld [vmem:[#allocation2 + $0xa] sm:$0xff]
      %v360 = vld [vmem:[#allocation2 + $0x1a] sm:$0xff]
      %v361 = vld [vmem:[#allocation2 + $0x22] sm:$0xff]
      %v362 = vld [vmem:[#allocation2 + $0x32] sm:$0xff]
      %v363 = vld [vmem:[#allocation2 + $0x3a] sm:$0xff]
      %v364 = vld [vmem:[#allocation2 + $0x4a] sm:$0xff]
      %v365 = vld [vmem:[#allocation2 + $0x52] sm:$0xff]
      %v366 = vld [vmem:[#allocation2 + $0x62] sm:$0xff]
      %v367 = vld [vmem:[#allocation2 + $0x6a] sm:$0xff]
      %v368 = vld [vmem:[#allocation2 + $0x7a] sm:$0xff]
      %v369 = vld [vmem:[#allocation2 + $0x82] sm:$0xff]
      %v370 = vld [vmem:[#allocation2 + $0x92] sm:$0xff]
      %v371 = vld [vmem:[#allocation2 + $0x9a] sm:$0xff]
      %v372 = vld [vmem:[#allocation2 + $0xaa] sm:$0xff]
      %v373 = vld [vmem:[#allocation2 + $0xb2] sm:$0xff]
      %v374 = vld [vmem:[#allocation2 + $0xc2] sm:$0xff]
      %v375 = vld [vmem:[#allocation2 + $0xca] sm:$0xff]
      %v376 = vld [vmem:[#allocation2 + $0xda] sm:$0xff]
      %v377 = vld [vmem:[#allocation2 + $0xe2] sm:$0xff]
      %v378 = vld [vmem:[#allocation2 + $0xf2] sm:$0xff]
      %v379 = vld [vmem:[#allocation2 + $0xfa] sm:$0xff]
      %v380 = vld [vmem:[#allocation2 + $0x10a] sm:$0xff]
      %v381 = vld [vmem:[#allocation2 + $0x112] sm:$0xff]
      %v382 = vld [vmem:[#allocation2 + $0x122] sm:$0xff]
      %v383 = vld [vmem:[#allocation2 + $0x12a] sm:$0xff]
      %v384 = vld [vmem:[#allocation2 + $0x13a] sm:$0xff]
      %v385 = vld [vmem:[#allocation2 + $0x142] sm:$0xff]
      %v386 = vld [vmem:[#allocation2 + $0x152] sm:$0xff]
      %v387 = vld [vmem:[#allocation2 + $0x15a] sm:$0xff]
      %v388 = vld [vmem:[#allocation2 + $0x16a] sm:$0xff]
      %v389 = vld [vmem:[#allocation2 + $0x172] sm:$0xff]
      %v390 = vld [vmem:[%s176] sm:$0xff]
      %v391 = vld [vmem:[%s176 + $0x8] sm:$0xff]
      %v392 = vld [vmem:[%s176 + $0x18] sm:$0xff]
      %v393 = vld [vmem:[%s176 + $0x20] sm:$0xff]
      %v394 = vld [vmem:[%s176 + $0x30] sm:$0xff]
      %v395 = vld [vmem:[%s176 + $0x38] sm:$0xff]
      %v396 = vld [vmem:[%s176 + $0x48] sm:$0xff]
      %v397 = vld [vmem:[%s176 + $0x50] sm:$0xff]
      %v398 = vld [vmem:[%s176 + $0x60] sm:$0xff]
      %v399 = vld [vmem:[%s176 + $0x68] sm:$0xff]
      %v400 = vld [vmem:[%s176 + $0x78] sm:$0xff]
      %v401 = vld [vmem:[%s176 + $0x80] sm:$0xff]
      %v402 = vld [vmem:[%s176 + $0x90] sm:$0xff]
      %v403 = vld [vmem:[%s176 + $0x98] sm:$0xff]
      %v404 = vld [vmem:[%s176 + $0xa8] sm:$0xff]
      %v405 = vld [vmem:[%s176 + $0xb0] sm:$0xff]
      %v406 = vld [vmem:[%s176 + $0xc0] sm:$0xff]
      %v407 = vld [vmem:[%s176 + $0xc8] sm:$0xff]
      %v408 = vld [vmem:[%s176 + $0xd8] sm:$0xff]
      %v409 = vld [vmem:[%s176 + $0xe0] sm:$0xff]
      %v410 = vld [vmem:[%s176 + $0xf0] sm:$0xff]
      %v411 = vld [vmem:[%s176 + $0xf8] sm:$0xff]
      %v412 = vld [vmem:[%s176 + $0x108] sm:$0xff]
      %v413 = vld [vmem:[%s176 + $0x110] sm:$0xff]
      %v414 = vld [vmem:[%s176 + $0x120] sm:$0xff]
      %v415 = vld [vmem:[%s176 + $0x128] sm:$0xff]
      %v416 = vld [vmem:[%s176 + $0x138] sm:$0xff]
      %v417 = vld [vmem:[%s176 + $0x140] sm:$0xff]
      %v418 = vld [vmem:[%s176 + $0x150] sm:$0xff]
      %v419 = vld [vmem:[%s176 + $0x158] sm:$0xff]
      %v420 = vld [vmem:[%s176 + $0x168] sm:$0xff]
      %v421 = vld [vmem:[%s176 + $0x170] sm:$0xff]
      %v422 = vld [vmem:[%s176 + $0x1] sm:$0xff]
      %v423 = vld [vmem:[%s176 + $0x9] sm:$0xff]
      %v424 = vld [vmem:[%s176 + $0x19] sm:$0xff]
      %v425 = vld [vmem:[%s176 + $0x21] sm:$0xff]
      %v426 = vld [vmem:[%s176 + $0x31] sm:$0xff]
      %v427 = vld [vmem:[%s176 + $0x39] sm:$0xff]
      %v428 = vld [vmem:[%s176 + $0x49] sm:$0xff]
      %v429 = vld [vmem:[%s176 + $0x51] sm:$0xff]
      %v430 = vld [vmem:[%s176 + $0x61] sm:$0xff]
      %v431 = vld [vmem:[%s176 + $0x69] sm:$0xff]
      %v432 = vld [vmem:[%s176 + $0x79] sm:$0xff]
      %v433 = vld [vmem:[%s176 + $0x81] sm:$0xff]
      %v434 = vld [vmem:[%s176 + $0x91] sm:$0xff]
      %v435 = vld [vmem:[%s176 + $0x99] sm:$0xff]
      %v436 = vld [vmem:[%s176 + $0xa9] sm:$0xff]
      %v437 = vld [vmem:[%s176 + $0xb1] sm:$0xff]
      %v438 = vld [vmem:[%s176 + $0xc1] sm:$0xff]
      %v439 = vld [vmem:[%s176 + $0xc9] sm:$0xff]
      %v440 = vld [vmem:[%s176 + $0xd9] sm:$0xff]
      %v441 = vld [vmem:[%s176 + $0xe1] sm:$0xff]
      %v442 = vld [vmem:[%s176 + $0xf1] sm:$0xff]
      %v443 = vld [vmem:[%s176 + $0xf9] sm:$0xff]
      %v444 = vld [vmem:[%s176 + $0x109] sm:$0xff]
      %v445 = vld [vmem:[%s176 + $0x111] sm:$0xff]
      %v446 = vld [vmem:[%s176 + $0x121] sm:$0xff]
      %v447 = vld [vmem:[%s176 + $0x129] sm:$0xff]
      %v448 = vld [vmem:[%s176 + $0x139] sm:$0xff]
      %v449 = vld [vmem:[%s176 + $0x141] sm:$0xff]
      %v450 = vld [vmem:[%s176 + $0x151] sm:$0xff]
      %v451 = vld [vmem:[%s176 + $0x159] sm:$0xff]
      %v452 = vld [vmem:[%s176 + $0x169] sm:$0xff]
      %v453 = vld [vmem:[%s176 + $0x171] sm:$0xff]
      %v454 = vld [vmem:[%s176 + $0x2] sm:$0xff]
      %v455 = vld [vmem:[%s176 + $0xa] sm:$0xff]
      %v456 = vld [vmem:[%s176 + $0x1a] sm:$0xff]
      %v457 = vld [vmem:[%s176 + $0x22] sm:$0xff]
      %v458 = vld [vmem:[%s176 + $0x32] sm:$0xff]
      %v459 = vld [vmem:[%s176 + $0x3a] sm:$0xff]
      %v460 = vld [vmem:[%s176 + $0x4a] sm:$0xff]
      %v461 = vld [vmem:[%s176 + $0x52] sm:$0xff]
      %v462 = vld [vmem:[%s176 + $0x62] sm:$0xff]
      %v463 = vld [vmem:[%s176 + $0x6a] sm:$0xff]
      %v464 = vld [vmem:[%s176 + $0x7a] sm:$0xff]
      %v465 = vld [vmem:[%s176 + $0x82] sm:$0xff]
      %v466 = vld [vmem:[%s176 + $0x92] sm:$0xff]
      %v467 = vld [vmem:[%s176 + $0x9a] sm:$0xff]
      %v468 = vld [vmem:[%s176 + $0xaa] sm:$0xff]
      %v469 = vld [vmem:[%s176 + $0xb2] sm:$0xff]
      %v470 = vld [vmem:[%s176 + $0xc2] sm:$0xff]
      %v471 = vld [vmem:[%s176 + $0xca] sm:$0xff]
      %v472 = vld [vmem:[%s176 + $0xda] sm:$0xff]
      %v473 = vld [vmem:[%s176 + $0xe2] sm:$0xff]
      %v474 = vld [vmem:[%s176 + $0xf2] sm:$0xff]
      %v475 = vld [vmem:[%s176 + $0xfa] sm:$0xff]
      %v476 = vld [vmem:[%s176 + $0x10a] sm:$0xff]
      %v477 = vld [vmem:[%s176 + $0x112] sm:$0xff]
      %v478 = vld [vmem:[%s176 + $0x122] sm:$0xff]
      %v479 = vld [vmem:[%s176 + $0x12a] sm:$0xff]
      %v480 = vld [vmem:[%s176 + $0x13a] sm:$0xff]
      %v481 = vld [vmem:[%s176 + $0x142] sm:$0xff]
      %v482 = vld [vmem:[%s176 + $0x152] sm:$0xff]
      %v483 = vld [vmem:[%s176 + $0x15a] sm:$0xff]
      %v484 = vld [vmem:[%s176 + $0x16a] sm:$0xff]
      %v485 = vld [vmem:[%s176 + $0x172] sm:$0xff]
      %v486 = vld [vmem:[%s210] sm:$0xff]
      %v487 = vld [vmem:[%s210 + $0x8] sm:$0xff]
      %v488 = vld [vmem:[%s210 + $0x18] sm:$0xff]
      %v489 = vld [vmem:[%s210 + $0x20] sm:$0xff]
      %v490 = vld [vmem:[%s210 + $0x30] sm:$0xff]
      %v491 = vld [vmem:[%s210 + $0x38] sm:$0xff]
      %v492 = vld [vmem:[%s210 + $0x48] sm:$0xff]
      %v493 = vld [vmem:[%s210 + $0x50] sm:$0xff]
      %v494 = vld [vmem:[%s210 + $0x60] sm:$0xff]
      %v495 = vld [vmem:[%s210 + $0x68] sm:$0xff]
      %v496 = vld [vmem:[%s210 + $0x78] sm:$0xff]
      %v497 = vld [vmem:[%s210 + $0x80] sm:$0xff]
      %v498 = vld [vmem:[%s210 + $0x90] sm:$0xff]
      %v499 = vld [vmem:[%s210 + $0x98] sm:$0xff]
      %v500 = vld [vmem:[%s210 + $0xa8] sm:$0xff]
      %v501 = vld [vmem:[%s210 + $0xb0] sm:$0xff]
      %v502 = vld [vmem:[%s210 + $0xc0] sm:$0xff]
      %v503 = vld [vmem:[%s210 + $0xc8] sm:$0xff]
      %v504 = vld [vmem:[%s210 + $0xd8] sm:$0xff]
      %v505 = vld [vmem:[%s210 + $0xe0] sm:$0xff]
      %v506 = vld [vmem:[%s210 + $0xf0] sm:$0xff]
      %v507 = vld [vmem:[%s210 + $0xf8] sm:$0xff]
      %v508 = vld [vmem:[%s210 + $0x108] sm:$0xff]
      %v509 = vld [vmem:[%s210 + $0x110] sm:$0xff]
      %v510 = vld [vmem:[%s210 + $0x120] sm:$0xff]
      %v511 = vld [vmem:[%s210 + $0x128] sm:$0xff]
      %v512 = vld [vmem:[%s210 + $0x138] sm:$0xff]
      %v513 = vld [vmem:[%s210 + $0x140] sm:$0xff]
      %v514 = vld [vmem:[%s210 + $0x150] sm:$0xff]
      %v515 = vld [vmem:[%s210 + $0x158] sm:$0xff]
      %v516 = vld [vmem:[%s210 + $0x168] sm:$0xff]
      %v517 = vld [vmem:[%s210 + $0x170] sm:$0xff]
      %v518 = vld [vmem:[%s210 + $0x1] sm:$0xff]
      %v519 = vld [vmem:[%s210 + $0x9] sm:$0xff]
      %v520 = vld [vmem:[%s210 + $0x19] sm:$0xff]
      %v521 = vld [vmem:[%s210 + $0x21] sm:$0xff]
      %v522 = vld [vmem:[%s210 + $0x31] sm:$0xff]
      %v523 = vld [vmem:[%s210 + $0x39] sm:$0xff]
      %v524 = vld [vmem:[%s210 + $0x49] sm:$0xff]
      %v525 = vld [vmem:[%s210 + $0x51] sm:$0xff]
      %v526 = vld [vmem:[%s210 + $0x61] sm:$0xff]
      %v527 = vld [vmem:[%s210 + $0x69] sm:$0xff]
      %v528 = vld [vmem:[%s210 + $0x79] sm:$0xff]
      %v529 = vld [vmem:[%s210 + $0x81] sm:$0xff]
      %v530 = vld [vmem:[%s210 + $0x91] sm:$0xff]
      %v531 = vld [vmem:[%s210 + $0x99] sm:$0xff]
      %v532 = vld [vmem:[%s210 + $0xa9] sm:$0xff]
      %v533 = vld [vmem:[%s210 + $0xb1] sm:$0xff]
      %v534 = vld [vmem:[%s210 + $0xc1] sm:$0xff]
      %v535 = vld [vmem:[%s210 + $0xc9] sm:$0xff]
      %v536 = vld [vmem:[%s210 + $0xd9] sm:$0xff]
      %v537 = vld [vmem:[%s210 + $0xe1] sm:$0xff]
      %v538 = vld [vmem:[%s210 + $0xf1] sm:$0xff]
      %v539 = vld [vmem:[%s210 + $0xf9] sm:$0xff]
      %v540 = vld [vmem:[%s210 + $0x109] sm:$0xff]
      %v541 = vld [vmem:[%s210 + $0x111] sm:$0xff]
      %v542 = vld [vmem:[%s210 + $0x121] sm:$0xff]
      %v543 = vld [vmem:[%s210 + $0x129] sm:$0xff]
      %v544 = vld [vmem:[%s210 + $0x139] sm:$0xff]
      %v545 = vld [vmem:[%s210 + $0x141] sm:$0xff]
      %v546 = vld [vmem:[%s210 + $0x151] sm:$0xff]
      %v547 = vld [vmem:[%s210 + $0x159] sm:$0xff]
      %v548 = vld [vmem:[%s210 + $0x169] sm:$0xff]
      %v549 = vld [vmem:[%s210 + $0x171] sm:$0xff]
      %v550 = vld [vmem:[%s210 + $0x2] sm:$0xff]
      %v551 = vld [vmem:[%s210 + $0xa] sm:$0xff]
      %v552 = vld [vmem:[%s210 + $0x1a] sm:$0xff]
      %v553 = vld [vmem:[%s210 + $0x22] sm:$0xff]
      %v554 = vld [vmem:[%s210 + $0x32] sm:$0xff]
      %v555 = vld [vmem:[%s210 + $0x3a] sm:$0xff]
      %v556 = vld [vmem:[%s210 + $0x4a] sm:$0xff]
      %v557 = vld [vmem:[%s210 + $0x52] sm:$0xff]
      %v558 = vld [vmem:[%s210 + $0x62] sm:$0xff]
      %v559 = vld [vmem:[%s210 + $0x6a] sm:$0xff]
      %v560 = vld [vmem:[%s210 + $0x7a] sm:$0xff]
      %v561 = vld [vmem:[%s210 + $0x82] sm:$0xff]
      %v562 = vld [vmem:[%s210 + $0x92] sm:$0xff]
      %v563 = vld [vmem:[%s210 + $0x9a] sm:$0xff]
      %v564 = vld [vmem:[%s210 + $0xaa] sm:$0xff]
      %v565 = vld [vmem:[%s210 + $0xb2] sm:$0xff]
      %v566 = vld [vmem:[%s210 + $0xc2] sm:$0xff]
      %v567 = vld [vmem:[%s210 + $0xca] sm:$0xff]
      %v568 = vld [vmem:[%s210 + $0xda] sm:$0xff]
      %v569 = vld [vmem:[%s210 + $0xe2] sm:$0xff]
      %v570 = vld [vmem:[%s210 + $0xf2] sm:$0xff]
      %v571 = vld [vmem:[%s210 + $0xfa] sm:$0xff]
      %v572 = vld [vmem:[%s210 + $0x10a] sm:$0xff]
      %v573 = vld [vmem:[%s210 + $0x112] sm:$0xff]
      %v574 = vld [vmem:[%s210 + $0x122] sm:$0xff]
      %v575 = vld [vmem:[%s210 + $0x12a] sm:$0xff]
      %v576 = vld [vmem:[%s210 + $0x13a] sm:$0xff]
      %v577 = vld [vmem:[%s210 + $0x142] sm:$0xff]
      %v578 = vld [vmem:[%s210 + $0x152] sm:$0xff]
      %v579 = vld [vmem:[%s210 + $0x15a] sm:$0xff]
      %v580 = vld [vmem:[%s210 + $0x16a] sm:$0xff]
      %v581 = vld [vmem:[%s210 + $0x172] sm:$0xff]
      %614 = vrot.lane.b32.xlu0 %v326, 4
      %v615 = vpop.permute.xlu0 %614
      %616 = vrot.lane.b32.xlu0 %v327, 4
      %v617 = vpop.permute.xlu0 %616
      %618 = vrot.lane.b32.xlu0 %v328, 4
      %v619 = vpop.permute.xlu0 %618
      %620 = vrot.lane.b32.xlu0 %v329, 4
      %v621 = vpop.permute.xlu0 %620
      %622 = vrot.lane.b32.xlu0 %v330, 4
      %v623 = vpop.permute.xlu0 %622
      %624 = vrot.lane.b32.xlu0 %v331, 4
      %v625 = vpop.permute.xlu0 %624
      %626 = vrot.lane.b32.xlu0 %v332, 4
      %v627 = vpop.permute.xlu0 %626
      %628 = vrot.lane.b32.xlu0 %v333, 4
      %v629 = vpop.permute.xlu0 %628
      %630 = vrot.lane.b32.xlu0 %v334, 4
      %v631 = vpop.permute.xlu0 %630
      %632 = vrot.lane.b32.xlu0 %v335, 4
      %v633 = vpop.permute.xlu0 %632
      %634 = vrot.lane.b32.xlu0 %v336, 4
      %v635 = vpop.permute.xlu0 %634
      %636 = vrot.lane.b32.xlu0 %v337, 4
      %v637 = vpop.permute.xlu0 %636
      %638 = vrot.lane.b32.xlu0 %v338, 4
      %v639 = vpop.permute.xlu0 %638
      %640 = vrot.lane.b32.xlu0 %v339, 4
      %v641 = vpop.permute.xlu0 %640
      %642 = vrot.lane.b32.xlu0 %v340, 4
      %v643 = vpop.permute.xlu0 %642
      %644 = vrot.lane.b32.xlu0 %v341, 4
      %v645 = vpop.permute.xlu0 %644
      %646 = vrot.lane.b32.xlu0 %v342, 4
      %v647 = vpop.permute.xlu0 %646
      %648 = vrot.lane.b32.xlu0 %v343, 4
      %v649 = vpop.permute.xlu0 %648
      %650 = vrot.lane.b32.xlu0 %v344, 4
      %v651 = vpop.permute.xlu0 %650
      %652 = vrot.lane.b32.xlu0 %v345, 4
      %v653 = vpop.permute.xlu0 %652
      %654 = vrot.lane.b32.xlu0 %v346, 4
      %v655 = vpop.permute.xlu0 %654
      %656 = vrot.lane.b32.xlu0 %v347, 4
      %v657 = vpop.permute.xlu0 %656
      %658 = vrot.lane.b32.xlu0 %v348, 4
      %v659 = vpop.permute.xlu0 %658
      %660 = vrot.lane.b32.xlu0 %v349, 4
      %v661 = vpop.permute.xlu0 %660
      %662 = vrot.lane.b32.xlu0 %v350, 4
      %v663 = vpop.permute.xlu0 %662
      %664 = vrot.lane.b32.xlu0 %v351, 4
      %v665 = vpop.permute.xlu0 %664
      %666 = vrot.lane.b32.xlu0 %v352, 4
      %v667 = vpop.permute.xlu0 %666
      %668 = vrot.lane.b32.xlu0 %v353, 4
      %v669 = vpop.permute.xlu0 %668
      %670 = vrot.lane.b32.xlu0 %v354, 4
      %v671 = vpop.permute.xlu0 %670
      %672 = vrot.lane.b32.xlu0 %v355, 4
      %v673 = vpop.permute.xlu0 %672
      %674 = vrot.lane.b32.xlu0 %v356, 4
      %v675 = vpop.permute.xlu0 %674
      %676 = vrot.lane.b32.xlu0 %v357, 4
      %v677 = vpop.permute.xlu0 %676
      %742 = vrot.lane.b32.xlu0 %v358, 8
      %v743 = vpop.permute.xlu0 %742
      %744 = vrot.lane.b32.xlu0 %v359, 8
      %v745 = vpop.permute.xlu0 %744
      %746 = vrot.lane.b32.xlu0 %v360, 8
      %v747 = vpop.permute.xlu0 %746
      %748 = vrot.lane.b32.xlu0 %v361, 8
      %v749 = vpop.permute.xlu0 %748
      %750 = vrot.lane.b32.xlu0 %v362, 8
      %v751 = vpop.permute.xlu0 %750
      %752 = vrot.lane.b32.xlu0 %v363, 8
      %v753 = vpop.permute.xlu0 %752
      %754 = vrot.lane.b32.xlu0 %v364, 8
      %v755 = vpop.permute.xlu0 %754
      %756 = vrot.lane.b32.xlu0 %v365, 8
      %v757 = vpop.permute.xlu0 %756
      %758 = vrot.lane.b32.xlu0 %v366, 8
      %v759 = vpop.permute.xlu0 %758
      %760 = vrot.lane.b32.xlu0 %v367, 8
      %v761 = vpop.permute.xlu0 %760
      %762 = vrot.lane.b32.xlu0 %v368, 8
      %v763 = vpop.permute.xlu0 %762
      %764 = vrot.lane.b32.xlu0 %v369, 8
      %v765 = vpop.permute.xlu0 %764
      %766 = vrot.lane.b32.xlu0 %v370, 8
      %v767 = vpop.permute.xlu0 %766
      %768 = vrot.lane.b32.xlu0 %v371, 8
      %v769 = vpop.permute.xlu0 %768
      %770 = vrot.lane.b32.xlu0 %v372, 8
      %v771 = vpop.permute.xlu0 %770
      %772 = vrot.lane.b32.xlu0 %v373, 8
      %v773 = vpop.permute.xlu0 %772
      %774 = vrot.lane.b32.xlu0 %v374, 8
      %v775 = vpop.permute.xlu0 %774
      %776 = vrot.lane.b32.xlu0 %v375, 8
      %v777 = vpop.permute.xlu0 %776
      %778 = vrot.lane.b32.xlu0 %v376, 8
      %v779 = vpop.permute.xlu0 %778
      %780 = vrot.lane.b32.xlu0 %v377, 8
      %v781 = vpop.permute.xlu0 %780
      %782 = vrot.lane.b32.xlu0 %v378, 8
      %v783 = vpop.permute.xlu0 %782
      %784 = vrot.lane.b32.xlu0 %v379, 8
      %v785 = vpop.permute.xlu0 %784
      %786 = vrot.lane.b32.xlu0 %v380, 8
      %v787 = vpop.permute.xlu0 %786
      %788 = vrot.lane.b32.xlu0 %v381, 8
      %v789 = vpop.permute.xlu0 %788
      %790 = vrot.lane.b32.xlu0 %v382, 8
      %v791 = vpop.permute.xlu0 %790
      %792 = vrot.lane.b32.xlu0 %v383, 8
      %v793 = vpop.permute.xlu0 %792
      %794 = vrot.lane.b32.xlu0 %v384, 8
      %v795 = vpop.permute.xlu0 %794
      %796 = vrot.lane.b32.xlu0 %v385, 8
      %v797 = vpop.permute.xlu0 %796
      %798 = vrot.lane.b32.xlu0 %v386, 8
      %v799 = vpop.permute.xlu0 %798
      %800 = vrot.lane.b32.xlu0 %v387, 8
      %v801 = vpop.permute.xlu0 %800
      %802 = vrot.lane.b32.xlu0 %v388, 8
      %v803 = vpop.permute.xlu0 %802
      %804 = vrot.lane.b32.xlu0 %v389, 8
      %v805 = vpop.permute.xlu0 %804
      %870 = vrot.lane.b32.xlu0 %v390, 12
      %v871 = vpop.permute.xlu0 %870
      %872 = vrot.lane.b32.xlu0 %v391, 12
      %v873 = vpop.permute.xlu0 %872
      %874 = vrot.lane.b32.xlu0 %v392, 12
      %v875 = vpop.permute.xlu0 %874
      %876 = vrot.lane.b32.xlu0 %v393, 12
      %v877 = vpop.permute.xlu0 %876
      %878 = vrot.lane.b32.xlu0 %v394, 12
      %v879 = vpop.permute.xlu0 %878
      %880 = vrot.lane.b32.xlu0 %v395, 12
      %v881 = vpop.permute.xlu0 %880
      %882 = vrot.lane.b32.xlu0 %v396, 12
      %v883 = vpop.permute.xlu0 %882
      %884 = vrot.lane.b32.xlu0 %v397, 12
      %v885 = vpop.permute.xlu0 %884
      %886 = vrot.lane.b32.xlu0 %v398, 12
      %v887 = vpop.permute.xlu0 %886
      %888 = vrot.lane.b32.xlu0 %v399, 12
      %v889 = vpop.permute.xlu0 %888
      %890 = vrot.lane.b32.xlu0 %v400, 12
      %v891 = vpop.permute.xlu0 %890
      %892 = vrot.lane.b32.xlu0 %v401, 12
      %v893 = vpop.permute.xlu0 %892
      %894 = vrot.lane.b32.xlu0 %v402, 12
      %v895 = vpop.permute.xlu0 %894
      %896 = vrot.lane.b32.xlu0 %v403, 12
      %v897 = vpop.permute.xlu0 %896
      %898 = vrot.lane.b32.xlu0 %v404, 12
      %v899 = vpop.permute.xlu0 %898
      %900 = vrot.lane.b32.xlu0 %v405, 12
      %v901 = vpop.permute.xlu0 %900
      %902 = vrot.lane.b32.xlu0 %v406, 12
      %v903 = vpop.permute.xlu0 %902
      %904 = vrot.lane.b32.xlu0 %v407, 12
      %v905 = vpop.permute.xlu0 %904
      %906 = vrot.lane.b32.xlu0 %v408, 12
      %v907 = vpop.permute.xlu0 %906
      %908 = vrot.lane.b32.xlu0 %v409, 12
      %v909 = vpop.permute.xlu0 %908
      %910 = vrot.lane.b32.xlu0 %v410, 12
      %v911 = vpop.permute.xlu0 %910
      %912 = vrot.lane.b32.xlu0 %v411, 12
      %v913 = vpop.permute.xlu0 %912
      %914 = vrot.lane.b32.xlu0 %v412, 12
      %v915 = vpop.permute.xlu0 %914
      %916 = vrot.lane.b32.xlu0 %v413, 12
      %v917 = vpop.permute.xlu0 %916
      %918 = vrot.lane.b32.xlu0 %v414, 12
      %v919 = vpop.permute.xlu0 %918
      %920 = vrot.lane.b32.xlu0 %v415, 12
      %v921 = vpop.permute.xlu0 %920
      %922 = vrot.lane.b32.xlu0 %v416, 12
      %v923 = vpop.permute.xlu0 %922
      %924 = vrot.lane.b32.xlu0 %v417, 12
      %v925 = vpop.permute.xlu0 %924
      %926 = vrot.lane.b32.xlu0 %v418, 12
      %v927 = vpop.permute.xlu0 %926
      %928 = vrot.lane.b32.xlu0 %v419, 12
      %v929 = vpop.permute.xlu0 %928
      %930 = vrot.lane.b32.xlu0 %v420, 12
      %v931 = vpop.permute.xlu0 %930
      %932 = vrot.lane.b32.xlu0 %v421, 12
      %v933 = vpop.permute.xlu0 %932
      %998 = vrot.lane.b32.xlu0 %v422, 16
      %v999 = vpop.permute.xlu0 %998
      %1000 = vrot.lane.b32.xlu0 %v423, 16
      %v1001 = vpop.permute.xlu0 %1000
      %1002 = vrot.lane.b32.xlu0 %v424, 16
      %v1003 = vpop.permute.xlu0 %1002
      %1004 = vrot.lane.b32.xlu0 %v425, 16
      %v1005 = vpop.permute.xlu0 %1004
      %1006 = vrot.lane.b32.xlu0 %v426, 16
      %v1007 = vpop.permute.xlu0 %1006
      %1008 = vrot.lane.b32.xlu0 %v427, 16
      %v1009 = vpop.permute.xlu0 %1008
      %1010 = vrot.lane.b32.xlu0 %v428, 16
      %v1011 = vpop.permute.xlu0 %1010
      %1012 = vrot.lane.b32.xlu0 %v429, 16
      %v1013 = vpop.permute.xlu0 %1012
      %1014 = vrot.lane.b32.xlu0 %v430, 16
      %v1015 = vpop.permute.xlu0 %1014
      %1016 = vrot.lane.b32.xlu0 %v431, 16
      %v1017 = vpop.permute.xlu0 %1016
      %1018 = vrot.lane.b32.xlu0 %v432, 16
      %v1019 = vpop.permute.xlu0 %1018
      %1020 = vrot.lane.b32.xlu0 %v433, 16
      %v1021 = vpop.permute.xlu0 %1020
      %1022 = vrot.lane.b32.xlu0 %v434, 16
      %v1023 = vpop.permute.xlu0 %1022
      %1024 = vrot.lane.b32.xlu0 %v435, 16
      %v1025 = vpop.permute.xlu0 %1024
      %1026 = vrot.lane.b32.xlu0 %v436, 16
      %v1027 = vpop.permute.xlu0 %1026
      %1028 = vrot.lane.b32.xlu0 %v437, 16
      %v1029 = vpop.permute.xlu0 %1028
      %1030 = vrot.lane.b32.xlu0 %v438, 16
      %v1031 = vpop.permute.xlu0 %1030
      %1032 = vrot.lane.b32.xlu0 %v439, 16
      %v1033 = vpop.permute.xlu0 %1032
      %1034 = vrot.lane.b32.xlu0 %v440, 16
      %v1035 = vpop.permute.xlu0 %1034
      %1036 = vrot.lane.b32.xlu0 %v441, 16
      %v1037 = vpop.permute.xlu0 %1036
      %1038 = vrot.lane.b32.xlu0 %v442, 16
      %v1039 = vpop.permute.xlu0 %1038
      %1040 = vrot.lane.b32.xlu0 %v443, 16
      %v1041 = vpop.permute.xlu0 %1040
      %1042 = vrot.lane.b32.xlu0 %v444, 16
      %v1043 = vpop.permute.xlu0 %1042
      %1044 = vrot.lane.b32.xlu0 %v445, 16
      %v1045 = vpop.permute.xlu0 %1044
      %1046 = vrot.lane.b32.xlu0 %v446, 16
      %v1047 = vpop.permute.xlu0 %1046
      %1048 = vrot.lane.b32.xlu0 %v447, 16
      %v1049 = vpop.permute.xlu0 %1048
      %1050 = vrot.lane.b32.xlu0 %v448, 16
      %v1051 = vpop.permute.xlu0 %1050
      %1052 = vrot.lane.b32.xlu0 %v449, 16
      %v1053 = vpop.permute.xlu0 %1052
      %1054 = vrot.lane.b32.xlu0 %v450, 16
      %v1055 = vpop.permute.xlu0 %1054
      %1056 = vrot.lane.b32.xlu0 %v451, 16
      %v1057 = vpop.permute.xlu0 %1056
      %1058 = vrot.lane.b32.xlu0 %v452, 16
      %v1059 = vpop.permute.xlu0 %1058
      %1060 = vrot.lane.b32.xlu0 %v453, 16
      %v1061 = vpop.permute.xlu0 %1060
      %1126 = vrot.lane.b32.xlu0 %v454, 20
      %v1127 = vpop.permute.xlu0 %1126
      %1128 = vrot.lane.b32.xlu0 %v455, 20
      %v1129 = vpop.permute.xlu0 %1128
      %1130 = vrot.lane.b32.xlu0 %v456, 20
      %v1131 = vpop.permute.xlu0 %1130
      %1132 = vrot.lane.b32.xlu0 %v457, 20
      %v1133 = vpop.permute.xlu0 %1132
      %1134 = vrot.lane.b32.xlu0 %v458, 20
      %v1135 = vpop.permute.xlu0 %1134
      %1136 = vrot.lane.b32.xlu0 %v459, 20
      %v1137 = vpop.permute.xlu0 %1136
      %1138 = vrot.lane.b32.xlu0 %v460, 20
      %v1139 = vpop.permute.xlu0 %1138
      %1140 = vrot.lane.b32.xlu0 %v461, 20
      %v1141 = vpop.permute.xlu0 %1140
      %1142 = vrot.lane.b32.xlu0 %v462, 20
      %v1143 = vpop.permute.xlu0 %1142
      %1144 = vrot.lane.b32.xlu0 %v463, 20
      %v1145 = vpop.permute.xlu0 %1144
      %1146 = vrot.lane.b32.xlu0 %v464, 20
      %v1147 = vpop.permute.xlu0 %1146
      %1148 = vrot.lane.b32.xlu0 %v465, 20
      %v1149 = vpop.permute.xlu0 %1148
      %1150 = vrot.lane.b32.xlu0 %v466, 20
      %v1151 = vpop.permute.xlu0 %1150
      %1152 = vrot.lane.b32.xlu0 %v467, 20
      %v1153 = vpop.permute.xlu0 %1152
      %1154 = vrot.lane.b32.xlu0 %v468, 20
      %v1155 = vpop.permute.xlu0 %1154
      %1156 = vrot.lane.b32.xlu0 %v469, 20
      %v1157 = vpop.permute.xlu0 %1156
      %1158 = vrot.lane.b32.xlu0 %v470, 20
      %v1159 = vpop.permute.xlu0 %1158
      %1160 = vrot.lane.b32.xlu0 %v471, 20
      %v1161 = vpop.permute.xlu0 %1160
      %1162 = vrot.lane.b32.xlu0 %v472, 20
      %v1163 = vpop.permute.xlu0 %1162
      %1164 = vrot.lane.b32.xlu0 %v473, 20
      %v1165 = vpop.permute.xlu0 %1164
      %1166 = vrot.lane.b32.xlu0 %v474, 20
      %v1167 = vpop.permute.xlu0 %1166
      %1168 = vrot.lane.b32.xlu0 %v475, 20
      %v1169 = vpop.permute.xlu0 %1168
      %1170 = vrot.lane.b32.xlu0 %v476, 20
      %v1171 = vpop.permute.xlu0 %1170
      %1172 = vrot.lane.b32.xlu0 %v477, 20
      %v1173 = vpop.permute.xlu0 %1172
      %1174 = vrot.lane.b32.xlu0 %v478, 20
      %v1175 = vpop.permute.xlu0 %1174
      %1176 = vrot.lane.b32.xlu0 %v479, 20
      %v1177 = vpop.permute.xlu0 %1176
      %1178 = vrot.lane.b32.xlu0 %v480, 20
      %v1179 = vpop.permute.xlu0 %1178
      %1180 = vrot.lane.b32.xlu0 %v481, 20
      %v1181 = vpop.permute.xlu0 %1180
      %1182 = vrot.lane.b32.xlu0 %v482, 20
      %v1183 = vpop.permute.xlu0 %1182
      %1184 = vrot.lane.b32.xlu0 %v483, 20
      %v1185 = vpop.permute.xlu0 %1184
      %1186 = vrot.lane.b32.xlu0 %v484, 20
      %v1187 = vpop.permute.xlu0 %1186
      %1188 = vrot.lane.b32.xlu0 %v485, 20
      %v1189 = vpop.permute.xlu0 %1188
      %1254 = vrot.lane.b32.xlu0 %v486, 24
      %v1255 = vpop.permute.xlu0 %1254
      %1256 = vrot.lane.b32.xlu0 %v487, 24
      %v1257 = vpop.permute.xlu0 %1256
      %1258 = vrot.lane.b32.xlu0 %v488, 24
      %v1259 = vpop.permute.xlu0 %1258
      %1260 = vrot.lane.b32.xlu0 %v489, 24
      %v1261 = vpop.permute.xlu0 %1260
      %1262 = vrot.lane.b32.xlu0 %v490, 24
      %v1263 = vpop.permute.xlu0 %1262
      %1264 = vrot.lane.b32.xlu0 %v491, 24
      %v1265 = vpop.permute.xlu0 %1264
      %1266 = vrot.lane.b32.xlu0 %v492, 24
      %v1267 = vpop.permute.xlu0 %1266
      %1268 = vrot.lane.b32.xlu0 %v493, 24
      %v1269 = vpop.permute.xlu0 %1268
      %1270 = vrot.lane.b32.xlu0 %v494, 24
      %v1271 = vpop.permute.xlu0 %1270
      %1272 = vrot.lane.b32.xlu0 %v495, 24
      %v1273 = vpop.permute.xlu0 %1272
      %1274 = vrot.lane.b32.xlu0 %v496, 24
      %v1275 = vpop.permute.xlu0 %1274
      %1276 = vrot.lane.b32.xlu0 %v497, 24
      %v1277 = vpop.permute.xlu0 %1276
      %1278 = vrot.lane.b32.xlu0 %v498, 24
      %v1279 = vpop.permute.xlu0 %1278
      %1280 = vrot.lane.b32.xlu0 %v499, 24
      %v1281 = vpop.permute.xlu0 %1280
      %1282 = vrot.lane.b32.xlu0 %v500, 24
      %v1283 = vpop.permute.xlu0 %1282
      %1284 = vrot.lane.b32.xlu0 %v501, 24
      %v1285 = vpop.permute.xlu0 %1284
      %1286 = vrot.lane.b32.xlu0 %v502, 24
      %v1287 = vpop.permute.xlu0 %1286
      %1288 = vrot.lane.b32.xlu0 %v503, 24
      %v1289 = vpop.permute.xlu0 %1288
      %1290 = vrot.lane.b32.xlu0 %v504, 24
      %v1291 = vpop.permute.xlu0 %1290
      %1292 = vrot.lane.b32.xlu0 %v505, 24
      %v1293 = vpop.permute.xlu0 %1292
      %1294 = vrot.lane.b32.xlu0 %v506, 24
      %v1295 = vpop.permute.xlu0 %1294
      %1296 = vrot.lane.b32.xlu0 %v507, 24
      %v1297 = vpop.permute.xlu0 %1296
      %1298 = vrot.lane.b32.xlu0 %v508, 24
      %v1299 = vpop.permute.xlu0 %1298
      %1300 = vrot.lane.b32.xlu0 %v509, 24
      %v1301 = vpop.permute.xlu0 %1300
      %1302 = vrot.lane.b32.xlu0 %v510, 24
      %v1303 = vpop.permute.xlu0 %1302
      %1304 = vrot.lane.b32.xlu0 %v511, 24
      %v1305 = vpop.permute.xlu0 %1304
      %1306 = vrot.lane.b32.xlu0 %v512, 24
      %v1307 = vpop.permute.xlu0 %1306
      %1308 = vrot.lane.b32.xlu0 %v513, 24
      %v1309 = vpop.permute.xlu0 %1308
      %1310 = vrot.lane.b32.xlu0 %v514, 24
      %v1311 = vpop.permute.xlu0 %1310
      %1312 = vrot.lane.b32.xlu0 %v515, 24
      %v1313 = vpop.permute.xlu0 %1312
      %1314 = vrot.lane.b32.xlu0 %v516, 24
      %v1315 = vpop.permute.xlu0 %1314
      %1316 = vrot.lane.b32.xlu0 %v517, 24
      %v1317 = vpop.permute.xlu0 %1316
      %1382 = vrot.lane.b32.xlu0 %v518, 28
      %v1383 = vpop.permute.xlu0 %1382
      %1384 = vrot.lane.b32.xlu0 %v519, 28
      %v1385 = vpop.permute.xlu0 %1384
      %1386 = vrot.lane.b32.xlu0 %v520, 28
      %v1387 = vpop.permute.xlu0 %1386
      %1388 = vrot.lane.b32.xlu0 %v521, 28
      %v1389 = vpop.permute.xlu0 %1388
      %1390 = vrot.lane.b32.xlu0 %v522, 28
      %v1391 = vpop.permute.xlu0 %1390
      %1392 = vrot.lane.b32.xlu0 %v523, 28
      %v1393 = vpop.permute.xlu0 %1392
      %1394 = vrot.lane.b32.xlu0 %v524, 28
      %v1395 = vpop.permute.xlu0 %1394
      %1396 = vrot.lane.b32.xlu0 %v525, 28
      %v1397 = vpop.permute.xlu0 %1396
      %1398 = vrot.lane.b32.xlu0 %v526, 28
      %v1399 = vpop.permute.xlu0 %1398
      %1400 = vrot.lane.b32.xlu0 %v527, 28
      %v1401 = vpop.permute.xlu0 %1400
      %1402 = vrot.lane.b32.xlu0 %v528, 28
      %v1403 = vpop.permute.xlu0 %1402
      %1404 = vrot.lane.b32.xlu0 %v529, 28
      %v1405 = vpop.permute.xlu0 %1404
      %1406 = vrot.lane.b32.xlu0 %v530, 28
      %v1407 = vpop.permute.xlu0 %1406
      %1408 = vrot.lane.b32.xlu0 %v531, 28
      %v1409 = vpop.permute.xlu0 %1408
      %1410 = vrot.lane.b32.xlu0 %v532, 28
      %v1411 = vpop.permute.xlu0 %1410
      %1412 = vrot.lane.b32.xlu0 %v533, 28
      %v1413 = vpop.permute.xlu0 %1412
      %1414 = vrot.lane.b32.xlu0 %v534, 28
      %v1415 = vpop.permute.xlu0 %1414
      %1416 = vrot.lane.b32.xlu0 %v535, 28
      %v1417 = vpop.permute.xlu0 %1416
      %1418 = vrot.lane.b32.xlu0 %v536, 28
      %v1419 = vpop.permute.xlu0 %1418
      %1420 = vrot.lane.b32.xlu0 %v537, 28
      %v1421 = vpop.permute.xlu0 %1420
      %1422 = vrot.lane.b32.xlu0 %v538, 28
      %v1423 = vpop.permute.xlu0 %1422
      %1424 = vrot.lane.b32.xlu0 %v539, 28
      %v1425 = vpop.permute.xlu0 %1424
      %1426 = vrot.lane.b32.xlu0 %v540, 28
      %v1427 = vpop.permute.xlu0 %1426
      %1428 = vrot.lane.b32.xlu0 %v541, 28
      %v1429 = vpop.permute.xlu0 %1428
      %1430 = vrot.lane.b32.xlu0 %v542, 28
      %v1431 = vpop.permute.xlu0 %1430
      %1432 = vrot.lane.b32.xlu0 %v543, 28
      %v1433 = vpop.permute.xlu0 %1432
      %1434 = vrot.lane.b32.xlu0 %v544, 28
      %v1435 = vpop.permute.xlu0 %1434
      %1436 = vrot.lane.b32.xlu0 %v545, 28
      %v1437 = vpop.permute.xlu0 %1436
      %1438 = vrot.lane.b32.xlu0 %v546, 28
      %v1439 = vpop.permute.xlu0 %1438
      %1440 = vrot.lane.b32.xlu0 %v547, 28
      %v1441 = vpop.permute.xlu0 %1440
      %1442 = vrot.lane.b32.xlu0 %v548, 28
      %v1443 = vpop.permute.xlu0 %1442
      %1444 = vrot.lane.b32.xlu0 %v549, 28
      %v1445 = vpop.permute.xlu0 %1444
      %1510 = vrot.lane.b32.xlu0 %v550, 32
      %v1511 = vpop.permute.xlu0 %1510
      %1512 = vrot.lane.b32.xlu0 %v551, 32
      %v1513 = vpop.permute.xlu0 %1512
      %1514 = vrot.lane.b32.xlu0 %v552, 32
      %v1515 = vpop.permute.xlu0 %1514
      %1516 = vrot.lane.b32.xlu0 %v553, 32
      %v1517 = vpop.permute.xlu0 %1516
      %1518 = vrot.lane.b32.xlu0 %v554, 32
      %v1519 = vpop.permute.xlu0 %1518
      %1520 = vrot.lane.b32.xlu0 %v555, 32
      %v1521 = vpop.permute.xlu0 %1520
      %1522 = vrot.lane.b32.xlu0 %v556, 32
      %v1523 = vpop.permute.xlu0 %1522
      %1524 = vrot.lane.b32.xlu0 %v557, 32
      %v1525 = vpop.permute.xlu0 %1524
      %1526 = vrot.lane.b32.xlu0 %v558, 32
      %v1527 = vpop.permute.xlu0 %1526
      %1528 = vrot.lane.b32.xlu0 %v559, 32
      %v1529 = vpop.permute.xlu0 %1528
      %1530 = vrot.lane.b32.xlu0 %v560, 32
      %v1531 = vpop.permute.xlu0 %1530
      %1532 = vrot.lane.b32.xlu0 %v561, 32
      %v1533 = vpop.permute.xlu0 %1532
      %1534 = vrot.lane.b32.xlu0 %v562, 32
      %v1535 = vpop.permute.xlu0 %1534
      %1536 = vrot.lane.b32.xlu0 %v563, 32
      %v1537 = vpop.permute.xlu0 %1536
      %1538 = vrot.lane.b32.xlu0 %v564, 32
      %v1539 = vpop.permute.xlu0 %1538
      %1540 = vrot.lane.b32.xlu0 %v565, 32
      %v1541 = vpop.permute.xlu0 %1540
      %1542 = vrot.lane.b32.xlu0 %v566, 32
      %v1543 = vpop.permute.xlu0 %1542
      %1544 = vrot.lane.b32.xlu0 %v567, 32
      %v1545 = vpop.permute.xlu0 %1544
      %1546 = vrot.lane.b32.xlu0 %v568, 32
      %v1547 = vpop.permute.xlu0 %1546
      %1548 = vrot.lane.b32.xlu0 %v569, 32
      %v1549 = vpop.permute.xlu0 %1548
      %1550 = vrot.lane.b32.xlu0 %v570, 32
      %v1551 = vpop.permute.xlu0 %1550
      %1552 = vrot.lane.b32.xlu0 %v571, 32
      %v1553 = vpop.permute.xlu0 %1552
      %1554 = vrot.lane.b32.xlu0 %v572, 32
      %v1555 = vpop.permute.xlu0 %1554
      %1556 = vrot.lane.b32.xlu0 %v573, 32
      %v1557 = vpop.permute.xlu0 %1556
      %1558 = vrot.lane.b32.xlu0 %v574, 32
      %v1559 = vpop.permute.xlu0 %1558
      %1560 = vrot.lane.b32.xlu0 %v575, 32
      %v1561 = vpop.permute.xlu0 %1560
      %1562 = vrot.lane.b32.xlu0 %v576, 32
      %v1563 = vpop.permute.xlu0 %1562
      %1564 = vrot.lane.b32.xlu0 %v577, 32
      %v1565 = vpop.permute.xlu0 %1564
      %1566 = vrot.lane.b32.xlu0 %v578, 32
      %v1567 = vpop.permute.xlu0 %1566
      %1568 = vrot.lane.b32.xlu0 %v579, 32
      %v1569 = vpop.permute.xlu0 %1568
      %1570 = vrot.lane.b32.xlu0 %v580, 32
      %v1571 = vpop.permute.xlu0 %1570
      %1572 = vrot.lane.b32.xlu0 %v581, 32
      %v1573 = vpop.permute.xlu0 %1572
      %v1606 = vsel %vm177, %v294, %v615
      %v1607 = vsel %vm177, %v295, %v617
      %v1608 = vsel %vm177, %v296, %v619
      %v1609 = vsel %vm177, %v297, %v621
      %v1610 = vsel %vm177, %v298, %v623
      %v1611 = vsel %vm177, %v299, %v625
      %v1612 = vsel %vm177, %v300, %v627
      %v1613 = vsel %vm177, %v301, %v629
      %v1614 = vsel %vm177, %v302, %v631
      %v1615 = vsel %vm177, %v303, %v633
      %v1616 = vsel %vm177, %v304, %v635
      %v1617 = vsel %vm177, %v305, %v637
      %v1618 = vsel %vm177, %v306, %v639
      %v1619 = vsel %vm177, %v307, %v641
      %v1620 = vsel %vm177, %v308, %v643
      %v1621 = vsel %vm177, %v309, %v645
      %v1622 = vsel %vm177, %v310, %v647
      %v1623 = vsel %vm177, %v311, %v649
      %v1624 = vsel %vm177, %v312, %v651
      %v1625 = vsel %vm177, %v313, %v653
      %v1626 = vsel %vm177, %v314, %v655
      %v1627 = vsel %vm177, %v315, %v657
      %v1628 = vsel %vm177, %v316, %v659
      %v1629 = vsel %vm177, %v317, %v661
      %v1630 = vsel %vm177, %v318, %v663
      %v1631 = vsel %vm177, %v319, %v665
      %v1632 = vsel %vm177, %v320, %v667
      %v1633 = vsel %vm177, %v321, %v669
      %v1634 = vsel %vm177, %v322, %v671
      %v1635 = vsel %vm177, %v323, %v673
      %v1636 = vsel %vm177, %v324, %v675
      %v1637 = vsel %vm177, %v325, %v677
      %vm1638 = vcmask 64512
      %v1639 = vsel %vm1638, %v1606, %v743
      %v1640 = vsel %vm1638, %v1607, %v745
      %v1641 = vsel %vm1638, %v1608, %v747
      %v1642 = vsel %vm1638, %v1609, %v749
      %v1643 = vsel %vm1638, %v1610, %v751
      %v1644 = vsel %vm1638, %v1611, %v753
      %v1645 = vsel %vm1638, %v1612, %v755
      %v1646 = vsel %vm1638, %v1613, %v757
      %v1647 = vsel %vm1638, %v1614, %v759
      %v1648 = vsel %vm1638, %v1615, %v761
      %v1649 = vsel %vm1638, %v1616, %v763
      %v1650 = vsel %vm1638, %v1617, %v765
      %v1651 = vsel %vm1638, %v1618, %v767
      %v1652 = vsel %vm1638, %v1619, %v769
      %v1653 = vsel %vm1638, %v1620, %v771
      %v1654 = vsel %vm1638, %v1621, %v773
      %v1655 = vsel %vm1638, %v1622, %v775
      %v1656 = vsel %vm1638, %v1623, %v777
      %v1657 = vsel %vm1638, %v1624, %v779
      %v1658 = vsel %vm1638, %v1625, %v781
      %v1659 = vsel %vm1638, %v1626, %v783
      %v1660 = vsel %vm1638, %v1627, %v785
      %v1661 = vsel %vm1638, %v1628, %v787
      %v1662 = vsel %vm1638, %v1629, %v789
      %v1663 = vsel %vm1638, %v1630, %v791
      %v1664 = vsel %vm1638, %v1631, %v793
      %v1665 = vsel %vm1638, %v1632, %v795
      %v1666 = vsel %vm1638, %v1633, %v797
      %v1667 = vsel %vm1638, %v1634, %v799
      %v1668 = vsel %vm1638, %v1635, %v801
      %v1669 = vsel %vm1638, %v1636, %v803
      %v1670 = vsel %vm1638, %v1637, %v805
      %vm1671 = vcmask 97280
      %v1672 = vsel %vm1671, %v1639, %v871
      %v1673 = vsel %vm1671, %v1640, %v873
      %v1674 = vsel %vm1671, %v1641, %v875
      %v1675 = vsel %vm1671, %v1642, %v877
      %v1676 = vsel %vm1671, %v1643, %v879
      %v1677 = vsel %vm1671, %v1644, %v881
      %v1678 = vsel %vm1671, %v1645, %v883
      %v1679 = vsel %vm1671, %v1646, %v885
      %v1680 = vsel %vm1671, %v1647, %v887
      %v1681 = vsel %vm1671, %v1648, %v889
      %v1682 = vsel %vm1671, %v1649, %v891
      %v1683 = vsel %vm1671, %v1650, %v893
      %v1684 = vsel %vm1671, %v1651, %v895
      %v1685 = vsel %vm1671, %v1652, %v897
      %v1686 = vsel %vm1671, %v1653, %v899
      %v1687 = vsel %vm1671, %v1654, %v901
      %v1688 = vsel %vm1671, %v1655, %v903
      %v1689 = vsel %vm1671, %v1656, %v905
      %v1690 = vsel %vm1671, %v1657, %v907
      %v1691 = vsel %vm1671, %v1658, %v909
      %v1692 = vsel %vm1671, %v1659, %v911
      %v1693 = vsel %vm1671, %v1660, %v913
      %v1694 = vsel %vm1671, %v1661, %v915
      %v1695 = vsel %vm1671, %v1662, %v917
      %v1696 = vsel %vm1671, %v1663, %v919
      %v1697 = vsel %vm1671, %v1664, %v921
      %v1698 = vsel %vm1671, %v1665, %v923
      %v1699 = vsel %vm1671, %v1666, %v925
      %v1700 = vsel %vm1671, %v1667, %v927
      %v1701 = vsel %vm1671, %v1668, %v929
      %v1702 = vsel %vm1671, %v1669, %v931
      %v1703 = vsel %vm1671, %v1670, %v933
      %vm1704 = vcmask 130048
      %v1705 = vsel %vm1704, %v1672, %v999
      %v1706 = vsel %vm1704, %v1673, %v1001
      %v1707 = vsel %vm1704, %v1674, %v1003
      %v1708 = vsel %vm1704, %v1675, %v1005
      %v1709 = vsel %vm1704, %v1676, %v1007
      %v1710 = vsel %vm1704, %v1677, %v1009
      %v1711 = vsel %vm1704, %v1678, %v1011
      %v1712 = vsel %vm1704, %v1679, %v1013
      %v1713 = vsel %vm1704, %v1680, %v1015
      %v1714 = vsel %vm1704, %v1681, %v1017
      %v1715 = vsel %vm1704, %v1682, %v1019
      %v1716 = vsel %vm1704, %v1683, %v1021
      %v1717 = vsel %vm1704, %v1684, %v1023
      %v1718 = vsel %vm1704, %v1685, %v1025
      %v1719 = vsel %vm1704, %v1686, %v1027
      %v1720 = vsel %vm1704, %v1687, %v1029
      %v1721 = vsel %vm1704, %v1688, %v1031
      %v1722 = vsel %vm1704, %v1689, %v1033
      %v1723 = vsel %vm1704, %v1690, %v1035
      %v1724 = vsel %vm1704, %v1691, %v1037
      %v1725 = vsel %vm1704, %v1692, %v1039
      %v1726 = vsel %vm1704, %v1693, %v1041
      %v1727 = vsel %vm1704, %v1694, %v1043
      %v1728 = vsel %vm1704, %v1695, %v1045
      %v1729 = vsel %vm1704, %v1696, %v1047
      %v1730 = vsel %vm1704, %v1697, %v1049
      %v1731 = vsel %vm1704, %v1698, %v1051
      %v1732 = vsel %vm1704, %v1699, %v1053
      %v1733 = vsel %vm1704, %v1700, %v1055
      %v1734 = vsel %vm1704, %v1701, %v1057
      %v1735 = vsel %vm1704, %v1702, %v1059
      %v1736 = vsel %vm1704, %v1703, %v1061
      %vm1737 = vcmask 162816
      %v1738 = vsel %vm1737, %v1705, %v1127
      %v1739 = vsel %vm1737, %v1706, %v1129
      %v1740 = vsel %vm1737, %v1707, %v1131
      %v1741 = vsel %vm1737, %v1708, %v1133
      %v1742 = vsel %vm1737, %v1709, %v1135
      %v1743 = vsel %vm1737, %v1710, %v1137
      %v1744 = vsel %vm1737, %v1711, %v1139
      %v1745 = vsel %vm1737, %v1712, %v1141
      %v1746 = vsel %vm1737, %v1713, %v1143
      %v1747 = vsel %vm1737, %v1714, %v1145
      %v1748 = vsel %vm1737, %v1715, %v1147
      %v1749 = vsel %vm1737, %v1716, %v1149
      %v1750 = vsel %vm1737, %v1717, %v1151
      %v1751 = vsel %vm1737, %v1718, %v1153
      %v1752 = vsel %vm1737, %v1719, %v1155
      %v1753 = vsel %vm1737, %v1720, %v1157
      %v1754 = vsel %vm1737, %v1721, %v1159
      %v1755 = vsel %vm1737, %v1722, %v1161
      %v1756 = vsel %vm1737, %v1723, %v1163
      %v1757 = vsel %vm1737, %v1724, %v1165
      %v1758 = vsel %vm1737, %v1725, %v1167
      %v1759 = vsel %vm1737, %v1726, %v1169
      %v1760 = vsel %vm1737, %v1727, %v1171
      %v1761 = vsel %vm1737, %v1728, %v1173
      %v1762 = vsel %vm1737, %v1729, %v1175
      %v1763 = vsel %vm1737, %v1730, %v1177
      %v1764 = vsel %vm1737, %v1731, %v1179
      %v1765 = vsel %vm1737, %v1732, %v1181
      %v1766 = vsel %vm1737, %v1733, %v1183
      %v1767 = vsel %vm1737, %v1734, %v1185
      %v1768 = vsel %vm1737, %v1735, %v1187
      %v1769 = vsel %vm1737, %v1736, %v1189
      %vm1770 = vcmask 195584
      %v1771 = vsel %vm1770, %v1738, %v1255
      %v1772 = vsel %vm1770, %v1739, %v1257
      %v1773 = vsel %vm1770, %v1740, %v1259
      %v1774 = vsel %vm1770, %v1741, %v1261
      %v1775 = vsel %vm1770, %v1742, %v1263
      %v1776 = vsel %vm1770, %v1743, %v1265
      %v1777 = vsel %vm1770, %v1744, %v1267
      %v1778 = vsel %vm1770, %v1745, %v1269
      %v1779 = vsel %vm1770, %v1746, %v1271
      %v1780 = vsel %vm1770, %v1747, %v1273
      %v1781 = vsel %vm1770, %v1748, %v1275
      %v1782 = vsel %vm1770, %v1749, %v1277
      %v1783 = vsel %vm1770, %v1750, %v1279
      %v1784 = vsel %vm1770, %v1751, %v1281
      %v1785 = vsel %vm1770, %v1752, %v1283
      %v1786 = vsel %vm1770, %v1753, %v1285
      %v1787 = vsel %vm1770, %v1754, %v1287
      %v1788 = vsel %vm1770, %v1755, %v1289
      %v1789 = vsel %vm1770, %v1756, %v1291
      %v1790 = vsel %vm1770, %v1757, %v1293
      %v1791 = vsel %vm1770, %v1758, %v1295
      %v1792 = vsel %vm1770, %v1759, %v1297
      %v1793 = vsel %vm1770, %v1760, %v1299
      %v1794 = vsel %vm1770, %v1761, %v1301
      %v1795 = vsel %vm1770, %v1762, %v1303
      %v1796 = vsel %vm1770, %v1763, %v1305
      %v1797 = vsel %vm1770, %v1764, %v1307
      %v1798 = vsel %vm1770, %v1765, %v1309
      %v1799 = vsel %vm1770, %v1766, %v1311
      %v1800 = vsel %vm1770, %v1767, %v1313
      %v1801 = vsel %vm1770, %v1768, %v1315
      %v1802 = vsel %vm1770, %v1769, %v1317
      %vm1803 = vcmask 228352
      %v1804 = vsel %vm1803, %v1771, %v1383
      %v1805 = vsel %vm1803, %v1772, %v1385
      %v1806 = vsel %vm1803, %v1773, %v1387
      %v1807 = vsel %vm1803, %v1774, %v1389
      %v1808 = vsel %vm1803, %v1775, %v1391
      %v1809 = vsel %vm1803, %v1776, %v1393
      %v1810 = vsel %vm1803, %v1777, %v1395
      %v1811 = vsel %vm1803, %v1778, %v1397
      %v1812 = vsel %vm1803, %v1779, %v1399
      %v1813 = vsel %vm1803, %v1780, %v1401
      %v1814 = vsel %vm1803, %v1781, %v1403
      %v1815 = vsel %vm1803, %v1782, %v1405
      %v1816 = vsel %vm1803, %v1783, %v1407
      %v1817 = vsel %vm1803, %v1784, %v1409
      %v1818 = vsel %vm1803, %v1785, %v1411
      %v1819 = vsel %vm1803, %v1786, %v1413
      %v1820 = vsel %vm1803, %v1787, %v1415
      %v1821 = vsel %vm1803, %v1788, %v1417
      %v1822 = vsel %vm1803, %v1789, %v1419
      %v1823 = vsel %vm1803, %v1790, %v1421
      %v1824 = vsel %vm1803, %v1791, %v1423
      %v1825 = vsel %vm1803, %v1792, %v1425
      %v1826 = vsel %vm1803, %v1793, %v1427
      %v1827 = vsel %vm1803, %v1794, %v1429
      %v1828 = vsel %vm1803, %v1795, %v1431
      %v1829 = vsel %vm1803, %v1796, %v1433
      %v1830 = vsel %vm1803, %v1797, %v1435
      %v1831 = vsel %vm1803, %v1798, %v1437
      %v1832 = vsel %vm1803, %v1799, %v1439
      %v1833 = vsel %vm1803, %v1800, %v1441
      %v1834 = vsel %vm1803, %v1801, %v1443
      %v1835 = vsel %vm1803, %v1802, %v1445
      %vm1836 = vcmask 261120
      %v1837 = vsel %vm1836, %v1804, %v1511
      %v1838 = vsel %vm1836, %v1805, %v1513
      %v1839 = vsel %vm1836, %v1806, %v1515
      %v1840 = vsel %vm1836, %v1807, %v1517
      %v1841 = vsel %vm1836, %v1808, %v1519
      %v1842 = vsel %vm1836, %v1809, %v1521
      %v1843 = vsel %vm1836, %v1810, %v1523
      %v1844 = vsel %vm1836, %v1811, %v1525
      %v1845 = vsel %vm1836, %v1812, %v1527
      %v1846 = vsel %vm1836, %v1813, %v1529
      %v1847 = vsel %vm1836, %v1814, %v1531
      %v1848 = vsel %vm1836, %v1815, %v1533
      %v1849 = vsel %vm1836, %v1816, %v1535
      %v1850 = vsel %vm1836, %v1817, %v1537
      %v1851 = vsel %vm1836, %v1818, %v1539
      %v1852 = vsel %vm1836, %v1819, %v1541
      %v1853 = vsel %vm1836, %v1820, %v1543
      %v1854 = vsel %vm1836, %v1821, %v1545
      %v1855 = vsel %vm1836, %v1822, %v1547
      %v1856 = vsel %vm1836, %v1823, %v1549
      %v1857 = vsel %vm1836, %v1824, %v1551
      %v1858 = vsel %vm1836, %v1825, %v1553
      %v1859 = vsel %vm1836, %v1826, %v1555
      %v1860 = vsel %vm1836, %v1827, %v1557
      %v1861 = vsel %vm1836, %v1828, %v1559
      %v1862 = vsel %vm1836, %v1829, %v1561
      %v1863 = vsel %vm1836, %v1830, %v1563
      %v1864 = vsel %vm1836, %v1831, %v1565
      %v1865 = vsel %vm1836, %v1832, %v1567
      %v1866 = vsel %vm1836, %v1833, %v1569
      %v1867 = vsel %vm1836, %v1834, %v1571
      %v1868 = vsel %vm1836, %v1835, %v1573
      %v1869 = vld [vmem:[%s1] sm:$0xff]
      %v1870 = vld [vmem:[%s1 + $0x8] sm:$0xff]
      %v1871 = vld [vmem:[%s1 + $0x10] sm:$0xff]
      %v1872 = vld [vmem:[%s1 + $0x18] sm:$0xff]
      %v1873 = vld [vmem:[%s1 + $0x20] sm:$0xf]
      %vm1874 = vcmask 293888
      %v1876 = vsel %vm1874, %v1837, 0
      %v1879 = vsel %vm1874, %v1838, 0
      %v1882 = vsel %vm1874, %v1839, 0
      %v1885 = vsel %vm1874, %v1840, 0
      %v1888 = vsel %vm1874, %v1841, 0
      %v1891 = vsel %vm1874, %v1842, 0
      %v1894 = vsel %vm1874, %v1843, 0
      %v1897 = vsel %vm1874, %v1844, 0
      %v1900 = vsel %vm1874, %v1845, 0
      %v1903 = vsel %vm1874, %v1846, 0
      %v1906 = vsel %vm1874, %v1847, 0
      %v1909 = vsel %vm1874, %v1848, 0
      %v1912 = vsel %vm1874, %v1849, 0
      %v1915 = vsel %vm1874, %v1850, 0
      %v1918 = vsel %vm1874, %v1851, 0
      %v1921 = vsel %vm1874, %v1852, 0
      %v1924 = vsel %vm1874, %v1853, 0
      %v1927 = vsel %vm1874, %v1854, 0
      %v1930 = vsel %vm1874, %v1855, 0
      %v1933 = vsel %vm1874, %v1856, 0
      %v1936 = vsel %vm1874, %v1857, 0
      %v1939 = vsel %vm1874, %v1858, 0
      %v1942 = vsel %vm1874, %v1859, 0
      %v1945 = vsel %vm1874, %v1860, 0
      %v1948 = vsel %vm1874, %v1861, 0
      %v1951 = vsel %vm1874, %v1862, 0
      %v1954 = vsel %vm1874, %v1863, 0
      %v1957 = vsel %vm1874, %v1864, 0
      %v1960 = vsel %vm1874, %v1865, 0
      %v1963 = vsel %vm1874, %v1866, 0
      %v1966 = vsel %vm1874, %v1867, 0
      %v1969 = vsel %vm1874, %v1868, 0
      %vm1971 = vcmask 1043456
      %v1973 = vsel %vm1971, %v1873, 0
      %1975 = vmatprep.subr.mxu0 0.0
      %1976 = vmatpush1.msra.mxu0 %v1869
      %1977 = vmatprep.subr.mxu0 0.0
      %1978 = vmatpush1.msra.mxu0 %v1870
      %1979 = vmatprep.subr.mxu0 0.0
      %1980 = vmatpush1.msra.mxu0 %v1871
      %1981 = vmatprep.subr.mxu0 0.0
      %1982 = vmatpush1.msra.mxu0 %v1872
      %1983 = vmatprep.subr.mxu0 0.0
      %1984 = vmatpush1.msra.mxu0 %v1973
      %1985 = vmatprep.subr.mxu0 0.0
      %1986 = vmatpush1.msra.mxu0 0.0
      %1987 = vmatprep.subr.mxu0 0.0
      %1988 = vmatpush1.msra.mxu0 0.0
      %1989 = vmatprep.subr.mxu0 0.0
      %1990 = vmatpush1.msra.mxu0 0.0
      %1991 = vmatprep.subr.mxu0 0.0
      %1992 = vmatpush1.msra.mxu0 0.0
      %1993 = vmatprep.subr.mxu0 0.0
      %1994 = vmatpush1.msra.mxu0 0.0
      %1995 = vmatprep.subr.mxu0 0.0
      %1996 = vmatpush1.msra.mxu0 0.0
      %1997 = vmatprep.subr.mxu0 0.0
      %1998 = vmatpush1.msra.mxu0 0.0
      %1999 = vmatprep.subr.mxu0 0.0
      %2000 = vmatpush1.msra.mxu0 0.0
      %2001 = vmatprep.subr.mxu0 0.0
      %2002 = vmatpush1.msra.mxu0 0.0
      %2003 = vmatprep.subr.mxu0 0.0
      %2004 = vmatpush1.msra.mxu0 0.0
      %2005 = vmatprep.subr.mxu0 0.0
      %2006 = vmatpush1.msra.mxu0 0.0
      %2007 = vmatprep.subr.mxu0 0.0
      %2008 = vmatpush1.msra.mxu0 0.0
      %2009 = vmatprep.subr.mxu0 0.0
      %2010 = vmatpush1.msra.mxu0 0.0
      %2011 = vmatprep.subr.mxu0 0.0
      %2012 = vmatpush1.msra.mxu0 0.0
      %2013 = vmatprep.subr.mxu0 0.0
      %2014 = vmatpush1.msra.mxu0 0.0
      %2015 = vmatprep.subr.mxu0 0.0
      %2016 = vmatpush1.msra.mxu0 0.0
      %2017 = vmatprep.subr.mxu0 0.0
      %2018 = vmatpush1.msra.mxu0 0.0
      %2019 = vmatprep.subr.mxu0 0.0
      %2020 = vmatpush1.msra.mxu0 0.0
      %2021 = vmatprep.subr.mxu0 0.0
      %2022 = vmatpush1.msra.mxu0 0.0
      %2023 = vmatprep.subr.mxu0 0.0
      %2024 = vmatpush1.msra.mxu0 0.0
      %2025 = vmatprep.subr.mxu0 0.0
      %2026 = vmatpush1.msra.mxu0 0.0
      %2027 = vmatprep.subr.mxu0 0.0
      %2028 = vmatpush1.msra.mxu0 0.0
      %2029 = vmatprep.subr.mxu0 0.0
      %2030 = vmatpush1.msra.mxu0 0.0
      %2031 = vmatprep.subr.mxu0 0.0
      %2032 = vmatpush1.msra.mxu0 0.0
      %2033 = vmatprep.subr.mxu0 0.0
      %2034 = vmatpush1.msra.mxu0 0.0
      %2035 = vmatprep.subr.mxu0 0.0
      %2036 = vmatpush1.msra.mxu0 0.0
      %2037 = vmatprep.subr.mxu0 0.0
      %2038 = vmatpush1.msra.mxu0 0.0
      %2039 = vmatprep.mubr.f32.mxu0 0.0
      %2040 = vmatmul.mubr.f32.gmra.mrb[0].mxu0 %v1876
      %v2041 = vpop.f32.mrb[0].mxu0
      %v2042 = vadd.f32 0.0, %v2041
      %v2043 = vpop.f32.mrb[0].mxu0
      %2044 = vmatprep.mubr.f32.mxu0 0.0
      %2045 = vmatmul.mubr.f32.gmra.mrb[0].mxu0 %v1879
      %v2046 = vpop.f32.mrb[0].mxu0
      %v2047 = vadd.f32 0.0, %v2046
      %v2048 = vpop.f32.mrb[0].mxu0
      %2049 = vmatprep.mubr.f32.mxu0 0.0
      %2050 = vmatmul.mubr.f32.gmra.mrb[0].mxu0 %v1882
      %v2051 = vpop.f32.mrb[0].mxu0
      %v2052 = vadd.f32 0.0, %v2051
      %v2053 = vpop.f32.mrb[0].mxu0
      %2054 = vmatprep.mubr.f32.mxu0 0.0
      %2055 = vmatmul.mubr.f32.gmra.mrb[0].mxu0 %v1885
      %v2056 = vpop.f32.mrb[0].mxu0
      %v2057 = vadd.f32 0.0, %v2056
      %v2058 = vpop.f32.mrb[0].mxu0
      %2059 = vmatprep.mubr.f32.mxu0 0.0
      %2060 = vmatmul.mubr.f32.gmra.mrb[0].mxu0 %v1888
      %v2061 = vpop.f32.mrb[0].mxu0
      %v2062 = vadd.f32 0.0, %v2061
      %v2063 = vpop.f32.mrb[0].mxu0
      %2064 = vmatprep.mubr.f32.mxu0 0.0
      %2065 = vmatmul.mubr.f32.gmra.mrb[0].mxu0 %v1891
      %v2066 = vpop.f32.mrb[0].mxu0
      %v2067 = vadd.f32 0.0, %v2066
      %v2068 = vpop.f32.mrb[0].mxu0
      %2069 = vmatprep.mubr.f32.mxu0 0.0
      %2070 = vmatmul.mubr.f32.gmra.mrb[0].mxu0 %v1894
      %v2071 = vpop.f32.mrb[0].mxu0
      %v2072 = vadd.f32 0.0, %v2071
      %v2073 = vpop.f32.mrb[0].mxu0
      %2074 = vmatprep.mubr.f32.mxu0 0.0
      %2075 = vmatmul.mubr.f32.gmra.mrb[0].mxu0 %v1897
      %v2076 = vpop.f32.mrb[0].mxu0
      %v2077 = vadd.f32 0.0, %v2076
      %v2078 = vpop.f32.mrb[0].mxu0
      %2079 = vmatprep.mubr.f32.mxu0 0.0
      %2080 = vmatmul.mubr.f32.gmra.mrb[0].mxu0 %v1900
      %v2081 = vpop.f32.mrb[0].mxu0
      %v2082 = vadd.f32 0.0, %v2081
      %v2083 = vpop.f32.mrb[0].mxu0
      %2084 = vmatprep.mubr.f32.mxu0 0.0
      %2085 = vmatmul.mubr.f32.gmra.mrb[0].mxu0 %v1903
      %v2086 = vpop.f32.mrb[0].mxu0
      %v2087 = vadd.f32 0.0, %v2086
      %v2088 = vpop.f32.mrb[0].mxu0
      %2089 = vmatprep.mubr.f32.mxu0 0.0
      %2090 = vmatmul.mubr.f32.gmra.mrb[0].mxu0 %v1906
      %v2091 = vpop.f32.mrb[0].mxu0
      %v2092 = vadd.f32 0.0, %v2091
      %v2093 = vpop.f32.mrb[0].mxu0
      %2094 = vmatprep.mubr.f32.mxu0 0.0
      %2095 = vmatmul.mubr.f32.gmra.mrb[0].mxu0 %v1909
      %v2096 = vpop.f32.mrb[0].mxu0
      %v2097 = vadd.f32 0.0, %v2096
      %v2098 = vpop.f32.mrb[0].mxu0
      %2099 = vmatprep.mubr.f32.mxu0 0.0
      %2100 = vmatmul.mubr.f32.gmra.mrb[0].mxu0 %v1912
      %v2101 = vpop.f32.mrb[0].mxu0
      %v2102 = vadd.f32 0.0, %v2101
      %v2103 = vpop.f32.mrb[0].mxu0
      %2104 = vmatprep.mubr.f32.mxu0 0.0
      %2105 = vmatmul.mubr.f32.gmra.mrb[0].mxu0 %v1915
      %v2106 = vpop.f32.mrb[0].mxu0
      %v2107 = vadd.f32 0.0, %v2106
      %v2108 = vpop.f32.mrb[0].mxu0
      %2109 = vmatprep.mubr.f32.mxu0 0.0
      %2110 = vmatmul.mubr.f32.gmra.mrb[0].mxu0 %v1918
      %v2111 = vpop.f32.mrb[0].mxu0
      %v2112 = vadd.f32 0.0, %v2111
      %v2113 = vpop.f32.mrb[0].mxu0
      %2114 = vmatprep.mubr.f32.mxu0 0.0
      %2115 = vmatmul.mubr.f32.gmra.mrb[0].mxu0 %v1921
      %v2116 = vpop.f32.mrb[0].mxu0
      %v2117 = vadd.f32 0.0, %v2116
      %v2118 = vpop.f32.mrb[0].mxu0
      %2119 = vmatprep.mubr.f32.mxu0 0.0
      %2120 = vmatmul.mubr.f32.gmra.mrb[0].mxu0 %v1924
      %v2121 = vpop.f32.mrb[0].mxu0
      %v2122 = vadd.f32 0.0, %v2121
      %v2123 = vpop.f32.mrb[0].mxu0
      %2124 = vmatprep.mubr.f32.mxu0 0.0
      %2125 = vmatmul.mubr.f32.gmra.mrb[0].mxu0 %v1927
      %v2126 = vpop.f32.mrb[0].mxu0
      %v2127 = vadd.f32 0.0, %v2126
      %v2128 = vpop.f32.mrb[0].mxu0
      %2129 = vmatprep.mubr.f32.mxu0 0.0
      %2130 = vmatmul.mubr.f32.gmra.mrb[0].mxu0 %v1930
      %v2131 = vpop.f32.mrb[0].mxu0
      %v2132 = vadd.f32 0.0, %v2131
      %v2133 = vpop.f32.mrb[0].mxu0
      %2134 = vmatprep.mubr.f32.mxu0 0.0
      %2135 = vmatmul.mubr.f32.gmra.mrb[0].mxu0 %v1933
      %v2136 = vpop.f32.mrb[0].mxu0
      %v2137 = vadd.f32 0.0, %v2136
      %v2138 = vpop.f32.mrb[0].mxu0
      %2139 = vmatprep.mubr.f32.mxu0 0.0
      %2140 = vmatmul.mubr.f32.gmra.mrb[0].mxu0 %v1936
      %v2141 = vpop.f32.mrb[0].mxu0
      %v2142 = vadd.f32 0.0, %v2141
      %v2143 = vpop.f32.mrb[0].mxu0
      %2144 = vmatprep.mubr.f32.mxu0 0.0
      %2145 = vmatmul.mubr.f32.gmra.mrb[0].mxu0 %v1939
      %v2146 = vpop.f32.mrb[0].mxu0
      %v2147 = vadd.f32 0.0, %v2146
      %v2148 = vpop.f32.mrb[0].mxu0
      %2149 = vmatprep.mubr.f32.mxu0 0.0
      %2150 = vmatmul.mubr.f32.gmra.mrb[0].mxu0 %v1942
      %v2151 = vpop.f32.mrb[0].mxu0
      %v2152 = vadd.f32 0.0, %v2151
      %v2153 = vpop.f32.mrb[0].mxu0
      %2154 = vmatprep.mubr.f32.mxu0 0.0
      %2155 = vmatmul.mubr.f32.gmra.mrb[0].mxu0 %v1945
      %v2156 = vpop.f32.mrb[0].mxu0
      %v2157 = vadd.f32 0.0, %v2156
      %v2158 = vpop.f32.mrb[0].mxu0
      %2159 = vmatprep.mubr.f32.mxu0 0.0
      %2160 = vmatmul.mubr.f32.gmra.mrb[0].mxu0 %v1948
      %v2161 = vpop.f32.mrb[0].mxu0
      %v2162 = vadd.f32 0.0, %v2161
      %v2163 = vpop.f32.mrb[0].mxu0
      %2164 = vmatprep.mubr.f32.mxu0 0.0
      %2165 = vmatmul.mubr.f32.gmra.mrb[0].mxu0 %v1951
      %v2166 = vpop.f32.mrb[0].mxu0
      %v2167 = vadd.f32 0.0, %v2166
      %v2168 = vpop.f32.mrb[0].mxu0
      %2169 = vmatprep.mubr.f32.mxu0 0.0
      %2170 = vmatmul.mubr.f32.gmra.mrb[0].mxu0 %v1954
      %v2171 = vpop.f32.mrb[0].mxu0
      %v2172 = vadd.f32 0.0, %v2171
      %v2173 = vpop.f32.mrb[0].mxu0
      %2174 = vmatprep.mubr.f32.mxu0 0.0
      %2175 = vmatmul.mubr.f32.gmra.mrb[0].mxu0 %v1957
      %v2176 = vpop.f32.mrb[0].mxu0
      %v2177 = vadd.f32 0.0, %v2176
      %v2178 = vpop.f32.mrb[0].mxu0
      %2179 = vmatprep.mubr.f32.mxu0 0.0
      %2180 = vmatmul.mubr.f32.gmra.mrb[0].mxu0 %v1960
      %v2181 = vpop.f32.mrb[0].mxu0
      %v2182 = vadd.f32 0.0, %v2181
      %v2183 = vpop.f32.mrb[0].mxu0
      %2184 = vmatprep.mubr.f32.mxu0 0.0
      %2185 = vmatmul.mubr.f32.gmra.mrb[0].mxu0 %v1963
      %v2186 = vpop.f32.mrb[0].mxu0
      %v2187 = vadd.f32 0.0, %v2186
      %v2188 = vpop.f32.mrb[0].mxu0
      %2189 = vmatprep.mubr.f32.mxu0 0.0
      %2190 = vmatmul.mubr.f32.gmra.mrb[0].mxu0 %v1966
      %v2191 = vpop.f32.mrb[0].mxu0
      %v2192 = vadd.f32 0.0, %v2191
      %v2193 = vpop.f32.mrb[0].mxu0
      %2194 = vmatprep.mubr.f32.mxu0 0.0
      %2195 = vmatmul.mubr.f32.gmra.mrb[0].mxu0 %v1969
      %v2196 = vpop.f32.mrb[0].mxu0
      %v2197 = vadd.f32 0.0, %v2196
      %v2198 = vpop.f32.mrb[0].mxu0
      %2199 = vdwg.mxu0
      %vm2200 = vcmask 146432
      %v2201 = vsel %vm2200, %v2042, 0.0
      %v2202 = vsel %vm2200, %v2047, 0.0
      %v2203 = vadd.f32 %v2201, %v2202
      %v2204 = vsel %vm2200, %v2052, 0.0
      %v2205 = vadd.f32 %v2203, %v2204
      %v2206 = vsel %vm2200, %v2057, 0.0
      %v2207 = vadd.f32 %v2205, %v2206
      %v2208 = vsel %vm2200, %v2062, 0.0
      %v2209 = vadd.f32 %v2207, %v2208
      %v2210 = vsel %vm2200, %v2067, 0.0
      %v2211 = vadd.f32 %v2209, %v2210
      %v2212 = vsel %vm2200, %v2072, 0.0
      %v2213 = vadd.f32 %v2211, %v2212
      %v2214 = vsel %vm2200, %v2077, 0.0
      %v2215 = vadd.f32 %v2213, %v2214
      %v2216 = vsel %vm2200, %v2082, 0.0
      %v2217 = vadd.f32 %v2215, %v2216
      %v2218 = vsel %vm2200, %v2087, 0.0
      %v2219 = vadd.f32 %v2217, %v2218
      %v2220 = vsel %vm2200, %v2092, 0.0
      %v2221 = vadd.f32 %v2219, %v2220
      %v2222 = vsel %vm2200, %v2097, 0.0
      %v2223 = vadd.f32 %v2221, %v2222
      %v2224 = vsel %vm2200, %v2102, 0.0
      %v2225 = vadd.f32 %v2223, %v2224
      %v2226 = vsel %vm2200, %v2107, 0.0
      %v2227 = vadd.f32 %v2225, %v2226
      %v2228 = vsel %vm2200, %v2112, 0.0
      %v2229 = vadd.f32 %v2227, %v2228
      %v2230 = vsel %vm2200, %v2117, 0.0
      %v2231 = vadd.f32 %v2229, %v2230
      %v2232 = vsel %vm2200, %v2122, 0.0
      %v2233 = vadd.f32 %v2231, %v2232
      %v2234 = vsel %vm2200, %v2127, 0.0
      %v2235 = vadd.f32 %v2233, %v2234
      %v2236 = vsel %vm2200, %v2132, 0.0
      %v2237 = vadd.f32 %v2235, %v2236
      %v2238 = vsel %vm2200, %v2137, 0.0
      %v2239 = vadd.f32 %v2237, %v2238
      %v2240 = vsel %vm2200, %v2142, 0.0
      %v2241 = vadd.f32 %v2239, %v2240
      %v2242 = vsel %vm2200, %v2147, 0.0
      %v2243 = vadd.f32 %v2241, %v2242
      %v2244 = vsel %vm2200, %v2152, 0.0
      %v2245 = vadd.f32 %v2243, %v2244
      %v2246 = vsel %vm2200, %v2157, 0.0
      %v2247 = vadd.f32 %v2245, %v2246
      %v2248 = vsel %vm2200, %v2162, 0.0
      %v2249 = vadd.f32 %v2247, %v2248
      %v2250 = vsel %vm2200, %v2167, 0.0
      %v2251 = vadd.f32 %v2249, %v2250
      %v2252 = vsel %vm2200, %v2172, 0.0
      %v2253 = vadd.f32 %v2251, %v2252
      %v2254 = vsel %vm2200, %v2177, 0.0
      %v2255 = vadd.f32 %v2253, %v2254
      %v2256 = vsel %vm2200, %v2182, 0.0
      %v2257 = vadd.f32 %v2255, %v2256
      %v2258 = vsel %vm2200, %v2187, 0.0
      %v2259 = vadd.f32 %v2257, %v2258
      %v2260 = vsel %vm2200, %v2192, 0.0
      %v2261 = vadd.f32 %v2259, %v2260
      %v2262 = vsel %vm2200, %v2197, 0.0
      %v2263 = vadd.f32 %v2261, %v2262
      %v2264 = vrot.slane %v2263, 4
      %v2265 = vadd.f32 %v2263, %v2264
      %v2266 = vrot.slane %v2265, 2
      %v2267 = vadd.f32 %v2265, %v2266
      %v2268 = vrot.slane %v2267, 1
      %v2269 = vadd.f32 %v2267, %v2268
      %v2270 = vrcp.pop 256.0
      %v2271 = vmul.f32 %v2269, %v2270
      %v2272 = vsub.f32 %v2042, %v2271
      %v2273 = vsub.f32 %v2047, %v2271
      %v2274 = vsub.f32 %v2052, %v2271
      %v2275 = vsub.f32 %v2057, %v2271
      %v2276 = vsub.f32 %v2062, %v2271
      %v2277 = vsub.f32 %v2067, %v2271
      %v2278 = vsub.f32 %v2072, %v2271
      %v2279 = vsub.f32 %v2077, %v2271
      %v2280 = vsub.f32 %v2082, %v2271
      %v2281 = vsub.f32 %v2087, %v2271
      %v2282 = vsub.f32 %v2092, %v2271
      %v2283 = vsub.f32 %v2097, %v2271
      %v2284 = vsub.f32 %v2102, %v2271
      %v2285 = vsub.f32 %v2107, %v2271
      %v2286 = vsub.f32 %v2112, %v2271
      %v2287 = vsub.f32 %v2117, %v2271
      %v2288 = vsub.f32 %v2122, %v2271
      %v2289 = vsub.f32 %v2127, %v2271
      %v2290 = vsub.f32 %v2132, %v2271
      %v2291 = vsub.f32 %v2137, %v2271
      %v2292 = vsub.f32 %v2142, %v2271
      %v2293 = vsub.f32 %v2147, %v2271
      %v2294 = vsub.f32 %v2152, %v2271
      %v2295 = vsub.f32 %v2157, %v2271
      %v2296 = vsub.f32 %v2162, %v2271
      %v2297 = vsub.f32 %v2167, %v2271
      %v2298 = vsub.f32 %v2172, %v2271
      %v2299 = vsub.f32 %v2177, %v2271
      %v2300 = vsub.f32 %v2182, %v2271
      %v2301 = vsub.f32 %v2187, %v2271
      %v2302 = vsub.f32 %v2192, %v2271
      %v2303 = vsub.f32 %v2197, %v2271
      %v2304 = vmul.f32 %v2272, %v2272
      %v2305 = vmul.f32 %v2273, %v2273
      %v2306 = vmul.f32 %v2274, %v2274
      %v2307 = vmul.f32 %v2275, %v2275
      %v2308 = vmul.f32 %v2276, %v2276
      %v2309 = vmul.f32 %v2277, %v2277
      %v2310 = vmul.f32 %v2278, %v2278
      %v2311 = vmul.f32 %v2279, %v2279
      %v2312 = vmul.f32 %v2280, %v2280
      %v2313 = vmul.f32 %v2281, %v2281
      %v2314 = vmul.f32 %v2282, %v2282
      %v2315 = vmul.f32 %v2283, %v2283
      %v2316 = vmul.f32 %v2284, %v2284
      %v2317 = vmul.f32 %v2285, %v2285
      %v2318 = vmul.f32 %v2286, %v2286
      %v2319 = vmul.f32 %v2287, %v2287
      %v2320 = vmul.f32 %v2288, %v2288
      %v2321 = vmul.f32 %v2289, %v2289
      %v2322 = vmul.f32 %v2290, %v2290
      %v2323 = vmul.f32 %v2291, %v2291
      %v2324 = vmul.f32 %v2292, %v2292
      %v2325 = vmul.f32 %v2293, %v2293
      %v2326 = vmul.f32 %v2294, %v2294
      %v2327 = vmul.f32 %v2295, %v2295
      %v2328 = vmul.f32 %v2296, %v2296
      %v2329 = vmul.f32 %v2297, %v2297
      %v2330 = vmul.f32 %v2298, %v2298
      %v2331 = vmul.f32 %v2299, %v2299
      %v2332 = vmul.f32 %v2300, %v2300
      %v2333 = vmul.f32 %v2301, %v2301
      %v2334 = vmul.f32 %v2302, %v2302
      %v2335 = vmul.f32 %v2303, %v2303
      %v2336 = vsel %vm2200, %v2304, 0.0
      %v2337 = vsel %vm2200, %v2305, 0.0
      %v2338 = vadd.f32 %v2336, %v2337
      %v2339 = vsel %vm2200, %v2306, 0.0
      %v2340 = vadd.f32 %v2338, %v2339
      %v2341 = vsel %vm2200, %v2307, 0.0
      %v2342 = vadd.f32 %v2340, %v2341
      %v2343 = vsel %vm2200, %v2308, 0.0
      %v2344 = vadd.f32 %v2342, %v2343
      %v2345 = vsel %vm2200, %v2309, 0.0
      %v2346 = vadd.f32 %v2344, %v2345
      %v2347 = vsel %vm2200, %v2310, 0.0
      %v2348 = vadd.f32 %v2346, %v2347
      %v2349 = vsel %vm2200, %v2311, 0.0
      %v2350 = vadd.f32 %v2348, %v2349
      %v2351 = vsel %vm2200, %v2312, 0.0
      %v2352 = vadd.f32 %v2350, %v2351
      %v2353 = vsel %vm2200, %v2313, 0.0
      %v2354 = vadd.f32 %v2352, %v2353
      %v2355 = vsel %vm2200, %v2314, 0.0
      %v2356 = vadd.f32 %v2354, %v2355
      %v2357 = vsel %vm2200, %v2315, 0.0
      %v2358 = vadd.f32 %v2356, %v2357
      %v2359 = vsel %vm2200, %v2316, 0.0
      %v2360 = vadd.f32 %v2358, %v2359
      %v2361 = vsel %vm2200, %v2317, 0.0
      %v2362 = vadd.f32 %v2360, %v2361
      %v2363 = vsel %vm2200, %v2318, 0.0
      %v2364 = vadd.f32 %v2362, %v2363
      %v2365 = vsel %vm2200, %v2319, 0.0
      %v2366 = vadd.f32 %v2364, %v2365
      %v2367 = vsel %vm2200, %v2320, 0.0
      %v2368 = vadd.f32 %v2366, %v2367
      %v2369 = vsel %vm2200, %v2321, 0.0
      %v2370 = vadd.f32 %v2368, %v2369
      %v2371 = vsel %vm2200, %v2322, 0.0
      %v2372 = vadd.f32 %v2370, %v2371
      %v2373 = vsel %vm2200, %v2323, 0.0
      %v2374 = vadd.f32 %v2372, %v2373
      %v2375 = vsel %vm2200, %v2324, 0.0
      %v2376 = vadd.f32 %v2374, %v2375
      %v2377 = vsel %vm2200, %v2325, 0.0
      %v2378 = vadd.f32 %v2376, %v2377
      %v2379 = vsel %vm2200, %v2326, 0.0
      %v2380 = vadd.f32 %v2378, %v2379
      %v2381 = vsel %vm2200, %v2327, 0.0
      %v2382 = vadd.f32 %v2380, %v2381
      %v2383 = vsel %vm2200, %v2328, 0.0
      %v2384 = vadd.f32 %v2382, %v2383
      %v2385 = vsel %vm2200, %v2329, 0.0
      %v2386 = vadd.f32 %v2384, %v2385
      %v2387 = vsel %vm2200, %v2330, 0.0
      %v2388 = vadd.f32 %v2386, %v2387
      %v2389 = vsel %vm2200, %v2331, 0.0
      %v2390 = vadd.f32 %v2388, %v2389
      %v2391 = vsel %vm2200, %v2332, 0.0
      %v2392 = vadd.f32 %v2390, %v2391
      %v2393 = vsel %vm2200, %v2333, 0.0
      %v2394 = vadd.f32 %v2392, %v2393
      %v2395 = vsel %vm2200, %v2334, 0.0
      %v2396 = vadd.f32 %v2394, %v2395
      %v2397 = vsel %vm2200, %v2335, 0.0
      %v2398 = vadd.f32 %v2396, %v2397
      %v2399 = vrot.slane %v2398, 4
      %v2400 = vadd.f32 %v2398, %v2399
      %v2401 = vrot.slane %v2400, 2
      %v2402 = vadd.f32 %v2400, %v2401
      %v2403 = vrot.slane %v2402, 1
      %v2404 = vadd.f32 %v2402, %v2403
      %v2405 = vmul.f32 %v2404, %v2270
      %v2406 = vadd.f32 %v2405, 1e-05
      %v2407 = vrsqrt.pop %v2406
      %v2408 = vmul.f32 %v2406, %v2407
      %vm2409 = vcmp.eq.f32.partialorder %v2406, inf
      %v2410 = vsel %vm2409, %v2406, %v2408
      %vm2411 = vcmp.eq.f32.partialorder %v2406, 0.0
      %v2412 = vand.u32 %v2406, 2147483648
      %v2413 = vsel %vm2411, %v2412, %v2410
      %v2414 = vrcp.pop %v2413
      %v2415 = vmul.f32 %v2272, %v2414
      %v2416 = vmul.f32 %v2273, %v2414
      %v2417 = vmul.f32 %v2274, %v2414
      %v2418 = vmul.f32 %v2275, %v2414
      %v2419 = vmul.f32 %v2276, %v2414
      %v2420 = vmul.f32 %v2277, %v2414
      %v2421 = vmul.f32 %v2278, %v2414
      %v2422 = vmul.f32 %v2279, %v2414
      %v2423 = vmul.f32 %v2280, %v2414
      %v2424 = vmul.f32 %v2281, %v2414
      %v2425 = vmul.f32 %v2282, %v2414
      %v2426 = vmul.f32 %v2283, %v2414
      %v2427 = vmul.f32 %v2284, %v2414
      %v2428 = vmul.f32 %v2285, %v2414
      %v2429 = vmul.f32 %v2286, %v2414
      %v2430 = vmul.f32 %v2287, %v2414
      %v2431 = vmul.f32 %v2288, %v2414
      %v2432 = vmul.f32 %v2289, %v2414
      %v2433 = vmul.f32 %v2290, %v2414
      %v2434 = vmul.f32 %v2291, %v2414
      %v2435 = vmul.f32 %v2292, %v2414
      %v2436 = vmul.f32 %v2293, %v2414
      %v2437 = vmul.f32 %v2294, %v2414
      %v2438 = vmul.f32 %v2295, %v2414
      %v2439 = vmul.f32 %v2296, %v2414
      %v2440 = vmul.f32 %v2297, %v2414
      %v2441 = vmul.f32 %v2298, %v2414
      %v2442 = vmul.f32 %v2299, %v2414
      %v2443 = vmul.f32 %v2300, %v2414
      %v2444 = vmul.f32 %v2301, %v2414
      %v2445 = vmul.f32 %v2302, %v2414
      %v2446 = vmul.f32 %v2303, %v2414
      %v2447 = vsel %vm2200, %v2415, -inf
      %2448 = vmax.xlane.f32.xlu0 %v2447
      %v2449 = vpop.xlane.xlu0 %2448
      %v2450 = vsel %vm2200, %v2416, -inf
      %2451 = vmax.xlane.f32.xlu0 %v2450
      %v2452 = vpop.xlane.xlu0 %2451
      %v2453 = vsel %vm2200, %v2417, -inf
      %2454 = vmax.xlane.f32.xlu0 %v2453
      %v2455 = vpop.xlane.xlu0 %2454
      %v2456 = vsel %vm2200, %v2418, -inf
      %2457 = vmax.xlane.f32.xlu0 %v2456
      %v2458 = vpop.xlane.xlu0 %2457
      %v2459 = vsel %vm2200, %v2419, -inf
      %2460 = vmax.xlane.f32.xlu0 %v2459
      %v2461 = vpop.xlane.xlu0 %2460
      %v2462 = vsel %vm2200, %v2420, -inf
      %2463 = vmax.xlane.f32.xlu0 %v2462
      %v2464 = vpop.xlane.xlu0 %2463
      %v2465 = vsel %vm2200, %v2421, -inf
      %2466 = vmax.xlane.f32.xlu0 %v2465
      %v2467 = vpop.xlane.xlu0 %2466
      %v2468 = vsel %vm2200, %v2422, -inf
      %2469 = vmax.xlane.f32.xlu0 %v2468
      %v2470 = vpop.xlane.xlu0 %2469
      %v2471 = vsel %vm2200, %v2423, -inf
      %2472 = vmax.xlane.f32.xlu0 %v2471
      %v2473 = vpop.xlane.xlu0 %2472
      %v2474 = vsel %vm2200, %v2424, -inf
      %2475 = vmax.xlane.f32.xlu0 %v2474
      %v2476 = vpop.xlane.xlu0 %2475
      %v2477 = vsel %vm2200, %v2425, -inf
      %2478 = vmax.xlane.f32.xlu0 %v2477
      %v2479 = vpop.xlane.xlu0 %2478
      %v2480 = vsel %vm2200, %v2426, -inf
      %2481 = vmax.xlane.f32.xlu0 %v2480
      %v2482 = vpop.xlane.xlu0 %2481
      %v2483 = vsel %vm2200, %v2427, -inf
      %2484 = vmax.xlane.f32.xlu0 %v2483
      %v2485 = vpop.xlane.xlu0 %2484
      %v2486 = vsel %vm2200, %v2428, -inf
      %2487 = vmax.xlane.f32.xlu0 %v2486
      %v2488 = vpop.xlane.xlu0 %2487
      %v2489 = vsel %vm2200, %v2429, -inf
      %2490 = vmax.xlane.f32.xlu0 %v2489
      %v2491 = vpop.xlane.xlu0 %2490
      %v2492 = vsel %vm2200, %v2430, -inf
      %2493 = vmax.xlane.f32.xlu0 %v2492
      %v2494 = vpop.xlane.xlu0 %2493
      %v2495 = vsel %vm2200, %v2431, -inf
      %2496 = vmax.xlane.f32.xlu0 %v2495
      %v2497 = vpop.xlane.xlu0 %2496
      %v2498 = vsel %vm2200, %v2432, -inf
      %2499 = vmax.xlane.f32.xlu0 %v2498
      %v2500 = vpop.xlane.xlu0 %2499
      %v2501 = vsel %vm2200, %v2433, -inf
      %2502 = vmax.xlane.f32.xlu0 %v2501
      %v2503 = vpop.xlane.xlu0 %2502
      %v2504 = vsel %vm2200, %v2434, -inf
      %2505 = vmax.xlane.f32.xlu0 %v2504
      %v2506 = vpop.xlane.xlu0 %2505
      %v2507 = vsel %vm2200, %v2435, -inf
      %2508 = vmax.xlane.f32.xlu0 %v2507
      %v2509 = vpop.xlane.xlu0 %2508
      %v2510 = vsel %vm2200, %v2436, -inf
      %2511 = vmax.xlane.f32.xlu0 %v2510
      %v2512 = vpop.xlane.xlu0 %2511
      %v2513 = vsel %vm2200, %v2437, -inf
      %2514 = vmax.xlane.f32.xlu0 %v2513
      %v2515 = vpop.xlane.xlu0 %2514
      %v2516 = vsel %vm2200, %v2438, -inf
      %2517 = vmax.xlane.f32.xlu0 %v2516
      %v2518 = vpop.xlane.xlu0 %2517
      %v2519 = vsel %vm2200, %v2439, -inf
      %2520 = vmax.xlane.f32.xlu0 %v2519
      %v2521 = vpop.xlane.xlu0 %2520
      %v2522 = vsel %vm2200, %v2440, -inf
      %2523 = vmax.xlane.f32.xlu0 %v2522
      %v2524 = vpop.xlane.xlu0 %2523
      %v2525 = vsel %vm2200, %v2441, -inf
      %2526 = vmax.xlane.f32.xlu0 %v2525
      %v2527 = vpop.xlane.xlu0 %2526
      %v2528 = vsel %vm2200, %v2442, -inf
      %2529 = vmax.xlane.f32.xlu0 %v2528
      %v2530 = vpop.xlane.xlu0 %2529
      %v2531 = vsel %vm2200, %v2443, -inf
      %2532 = vmax.xlane.f32.xlu0 %v2531
      %v2533 = vpop.xlane.xlu0 %2532
      %v2534 = vsel %vm2200, %v2444, -inf
      %2535 = vmax.xlane.f32.xlu0 %v2534
      %v2536 = vpop.xlane.xlu0 %2535
      %v2537 = vsel %vm2200, %v2445, -inf
      %2538 = vmax.xlane.f32.xlu0 %v2537
      %v2539 = vpop.xlane.xlu0 %2538
      %v2540 = vsel %vm2200, %v2446, -inf
      %2541 = vmax.xlane.f32.xlu0 %v2540
      %v2542 = vpop.xlane.xlu0 %2541
      %v2543 = vsub.f32 %v2415, %v2449
      %v2544 = vsub.f32 %v2416, %v2452
      %v2545 = vsub.f32 %v2417, %v2455
      %v2546 = vsub.f32 %v2418, %v2458
      %v2547 = vsub.f32 %v2419, %v2461
      %v2548 = vsub.f32 %v2420, %v2464
      %v2549 = vsub.f32 %v2421, %v2467
      %v2550 = vsub.f32 %v2422, %v2470
      %v2551 = vsub.f32 %v2423, %v2473
      %v2552 = vsub.f32 %v2424, %v2476
      %v2553 = vsub.f32 %v2425, %v2479
      %v2554 = vsub.f32 %v2426, %v2482
      %v2555 = vsub.f32 %v2427, %v2485
      %v2556 = vsub.f32 %v2428, %v2488
      %v2557 = vsub.f32 %v2429, %v2491
      %v2558 = vsub.f32 %v2430, %v2494
      %v2559 = vsub.f32 %v2431, %v2497
      %v2560 = vsub.f32 %v2432, %v2500
      %v2561 = vsub.f32 %v2433, %v2503
      %v2562 = vsub.f32 %v2434, %v2506
      %v2563 = vsub.f32 %v2435, %v2509
      %v2564 = vsub.f32 %v2436, %v2512
      %v2565 = vsub.f32 %v2437, %v2515
      %v2566 = vsub.f32 %v2438, %v2518
      %v2567 = vsub.f32 %v2439, %v2521
      %v2568 = vsub.f32 %v2440, %v2524
      %v2569 = vsub.f32 %v2441, %v2527
      %v2570 = vsub.f32 %v2442, %v2530
      %v2571 = vsub.f32 %v2443, %v2533
      %v2572 = vsub.f32 %v2444, %v2536
      %v2573 = vsub.f32 %v2445, %v2539
      %v2574 = vsub.f32 %v2446, %v2542
      %v2575 = vmul.f32 %v2543, 1.442695
      %v2576 = vpow.pop %v2575
      %v2577 = vmul.f32 %v2544, 1.442695
      %v2578 = vpow.pop %v2577
      %v2579 = vmul.f32 %v2545, 1.442695
      %v2580 = vpow.pop %v2579
      %v2581 = vmul.f32 %v2546, 1.442695
      %v2582 = vpow.pop %v2581
      %v2583 = vmul.f32 %v2547, 1.442695
      %v2584 = vpow.pop %v2583
      %v2585 = vmul.f32 %v2548, 1.442695
      %v2586 = vpow.pop %v2585
      %v2587 = vmul.f32 %v2549, 1.442695
      %v2588 = vpow.pop %v2587
      %v2589 = vmul.f32 %v2550, 1.442695
      %v2590 = vpow.pop %v2589
      %v2591 = vmul.f32 %v2551, 1.442695
      %v2592 = vpow.pop %v2591
      %v2593 = vmul.f32 %v2552, 1.442695
      %v2594 = vpow.pop %v2593
      %v2595 = vmul.f32 %v2553, 1.442695
      %v2596 = vpow.pop %v2595
      %v2597 = vmul.f32 %v2554, 1.442695
      %v2598 = vpow.pop %v2597
      %v2599 = vmul.f32 %v2555, 1.442695
      %v2600 = vpow.pop %v2599
      %v2601 = vmul.f32 %v2556, 1.442695
      %v2602 = vpow.pop %v2601
      %v2603 = vmul.f32 %v2557, 1.442695
      %v2604 = vpow.pop %v2603
      %v2605 = vmul.f32 %v2558, 1.442695
      %v2606 = vpow.pop %v2605
      %v2607 = vmul.f32 %v2559, 1.442695
      %v2608 = vpow.pop %v2607
      %v2609 = vmul.f32 %v2560, 1.442695
      %v2610 = vpow.pop %v2609
      %v2611 = vmul.f32 %v2561, 1.442695
      %v2612 = vpow.pop %v2611
      %v2613 = vmul.f32 %v2562, 1.442695
      %v2614 = vpow.pop %v2613
      %v2615 = vmul.f32 %v2563, 1.442695
      %v2616 = vpow.pop %v2615
      %v2617 = vmul.f32 %v2564, 1.442695
      %v2618 = vpow.pop %v2617
      %v2619 = vmul.f32 %v2565, 1.442695
      %v2620 = vpow.pop %v2619
      %v2621 = vmul.f32 %v2566, 1.442695
      %v2622 = vpow.pop %v2621
      %v2623 = vmul.f32 %v2567, 1.442695
      %v2624 = vpow.pop %v2623
      %v2625 = vmul.f32 %v2568, 1.442695
      %v2626 = vpow.pop %v2625
      %v2627 = vmul.f32 %v2569, 1.442695
      %v2628 = vpow.pop %v2627
      %v2629 = vmul.f32 %v2570, 1.442695
      %v2630 = vpow.pop %v2629
      %v2631 = vmul.f32 %v2571, 1.442695
      %v2632 = vpow.pop %v2631
      %v2633 = vmul.f32 %v2572, 1.442695
      %v2634 = vpow.pop %v2633
      %v2635 = vmul.f32 %v2573, 1.442695
      %v2636 = vpow.pop %v2635
      %v2637 = vmul.f32 %v2574, 1.442695
      %v2638 = vpow.pop %v2637
      %v2639 = vsel %vm2200, %v2576, 0.0
      %2640 = vadd.xlane.f32.xlu0 %v2639
      %v2641 = vpop.xlane.xlu0 %2640
      %v2642 = vsel %vm2200, %v2578, 0.0
      %2643 = vadd.xlane.f32.xlu0 %v2642
      %v2644 = vpop.xlane.xlu0 %2643
      %v2645 = vsel %vm2200, %v2580, 0.0
      %2646 = vadd.xlane.f32.xlu0 %v2645
      %v2647 = vpop.xlane.xlu0 %2646
      %v2648 = vsel %vm2200, %v2582, 0.0
      %2649 = vadd.xlane.f32.xlu0 %v2648
      %v2650 = vpop.xlane.xlu0 %2649
      %v2651 = vsel %vm2200, %v2584, 0.0
      %2652 = vadd.xlane.f32.xlu0 %v2651
      %v2653 = vpop.xlane.xlu0 %2652
      %v2654 = vsel %vm2200, %v2586, 0.0
      %2655 = vadd.xlane.f32.xlu0 %v2654
      %v2656 = vpop.xlane.xlu0 %2655
      %v2657 = vsel %vm2200, %v2588, 0.0
      %2658 = vadd.xlane.f32.xlu0 %v2657
      %v2659 = vpop.xlane.xlu0 %2658
      %v2660 = vsel %vm2200, %v2590, 0.0
      %2661 = vadd.xlane.f32.xlu0 %v2660
      %v2662 = vpop.xlane.xlu0 %2661
      %v2663 = vsel %vm2200, %v2592, 0.0
      %2664 = vadd.xlane.f32.xlu0 %v2663
      %v2665 = vpop.xlane.xlu0 %2664
      %v2666 = vsel %vm2200, %v2594, 0.0
      %2667 = vadd.xlane.f32.xlu0 %v2666
      %v2668 = vpop.xlane.xlu0 %2667
      %v2669 = vsel %vm2200, %v2596, 0.0
      %2670 = vadd.xlane.f32.xlu0 %v2669
      %v2671 = vpop.xlane.xlu0 %2670
      %v2672 = vsel %vm2200, %v2598, 0.0
      %2673 = vadd.xlane.f32.xlu0 %v2672
      %v2674 = vpop.xlane.xlu0 %2673
      %v2675 = vsel %vm2200, %v2600, 0.0
      %2676 = vadd.xlane.f32.xlu0 %v2675
      %v2677 = vpop.xlane.xlu0 %2676
      %v2678 = vsel %vm2200, %v2602, 0.0
      %2679 = vadd.xlane.f32.xlu0 %v2678
      %v2680 = vpop.xlane.xlu0 %2679
      %v2681 = vsel %vm2200, %v2604, 0.0
      %2682 = vadd.xlane.f32.xlu0 %v2681
      %v2683 = vpop.xlane.xlu0 %2682
      %v2684 = vsel %vm2200, %v2606, 0.0
      %2685 = vadd.xlane.f32.xlu0 %v2684
      %v2686 = vpop.xlane.xlu0 %2685
      %v2687 = vsel %vm2200, %v2608, 0.0
      %2688 = vadd.xlane.f32.xlu0 %v2687
      %v2689 = vpop.xlane.xlu0 %2688
      %v2690 = vsel %vm2200, %v2610, 0.0
      %2691 = vadd.xlane.f32.xlu0 %v2690
      %v2692 = vpop.xlane.xlu0 %2691
      %v2693 = vsel %vm2200, %v2612, 0.0
      %2694 = vadd.xlane.f32.xlu0 %v2693
      %v2695 = vpop.xlane.xlu0 %2694
      %v2696 = vsel %vm2200, %v2614, 0.0
      %2697 = vadd.xlane.f32.xlu0 %v2696
      %v2698 = vpop.xlane.xlu0 %2697
      %v2699 = vsel %vm2200, %v2616, 0.0
      %2700 = vadd.xlane.f32.xlu0 %v2699
      %v2701 = vpop.xlane.xlu0 %2700
      %v2702 = vsel %vm2200, %v2618, 0.0
      %2703 = vadd.xlane.f32.xlu0 %v2702
      %v2704 = vpop.xlane.xlu0 %2703
      %v2705 = vsel %vm2200, %v2620, 0.0
      %2706 = vadd.xlane.f32.xlu0 %v2705
      %v2707 = vpop.xlane.xlu0 %2706
      %v2708 = vsel %vm2200, %v2622, 0.0
      %2709 = vadd.xlane.f32.xlu0 %v2708
      %v2710 = vpop.xlane.xlu0 %2709
      %v2711 = vsel %vm2200, %v2624, 0.0
      %2712 = vadd.xlane.f32.xlu0 %v2711
      %v2713 = vpop.xlane.xlu0 %2712
      %v2714 = vsel %vm2200, %v2626, 0.0
      %2715 = vadd.xlane.f32.xlu0 %v2714
      %v2716 = vpop.xlane.xlu0 %2715
      %v2717 = vsel %vm2200, %v2628, 0.0
      %2718 = vadd.xlane.f32.xlu0 %v2717
      %v2719 = vpop.xlane.xlu0 %2718
      %v2720 = vsel %vm2200, %v2630, 0.0
      %2721 = vadd.xlane.f32.xlu0 %v2720
      %v2722 = vpop.xlane.xlu0 %2721
      %v2723 = vsel %vm2200, %v2632, 0.0
      %2724 = vadd.xlane.f32.xlu0 %v2723
      %v2725 = vpop.xlane.xlu0 %2724
      %v2726 = vsel %vm2200, %v2634, 0.0
      %2727 = vadd.xlane.f32.xlu0 %v2726
      %v2728 = vpop.xlane.xlu0 %2727
      %v2729 = vsel %vm2200, %v2636, 0.0
      %2730 = vadd.xlane.f32.xlu0 %v2729
      %v2731 = vpop.xlane.xlu0 %2730
      %v2732 = vsel %vm2200, %v2638, 0.0
      %2733 = vadd.xlane.f32.xlu0 %v2732
      %v2734 = vpop.xlane.xlu0 %2733
      %v2735 = vrcp.pop %v2641
      %v2736 = vmul.f32 %v2576, %v2735
      %v2737 = vrcp.pop %v2644
      %v2738 = vmul.f32 %v2578, %v2737
      %v2739 = vrcp.pop %v2647
      %v2740 = vmul.f32 %v2580, %v2739
      %v2741 = vrcp.pop %v2650
      %v2742 = vmul.f32 %v2582, %v2741
      %v2743 = vrcp.pop %v2653
      %v2744 = vmul.f32 %v2584, %v2743
      %v2745 = vrcp.pop %v2656
      %v2746 = vmul.f32 %v2586, %v2745
      %v2747 = vrcp.pop %v2659
      %v2748 = vmul.f32 %v2588, %v2747
      %v2749 = vrcp.pop %v2662
      %v2750 = vmul.f32 %v2590, %v2749
      %v2751 = vrcp.pop %v2665
      %v2752 = vmul.f32 %v2592, %v2751
      %v2753 = vrcp.pop %v2668
      %v2754 = vmul.f32 %v2594, %v2753
      %v2755 = vrcp.pop %v2671
      %v2756 = vmul.f32 %v2596, %v2755
      %v2757 = vrcp.pop %v2674
      %v2758 = vmul.f32 %v2598, %v2757
      %v2759 = vrcp.pop %v2677
      %v2760 = vmul.f32 %v2600, %v2759
      %v2761 = vrcp.pop %v2680
      %v2762 = vmul.f32 %v2602, %v2761
      %v2763 = vrcp.pop %v2683
      %v2764 = vmul.f32 %v2604, %v2763
      %v2765 = vrcp.pop %v2686
      %v2766 = vmul.f32 %v2606, %v2765
      %v2767 = vrcp.pop %v2689
      %v2768 = vmul.f32 %v2608, %v2767
      %v2769 = vrcp.pop %v2692
      %v2770 = vmul.f32 %v2610, %v2769
      %v2771 = vrcp.pop %v2695
      %v2772 = vmul.f32 %v2612, %v2771
      %v2773 = vrcp.pop %v2698
      %v2774 = vmul.f32 %v2614, %v2773
      %v2775 = vrcp.pop %v2701
      %v2776 = vmul.f32 %v2616, %v2775
      %v2777 = vrcp.pop %v2704
      %v2778 = vmul.f32 %v2618, %v2777
      %v2779 = vrcp.pop %v2707
      %v2780 = vmul.f32 %v2620, %v2779
      %v2781 = vrcp.pop %v2710
      %v2782 = vmul.f32 %v2622, %v2781
      %v2783 = vrcp.pop %v2713
      %v2784 = vmul.f32 %v2624, %v2783
      %v2785 = vrcp.pop %v2716
      %v2786 = vmul.f32 %v2626, %v2785
      %v2787 = vrcp.pop %v2719
      %v2788 = vmul.f32 %v2628, %v2787
      %v2789 = vrcp.pop %v2722
      %v2790 = vmul.f32 %v2630, %v2789
      %v2791 = vrcp.pop %v2725
      %v2792 = vmul.f32 %v2632, %v2791
      %v2793 = vrcp.pop %v2728
      %v2794 = vmul.f32 %v2634, %v2793
      %v2795 = vrcp.pop %v2731
      %v2796 = vmul.f32 %v2636, %v2795
      %v2797 = vrcp.pop %v2734
      %v2798 = vmul.f32 %v2638, %v2797
      %2800 = vset.pattern.permute.xlu0 0
      %2801 = vperm.xlu0 %2800, %v2736
      %v2802 = vpop.permute.xlu0 %2801
      %2805 = vset.pattern.permute.xlu0 0
      %2806 = vperm.xlu0 %2805, %v2738
      %v2807 = vpop.permute.xlu0 %2806
      %2810 = vset.pattern.permute.xlu0 0
      %2811 = vperm.xlu0 %2810, %v2740
      %v2812 = vpop.permute.xlu0 %2811
      %2815 = vset.pattern.permute.xlu0 0
      %2816 = vperm.xlu0 %2815, %v2742
      %v2817 = vpop.permute.xlu0 %2816
      %2820 = vset.pattern.permute.xlu0 0
      %2821 = vperm.xlu0 %2820, %v2744
      %v2822 = vpop.permute.xlu0 %2821
      %2825 = vset.pattern.permute.xlu0 0
      %2826 = vperm.xlu0 %2825, %v2746
      %v2827 = vpop.permute.xlu0 %2826
      %2830 = vset.pattern.permute.xlu0 0
      %2831 = vperm.xlu0 %2830, %v2748
      %v2832 = vpop.permute.xlu0 %2831
      %2835 = vset.pattern.permute.xlu0 0
      %2836 = vperm.xlu0 %2835, %v2750
      %v2837 = vpop.permute.xlu0 %2836
      %2840 = vset.pattern.permute.xlu0 0
      %2841 = vperm.xlu0 %2840, %v2752
      %v2842 = vpop.permute.xlu0 %2841
      %2845 = vset.pattern.permute.xlu0 0
      %2846 = vperm.xlu0 %2845, %v2754
      %v2847 = vpop.permute.xlu0 %2846
      %2850 = vset.pattern.permute.xlu0 0
      %2851 = vperm.xlu0 %2850, %v2756
      %v2852 = vpop.permute.xlu0 %2851
      %2855 = vset.pattern.permute.xlu0 0
      %2856 = vperm.xlu0 %2855, %v2758
      %v2857 = vpop.permute.xlu0 %2856
      %2860 = vset.pattern.permute.xlu0 0
      %2861 = vperm.xlu0 %2860, %v2760
      %v2862 = vpop.permute.xlu0 %2861
      %2865 = vset.pattern.permute.xlu0 0
      %2866 = vperm.xlu0 %2865, %v2762
      %v2867 = vpop.permute.xlu0 %2866
      %2870 = vset.pattern.permute.xlu0 0
      %2871 = vperm.xlu0 %2870, %v2764
      %v2872 = vpop.permute.xlu0 %2871
      %2875 = vset.pattern.permute.xlu0 0
      %2876 = vperm.xlu0 %2875, %v2766
      %v2877 = vpop.permute.xlu0 %2876
      %2880 = vset.pattern.permute.xlu0 0
      %2881 = vperm.xlu0 %2880, %v2768
      %v2882 = vpop.permute.xlu0 %2881
      %2885 = vset.pattern.permute.xlu0 0
      %2886 = vperm.xlu0 %2885, %v2770
      %v2887 = vpop.permute.xlu0 %2886
      %2890 = vset.pattern.permute.xlu0 0
      %2891 = vperm.xlu0 %2890, %v2772
      %v2892 = vpop.permute.xlu0 %2891
      %2895 = vset.pattern.permute.xlu0 0
      %2896 = vperm.xlu0 %2895, %v2774
      %v2897 = vpop.permute.xlu0 %2896
      %2900 = vset.pattern.permute.xlu0 0
      %2901 = vperm.xlu0 %2900, %v2776
      %v2902 = vpop.permute.xlu0 %2901
      %2905 = vset.pattern.permute.xlu0 0
      %2906 = vperm.xlu0 %2905, %v2778
      %v2907 = vpop.permute.xlu0 %2906
      %2910 = vset.pattern.permute.xlu0 0
      %2911 = vperm.xlu0 %2910, %v2780
      %v2912 = vpop.permute.xlu0 %2911
      %2915 = vset.pattern.permute.xlu0 0
      %2916 = vperm.xlu0 %2915, %v2782
      %v2917 = vpop.permute.xlu0 %2916
      %2920 = vset.pattern.permute.xlu0 0
      %2921 = vperm.xlu0 %2920, %v2784
      %v2922 = vpop.permute.xlu0 %2921
      %2925 = vset.pattern.permute.xlu0 0
      %2926 = vperm.xlu0 %2925, %v2786
      %v2927 = vpop.permute.xlu0 %2926
      %2930 = vset.pattern.permute.xlu0 0
      %2931 = vperm.xlu0 %2930, %v2788
      %v2932 = vpop.permute.xlu0 %2931
      %2935 = vset.pattern.permute.xlu0 0
      %2936 = vperm.xlu0 %2935, %v2790
      %v2937 = vpop.permute.xlu0 %2936
      %2940 = vset.pattern.permute.xlu0 0
      %2941 = vperm.xlu0 %2940, %v2792
      %v2942 = vpop.permute.xlu0 %2941
      %2945 = vset.pattern.permute.xlu0 0
      %2946 = vperm.xlu0 %2945, %v2794
      %v2947 = vpop.permute.xlu0 %2946
      %2950 = vset.pattern.permute.xlu0 0
      %2951 = vperm.xlu0 %2950, %v2796
      %v2952 = vpop.permute.xlu0 %2951
      %2955 = vset.pattern.permute.xlu0 0
      %2956 = vperm.xlu0 %2955, %v2798
      %v2957 = vpop.permute.xlu0 %2956
      %v2959 = vmul.f32 %v1837, %v2802
      %v2960 = vmul.f32 %v1838, %v2807
      %v2961 = vmul.f32 %v1839, %v2812
      %v2962 = vmul.f32 %v1840, %v2817
      %v2963 = vmul.f32 %v1841, %v2822
      %v2964 = vmul.f32 %v1842, %v2827
      %v2965 = vmul.f32 %v1843, %v2832
      %v2966 = vmul.f32 %v1844, %v2837
      %v2967 = vmul.f32 %v1845, %v2842
      %v2968 = vmul.f32 %v1846, %v2847
      %v2969 = vmul.f32 %v1847, %v2852
      %v2970 = vmul.f32 %v1848, %v2857
      %v2971 = vmul.f32 %v1849, %v2862
      %v2972 = vmul.f32 %v1850, %v2867
      %v2973 = vmul.f32 %v1851, %v2872
      %v2974 = vmul.f32 %v1852, %v2877
      %v2975 = vmul.f32 %v1853, %v2882
      %v2976 = vmul.f32 %v1854, %v2887
      %v2977 = vmul.f32 %v1855, %v2892
      %v2978 = vmul.f32 %v1856, %v2897
      %v2979 = vmul.f32 %v1857, %v2902
      %v2980 = vmul.f32 %v1858, %v2907
      %v2981 = vmul.f32 %v1859, %v2912
      %v2982 = vmul.f32 %v1860, %v2917
      %v2983 = vmul.f32 %v1861, %v2922
      %v2984 = vmul.f32 %v1862, %v2927
      %v2985 = vmul.f32 %v1863, %v2932
      %v2986 = vmul.f32 %v1864, %v2937
      %v2987 = vmul.f32 %v1865, %v2942
      %v2988 = vmul.f32 %v1866, %v2947
      %v2989 = vmul.f32 %v1867, %v2952
      %v2990 = vmul.f32 %v1868, %v2957
      %v2991 = vadd.f32 %v2959, 0.0
      %v2992 = vadd.f32 %v2960, 0.0
      %v2993 = vadd.f32 %v2961, 0.0
      %v2994 = vadd.f32 %v2962, 0.0
      %v2995 = vadd.f32 %v2963, 0.0
      %v2996 = vadd.f32 %v2964, 0.0
      %v2997 = vadd.f32 %v2965, 0.0
      %v2998 = vadd.f32 %v2966, 0.0
      %v2999 = vadd.f32 %v2967, 0.0
      %v3000 = vadd.f32 %v2968, 0.0
      %v3001 = vadd.f32 %v2969, 0.0
      %v3002 = vadd.f32 %v2970, 0.0
      %v3003 = vadd.f32 %v2971, 0.0
      %v3004 = vadd.f32 %v2972, 0.0
      %v3005 = vadd.f32 %v2973, 0.0
      %v3006 = vadd.f32 %v2974, 0.0
      %v3007 = vadd.f32 %v2975, 0.0
      %v3008 = vadd.f32 %v2976, 0.0
      %v3009 = vadd.f32 %v2977, 0.0
      %v3010 = vadd.f32 %v2978, 0.0
      %v3011 = vadd.f32 %v2979, 0.0
      %v3012 = vadd.f32 %v2980, 0.0
      %v3013 = vadd.f32 %v2981, 0.0
      %v3014 = vadd.f32 %v2982, 0.0
      %v3015 = vadd.f32 %v2983, 0.0
      %v3016 = vadd.f32 %v2984, 0.0
      %v3017 = vadd.f32 %v2985, 0.0
      %v3018 = vadd.f32 %v2986, 0.0
      %v3019 = vadd.f32 %v2987, 0.0
      %v3020 = vadd.f32 %v2988, 0.0
      %v3021 = vadd.f32 %v2989, 0.0
      %v3022 = vadd.f32 %v2990, 0.0
      %3023 = vset.pattern.permute.xlu0 1
      %3024 = vperm.xlu0 %3023, %v2736
      %v3025 = vpop.permute.xlu0 %3024
      %3027 = vset.pattern.permute.xlu0 1
      %3028 = vperm.xlu0 %3027, %v2738
      %v3029 = vpop.permute.xlu0 %3028
      %3031 = vset.pattern.permute.xlu0 1
      %3032 = vperm.xlu0 %3031, %v2740
      %v3033 = vpop.permute.xlu0 %3032
      %3035 = vset.pattern.permute.xlu0 1
      %3036 = vperm.xlu0 %3035, %v2742
      %v3037 = vpop.permute.xlu0 %3036
      %3039 = vset.pattern.permute.xlu0 1
      %3040 = vperm.xlu0 %3039, %v2744
      %v3041 = vpop.permute.xlu0 %3040
      %3043 = vset.pattern.permute.xlu0 1
      %3044 = vperm.xlu0 %3043, %v2746
      %v3045 = vpop.permute.xlu0 %3044
      %3047 = vset.pattern.permute.xlu0 1
      %3048 = vperm.xlu0 %3047, %v2748
      %v3049 = vpop.permute.xlu0 %3048
      %3051 = vset.pattern.permute.xlu0 1
      %3052 = vperm.xlu0 %3051, %v2750
      %v3053 = vpop.permute.xlu0 %3052
      %3055 = vset.pattern.permute.xlu0 1
      %3056 = vperm.xlu0 %3055, %v2752
      %v3057 = vpop.permute.xlu0 %3056
      %3059 = vset.pattern.permute.xlu0 1
      %3060 = vperm.xlu0 %3059, %v2754
      %v3061 = vpop.permute.xlu0 %3060
      %3063 = vset.pattern.permute.xlu0 1
      %3064 = vperm.xlu0 %3063, %v2756
      %v3065 = vpop.permute.xlu0 %3064
      %3067 = vset.pattern.permute.xlu0 1
      %3068 = vperm.xlu0 %3067, %v2758
      %v3069 = vpop.permute.xlu0 %3068
      %3071 = vset.pattern.permute.xlu0 1
      %3072 = vperm.xlu0 %3071, %v2760
      %v3073 = vpop.permute.xlu0 %3072
      %3075 = vset.pattern.permute.xlu0 1
      %3076 = vperm.xlu0 %3075, %v2762
      %v3077 = vpop.permute.xlu0 %3076
      %3079 = vset.pattern.permute.xlu0 1
      %3080 = vperm.xlu0 %3079, %v2764
      %v3081 = vpop.permute.xlu0 %3080
      %3083 = vset.pattern.permute.xlu0 1
      %3084 = vperm.xlu0 %3083, %v2766
      %v3085 = vpop.permute.xlu0 %3084
      %3087 = vset.pattern.permute.xlu0 1
      %3088 = vperm.xlu0 %3087, %v2768
      %v3089 = vpop.permute.xlu0 %3088
      %3091 = vset.pattern.permute.xlu0 1
      %3092 = vperm.xlu0 %3091, %v2770
      %v3093 = vpop.permute.xlu0 %3092
      %3095 = vset.pattern.permute.xlu0 1
      %3096 = vperm.xlu0 %3095, %v2772
      %v3097 = vpop.permute.xlu0 %3096
      %3099 = vset.pattern.permute.xlu0 1
      %3100 = vperm.xlu0 %3099, %v2774
      %v3101 = vpop.permute.xlu0 %3100
      %3103 = vset.pattern.permute.xlu0 1
      %3104 = vperm.xlu0 %3103, %v2776
      %v3105 = vpop.permute.xlu0 %3104
      %3107 = vset.pattern.permute.xlu0 1
      %3108 = vperm.xlu0 %3107, %v2778
      %v3109 = vpop.permute.xlu0 %3108
      %3111 = vset.pattern.permute.xlu0 1
      %3112 = vperm.xlu0 %3111, %v2780
      %v3113 = vpop.permute.xlu0 %3112
      %3115 = vset.pattern.permute.xlu0 1
      %3116 = vperm.xlu0 %3115, %v2782
      %v3117 = vpop.permute.xlu0 %3116
      %3119 = vset.pattern.permute.xlu0 1
      %3120 = vperm.xlu0 %3119, %v2784
      %v3121 = vpop.permute.xlu0 %3120
      %3123 = vset.pattern.permute.xlu0 1
      %3124 = vperm.xlu0 %3123, %v2786
      %v3125 = vpop.permute.xlu0 %3124
      %3127 = vset.pattern.permute.xlu0 1
      %3128 = vperm.xlu0 %3127, %v2788
      %v3129 = vpop.permute.xlu0 %3128
      %3131 = vset.pattern.permute.xlu0 1
      %3132 = vperm.xlu0 %3131, %v2790
      %v3133 = vpop.permute.xlu0 %3132
      %3135 = vset.pattern.permute.xlu0 1
      %3136 = vperm.xlu0 %3135, %v2792
      %v3137 = vpop.permute.xlu0 %3136
      %3139 = vset.pattern.permute.xlu0 1
      %3140 = vperm.xlu0 %3139, %v2794
      %v3141 = vpop.permute.xlu0 %3140
      %3143 = vset.pattern.permute.xlu0 1
      %3144 = vperm.xlu0 %3143, %v2796
      %v3145 = vpop.permute.xlu0 %3144
      %3147 = vset.pattern.permute.xlu0 1
      %3148 = vperm.xlu0 %3147, %v2798
      %v3149 = vpop.permute.xlu0 %3148
      %v3151 = vmul.f32 %v1837, %v3025
      %v3152 = vmul.f32 %v1838, %v3029
      %v3153 = vmul.f32 %v1839, %v3033
      %v3154 = vmul.f32 %v1840, %v3037
      %v3155 = vmul.f32 %v1841, %v3041
      %v3156 = vmul.f32 %v1842, %v3045
      %v3157 = vmul.f32 %v1843, %v3049
      %v3158 = vmul.f32 %v1844, %v3053
      %v3159 = vmul.f32 %v1845, %v3057
      %v3160 = vmul.f32 %v1846, %v3061
      %v3161 = vmul.f32 %v1847, %v3065
      %v3162 = vmul.f32 %v1848, %v3069
      %v3163 = vmul.f32 %v1849, %v3073
      %v3164 = vmul.f32 %v1850, %v3077
      %v3165 = vmul.f32 %v1851, %v3081
      %v3166 = vmul.f32 %v1852, %v3085
      %v3167 = vmul.f32 %v1853, %v3089
      %v3168 = vmul.f32 %v1854, %v3093
      %v3169 = vmul.f32 %v1855, %v3097
      %v3170 = vmul.f32 %v1856, %v3101
      %v3171 = vmul.f32 %v1857, %v3105
      %v3172 = vmul.f32 %v1858, %v3109
      %v3173 = vmul.f32 %v1859, %v3113
      %v3174 = vmul.f32 %v1860, %v3117
      %v3175 = vmul.f32 %v1861, %v3121
      %v3176 = vmul.f32 %v1862, %v3125
      %v3177 = vmul.f32 %v1863, %v3129
      %v3178 = vmul.f32 %v1864, %v3133
      %v3179 = vmul.f32 %v1865, %v3137
      %v3180 = vmul.f32 %v1866, %v3141
      %v3181 = vmul.f32 %v1867, %v3145
      %v3182 = vmul.f32 %v1868, %v3149
      %3215 = vrot.lane.b32.xlu0 %v3151, 124
      %v3216 = vpop.permute.xlu0 %3215
      %3217 = vrot.lane.b32.xlu0 %v3152, 124
      %v3218 = vpop.permute.xlu0 %3217
      %3219 = vrot.lane.b32.xlu0 %v3153, 124
      %v3220 = vpop.permute.xlu0 %3219
      %3221 = vrot.lane.b32.xlu0 %v3154, 124
      %v3222 = vpop.permute.xlu0 %3221
      %3223 = vrot.lane.b32.xlu0 %v3155, 124
      %v3224 = vpop.permute.xlu0 %3223
      %3225 = vrot.lane.b32.xlu0 %v3156, 124
      %v3226 = vpop.permute.xlu0 %3225
      %3227 = vrot.lane.b32.xlu0 %v3157, 124
      %v3228 = vpop.permute.xlu0 %3227
      %3229 = vrot.lane.b32.xlu0 %v3158, 124
      %v3230 = vpop.permute.xlu0 %3229
      %3231 = vrot.lane.b32.xlu0 %v3159, 124
      %v3232 = vpop.permute.xlu0 %3231
      %3233 = vrot.lane.b32.xlu0 %v3160, 124
      %v3234 = vpop.permute.xlu0 %3233
      %3235 = vrot.lane.b32.xlu0 %v3161, 124
      %v3236 = vpop.permute.xlu0 %3235
      %3237 = vrot.lane.b32.xlu0 %v3162, 124
      %v3238 = vpop.permute.xlu0 %3237
      %3239 = vrot.lane.b32.xlu0 %v3163, 124
      %v3240 = vpop.permute.xlu0 %3239
      %3241 = vrot.lane.b32.xlu0 %v3164, 124
      %v3242 = vpop.permute.xlu0 %3241
      %3243 = vrot.lane.b32.xlu0 %v3165, 124
      %v3244 = vpop.permute.xlu0 %3243
      %3245 = vrot.lane.b32.xlu0 %v3166, 124
      %v3246 = vpop.permute.xlu0 %3245
      %3247 = vrot.lane.b32.xlu0 %v3167, 124
      %v3248 = vpop.permute.xlu0 %3247
      %3249 = vrot.lane.b32.xlu0 %v3168, 124
      %v3250 = vpop.permute.xlu0 %3249
      %3251 = vrot.lane.b32.xlu0 %v3169, 124
      %v3252 = vpop.permute.xlu0 %3251
      %3253 = vrot.lane.b32.xlu0 %v3170, 124
      %v3254 = vpop.permute.xlu0 %3253
      %3255 = vrot.lane.b32.xlu0 %v3171, 124
      %v3256 = vpop.permute.xlu0 %3255
      %3257 = vrot.lane.b32.xlu0 %v3172, 124
      %v3258 = vpop.permute.xlu0 %3257
      %3259 = vrot.lane.b32.xlu0 %v3173, 124
      %v3260 = vpop.permute.xlu0 %3259
      %3261 = vrot.lane.b32.xlu0 %v3174, 124
      %v3262 = vpop.permute.xlu0 %3261
      %3263 = vrot.lane.b32.xlu0 %v3175, 124
      %v3264 = vpop.permute.xlu0 %3263
      %3265 = vrot.lane.b32.xlu0 %v3176, 124
      %v3266 = vpop.permute.xlu0 %3265
      %3267 = vrot.lane.b32.xlu0 %v3177, 124
      %v3268 = vpop.permute.xlu0 %3267
      %3269 = vrot.lane.b32.xlu0 %v3178, 124
      %v3270 = vpop.permute.xlu0 %3269
      %3271 = vrot.lane.b32.xlu0 %v3179, 124
      %v3272 = vpop.permute.xlu0 %3271
      %3273 = vrot.lane.b32.xlu0 %v3180, 124
      %v3274 = vpop.permute.xlu0 %3273
      %3275 = vrot.lane.b32.xlu0 %v3181, 124
      %v3276 = vpop.permute.xlu0 %3275
      %3277 = vrot.lane.b32.xlu0 %v3182, 124
      %v3278 = vpop.permute.xlu0 %3277
      %v3311 = vadd.f32 %v2991, %v3216
      %v3312 = vadd.f32 %v2992, %v3218
      %v3313 = vadd.f32 %v2993, %v3220
      %v3314 = vadd.f32 %v2994, %v3222
      %v3315 = vadd.f32 %v2995, %v3224
      %v3316 = vadd.f32 %v2996, %v3226
      %v3317 = vadd.f32 %v2997, %v3228
      %v3318 = vadd.f32 %v2998, %v3230
      %v3319 = vadd.f32 %v2999, %v3232
      %v3320 = vadd.f32 %v3000, %v3234
      %v3321 = vadd.f32 %v3001, %v3236
      %v3322 = vadd.f32 %v3002, %v3238
      %v3323 = vadd.f32 %v3003, %v3240
      %v3324 = vadd.f32 %v3004, %v3242
      %v3325 = vadd.f32 %v3005, %v3244
      %v3326 = vadd.f32 %v3006, %v3246
      %v3327 = vadd.f32 %v3007, %v3248
      %v3328 = vadd.f32 %v3008, %v3250
      %v3329 = vadd.f32 %v3009, %v3252
      %v3330 = vadd.f32 %v3010, %v3254
      %v3331 = vadd.f32 %v3011, %v3256
      %v3332 = vadd.f32 %v3012, %v3258
      %v3333 = vadd.f32 %v3013, %v3260
      %v3334 = vadd.f32 %v3014, %v3262
      %v3335 = vadd.f32 %v3015, %v3264
      %v3336 = vadd.f32 %v3016, %v3266
      %v3337 = vadd.f32 %v3017, %v3268
      %v3338 = vadd.f32 %v3018, %v3270
      %v3339 = vadd.f32 %v3019, %v3272
      %v3340 = vadd.f32 %v3020, %v3274
      %v3341 = vadd.f32 %v3021, %v3276
      %v3342 = vadd.f32 %v3022, %v3278
      %3343 = vset.pattern.permute.xlu0 2
      %3344 = vperm.xlu0 %3343, %v2736
      %v3345 = vpop.permute.xlu0 %3344
      %3347 = vset.pattern.permute.xlu0 2
      %3348 = vperm.xlu0 %3347, %v2738
      %v3349 = vpop.permute.xlu0 %3348
      %3351 = vset.pattern.permute.xlu0 2
      %3352 = vperm.xlu0 %3351, %v2740
      %v3353 = vpop.permute.xlu0 %3352
      %3355 = vset.pattern.permute.xlu0 2
      %3356 = vperm.xlu0 %3355, %v2742
      %v3357 = vpop.permute.xlu0 %3356
      %3359 = vset.pattern.permute.xlu0 2
      %3360 = vperm.xlu0 %3359, %v2744
      %v3361 = vpop.permute.xlu0 %3360
      %3363 = vset.pattern.permute.xlu0 2
      %3364 = vperm.xlu0 %3363, %v2746
      %v3365 = vpop.permute.xlu0 %3364
      %3367 = vset.pattern.permute.xlu0 2
      %3368 = vperm.xlu0 %3367, %v2748
      %v3369 = vpop.permute.xlu0 %3368
      %3371 = vset.pattern.permute.xlu0 2
      %3372 = vperm.xlu0 %3371, %v2750
      %v3373 = vpop.permute.xlu0 %3372
      %3375 = vset.pattern.permute.xlu0 2
      %3376 = vperm.xlu0 %3375, %v2752
      %v3377 = vpop.permute.xlu0 %3376
      %3379 = vset.pattern.permute.xlu0 2
      %3380 = vperm.xlu0 %3379, %v2754
      %v3381 = vpop.permute.xlu0 %3380
      %3383 = vset.pattern.permute.xlu0 2
      %3384 = vperm.xlu0 %3383, %v2756
      %v3385 = vpop.permute.xlu0 %3384
      %3387 = vset.pattern.permute.xlu0 2
      %3388 = vperm.xlu0 %3387, %v2758
      %v3389 = vpop.permute.xlu0 %3388
      %3391 = vset.pattern.permute.xlu0 2
      %3392 = vperm.xlu0 %3391, %v2760
      %v3393 = vpop.permute.xlu0 %3392
      %3395 = vset.pattern.permute.xlu0 2
      %3396 = vperm.xlu0 %3395, %v2762
      %v3397 = vpop.permute.xlu0 %3396
      %3399 = vset.pattern.permute.xlu0 2
      %3400 = vperm.xlu0 %3399, %v2764
      %v3401 = vpop.permute.xlu0 %3400
      %3403 = vset.pattern.permute.xlu0 2
      %3404 = vperm.xlu0 %3403, %v2766
      %v3405 = vpop.permute.xlu0 %3404
      %3407 = vset.pattern.permute.xlu0 2
      %3408 = vperm.xlu0 %3407, %v2768
      %v3409 = vpop.permute.xlu0 %3408
      %3411 = vset.pattern.permute.xlu0 2
      %3412 = vperm.xlu0 %3411, %v2770
      %v3413 = vpop.permute.xlu0 %3412
      %3415 = vset.pattern.permute.xlu0 2
      %3416 = vperm.xlu0 %3415, %v2772
      %v3417 = vpop.permute.xlu0 %3416
      %3419 = vset.pattern.permute.xlu0 2
      %3420 = vperm.xlu0 %3419, %v2774
      %v3421 = vpop.permute.xlu0 %3420
      %3423 = vset.pattern.permute.xlu0 2
      %3424 = vperm.xlu0 %3423, %v2776
      %v3425 = vpop.permute.xlu0 %3424
      %3427 = vset.pattern.permute.xlu0 2
      %3428 = vperm.xlu0 %3427, %v2778
      %v3429 = vpop.permute.xlu0 %3428
      %3431 = vset.pattern.permute.xlu0 2
      %3432 = vperm.xlu0 %3431, %v2780
      %v3433 = vpop.permute.xlu0 %3432
      %3435 = vset.pattern.permute.xlu0 2
      %3436 = vperm.xlu0 %3435, %v2782
      %v3437 = vpop.permute.xlu0 %3436
      %3439 = vset.pattern.permute.xlu0 2
      %3440 = vperm.xlu0 %3439, %v2784
      %v3441 = vpop.permute.xlu0 %3440
      %3443 = vset.pattern.permute.xlu0 2
      %3444 = vperm.xlu0 %3443, %v2786
      %v3445 = vpop.permute.xlu0 %3444
      %3447 = vset.pattern.permute.xlu0 2
      %3448 = vperm.xlu0 %3447, %v2788
      %v3449 = vpop.permute.xlu0 %3448
      %3451 = vset.pattern.permute.xlu0 2
      %3452 = vperm.xlu0 %3451, %v2790
      %v3453 = vpop.permute.xlu0 %3452
      %3455 = vset.pattern.permute.xlu0 2
      %3456 = vperm.xlu0 %3455, %v2792
      %v3457 = vpop.permute.xlu0 %3456
      %3459 = vset.pattern.permute.xlu0 2
      %3460 = vperm.xlu0 %3459, %v2794
      %v3461 = vpop.permute.xlu0 %3460
      %3463 = vset.pattern.permute.xlu0 2
      %3464 = vperm.xlu0 %3463, %v2796
      %v3465 = vpop.permute.xlu0 %3464
      %3467 = vset.pattern.permute.xlu0 2
      %3468 = vperm.xlu0 %3467, %v2798
      %v3469 = vpop.permute.xlu0 %3468
      %v3471 = vmul.f32 %v1837, %v3345
      %v3472 = vmul.f32 %v1838, %v3349
      %v3473 = vmul.f32 %v1839, %v3353
      %v3474 = vmul.f32 %v1840, %v3357
      %v3475 = vmul.f32 %v1841, %v3361
      %v3476 = vmul.f32 %v1842, %v3365
      %v3477 = vmul.f32 %v1843, %v3369
      %v3478 = vmul.f32 %v1844, %v3373
      %v3479 = vmul.f32 %v1845, %v3377
      %v3480 = vmul.f32 %v1846, %v3381
      %v3481 = vmul.f32 %v1847, %v3385
      %v3482 = vmul.f32 %v1848, %v3389
      %v3483 = vmul.f32 %v1849, %v3393
      %v3484 = vmul.f32 %v1850, %v3397
      %v3485 = vmul.f32 %v1851, %v3401
      %v3486 = vmul.f32 %v1852, %v3405
      %v3487 = vmul.f32 %v1853, %v3409
      %v3488 = vmul.f32 %v1854, %v3413
      %v3489 = vmul.f32 %v1855, %v3417
      %v3490 = vmul.f32 %v1856, %v3421
      %v3491 = vmul.f32 %v1857, %v3425
      %v3492 = vmul.f32 %v1858, %v3429
      %v3493 = vmul.f32 %v1859, %v3433
      %v3494 = vmul.f32 %v1860, %v3437
      %v3495 = vmul.f32 %v1861, %v3441
      %v3496 = vmul.f32 %v1862, %v3445
      %v3497 = vmul.f32 %v1863, %v3449
      %v3498 = vmul.f32 %v1864, %v3453
      %v3499 = vmul.f32 %v1865, %v3457
      %v3500 = vmul.f32 %v1866, %v3461
      %v3501 = vmul.f32 %v1867, %v3465
      %v3502 = vmul.f32 %v1868, %v3469
      %3535 = vrot.lane.b32.xlu0 %v3471, 120
      %v3536 = vpop.permute.xlu0 %3535
      %3537 = vrot.lane.b32.xlu0 %v3472, 120
      %v3538 = vpop.permute.xlu0 %3537
      %3539 = vrot.lane.b32.xlu0 %v3473, 120
      %v3540 = vpop.permute.xlu0 %3539
      %3541 = vrot.lane.b32.xlu0 %v3474, 120
      %v3542 = vpop.permute.xlu0 %3541
      %3543 = vrot.lane.b32.xlu0 %v3475, 120
      %v3544 = vpop.permute.xlu0 %3543
      %3545 = vrot.lane.b32.xlu0 %v3476, 120
      %v3546 = vpop.permute.xlu0 %3545
      %3547 = vrot.lane.b32.xlu0 %v3477, 120
      %v3548 = vpop.permute.xlu0 %3547
      %3549 = vrot.lane.b32.xlu0 %v3478, 120
      %v3550 = vpop.permute.xlu0 %3549
      %3551 = vrot.lane.b32.xlu0 %v3479, 120
      %v3552 = vpop.permute.xlu0 %3551
      %3553 = vrot.lane.b32.xlu0 %v3480, 120
      %v3554 = vpop.permute.xlu0 %3553
      %3555 = vrot.lane.b32.xlu0 %v3481, 120
      %v3556 = vpop.permute.xlu0 %3555
      %3557 = vrot.lane.b32.xlu0 %v3482, 120
      %v3558 = vpop.permute.xlu0 %3557
      %3559 = vrot.lane.b32.xlu0 %v3483, 120
      %v3560 = vpop.permute.xlu0 %3559
      %3561 = vrot.lane.b32.xlu0 %v3484, 120
      %v3562 = vpop.permute.xlu0 %3561
      %3563 = vrot.lane.b32.xlu0 %v3485, 120
      %v3564 = vpop.permute.xlu0 %3563
      %3565 = vrot.lane.b32.xlu0 %v3486, 120
      %v3566 = vpop.permute.xlu0 %3565
      %3567 = vrot.lane.b32.xlu0 %v3487, 120
      %v3568 = vpop.permute.xlu0 %3567
      %3569 = vrot.lane.b32.xlu0 %v3488, 120
      %v3570 = vpop.permute.xlu0 %3569
      %3571 = vrot.lane.b32.xlu0 %v3489, 120
      %v3572 = vpop.permute.xlu0 %3571
      %3573 = vrot.lane.b32.xlu0 %v3490, 120
      %v3574 = vpop.permute.xlu0 %3573
      %3575 = vrot.lane.b32.xlu0 %v3491, 120
      %v3576 = vpop.permute.xlu0 %3575
      %3577 = vrot.lane.b32.xlu0 %v3492, 120
      %v3578 = vpop.permute.xlu0 %3577
      %3579 = vrot.lane.b32.xlu0 %v3493, 120
      %v3580 = vpop.permute.xlu0 %3579
      %3581 = vrot.lane.b32.xlu0 %v3494, 120
      %v3582 = vpop.permute.xlu0 %3581
      %3583 = vrot.lane.b32.xlu0 %v3495, 120
      %v3584 = vpop.permute.xlu0 %3583
      %3585 = vrot.lane.b32.xlu0 %v3496, 120
      %v3586 = vpop.permute.xlu0 %3585
      %3587 = vrot.lane.b32.xlu0 %v3497, 120
      %v3588 = vpop.permute.xlu0 %3587
      %3589 = vrot.lane.b32.xlu0 %v3498, 120
      %v3590 = vpop.permute.xlu0 %3589
      %3591 = vrot.lane.b32.xlu0 %v3499, 120
      %v3592 = vpop.permute.xlu0 %3591
      %3593 = vrot.lane.b32.xlu0 %v3500, 120
      %v3594 = vpop.permute.xlu0 %3593
      %3595 = vrot.lane.b32.xlu0 %v3501, 120
      %v3596 = vpop.permute.xlu0 %3595
      %3597 = vrot.lane.b32.xlu0 %v3502, 120
      %v3598 = vpop.permute.xlu0 %3597
      %v3631 = vadd.f32 %v3311, %v3536
      %v3632 = vadd.f32 %v3312, %v3538
      %v3633 = vadd.f32 %v3313, %v3540
      %v3634 = vadd.f32 %v3314, %v3542
      %v3635 = vadd.f32 %v3315, %v3544
      %v3636 = vadd.f32 %v3316, %v3546
      %v3637 = vadd.f32 %v3317, %v3548
      %v3638 = vadd.f32 %v3318, %v3550
      %v3639 = vadd.f32 %v3319, %v3552
      %v3640 = vadd.f32 %v3320, %v3554
      %v3641 = vadd.f32 %v3321, %v3556
      %v3642 = vadd.f32 %v3322, %v3558
      %v3643 = vadd.f32 %v3323, %v3560
      %v3644 = vadd.f32 %v3324, %v3562
      %v3645 = vadd.f32 %v3325, %v3564
      %v3646 = vadd.f32 %v3326, %v3566
      %v3647 = vadd.f32 %v3327, %v3568
      %v3648 = vadd.f32 %v3328, %v3570
      %v3649 = vadd.f32 %v3329, %v3572
      %v3650 = vadd.f32 %v3330, %v3574
      %v3651 = vadd.f32 %v3331, %v3576
      %v3652 = vadd.f32 %v3332, %v3578
      %v3653 = vadd.f32 %v3333, %v3580
      %v3654 = vadd.f32 %v3334, %v3582
      %v3655 = vadd.f32 %v3335, %v3584
      %v3656 = vadd.f32 %v3336, %v3586
      %v3657 = vadd.f32 %v3337, %v3588
      %v3658 = vadd.f32 %v3338, %v3590
      %v3659 = vadd.f32 %v3339, %v3592
      %v3660 = vadd.f32 %v3340, %v3594
      %v3661 = vadd.f32 %v3341, %v3596
      %v3662 = vadd.f32 %v3342, %v3598
      %3663 = vset.pattern.permute.xlu0 3
      %3664 = vperm.xlu0 %3663, %v2736
      %v3665 = vpop.permute.xlu0 %3664
      %3667 = vset.pattern.permute.xlu0 3
      %3668 = vperm.xlu0 %3667, %v2738
      %v3669 = vpop.permute.xlu0 %3668
      %3671 = vset.pattern.permute.xlu0 3
      %3672 = vperm.xlu0 %3671, %v2740
      %v3673 = vpop.permute.xlu0 %3672
      %3675 = vset.pattern.permute.xlu0 3
      %3676 = vperm.xlu0 %3675, %v2742
      %v3677 = vpop.permute.xlu0 %3676
      %3679 = vset.pattern.permute.xlu0 3
      %3680 = vperm.xlu0 %3679, %v2744
      %v3681 = vpop.permute.xlu0 %3680
      %3683 = vset.pattern.permute.xlu0 3
      %3684 = vperm.xlu0 %3683, %v2746
      %v3685 = vpop.permute.xlu0 %3684
      %3687 = vset.pattern.permute.xlu0 3
      %3688 = vperm.xlu0 %3687, %v2748
      %v3689 = vpop.permute.xlu0 %3688
      %3691 = vset.pattern.permute.xlu0 3
      %3692 = vperm.xlu0 %3691, %v2750
      %v3693 = vpop.permute.xlu0 %3692
      %3695 = vset.pattern.permute.xlu0 3
      %3696 = vperm.xlu0 %3695, %v2752
      %v3697 = vpop.permute.xlu0 %3696
      %3699 = vset.pattern.permute.xlu0 3
      %3700 = vperm.xlu0 %3699, %v2754
      %v3701 = vpop.permute.xlu0 %3700
      %3703 = vset.pattern.permute.xlu0 3
      %3704 = vperm.xlu0 %3703, %v2756
      %v3705 = vpop.permute.xlu0 %3704
      %3707 = vset.pattern.permute.xlu0 3
      %3708 = vperm.xlu0 %3707, %v2758
      %v3709 = vpop.permute.xlu0 %3708
      %3711 = vset.pattern.permute.xlu0 3
      %3712 = vperm.xlu0 %3711, %v2760
      %v3713 = vpop.permute.xlu0 %3712
      %3715 = vset.pattern.permute.xlu0 3
      %3716 = vperm.xlu0 %3715, %v2762
      %v3717 = vpop.permute.xlu0 %3716
      %3719 = vset.pattern.permute.xlu0 3
      %3720 = vperm.xlu0 %3719, %v2764
      %v3721 = vpop.permute.xlu0 %3720
      %3723 = vset.pattern.permute.xlu0 3
      %3724 = vperm.xlu0 %3723, %v2766
      %v3725 = vpop.permute.xlu0 %3724
      %3727 = vset.pattern.permute.xlu0 3
      %3728 = vperm.xlu0 %3727, %v2768
      %v3729 = vpop.permute.xlu0 %3728
      %3731 = vset.pattern.permute.xlu0 3
      %3732 = vperm.xlu0 %3731, %v2770
      %v3733 = vpop.permute.xlu0 %3732
      %3735 = vset.pattern.permute.xlu0 3
      %3736 = vperm.xlu0 %3735, %v2772
      %v3737 = vpop.permute.xlu0 %3736
      %3739 = vset.pattern.permute.xlu0 3
      %3740 = vperm.xlu0 %3739, %v2774
      %v3741 = vpop.permute.xlu0 %3740
      %3743 = vset.pattern.permute.xlu0 3
      %3744 = vperm.xlu0 %3743, %v2776
      %v3745 = vpop.permute.xlu0 %3744
      %3747 = vset.pattern.permute.xlu0 3
      %3748 = vperm.xlu0 %3747, %v2778
      %v3749 = vpop.permute.xlu0 %3748
      %3751 = vset.pattern.permute.xlu0 3
      %3752 = vperm.xlu0 %3751, %v2780
      %v3753 = vpop.permute.xlu0 %3752
      %3755 = vset.pattern.permute.xlu0 3
      %3756 = vperm.xlu0 %3755, %v2782
      %v3757 = vpop.permute.xlu0 %3756
      %3759 = vset.pattern.permute.xlu0 3
      %3760 = vperm.xlu0 %3759, %v2784
      %v3761 = vpop.permute.xlu0 %3760
      %3763 = vset.pattern.permute.xlu0 3
      %3764 = vperm.xlu0 %3763, %v2786
      %v3765 = vpop.permute.xlu0 %3764
      %3767 = vset.pattern.permute.xlu0 3
      %3768 = vperm.xlu0 %3767, %v2788
      %v3769 = vpop.permute.xlu0 %3768
      %3771 = vset.pattern.permute.xlu0 3
      %3772 = vperm.xlu0 %3771, %v2790
      %v3773 = vpop.permute.xlu0 %3772
      %3775 = vset.pattern.permute.xlu0 3
      %3776 = vperm.xlu0 %3775, %v2792
      %v3777 = vpop.permute.xlu0 %3776
      %3779 = vset.pattern.permute.xlu0 3
      %3780 = vperm.xlu0 %3779, %v2794
      %v3781 = vpop.permute.xlu0 %3780
      %3783 = vset.pattern.permute.xlu0 3
      %3784 = vperm.xlu0 %3783, %v2796
      %v3785 = vpop.permute.xlu0 %3784
      %3787 = vset.pattern.permute.xlu0 3
      %3788 = vperm.xlu0 %3787, %v2798
      %v3789 = vpop.permute.xlu0 %3788
      %v3791 = vmul.f32 %v1837, %v3665
      %v3792 = vmul.f32 %v1838, %v3669
      %v3793 = vmul.f32 %v1839, %v3673
      %v3794 = vmul.f32 %v1840, %v3677
      %v3795 = vmul.f32 %v1841, %v3681
      %v3796 = vmul.f32 %v1842, %v3685
      %v3797 = vmul.f32 %v1843, %v3689
      %v3798 = vmul.f32 %v1844, %v3693
      %v3799 = vmul.f32 %v1845, %v3697
      %v3800 = vmul.f32 %v1846, %v3701
      %v3801 = vmul.f32 %v1847, %v3705
      %v3802 = vmul.f32 %v1848, %v3709
      %v3803 = vmul.f32 %v1849, %v3713
      %v3804 = vmul.f32 %v1850, %v3717
      %v3805 = vmul.f32 %v1851, %v3721
      %v3806 = vmul.f32 %v1852, %v3725
      %v3807 = vmul.f32 %v1853, %v3729
      %v3808 = vmul.f32 %v1854, %v3733
      %v3809 = vmul.f32 %v1855, %v3737
      %v3810 = vmul.f32 %v1856, %v3741
      %v3811 = vmul.f32 %v1857, %v3745
      %v3812 = vmul.f32 %v1858, %v3749
      %v3813 = vmul.f32 %v1859, %v3753
      %v3814 = vmul.f32 %v1860, %v3757
      %v3815 = vmul.f32 %v1861, %v3761
      %v3816 = vmul.f32 %v1862, %v3765
      %v3817 = vmul.f32 %v1863, %v3769
      %v3818 = vmul.f32 %v1864, %v3773
      %v3819 = vmul.f32 %v1865, %v3777
      %v3820 = vmul.f32 %v1866, %v3781
      %v3821 = vmul.f32 %v1867, %v3785
      %v3822 = vmul.f32 %v1868, %v3789
      %3855 = vrot.lane.b32.xlu0 %v3791, 116
      %v3856 = vpop.permute.xlu0 %3855
      %3857 = vrot.lane.b32.xlu0 %v3792, 116
      %v3858 = vpop.permute.xlu0 %3857
      %3859 = vrot.lane.b32.xlu0 %v3793, 116
      %v3860 = vpop.permute.xlu0 %3859
      %3861 = vrot.lane.b32.xlu0 %v3794, 116
      %v3862 = vpop.permute.xlu0 %3861
      %3863 = vrot.lane.b32.xlu0 %v3795, 116
      %v3864 = vpop.permute.xlu0 %3863
      %3865 = vrot.lane.b32.xlu0 %v3796, 116
      %v3866 = vpop.permute.xlu0 %3865
      %3867 = vrot.lane.b32.xlu0 %v3797, 116
      %v3868 = vpop.permute.xlu0 %3867
      %3869 = vrot.lane.b32.xlu0 %v3798, 116
      %v3870 = vpop.permute.xlu0 %3869
      %3871 = vrot.lane.b32.xlu0 %v3799, 116
      %v3872 = vpop.permute.xlu0 %3871
      %3873 = vrot.lane.b32.xlu0 %v3800, 116
      %v3874 = vpop.permute.xlu0 %3873
      %3875 = vrot.lane.b32.xlu0 %v3801, 116
      %v3876 = vpop.permute.xlu0 %3875
      %3877 = vrot.lane.b32.xlu0 %v3802, 116
      %v3878 = vpop.permute.xlu0 %3877
      %3879 = vrot.lane.b32.xlu0 %v3803, 116
      %v3880 = vpop.permute.xlu0 %3879
      %3881 = vrot.lane.b32.xlu0 %v3804, 116
      %v3882 = vpop.permute.xlu0 %3881
      %3883 = vrot.lane.b32.xlu0 %v3805, 116
      %v3884 = vpop.permute.xlu0 %3883
      %3885 = vrot.lane.b32.xlu0 %v3806, 116
      %v3886 = vpop.permute.xlu0 %3885
      %3887 = vrot.lane.b32.xlu0 %v3807, 116
      %v3888 = vpop.permute.xlu0 %3887
      %3889 = vrot.lane.b32.xlu0 %v3808, 116
      %v3890 = vpop.permute.xlu0 %3889
      %3891 = vrot.lane.b32.xlu0 %v3809, 116
      %v3892 = vpop.permute.xlu0 %3891
      %3893 = vrot.lane.b32.xlu0 %v3810, 116
      %v3894 = vpop.permute.xlu0 %3893
      %3895 = vrot.lane.b32.xlu0 %v3811, 116
      %v3896 = vpop.permute.xlu0 %3895
      %3897 = vrot.lane.b32.xlu0 %v3812, 116
      %v3898 = vpop.permute.xlu0 %3897
      %3899 = vrot.lane.b32.xlu0 %v3813, 116
      %v3900 = vpop.permute.xlu0 %3899
      %3901 = vrot.lane.b32.xlu0 %v3814, 116
      %v3902 = vpop.permute.xlu0 %3901
      %3903 = vrot.lane.b32.xlu0 %v3815, 116
      %v3904 = vpop.permute.xlu0 %3903
      %3905 = vrot.lane.b32.xlu0 %v3816, 116
      %v3906 = vpop.permute.xlu0 %3905
      %3907 = vrot.lane.b32.xlu0 %v3817, 116
      %v3908 = vpop.permute.xlu0 %3907
      %3909 = vrot.lane.b32.xlu0 %v3818, 116
      %v3910 = vpop.permute.xlu0 %3909
      %3911 = vrot.lane.b32.xlu0 %v3819, 116
      %v3912 = vpop.permute.xlu0 %3911
      %3913 = vrot.lane.b32.xlu0 %v3820, 116
      %v3914 = vpop.permute.xlu0 %3913
      %3915 = vrot.lane.b32.xlu0 %v3821, 116
      %v3916 = vpop.permute.xlu0 %3915
      %3917 = vrot.lane.b32.xlu0 %v3822, 116
      %v3918 = vpop.permute.xlu0 %3917
      %v3951 = vadd.f32 %v3631, %v3856
      %v3952 = vadd.f32 %v3632, %v3858
      %v3953 = vadd.f32 %v3633, %v3860
      %v3954 = vadd.f32 %v3634, %v3862
      %v3955 = vadd.f32 %v3635, %v3864
      %v3956 = vadd.f32 %v3636, %v3866
      %v3957 = vadd.f32 %v3637, %v3868
      %v3958 = vadd.f32 %v3638, %v3870
      %v3959 = vadd.f32 %v3639, %v3872
      %v3960 = vadd.f32 %v3640, %v3874
      %v3961 = vadd.f32 %v3641, %v3876
      %v3962 = vadd.f32 %v3642, %v3878
      %v3963 = vadd.f32 %v3643, %v3880
      %v3964 = vadd.f32 %v3644, %v3882
      %v3965 = vadd.f32 %v3645, %v3884
      %v3966 = vadd.f32 %v3646, %v3886
      %v3967 = vadd.f32 %v3647, %v3888
      %v3968 = vadd.f32 %v3648, %v3890
      %v3969 = vadd.f32 %v3649, %v3892
      %v3970 = vadd.f32 %v3650, %v3894
      %v3971 = vadd.f32 %v3651, %v3896
      %v3972 = vadd.f32 %v3652, %v3898
      %v3973 = vadd.f32 %v3653, %v3900
      %v3974 = vadd.f32 %v3654, %v3902
      %v3975 = vadd.f32 %v3655, %v3904
      %v3976 = vadd.f32 %v3656, %v3906
      %v3977 = vadd.f32 %v3657, %v3908
      %v3978 = vadd.f32 %v3658, %v3910
      %v3979 = vadd.f32 %v3659, %v3912
      %v3980 = vadd.f32 %v3660, %v3914
      %v3981 = vadd.f32 %v3661, %v3916
      %v3982 = vadd.f32 %v3662, %v3918
      %3983 = vset.pattern.permute.xlu0 4
      %3984 = vperm.xlu0 %3983, %v2736
      %v3985 = vpop.permute.xlu0 %3984
      %3987 = vset.pattern.permute.xlu0 4
      %3988 = vperm.xlu0 %3987, %v2738
      %v3989 = vpop.permute.xlu0 %3988
      %3991 = vset.pattern.permute.xlu0 4
      %3992 = vperm.xlu0 %3991, %v2740
      %v3993 = vpop.permute.xlu0 %3992
      %3995 = vset.pattern.permute.xlu0 4
      %3996 = vperm.xlu0 %3995, %v2742
      %v3997 = vpop.permute.xlu0 %3996
      %3999 = vset.pattern.permute.xlu0 4
      %4000 = vperm.xlu0 %3999, %v2744
      %v4001 = vpop.permute.xlu0 %4000
      %4003 = vset.pattern.permute.xlu0 4
      %4004 = vperm.xlu0 %4003, %v2746
      %v4005 = vpop.permute.xlu0 %4004
      %4007 = vset.pattern.permute.xlu0 4
      %4008 = vperm.xlu0 %4007, %v2748
      %v4009 = vpop.permute.xlu0 %4008
      %4011 = vset.pattern.permute.xlu0 4
      %4012 = vperm.xlu0 %4011, %v2750
      %v4013 = vpop.permute.xlu0 %4012
      %4015 = vset.pattern.permute.xlu0 4
      %4016 = vperm.xlu0 %4015, %v2752
      %v4017 = vpop.permute.xlu0 %4016
      %4019 = vset.pattern.permute.xlu0 4
      %4020 = vperm.xlu0 %4019, %v2754
      %v4021 = vpop.permute.xlu0 %4020
      %4023 = vset.pattern.permute.xlu0 4
      %4024 = vperm.xlu0 %4023, %v2756
      %v4025 = vpop.permute.xlu0 %4024
      %4027 = vset.pattern.permute.xlu0 4
      %4028 = vperm.xlu0 %4027, %v2758
      %v4029 = vpop.permute.xlu0 %4028
      %4031 = vset.pattern.permute.xlu0 4
      %4032 = vperm.xlu0 %4031, %v2760
      %v4033 = vpop.permute.xlu0 %4032
      %4035 = vset.pattern.permute.xlu0 4
      %4036 = vperm.xlu0 %4035, %v2762
      %v4037 = vpop.permute.xlu0 %4036
      %4039 = vset.pattern.permute.xlu0 4
      %4040 = vperm.xlu0 %4039, %v2764
      %v4041 = vpop.permute.xlu0 %4040
      %4043 = vset.pattern.permute.xlu0 4
      %4044 = vperm.xlu0 %4043, %v2766
      %v4045 = vpop.permute.xlu0 %4044
      %4047 = vset.pattern.permute.xlu0 4
      %4048 = vperm.xlu0 %4047, %v2768
      %v4049 = vpop.permute.xlu0 %4048
      %4051 = vset.pattern.permute.xlu0 4
      %4052 = vperm.xlu0 %4051, %v2770
      %v4053 = vpop.permute.xlu0 %4052
      %4055 = vset.pattern.permute.xlu0 4
      %4056 = vperm.xlu0 %4055, %v2772
      %v4057 = vpop.permute.xlu0 %4056
      %4059 = vset.pattern.permute.xlu0 4
      %4060 = vperm.xlu0 %4059, %v2774
      %v4061 = vpop.permute.xlu0 %4060
      %4063 = vset.pattern.permute.xlu0 4
      %4064 = vperm.xlu0 %4063, %v2776
      %v4065 = vpop.permute.xlu0 %4064
      %4067 = vset.pattern.permute.xlu0 4
      %4068 = vperm.xlu0 %4067, %v2778
      %v4069 = vpop.permute.xlu0 %4068
      %4071 = vset.pattern.permute.xlu0 4
      %4072 = vperm.xlu0 %4071, %v2780
      %v4073 = vpop.permute.xlu0 %4072
      %4075 = vset.pattern.permute.xlu0 4
      %4076 = vperm.xlu0 %4075, %v2782
      %v4077 = vpop.permute.xlu0 %4076
      %4079 = vset.pattern.permute.xlu0 4
      %4080 = vperm.xlu0 %4079, %v2784
      %v4081 = vpop.permute.xlu0 %4080
      %4083 = vset.pattern.permute.xlu0 4
      %4084 = vperm.xlu0 %4083, %v2786
      %v4085 = vpop.permute.xlu0 %4084
      %4087 = vset.pattern.permute.xlu0 4
      %4088 = vperm.xlu0 %4087, %v2788
      %v4089 = vpop.permute.xlu0 %4088
      %4091 = vset.pattern.permute.xlu0 4
      %4092 = vperm.xlu0 %4091, %v2790
      %v4093 = vpop.permute.xlu0 %4092
      %4095 = vset.pattern.permute.xlu0 4
      %4096 = vperm.xlu0 %4095, %v2792
      %v4097 = vpop.permute.xlu0 %4096
      %4099 = vset.pattern.permute.xlu0 4
      %4100 = vperm.xlu0 %4099, %v2794
      %v4101 = vpop.permute.xlu0 %4100
      %4103 = vset.pattern.permute.xlu0 4
      %4104 = vperm.xlu0 %4103, %v2796
      %v4105 = vpop.permute.xlu0 %4104
      %4107 = vset.pattern.permute.xlu0 4
      %4108 = vperm.xlu0 %4107, %v2798
      %v4109 = vpop.permute.xlu0 %4108
      %v4111 = vmul.f32 %v1837, %v3985
      %v4112 = vmul.f32 %v1838, %v3989
      %v4113 = vmul.f32 %v1839, %v3993
      %v4114 = vmul.f32 %v1840, %v3997
      %v4115 = vmul.f32 %v1841, %v4001
      %v4116 = vmul.f32 %v1842, %v4005
      %v4117 = vmul.f32 %v1843, %v4009
      %v4118 = vmul.f32 %v1844, %v4013
      %v4119 = vmul.f32 %v1845, %v4017
      %v4120 = vmul.f32 %v1846, %v4021
      %v4121 = vmul.f32 %v1847, %v4025
      %v4122 = vmul.f32 %v1848, %v4029
      %v4123 = vmul.f32 %v1849, %v4033
      %v4124 = vmul.f32 %v1850, %v4037
      %v4125 = vmul.f32 %v1851, %v4041
      %v4126 = vmul.f32 %v1852, %v4045
      %v4127 = vmul.f32 %v1853, %v4049
      %v4128 = vmul.f32 %v1854, %v4053
      %v4129 = vmul.f32 %v1855, %v4057
      %v4130 = vmul.f32 %v1856, %v4061
      %v4131 = vmul.f32 %v1857, %v4065
      %v4132 = vmul.f32 %v1858, %v4069
      %v4133 = vmul.f32 %v1859, %v4073
      %v4134 = vmul.f32 %v1860, %v4077
      %v4135 = vmul.f32 %v1861, %v4081
      %v4136 = vmul.f32 %v1862, %v4085
      %v4137 = vmul.f32 %v1863, %v4089
      %v4138 = vmul.f32 %v1864, %v4093
      %v4139 = vmul.f32 %v1865, %v4097
      %v4140 = vmul.f32 %v1866, %v4101
      %v4141 = vmul.f32 %v1867, %v4105
      %v4142 = vmul.f32 %v1868, %v4109
      %4175 = vrot.lane.b32.xlu0 %v4111, 112
      %v4176 = vpop.permute.xlu0 %4175
      %4177 = vrot.lane.b32.xlu0 %v4112, 112
      %v4178 = vpop.permute.xlu0 %4177
      %4179 = vrot.lane.b32.xlu0 %v4113, 112
      %v4180 = vpop.permute.xlu0 %4179
      %4181 = vrot.lane.b32.xlu0 %v4114, 112
      %v4182 = vpop.permute.xlu0 %4181
      %4183 = vrot.lane.b32.xlu0 %v4115, 112
      %v4184 = vpop.permute.xlu0 %4183
      %4185 = vrot.lane.b32.xlu0 %v4116, 112
      %v4186 = vpop.permute.xlu0 %4185
      %4187 = vrot.lane.b32.xlu0 %v4117, 112
      %v4188 = vpop.permute.xlu0 %4187
      %4189 = vrot.lane.b32.xlu0 %v4118, 112
      %v4190 = vpop.permute.xlu0 %4189
      %4191 = vrot.lane.b32.xlu0 %v4119, 112
      %v4192 = vpop.permute.xlu0 %4191
      %4193 = vrot.lane.b32.xlu0 %v4120, 112
      %v4194 = vpop.permute.xlu0 %4193
      %4195 = vrot.lane.b32.xlu0 %v4121, 112
      %v4196 = vpop.permute.xlu0 %4195
      %4197 = vrot.lane.b32.xlu0 %v4122, 112
      %v4198 = vpop.permute.xlu0 %4197
      %4199 = vrot.lane.b32.xlu0 %v4123, 112
      %v4200 = vpop.permute.xlu0 %4199
      %4201 = vrot.lane.b32.xlu0 %v4124, 112
      %v4202 = vpop.permute.xlu0 %4201
      %4203 = vrot.lane.b32.xlu0 %v4125, 112
      %v4204 = vpop.permute.xlu0 %4203
      %4205 = vrot.lane.b32.xlu0 %v4126, 112
      %v4206 = vpop.permute.xlu0 %4205
      %4207 = vrot.lane.b32.xlu0 %v4127, 112
      %v4208 = vpop.permute.xlu0 %4207
      %4209 = vrot.lane.b32.xlu0 %v4128, 112
      %v4210 = vpop.permute.xlu0 %4209
      %4211 = vrot.lane.b32.xlu0 %v4129, 112
      %v4212 = vpop.permute.xlu0 %4211
      %4213 = vrot.lane.b32.xlu0 %v4130, 112
      %v4214 = vpop.permute.xlu0 %4213
      %4215 = vrot.lane.b32.xlu0 %v4131, 112
      %v4216 = vpop.permute.xlu0 %4215
      %4217 = vrot.lane.b32.xlu0 %v4132, 112
      %v4218 = vpop.permute.xlu0 %4217
      %4219 = vrot.lane.b32.xlu0 %v4133, 112
      %v4220 = vpop.permute.xlu0 %4219
      %4221 = vrot.lane.b32.xlu0 %v4134, 112
      %v4222 = vpop.permute.xlu0 %4221
      %4223 = vrot.lane.b32.xlu0 %v4135, 112
      %v4224 = vpop.permute.xlu0 %4223
      %4225 = vrot.lane.b32.xlu0 %v4136, 112
      %v4226 = vpop.permute.xlu0 %4225
      %4227 = vrot.lane.b32.xlu0 %v4137, 112
      %v4228 = vpop.permute.xlu0 %4227
      %4229 = vrot.lane.b32.xlu0 %v4138, 112
      %v4230 = vpop.permute.xlu0 %4229
      %4231 = vrot.lane.b32.xlu0 %v4139, 112
      %v4232 = vpop.permute.xlu0 %4231
      %4233 = vrot.lane.b32.xlu0 %v4140, 112
      %v4234 = vpop.permute.xlu0 %4233
      %4235 = vrot.lane.b32.xlu0 %v4141, 112
      %v4236 = vpop.permute.xlu0 %4235
      %4237 = vrot.lane.b32.xlu0 %v4142, 112
      %v4238 = vpop.permute.xlu0 %4237
      %v4271 = vadd.f32 %v3951, %v4176
      %v4272 = vadd.f32 %v3952, %v4178
      %v4273 = vadd.f32 %v3953, %v4180
      %v4274 = vadd.f32 %v3954, %v4182
      %v4275 = vadd.f32 %v3955, %v4184
      %v4276 = vadd.f32 %v3956, %v4186
      %v4277 = vadd.f32 %v3957, %v4188
      %v4278 = vadd.f32 %v3958, %v4190
      %v4279 = vadd.f32 %v3959, %v4192
      %v4280 = vadd.f32 %v3960, %v4194
      %v4281 = vadd.f32 %v3961, %v4196
      %v4282 = vadd.f32 %v3962, %v4198
      %v4283 = vadd.f32 %v3963, %v4200
      %v4284 = vadd.f32 %v3964, %v4202
      %v4285 = vadd.f32 %v3965, %v4204
      %v4286 = vadd.f32 %v3966, %v4206
      %v4287 = vadd.f32 %v3967, %v4208
      %v4288 = vadd.f32 %v3968, %v4210
      %v4289 = vadd.f32 %v3969, %v4212
      %v4290 = vadd.f32 %v3970, %v4214
      %v4291 = vadd.f32 %v3971, %v4216
      %v4292 = vadd.f32 %v3972, %v4218
      %v4293 = vadd.f32 %v3973, %v4220
      %v4294 = vadd.f32 %v3974, %v4222
      %v4295 = vadd.f32 %v3975, %v4224
      %v4296 = vadd.f32 %v3976, %v4226
      %v4297 = vadd.f32 %v3977, %v4228
      %v4298 = vadd.f32 %v3978, %v4230
      %v4299 = vadd.f32 %v3979, %v4232
      %v4300 = vadd.f32 %v3980, %v4234
      %v4301 = vadd.f32 %v3981, %v4236
      %v4302 = vadd.f32 %v3982, %v4238
      %4303 = vset.pattern.permute.xlu0 5
      %4304 = vperm.xlu0 %4303, %v2736
      %v4305 = vpop.permute.xlu0 %4304
      %4307 = vset.pattern.permute.xlu0 5
      %4308 = vperm.xlu0 %4307, %v2738
      %v4309 = vpop.permute.xlu0 %4308
      %4311 = vset.pattern.permute.xlu0 5
      %4312 = vperm.xlu0 %4311, %v2740
      %v4313 = vpop.permute.xlu0 %4312
      %4315 = vset.pattern.permute.xlu0 5
      %4316 = vperm.xlu0 %4315, %v2742
      %v4317 = vpop.permute.xlu0 %4316
      %4319 = vset.pattern.permute.xlu0 5
      %4320 = vperm.xlu0 %4319, %v2744
      %v4321 = vpop.permute.xlu0 %4320
      %4323 = vset.pattern.permute.xlu0 5
      %4324 = vperm.xlu0 %4323, %v2746
      %v4325 = vpop.permute.xlu0 %4324
      %4327 = vset.pattern.permute.xlu0 5
      %4328 = vperm.xlu0 %4327, %v2748
      %v4329 = vpop.permute.xlu0 %4328
      %4331 = vset.pattern.permute.xlu0 5
      %4332 = vperm.xlu0 %4331, %v2750
      %v4333 = vpop.permute.xlu0 %4332
      %4335 = vset.pattern.permute.xlu0 5
      %4336 = vperm.xlu0 %4335, %v2752
      %v4337 = vpop.permute.xlu0 %4336
      %4339 = vset.pattern.permute.xlu0 5
      %4340 = vperm.xlu0 %4339, %v2754
      %v4341 = vpop.permute.xlu0 %4340
      %4343 = vset.pattern.permute.xlu0 5
      %4344 = vperm.xlu0 %4343, %v2756
      %v4345 = vpop.permute.xlu0 %4344
      %4347 = vset.pattern.permute.xlu0 5
      %4348 = vperm.xlu0 %4347, %v2758
      %v4349 = vpop.permute.xlu0 %4348
      %4351 = vset.pattern.permute.xlu0 5
      %4352 = vperm.xlu0 %4351, %v2760
      %v4353 = vpop.permute.xlu0 %4352
      %4355 = vset.pattern.permute.xlu0 5
      %4356 = vperm.xlu0 %4355, %v2762
      %v4357 = vpop.permute.xlu0 %4356
      %4359 = vset.pattern.permute.xlu0 5
      %4360 = vperm.xlu0 %4359, %v2764
      %v4361 = vpop.permute.xlu0 %4360
      %4363 = vset.pattern.permute.xlu0 5
      %4364 = vperm.xlu0 %4363, %v2766
      %v4365 = vpop.permute.xlu0 %4364
      %4367 = vset.pattern.permute.xlu0 5
      %4368 = vperm.xlu0 %4367, %v2768
      %v4369 = vpop.permute.xlu0 %4368
      %4371 = vset.pattern.permute.xlu0 5
      %4372 = vperm.xlu0 %4371, %v2770
      %v4373 = vpop.permute.xlu0 %4372
      %4375 = vset.pattern.permute.xlu0 5
      %4376 = vperm.xlu0 %4375, %v2772
      %v4377 = vpop.permute.xlu0 %4376
      %4379 = vset.pattern.permute.xlu0 5
      %4380 = vperm.xlu0 %4379, %v2774
      %v4381 = vpop.permute.xlu0 %4380
      %4383 = vset.pattern.permute.xlu0 5
      %4384 = vperm.xlu0 %4383, %v2776
      %v4385 = vpop.permute.xlu0 %4384
      %4387 = vset.pattern.permute.xlu0 5
      %4388 = vperm.xlu0 %4387, %v2778
      %v4389 = vpop.permute.xlu0 %4388
      %4391 = vset.pattern.permute.xlu0 5
      %4392 = vperm.xlu0 %4391, %v2780
      %v4393 = vpop.permute.xlu0 %4392
      %4395 = vset.pattern.permute.xlu0 5
      %4396 = vperm.xlu0 %4395, %v2782
      %v4397 = vpop.permute.xlu0 %4396
      %4399 = vset.pattern.permute.xlu0 5
      %4400 = vperm.xlu0 %4399, %v2784
      %v4401 = vpop.permute.xlu0 %4400
      %4403 = vset.pattern.permute.xlu0 5
      %4404 = vperm.xlu0 %4403, %v2786
      %v4405 = vpop.permute.xlu0 %4404
      %4407 = vset.pattern.permute.xlu0 5
      %4408 = vperm.xlu0 %4407, %v2788
      %v4409 = vpop.permute.xlu0 %4408
      %4411 = vset.pattern.permute.xlu0 5
      %4412 = vperm.xlu0 %4411, %v2790
      %v4413 = vpop.permute.xlu0 %4412
      %4415 = vset.pattern.permute.xlu0 5
      %4416 = vperm.xlu0 %4415, %v2792
      %v4417 = vpop.permute.xlu0 %4416
      %4419 = vset.pattern.permute.xlu0 5
      %4420 = vperm.xlu0 %4419, %v2794
      %v4421 = vpop.permute.xlu0 %4420
      %4423 = vset.pattern.permute.xlu0 5
      %4424 = vperm.xlu0 %4423, %v2796
      %v4425 = vpop.permute.xlu0 %4424
      %4427 = vset.pattern.permute.xlu0 5
      %4428 = vperm.xlu0 %4427, %v2798
      %v4429 = vpop.permute.xlu0 %4428
      %v4431 = vmul.f32 %v1837, %v4305
      %v4432 = vmul.f32 %v1838, %v4309
      %v4433 = vmul.f32 %v1839, %v4313
      %v4434 = vmul.f32 %v1840, %v4317
      %v4435 = vmul.f32 %v1841, %v4321
      %v4436 = vmul.f32 %v1842, %v4325
      %v4437 = vmul.f32 %v1843, %v4329
      %v4438 = vmul.f32 %v1844, %v4333
      %v4439 = vmul.f32 %v1845, %v4337
      %v4440 = vmul.f32 %v1846, %v4341
      %v4441 = vmul.f32 %v1847, %v4345
      %v4442 = vmul.f32 %v1848, %v4349
      %v4443 = vmul.f32 %v1849, %v4353
      %v4444 = vmul.f32 %v1850, %v4357
      %v4445 = vmul.f32 %v1851, %v4361
      %v4446 = vmul.f32 %v1852, %v4365
      %v4447 = vmul.f32 %v1853, %v4369
      %v4448 = vmul.f32 %v1854, %v4373
      %v4449 = vmul.f32 %v1855, %v4377
      %v4450 = vmul.f32 %v1856, %v4381
      %v4451 = vmul.f32 %v1857, %v4385
      %v4452 = vmul.f32 %v1858, %v4389
      %v4453 = vmul.f32 %v1859, %v4393
      %v4454 = vmul.f32 %v1860, %v4397
      %v4455 = vmul.f32 %v1861, %v4401
      %v4456 = vmul.f32 %v1862, %v4405
      %v4457 = vmul.f32 %v1863, %v4409
      %v4458 = vmul.f32 %v1864, %v4413
      %v4459 = vmul.f32 %v1865, %v4417
      %v4460 = vmul.f32 %v1866, %v4421
      %v4461 = vmul.f32 %v1867, %v4425
      %v4462 = vmul.f32 %v1868, %v4429
      %4495 = vrot.lane.b32.xlu0 %v4431, 108
      %v4496 = vpop.permute.xlu0 %4495
      %4497 = vrot.lane.b32.xlu0 %v4432, 108
      %v4498 = vpop.permute.xlu0 %4497
      %4499 = vrot.lane.b32.xlu0 %v4433, 108
      %v4500 = vpop.permute.xlu0 %4499
      %4501 = vrot.lane.b32.xlu0 %v4434, 108
      %v4502 = vpop.permute.xlu0 %4501
      %4503 = vrot.lane.b32.xlu0 %v4435, 108
      %v4504 = vpop.permute.xlu0 %4503
      %4505 = vrot.lane.b32.xlu0 %v4436, 108
      %v4506 = vpop.permute.xlu0 %4505
      %4507 = vrot.lane.b32.xlu0 %v4437, 108
      %v4508 = vpop.permute.xlu0 %4507
      %4509 = vrot.lane.b32.xlu0 %v4438, 108
      %v4510 = vpop.permute.xlu0 %4509
      %4511 = vrot.lane.b32.xlu0 %v4439, 108
      %v4512 = vpop.permute.xlu0 %4511
      %4513 = vrot.lane.b32.xlu0 %v4440, 108
      %v4514 = vpop.permute.xlu0 %4513
      %4515 = vrot.lane.b32.xlu0 %v4441, 108
      %v4516 = vpop.permute.xlu0 %4515
      %4517 = vrot.lane.b32.xlu0 %v4442, 108
      %v4518 = vpop.permute.xlu0 %4517
      %4519 = vrot.lane.b32.xlu0 %v4443, 108
      %v4520 = vpop.permute.xlu0 %4519
      %4521 = vrot.lane.b32.xlu0 %v4444, 108
      %v4522 = vpop.permute.xlu0 %4521
      %4523 = vrot.lane.b32.xlu0 %v4445, 108
      %v4524 = vpop.permute.xlu0 %4523
      %4525 = vrot.lane.b32.xlu0 %v4446, 108
      %v4526 = vpop.permute.xlu0 %4525
      %4527 = vrot.lane.b32.xlu0 %v4447, 108
      %v4528 = vpop.permute.xlu0 %4527
      %4529 = vrot.lane.b32.xlu0 %v4448, 108
      %v4530 = vpop.permute.xlu0 %4529
      %4531 = vrot.lane.b32.xlu0 %v4449, 108
      %v4532 = vpop.permute.xlu0 %4531
      %4533 = vrot.lane.b32.xlu0 %v4450, 108
      %v4534 = vpop.permute.xlu0 %4533
      %4535 = vrot.lane.b32.xlu0 %v4451, 108
      %v4536 = vpop.permute.xlu0 %4535
      %4537 = vrot.lane.b32.xlu0 %v4452, 108
      %v4538 = vpop.permute.xlu0 %4537
      %4539 = vrot.lane.b32.xlu0 %v4453, 108
      %v4540 = vpop.permute.xlu0 %4539
      %4541 = vrot.lane.b32.xlu0 %v4454, 108
      %v4542 = vpop.permute.xlu0 %4541
      %4543 = vrot.lane.b32.xlu0 %v4455, 108
      %v4544 = vpop.permute.xlu0 %4543
      %4545 = vrot.lane.b32.xlu0 %v4456, 108
      %v4546 = vpop.permute.xlu0 %4545
      %4547 = vrot.lane.b32.xlu0 %v4457, 108
      %v4548 = vpop.permute.xlu0 %4547
      %4549 = vrot.lane.b32.xlu0 %v4458, 108
      %v4550 = vpop.permute.xlu0 %4549
      %4551 = vrot.lane.b32.xlu0 %v4459, 108
      %v4552 = vpop.permute.xlu0 %4551
      %4553 = vrot.lane.b32.xlu0 %v4460, 108
      %v4554 = vpop.permute.xlu0 %4553
      %4555 = vrot.lane.b32.xlu0 %v4461, 108
      %v4556 = vpop.permute.xlu0 %4555
      %4557 = vrot.lane.b32.xlu0 %v4462, 108
      %v4558 = vpop.permute.xlu0 %4557
      %v4591 = vadd.f32 %v4271, %v4496
      %v4592 = vadd.f32 %v4272, %v4498
      %v4593 = vadd.f32 %v4273, %v4500
      %v4594 = vadd.f32 %v4274, %v4502
      %v4595 = vadd.f32 %v4275, %v4504
      %v4596 = vadd.f32 %v4276, %v4506
      %v4597 = vadd.f32 %v4277, %v4508
      %v4598 = vadd.f32 %v4278, %v4510
      %v4599 = vadd.f32 %v4279, %v4512
      %v4600 = vadd.f32 %v4280, %v4514
      %v4601 = vadd.f32 %v4281, %v4516
      %v4602 = vadd.f32 %v4282, %v4518
      %v4603 = vadd.f32 %v4283, %v4520
      %v4604 = vadd.f32 %v4284, %v4522
      %v4605 = vadd.f32 %v4285, %v4524
      %v4606 = vadd.f32 %v4286, %v4526
      %v4607 = vadd.f32 %v4287, %v4528
      %v4608 = vadd.f32 %v4288, %v4530
      %v4609 = vadd.f32 %v4289, %v4532
      %v4610 = vadd.f32 %v4290, %v4534
      %v4611 = vadd.f32 %v4291, %v4536
      %v4612 = vadd.f32 %v4292, %v4538
      %v4613 = vadd.f32 %v4293, %v4540
      %v4614 = vadd.f32 %v4294, %v4542
      %v4615 = vadd.f32 %v4295, %v4544
      %v4616 = vadd.f32 %v4296, %v4546
      %v4617 = vadd.f32 %v4297, %v4548
      %v4618 = vadd.f32 %v4298, %v4550
      %v4619 = vadd.f32 %v4299, %v4552
      %v4620 = vadd.f32 %v4300, %v4554
      %v4621 = vadd.f32 %v4301, %v4556
      %v4622 = vadd.f32 %v4302, %v4558
      %4623 = vset.pattern.permute.xlu0 6
      %4624 = vperm.xlu0 %4623, %v2736
      %v4625 = vpop.permute.xlu0 %4624
      %4627 = vset.pattern.permute.xlu0 6
      %4628 = vperm.xlu0 %4627, %v2738
      %v4629 = vpop.permute.xlu0 %4628
      %4631 = vset.pattern.permute.xlu0 6
      %4632 = vperm.xlu0 %4631, %v2740
      %v4633 = vpop.permute.xlu0 %4632
      %4635 = vset.pattern.permute.xlu0 6
      %4636 = vperm.xlu0 %4635, %v2742
      %v4637 = vpop.permute.xlu0 %4636
      %4639 = vset.pattern.permute.xlu0 6
      %4640 = vperm.xlu0 %4639, %v2744
      %v4641 = vpop.permute.xlu0 %4640
      %4643 = vset.pattern.permute.xlu0 6
      %4644 = vperm.xlu0 %4643, %v2746
      %v4645 = vpop.permute.xlu0 %4644
      %4647 = vset.pattern.permute.xlu0 6
      %4648 = vperm.xlu0 %4647, %v2748
      %v4649 = vpop.permute.xlu0 %4648
      %4651 = vset.pattern.permute.xlu0 6
      %4652 = vperm.xlu0 %4651, %v2750
      %v4653 = vpop.permute.xlu0 %4652
      %4655 = vset.pattern.permute.xlu0 6
      %4656 = vperm.xlu0 %4655, %v2752
      %v4657 = vpop.permute.xlu0 %4656
      %4659 = vset.pattern.permute.xlu0 6
      %4660 = vperm.xlu0 %4659, %v2754
      %v4661 = vpop.permute.xlu0 %4660
      %4663 = vset.pattern.permute.xlu0 6
      %4664 = vperm.xlu0 %4663, %v2756
      %v4665 = vpop.permute.xlu0 %4664
      %4667 = vset.pattern.permute.xlu0 6
      %4668 = vperm.xlu0 %4667, %v2758
      %v4669 = vpop.permute.xlu0 %4668
      %4671 = vset.pattern.permute.xlu0 6
      %4672 = vperm.xlu0 %4671, %v2760
      %v4673 = vpop.permute.xlu0 %4672
      %4675 = vset.pattern.permute.xlu0 6
      %4676 = vperm.xlu0 %4675, %v2762
      %v4677 = vpop.permute.xlu0 %4676
      %4679 = vset.pattern.permute.xlu0 6
      %4680 = vperm.xlu0 %4679, %v2764
      %v4681 = vpop.permute.xlu0 %4680
      %4683 = vset.pattern.permute.xlu0 6
      %4684 = vperm.xlu0 %4683, %v2766
      %v4685 = vpop.permute.xlu0 %4684
      %4687 = vset.pattern.permute.xlu0 6
      %4688 = vperm.xlu0 %4687, %v2768
      %v4689 = vpop.permute.xlu0 %4688
      %4691 = vset.pattern.permute.xlu0 6
      %4692 = vperm.xlu0 %4691, %v2770
      %v4693 = vpop.permute.xlu0 %4692
      %4695 = vset.pattern.permute.xlu0 6
      %4696 = vperm.xlu0 %4695, %v2772
      %v4697 = vpop.permute.xlu0 %4696
      %4699 = vset.pattern.permute.xlu0 6
      %4700 = vperm.xlu0 %4699, %v2774
      %v4701 = vpop.permute.xlu0 %4700
      %4703 = vset.pattern.permute.xlu0 6
      %4704 = vperm.xlu0 %4703, %v2776
      %v4705 = vpop.permute.xlu0 %4704
      %4707 = vset.pattern.permute.xlu0 6
      %4708 = vperm.xlu0 %4707, %v2778
      %v4709 = vpop.permute.xlu0 %4708
      %4711 = vset.pattern.permute.xlu0 6
      %4712 = vperm.xlu0 %4711, %v2780
      %v4713 = vpop.permute.xlu0 %4712
      %4715 = vset.pattern.permute.xlu0 6
      %4716 = vperm.xlu0 %4715, %v2782
      %v4717 = vpop.permute.xlu0 %4716
      %4719 = vset.pattern.permute.xlu0 6
      %4720 = vperm.xlu0 %4719, %v2784
      %v4721 = vpop.permute.xlu0 %4720
      %4723 = vset.pattern.permute.xlu0 6
      %4724 = vperm.xlu0 %4723, %v2786
      %v4725 = vpop.permute.xlu0 %4724
      %4727 = vset.pattern.permute.xlu0 6
      %4728 = vperm.xlu0 %4727, %v2788
      %v4729 = vpop.permute.xlu0 %4728
      %4731 = vset.pattern.permute.xlu0 6
      %4732 = vperm.xlu0 %4731, %v2790
      %v4733 = vpop.permute.xlu0 %4732
      %4735 = vset.pattern.permute.xlu0 6
      %4736 = vperm.xlu0 %4735, %v2792
      %v4737 = vpop.permute.xlu0 %4736
      %4739 = vset.pattern.permute.xlu0 6
      %4740 = vperm.xlu0 %4739, %v2794
      %v4741 = vpop.permute.xlu0 %4740
      %4743 = vset.pattern.permute.xlu0 6
      %4744 = vperm.xlu0 %4743, %v2796
      %v4745 = vpop.permute.xlu0 %4744
      %4747 = vset.pattern.permute.xlu0 6
      %4748 = vperm.xlu0 %4747, %v2798
      %v4749 = vpop.permute.xlu0 %4748
      %v4751 = vmul.f32 %v1837, %v4625
      %v4752 = vmul.f32 %v1838, %v4629
      %v4753 = vmul.f32 %v1839, %v4633
      %v4754 = vmul.f32 %v1840, %v4637
      %v4755 = vmul.f32 %v1841, %v4641
      %v4756 = vmul.f32 %v1842, %v4645
      %v4757 = vmul.f32 %v1843, %v4649
      %v4758 = vmul.f32 %v1844, %v4653
      %v4759 = vmul.f32 %v1845, %v4657
      %v4760 = vmul.f32 %v1846, %v4661
      %v4761 = vmul.f32 %v1847, %v4665
      %v4762 = vmul.f32 %v1848, %v4669
      %v4763 = vmul.f32 %v1849, %v4673
      %v4764 = vmul.f32 %v1850, %v4677
      %v4765 = vmul.f32 %v1851, %v4681
      %v4766 = vmul.f32 %v1852, %v4685
      %v4767 = vmul.f32 %v1853, %v4689
      %v4768 = vmul.f32 %v1854, %v4693
      %v4769 = vmul.f32 %v1855, %v4697
      %v4770 = vmul.f32 %v1856, %v4701
      %v4771 = vmul.f32 %v1857, %v4705
      %v4772 = vmul.f32 %v1858, %v4709
      %v4773 = vmul.f32 %v1859, %v4713
      %v4774 = vmul.f32 %v1860, %v4717
      %v4775 = vmul.f32 %v1861, %v4721
      %v4776 = vmul.f32 %v1862, %v4725
      %v4777 = vmul.f32 %v1863, %v4729
      %v4778 = vmul.f32 %v1864, %v4733
      %v4779 = vmul.f32 %v1865, %v4737
      %v4780 = vmul.f32 %v1866, %v4741
      %v4781 = vmul.f32 %v1867, %v4745
      %v4782 = vmul.f32 %v1868, %v4749
      %4815 = vrot.lane.b32.xlu0 %v4751, 104
      %v4816 = vpop.permute.xlu0 %4815
      %4817 = vrot.lane.b32.xlu0 %v4752, 104
      %v4818 = vpop.permute.xlu0 %4817
      %4819 = vrot.lane.b32.xlu0 %v4753, 104
      %v4820 = vpop.permute.xlu0 %4819
      %4821 = vrot.lane.b32.xlu0 %v4754, 104
      %v4822 = vpop.permute.xlu0 %4821
      %4823 = vrot.lane.b32.xlu0 %v4755, 104
      %v4824 = vpop.permute.xlu0 %4823
      %4825 = vrot.lane.b32.xlu0 %v4756, 104
      %v4826 = vpop.permute.xlu0 %4825
      %4827 = vrot.lane.b32.xlu0 %v4757, 104
      %v4828 = vpop.permute.xlu0 %4827
      %4829 = vrot.lane.b32.xlu0 %v4758, 104
      %v4830 = vpop.permute.xlu0 %4829
      %4831 = vrot.lane.b32.xlu0 %v4759, 104
      %v4832 = vpop.permute.xlu0 %4831
      %4833 = vrot.lane.b32.xlu0 %v4760, 104
      %v4834 = vpop.permute.xlu0 %4833
      %4835 = vrot.lane.b32.xlu0 %v4761, 104
      %v4836 = vpop.permute.xlu0 %4835
      %4837 = vrot.lane.b32.xlu0 %v4762, 104
      %v4838 = vpop.permute.xlu0 %4837
      %4839 = vrot.lane.b32.xlu0 %v4763, 104
      %v4840 = vpop.permute.xlu0 %4839
      %4841 = vrot.lane.b32.xlu0 %v4764, 104
      %v4842 = vpop.permute.xlu0 %4841
      %4843 = vrot.lane.b32.xlu0 %v4765, 104
      %v4844 = vpop.permute.xlu0 %4843
      %4845 = vrot.lane.b32.xlu0 %v4766, 104
      %v4846 = vpop.permute.xlu0 %4845
      %4847 = vrot.lane.b32.xlu0 %v4767, 104
      %v4848 = vpop.permute.xlu0 %4847
      %4849 = vrot.lane.b32.xlu0 %v4768, 104
      %v4850 = vpop.permute.xlu0 %4849
      %4851 = vrot.lane.b32.xlu0 %v4769, 104
      %v4852 = vpop.permute.xlu0 %4851
      %4853 = vrot.lane.b32.xlu0 %v4770, 104
      %v4854 = vpop.permute.xlu0 %4853
      %4855 = vrot.lane.b32.xlu0 %v4771, 104
      %v4856 = vpop.permute.xlu0 %4855
      %4857 = vrot.lane.b32.xlu0 %v4772, 104
      %v4858 = vpop.permute.xlu0 %4857
      %4859 = vrot.lane.b32.xlu0 %v4773, 104
      %v4860 = vpop.permute.xlu0 %4859
      %4861 = vrot.lane.b32.xlu0 %v4774, 104
      %v4862 = vpop.permute.xlu0 %4861
      %4863 = vrot.lane.b32.xlu0 %v4775, 104
      %v4864 = vpop.permute.xlu0 %4863
      %4865 = vrot.lane.b32.xlu0 %v4776, 104
      %v4866 = vpop.permute.xlu0 %4865
      %4867 = vrot.lane.b32.xlu0 %v4777, 104
      %v4868 = vpop.permute.xlu0 %4867
      %4869 = vrot.lane.b32.xlu0 %v4778, 104
      %v4870 = vpop.permute.xlu0 %4869
      %4871 = vrot.lane.b32.xlu0 %v4779, 104
      %v4872 = vpop.permute.xlu0 %4871
      %4873 = vrot.lane.b32.xlu0 %v4780, 104
      %v4874 = vpop.permute.xlu0 %4873
      %4875 = vrot.lane.b32.xlu0 %v4781, 104
      %v4876 = vpop.permute.xlu0 %4875
      %4877 = vrot.lane.b32.xlu0 %v4782, 104
      %v4878 = vpop.permute.xlu0 %4877
      %v4911 = vadd.f32 %v4591, %v4816
      %v4912 = vadd.f32 %v4592, %v4818
      %v4913 = vadd.f32 %v4593, %v4820
      %v4914 = vadd.f32 %v4594, %v4822
      %v4915 = vadd.f32 %v4595, %v4824
      %v4916 = vadd.f32 %v4596, %v4826
      %v4917 = vadd.f32 %v4597, %v4828
      %v4918 = vadd.f32 %v4598, %v4830
      %v4919 = vadd.f32 %v4599, %v4832
      %v4920 = vadd.f32 %v4600, %v4834
      %v4921 = vadd.f32 %v4601, %v4836
      %v4922 = vadd.f32 %v4602, %v4838
      %v4923 = vadd.f32 %v4603, %v4840
      %v4924 = vadd.f32 %v4604, %v4842
      %v4925 = vadd.f32 %v4605, %v4844
      %v4926 = vadd.f32 %v4606, %v4846
      %v4927 = vadd.f32 %v4607, %v4848
      %v4928 = vadd.f32 %v4608, %v4850
      %v4929 = vadd.f32 %v4609, %v4852
      %v4930 = vadd.f32 %v4610, %v4854
      %v4931 = vadd.f32 %v4611, %v4856
      %v4932 = vadd.f32 %v4612, %v4858
      %v4933 = vadd.f32 %v4613, %v4860
      %v4934 = vadd.f32 %v4614, %v4862
      %v4935 = vadd.f32 %v4615, %v4864
      %v4936 = vadd.f32 %v4616, %v4866
      %v4937 = vadd.f32 %v4617, %v4868
      %v4938 = vadd.f32 %v4618, %v4870
      %v4939 = vadd.f32 %v4619, %v4872
      %v4940 = vadd.f32 %v4620, %v4874
      %v4941 = vadd.f32 %v4621, %v4876
      %v4942 = vadd.f32 %v4622, %v4878
      %4943 = vset.pattern.permute.xlu0 7
      %4944 = vperm.xlu0 %4943, %v2736
      %v4945 = vpop.permute.xlu0 %4944
      %4947 = vset.pattern.permute.xlu0 7
      %4948 = vperm.xlu0 %4947, %v2738
      %v4949 = vpop.permute.xlu0 %4948
      %4951 = vset.pattern.permute.xlu0 7
      %4952 = vperm.xlu0 %4951, %v2740
      %v4953 = vpop.permute.xlu0 %4952
      %4955 = vset.pattern.permute.xlu0 7
      %4956 = vperm.xlu0 %4955, %v2742
      %v4957 = vpop.permute.xlu0 %4956
      %4959 = vset.pattern.permute.xlu0 7
      %4960 = vperm.xlu0 %4959, %v2744
      %v4961 = vpop.permute.xlu0 %4960
      %4963 = vset.pattern.permute.xlu0 7
      %4964 = vperm.xlu0 %4963, %v2746
      %v4965 = vpop.permute.xlu0 %4964
      %4967 = vset.pattern.permute.xlu0 7
      %4968 = vperm.xlu0 %4967, %v2748
      %v4969 = vpop.permute.xlu0 %4968
      %4971 = vset.pattern.permute.xlu0 7
      %4972 = vperm.xlu0 %4971, %v2750
      %v4973 = vpop.permute.xlu0 %4972
      %4975 = vset.pattern.permute.xlu0 7
      %4976 = vperm.xlu0 %4975, %v2752
      %v4977 = vpop.permute.xlu0 %4976
      %4979 = vset.pattern.permute.xlu0 7
      %4980 = vperm.xlu0 %4979, %v2754
      %v4981 = vpop.permute.xlu0 %4980
      %4983 = vset.pattern.permute.xlu0 7
      %4984 = vperm.xlu0 %4983, %v2756
      %v4985 = vpop.permute.xlu0 %4984
      %4987 = vset.pattern.permute.xlu0 7
      %4988 = vperm.xlu0 %4987, %v2758
      %v4989 = vpop.permute.xlu0 %4988
      %4991 = vset.pattern.permute.xlu0 7
      %4992 = vperm.xlu0 %4991, %v2760
      %v4993 = vpop.permute.xlu0 %4992
      %4995 = vset.pattern.permute.xlu0 7
      %4996 = vperm.xlu0 %4995, %v2762
      %v4997 = vpop.permute.xlu0 %4996
      %4999 = vset.pattern.permute.xlu0 7
      %5000 = vperm.xlu0 %4999, %v2764
      %v5001 = vpop.permute.xlu0 %5000
      %5003 = vset.pattern.permute.xlu0 7
      %5004 = vperm.xlu0 %5003, %v2766
      %v5005 = vpop.permute.xlu0 %5004
      %5007 = vset.pattern.permute.xlu0 7
      %5008 = vperm.xlu0 %5007, %v2768
      %v5009 = vpop.permute.xlu0 %5008
      %5011 = vset.pattern.permute.xlu0 7
      %5012 = vperm.xlu0 %5011, %v2770
      %v5013 = vpop.permute.xlu0 %5012
      %5015 = vset.pattern.permute.xlu0 7
      %5016 = vperm.xlu0 %5015, %v2772
      %v5017 = vpop.permute.xlu0 %5016
      %5019 = vset.pattern.permute.xlu0 7
      %5020 = vperm.xlu0 %5019, %v2774
      %v5021 = vpop.permute.xlu0 %5020
      %5023 = vset.pattern.permute.xlu0 7
      %5024 = vperm.xlu0 %5023, %v2776
      %v5025 = vpop.permute.xlu0 %5024
      %5027 = vset.pattern.permute.xlu0 7
      %5028 = vperm.xlu0 %5027, %v2778
      %v5029 = vpop.permute.xlu0 %5028
      %5031 = vset.pattern.permute.xlu0 7
      %5032 = vperm.xlu0 %5031, %v2780
      %v5033 = vpop.permute.xlu0 %5032
      %5035 = vset.pattern.permute.xlu0 7
      %5036 = vperm.xlu0 %5035, %v2782
      %v5037 = vpop.permute.xlu0 %5036
      %5039 = vset.pattern.permute.xlu0 7
      %5040 = vperm.xlu0 %5039, %v2784
      %v5041 = vpop.permute.xlu0 %5040
      %5043 = vset.pattern.permute.xlu0 7
      %5044 = vperm.xlu0 %5043, %v2786
      %v5045 = vpop.permute.xlu0 %5044
      %5047 = vset.pattern.permute.xlu0 7
      %5048 = vperm.xlu0 %5047, %v2788
      %v5049 = vpop.permute.xlu0 %5048
      %5051 = vset.pattern.permute.xlu0 7
      %5052 = vperm.xlu0 %5051, %v2790
      %v5053 = vpop.permute.xlu0 %5052
      %5055 = vset.pattern.permute.xlu0 7
      %5056 = vperm.xlu0 %5055, %v2792
      %v5057 = vpop.permute.xlu0 %5056
      %5059 = vset.pattern.permute.xlu0 7
      %5060 = vperm.xlu0 %5059, %v2794
      %v5061 = vpop.permute.xlu0 %5060
      %5063 = vset.pattern.permute.xlu0 7
      %5064 = vperm.xlu0 %5063, %v2796
      %v5065 = vpop.permute.xlu0 %5064
      %5067 = vset.pattern.permute.xlu0 7
      %5068 = vperm.xlu0 %5067, %v2798
      %v5069 = vpop.permute.xlu0 %5068
      %v5071 = vmul.f32 %v1837, %v4945
      %v5072 = vmul.f32 %v1838, %v4949
      %v5073 = vmul.f32 %v1839, %v4953
      %v5074 = vmul.f32 %v1840, %v4957
      %v5075 = vmul.f32 %v1841, %v4961
      %v5076 = vmul.f32 %v1842, %v4965
      %v5077 = vmul.f32 %v1843, %v4969
      %v5078 = vmul.f32 %v1844, %v4973
      %v5079 = vmul.f32 %v1845, %v4977
      %v5080 = vmul.f32 %v1846, %v4981
      %v5081 = vmul.f32 %v1847, %v4985
      %v5082 = vmul.f32 %v1848, %v4989
      %v5083 = vmul.f32 %v1849, %v4993
      %v5084 = vmul.f32 %v1850, %v4997
      %v5085 = vmul.f32 %v1851, %v5001
      %v5086 = vmul.f32 %v1852, %v5005
      %v5087 = vmul.f32 %v1853, %v5009
      %v5088 = vmul.f32 %v1854, %v5013
      %v5089 = vmul.f32 %v1855, %v5017
      %v5090 = vmul.f32 %v1856, %v5021
      %v5091 = vmul.f32 %v1857, %v5025
      %v5092 = vmul.f32 %v1858, %v5029
      %v5093 = vmul.f32 %v1859, %v5033
      %v5094 = vmul.f32 %v1860, %v5037
      %v5095 = vmul.f32 %v1861, %v5041
      %v5096 = vmul.f32 %v1862, %v5045
      %v5097 = vmul.f32 %v1863, %v5049
      %v5098 = vmul.f32 %v1864, %v5053
      %v5099 = vmul.f32 %v1865, %v5057
      %v5100 = vmul.f32 %v1866, %v5061
      %v5101 = vmul.f32 %v1867, %v5065
      %v5102 = vmul.f32 %v1868, %v5069
      %5135 = vrot.lane.b32.xlu0 %v5071, 100
      %v5136 = vpop.permute.xlu0 %5135
      %5137 = vrot.lane.b32.xlu0 %v5072, 100
      %v5138 = vpop.permute.xlu0 %5137
      %5139 = vrot.lane.b32.xlu0 %v5073, 100
      %v5140 = vpop.permute.xlu0 %5139
      %5141 = vrot.lane.b32.xlu0 %v5074, 100
      %v5142 = vpop.permute.xlu0 %5141
      %5143 = vrot.lane.b32.xlu0 %v5075, 100
      %v5144 = vpop.permute.xlu0 %5143
      %5145 = vrot.lane.b32.xlu0 %v5076, 100
      %v5146 = vpop.permute.xlu0 %5145
      %5147 = vrot.lane.b32.xlu0 %v5077, 100
      %v5148 = vpop.permute.xlu0 %5147
      %5149 = vrot.lane.b32.xlu0 %v5078, 100
      %v5150 = vpop.permute.xlu0 %5149
      %5151 = vrot.lane.b32.xlu0 %v5079, 100
      %v5152 = vpop.permute.xlu0 %5151
      %5153 = vrot.lane.b32.xlu0 %v5080, 100
      %v5154 = vpop.permute.xlu0 %5153
      %5155 = vrot.lane.b32.xlu0 %v5081, 100
      %v5156 = vpop.permute.xlu0 %5155
      %5157 = vrot.lane.b32.xlu0 %v5082, 100
      %v5158 = vpop.permute.xlu0 %5157
      %5159 = vrot.lane.b32.xlu0 %v5083, 100
      %v5160 = vpop.permute.xlu0 %5159
      %5161 = vrot.lane.b32.xlu0 %v5084, 100
      %v5162 = vpop.permute.xlu0 %5161
      %5163 = vrot.lane.b32.xlu0 %v5085, 100
      %v5164 = vpop.permute.xlu0 %5163
      %5165 = vrot.lane.b32.xlu0 %v5086, 100
      %v5166 = vpop.permute.xlu0 %5165
      %5167 = vrot.lane.b32.xlu0 %v5087, 100
      %v5168 = vpop.permute.xlu0 %5167
      %5169 = vrot.lane.b32.xlu0 %v5088, 100
      %v5170 = vpop.permute.xlu0 %5169
      %5171 = vrot.lane.b32.xlu0 %v5089, 100
      %v5172 = vpop.permute.xlu0 %5171
      %5173 = vrot.lane.b32.xlu0 %v5090, 100
      %v5174 = vpop.permute.xlu0 %5173
      %5175 = vrot.lane.b32.xlu0 %v5091, 100
      %v5176 = vpop.permute.xlu0 %5175
      %5177 = vrot.lane.b32.xlu0 %v5092, 100
      %v5178 = vpop.permute.xlu0 %5177
      %5179 = vrot.lane.b32.xlu0 %v5093, 100
      %v5180 = vpop.permute.xlu0 %5179
      %5181 = vrot.lane.b32.xlu0 %v5094, 100
      %v5182 = vpop.permute.xlu0 %5181
      %5183 = vrot.lane.b32.xlu0 %v5095, 100
      %v5184 = vpop.permute.xlu0 %5183
      %5185 = vrot.lane.b32.xlu0 %v5096, 100
      %v5186 = vpop.permute.xlu0 %5185
      %5187 = vrot.lane.b32.xlu0 %v5097, 100
      %v5188 = vpop.permute.xlu0 %5187
      %5189 = vrot.lane.b32.xlu0 %v5098, 100
      %v5190 = vpop.permute.xlu0 %5189
      %5191 = vrot.lane.b32.xlu0 %v5099, 100
      %v5192 = vpop.permute.xlu0 %5191
      %5193 = vrot.lane.b32.xlu0 %v5100, 100
      %v5194 = vpop.permute.xlu0 %5193
      %5195 = vrot.lane.b32.xlu0 %v5101, 100
      %v5196 = vpop.permute.xlu0 %5195
      %5197 = vrot.lane.b32.xlu0 %v5102, 100
      %v5198 = vpop.permute.xlu0 %5197
      %v5231 = vadd.f32 %v4911, %v5136
      %v5232 = vadd.f32 %v4912, %v5138
      %v5233 = vadd.f32 %v4913, %v5140
      %v5234 = vadd.f32 %v4914, %v5142
      %v5235 = vadd.f32 %v4915, %v5144
      %v5236 = vadd.f32 %v4916, %v5146
      %v5237 = vadd.f32 %v4917, %v5148
      %v5238 = vadd.f32 %v4918, %v5150
      %v5239 = vadd.f32 %v4919, %v5152
      %v5240 = vadd.f32 %v4920, %v5154
      %v5241 = vadd.f32 %v4921, %v5156
      %v5242 = vadd.f32 %v4922, %v5158
      %v5243 = vadd.f32 %v4923, %v5160
      %v5244 = vadd.f32 %v4924, %v5162
      %v5245 = vadd.f32 %v4925, %v5164
      %v5246 = vadd.f32 %v4926, %v5166
      %v5247 = vadd.f32 %v4927, %v5168
      %v5248 = vadd.f32 %v4928, %v5170
      %v5249 = vadd.f32 %v4929, %v5172
      %v5250 = vadd.f32 %v4930, %v5174
      %v5251 = vadd.f32 %v4931, %v5176
      %v5252 = vadd.f32 %v4932, %v5178
      %v5253 = vadd.f32 %v4933, %v5180
      %v5254 = vadd.f32 %v4934, %v5182
      %v5255 = vadd.f32 %v4935, %v5184
      %v5256 = vadd.f32 %v4936, %v5186
      %v5257 = vadd.f32 %v4937, %v5188
      %v5258 = vadd.f32 %v4938, %v5190
      %v5259 = vadd.f32 %v4939, %v5192
      %v5260 = vadd.f32 %v4940, %v5194
      %v5261 = vadd.f32 %v4941, %v5196
      %v5262 = vadd.f32 %v4942, %v5198
      %5263 = vset.pattern.permute.xlu0 8
      %5264 = vperm.xlu0 %5263, %v2736
      %v5265 = vpop.permute.xlu0 %5264
      %5267 = vset.pattern.permute.xlu0 8
      %5268 = vperm.xlu0 %5267, %v2738
      %v5269 = vpop.permute.xlu0 %5268
      %5271 = vset.pattern.permute.xlu0 8
      %5272 = vperm.xlu0 %5271, %v2740
      %v5273 = vpop.permute.xlu0 %5272
      %5275 = vset.pattern.permute.xlu0 8
      %5276 = vperm.xlu0 %5275, %v2742
      %v5277 = vpop.permute.xlu0 %5276
      %5279 = vset.pattern.permute.xlu0 8
      %5280 = vperm.xlu0 %5279, %v2744
      %v5281 = vpop.permute.xlu0 %5280
      %5283 = vset.pattern.permute.xlu0 8
      %5284 = vperm.xlu0 %5283, %v2746
      %v5285 = vpop.permute.xlu0 %5284
      %5287 = vset.pattern.permute.xlu0 8
      %5288 = vperm.xlu0 %5287, %v2748
      %v5289 = vpop.permute.xlu0 %5288
      %5291 = vset.pattern.permute.xlu0 8
      %5292 = vperm.xlu0 %5291, %v2750
      %v5293 = vpop.permute.xlu0 %5292
      %5295 = vset.pattern.permute.xlu0 8
      %5296 = vperm.xlu0 %5295, %v2752
      %v5297 = vpop.permute.xlu0 %5296
      %5299 = vset.pattern.permute.xlu0 8
      %5300 = vperm.xlu0 %5299, %v2754
      %v5301 = vpop.permute.xlu0 %5300
      %5303 = vset.pattern.permute.xlu0 8
      %5304 = vperm.xlu0 %5303, %v2756
      %v5305 = vpop.permute.xlu0 %5304
      %5307 = vset.pattern.permute.xlu0 8
      %5308 = vperm.xlu0 %5307, %v2758
      %v5309 = vpop.permute.xlu0 %5308
      %5311 = vset.pattern.permute.xlu0 8
      %5312 = vperm.xlu0 %5311, %v2760
      %v5313 = vpop.permute.xlu0 %5312
      %5315 = vset.pattern.permute.xlu0 8
      %5316 = vperm.xlu0 %5315, %v2762
      %v5317 = vpop.permute.xlu0 %5316
      %5319 = vset.pattern.permute.xlu0 8
      %5320 = vperm.xlu0 %5319, %v2764
      %v5321 = vpop.permute.xlu0 %5320
      %5323 = vset.pattern.permute.xlu0 8
      %5324 = vperm.xlu0 %5323, %v2766
      %v5325 = vpop.permute.xlu0 %5324
      %5327 = vset.pattern.permute.xlu0 8
      %5328 = vperm.xlu0 %5327, %v2768
      %v5329 = vpop.permute.xlu0 %5328
      %5331 = vset.pattern.permute.xlu0 8
      %5332 = vperm.xlu0 %5331, %v2770
      %v5333 = vpop.permute.xlu0 %5332
      %5335 = vset.pattern.permute.xlu0 8
      %5336 = vperm.xlu0 %5335, %v2772
      %v5337 = vpop.permute.xlu0 %5336
      %5339 = vset.pattern.permute.xlu0 8
      %5340 = vperm.xlu0 %5339, %v2774
      %v5341 = vpop.permute.xlu0 %5340
      %5343 = vset.pattern.permute.xlu0 8
      %5344 = vperm.xlu0 %5343, %v2776
      %v5345 = vpop.permute.xlu0 %5344
      %5347 = vset.pattern.permute.xlu0 8
      %5348 = vperm.xlu0 %5347, %v2778
      %v5349 = vpop.permute.xlu0 %5348
      %5351 = vset.pattern.permute.xlu0 8
      %5352 = vperm.xlu0 %5351, %v2780
      %v5353 = vpop.permute.xlu0 %5352
      %5355 = vset.pattern.permute.xlu0 8
      %5356 = vperm.xlu0 %5355, %v2782
      %v5357 = vpop.permute.xlu0 %5356
      %5359 = vset.pattern.permute.xlu0 8
      %5360 = vperm.xlu0 %5359, %v2784
      %v5361 = vpop.permute.xlu0 %5360
      %5363 = vset.pattern.permute.xlu0 8
      %5364 = vperm.xlu0 %5363, %v2786
      %v5365 = vpop.permute.xlu0 %5364
      %5367 = vset.pattern.permute.xlu0 8
      %5368 = vperm.xlu0 %5367, %v2788
      %v5369 = vpop.permute.xlu0 %5368
      %5371 = vset.pattern.permute.xlu0 8
      %5372 = vperm.xlu0 %5371, %v2790
      %v5373 = vpop.permute.xlu0 %5372
      %5375 = vset.pattern.permute.xlu0 8
      %5376 = vperm.xlu0 %5375, %v2792
      %v5377 = vpop.permute.xlu0 %5376
      %5379 = vset.pattern.permute.xlu0 8
      %5380 = vperm.xlu0 %5379, %v2794
      %v5381 = vpop.permute.xlu0 %5380
      %5383 = vset.pattern.permute.xlu0 8
      %5384 = vperm.xlu0 %5383, %v2796
      %v5385 = vpop.permute.xlu0 %5384
      %5387 = vset.pattern.permute.xlu0 8
      %5388 = vperm.xlu0 %5387, %v2798
      %v5389 = vpop.permute.xlu0 %5388
      %v5391 = vmul.f32 %v1837, %v5265
      %v5392 = vmul.f32 %v1838, %v5269
      %v5393 = vmul.f32 %v1839, %v5273
      %v5394 = vmul.f32 %v1840, %v5277
      %v5395 = vmul.f32 %v1841, %v5281
      %v5396 = vmul.f32 %v1842, %v5285
      %v5397 = vmul.f32 %v1843, %v5289
      %v5398 = vmul.f32 %v1844, %v5293
      %v5399 = vmul.f32 %v1845, %v5297
      %v5400 = vmul.f32 %v1846, %v5301
      %v5401 = vmul.f32 %v1847, %v5305
      %v5402 = vmul.f32 %v1848, %v5309
      %v5403 = vmul.f32 %v1849, %v5313
      %v5404 = vmul.f32 %v1850, %v5317
      %v5405 = vmul.f32 %v1851, %v5321
      %v5406 = vmul.f32 %v1852, %v5325
      %v5407 = vmul.f32 %v1853, %v5329
      %v5408 = vmul.f32 %v1854, %v5333
      %v5409 = vmul.f32 %v1855, %v5337
      %v5410 = vmul.f32 %v1856, %v5341
      %v5411 = vmul.f32 %v1857, %v5345
      %v5412 = vmul.f32 %v1858, %v5349
      %v5413 = vmul.f32 %v1859, %v5353
      %v5414 = vmul.f32 %v1860, %v5357
      %v5415 = vmul.f32 %v1861, %v5361
      %v5416 = vmul.f32 %v1862, %v5365
      %v5417 = vmul.f32 %v1863, %v5369
      %v5418 = vmul.f32 %v1864, %v5373
      %v5419 = vmul.f32 %v1865, %v5377
      %v5420 = vmul.f32 %v1866, %v5381
      %v5421 = vmul.f32 %v1867, %v5385
      %v5422 = vmul.f32 %v1868, %v5389
      %5455 = vrot.lane.b32.xlu0 %v5391, 96
      %v5456 = vpop.permute.xlu0 %5455
      %5457 = vrot.lane.b32.xlu0 %v5392, 96
      %v5458 = vpop.permute.xlu0 %5457
      %5459 = vrot.lane.b32.xlu0 %v5393, 96
      %v5460 = vpop.permute.xlu0 %5459
      %5461 = vrot.lane.b32.xlu0 %v5394, 96
      %v5462 = vpop.permute.xlu0 %5461
      %5463 = vrot.lane.b32.xlu0 %v5395, 96
      %v5464 = vpop.permute.xlu0 %5463
      %5465 = vrot.lane.b32.xlu0 %v5396, 96
      %v5466 = vpop.permute.xlu0 %5465
      %5467 = vrot.lane.b32.xlu0 %v5397, 96
      %v5468 = vpop.permute.xlu0 %5467
      %5469 = vrot.lane.b32.xlu0 %v5398, 96
      %v5470 = vpop.permute.xlu0 %5469
      %5471 = vrot.lane.b32.xlu0 %v5399, 96
      %v5472 = vpop.permute.xlu0 %5471
      %5473 = vrot.lane.b32.xlu0 %v5400, 96
      %v5474 = vpop.permute.xlu0 %5473
      %5475 = vrot.lane.b32.xlu0 %v5401, 96
      %v5476 = vpop.permute.xlu0 %5475
      %5477 = vrot.lane.b32.xlu0 %v5402, 96
      %v5478 = vpop.permute.xlu0 %5477
      %5479 = vrot.lane.b32.xlu0 %v5403, 96
      %v5480 = vpop.permute.xlu0 %5479
      %5481 = vrot.lane.b32.xlu0 %v5404, 96
      %v5482 = vpop.permute.xlu0 %5481
      %5483 = vrot.lane.b32.xlu0 %v5405, 96
      %v5484 = vpop.permute.xlu0 %5483
      %5485 = vrot.lane.b32.xlu0 %v5406, 96
      %v5486 = vpop.permute.xlu0 %5485
      %5487 = vrot.lane.b32.xlu0 %v5407, 96
      %v5488 = vpop.permute.xlu0 %5487
      %5489 = vrot.lane.b32.xlu0 %v5408, 96
      %v5490 = vpop.permute.xlu0 %5489
      %5491 = vrot.lane.b32.xlu0 %v5409, 96
      %v5492 = vpop.permute.xlu0 %5491
      %5493 = vrot.lane.b32.xlu0 %v5410, 96
      %v5494 = vpop.permute.xlu0 %5493
      %5495 = vrot.lane.b32.xlu0 %v5411, 96
      %v5496 = vpop.permute.xlu0 %5495
      %5497 = vrot.lane.b32.xlu0 %v5412, 96
      %v5498 = vpop.permute.xlu0 %5497
      %5499 = vrot.lane.b32.xlu0 %v5413, 96
      %v5500 = vpop.permute.xlu0 %5499
      %5501 = vrot.lane.b32.xlu0 %v5414, 96
      %v5502 = vpop.permute.xlu0 %5501
      %5503 = vrot.lane.b32.xlu0 %v5415, 96
      %v5504 = vpop.permute.xlu0 %5503
      %5505 = vrot.lane.b32.xlu0 %v5416, 96
      %v5506 = vpop.permute.xlu0 %5505
      %5507 = vrot.lane.b32.xlu0 %v5417, 96
      %v5508 = vpop.permute.xlu0 %5507
      %5509 = vrot.lane.b32.xlu0 %v5418, 96
      %v5510 = vpop.permute.xlu0 %5509
      %5511 = vrot.lane.b32.xlu0 %v5419, 96
      %v5512 = vpop.permute.xlu0 %5511
      %5513 = vrot.lane.b32.xlu0 %v5420, 96
      %v5514 = vpop.permute.xlu0 %5513
      %5515 = vrot.lane.b32.xlu0 %v5421, 96
      %v5516 = vpop.permute.xlu0 %5515
      %5517 = vrot.lane.b32.xlu0 %v5422, 96
      %v5518 = vpop.permute.xlu0 %5517
      %v5551 = vadd.f32 %v5231, %v5456
      %v5552 = vadd.f32 %v5232, %v5458
      %v5553 = vadd.f32 %v5233, %v5460
      %v5554 = vadd.f32 %v5234, %v5462
      %v5555 = vadd.f32 %v5235, %v5464
      %v5556 = vadd.f32 %v5236, %v5466
      %v5557 = vadd.f32 %v5237, %v5468
      %v5558 = vadd.f32 %v5238, %v5470
      %v5559 = vadd.f32 %v5239, %v5472
      %v5560 = vadd.f32 %v5240, %v5474
      %v5561 = vadd.f32 %v5241, %v5476
      %v5562 = vadd.f32 %v5242, %v5478
      %v5563 = vadd.f32 %v5243, %v5480
      %v5564 = vadd.f32 %v5244, %v5482
      %v5565 = vadd.f32 %v5245, %v5484
      %v5566 = vadd.f32 %v5246, %v5486
      %v5567 = vadd.f32 %v5247, %v5488
      %v5568 = vadd.f32 %v5248, %v5490
      %v5569 = vadd.f32 %v5249, %v5492
      %v5570 = vadd.f32 %v5250, %v5494
      %v5571 = vadd.f32 %v5251, %v5496
      %v5572 = vadd.f32 %v5252, %v5498
      %v5573 = vadd.f32 %v5253, %v5500
      %v5574 = vadd.f32 %v5254, %v5502
      %v5575 = vadd.f32 %v5255, %v5504
      %v5576 = vadd.f32 %v5256, %v5506
      %v5577 = vadd.f32 %v5257, %v5508
      %v5578 = vadd.f32 %v5258, %v5510
      %v5579 = vadd.f32 %v5259, %v5512
      %v5580 = vadd.f32 %v5260, %v5514
      %v5581 = vadd.f32 %v5261, %v5516
      %v5582 = vadd.f32 %v5262, %v5518
      %5583 = vset.pattern.permute.xlu0 9
      %5584 = vperm.xlu0 %5583, %v2736
      %v5585 = vpop.permute.xlu0 %5584
      %5587 = vset.pattern.permute.xlu0 9
      %5588 = vperm.xlu0 %5587, %v2738
      %v5589 = vpop.permute.xlu0 %5588
      %5591 = vset.pattern.permute.xlu0 9
      %5592 = vperm.xlu0 %5591, %v2740
      %v5593 = vpop.permute.xlu0 %5592
      %5595 = vset.pattern.permute.xlu0 9
      %5596 = vperm.xlu0 %5595, %v2742
      %v5597 = vpop.permute.xlu0 %5596
      %5599 = vset.pattern.permute.xlu0 9
      %5600 = vperm.xlu0 %5599, %v2744
      %v5601 = vpop.permute.xlu0 %5600
      %5603 = vset.pattern.permute.xlu0 9
      %5604 = vperm.xlu0 %5603, %v2746
      %v5605 = vpop.permute.xlu0 %5604
      %5607 = vset.pattern.permute.xlu0 9
      %5608 = vperm.xlu0 %5607, %v2748
      %v5609 = vpop.permute.xlu0 %5608
      %5611 = vset.pattern.permute.xlu0 9
      %5612 = vperm.xlu0 %5611, %v2750
      %v5613 = vpop.permute.xlu0 %5612
      %5615 = vset.pattern.permute.xlu0 9
      %5616 = vperm.xlu0 %5615, %v2752
      %v5617 = vpop.permute.xlu0 %5616
      %5619 = vset.pattern.permute.xlu0 9
      %5620 = vperm.xlu0 %5619, %v2754
      %v5621 = vpop.permute.xlu0 %5620
      %5623 = vset.pattern.permute.xlu0 9
      %5624 = vperm.xlu0 %5623, %v2756
      %v5625 = vpop.permute.xlu0 %5624
      %5627 = vset.pattern.permute.xlu0 9
      %5628 = vperm.xlu0 %5627, %v2758
      %v5629 = vpop.permute.xlu0 %5628
      %5631 = vset.pattern.permute.xlu0 9
      %5632 = vperm.xlu0 %5631, %v2760
      %v5633 = vpop.permute.xlu0 %5632
      %5635 = vset.pattern.permute.xlu0 9
      %5636 = vperm.xlu0 %5635, %v2762
      %v5637 = vpop.permute.xlu0 %5636
      %5639 = vset.pattern.permute.xlu0 9
      %5640 = vperm.xlu0 %5639, %v2764
      %v5641 = vpop.permute.xlu0 %5640
      %5643 = vset.pattern.permute.xlu0 9
      %5644 = vperm.xlu0 %5643, %v2766
      %v5645 = vpop.permute.xlu0 %5644
      %5647 = vset.pattern.permute.xlu0 9
      %5648 = vperm.xlu0 %5647, %v2768
      %v5649 = vpop.permute.xlu0 %5648
      %5651 = vset.pattern.permute.xlu0 9
      %5652 = vperm.xlu0 %5651, %v2770
      %v5653 = vpop.permute.xlu0 %5652
      %5655 = vset.pattern.permute.xlu0 9
      %5656 = vperm.xlu0 %5655, %v2772
      %v5657 = vpop.permute.xlu0 %5656
      %5659 = vset.pattern.permute.xlu0 9
      %5660 = vperm.xlu0 %5659, %v2774
      %v5661 = vpop.permute.xlu0 %5660
      %5663 = vset.pattern.permute.xlu0 9
      %5664 = vperm.xlu0 %5663, %v2776
      %v5665 = vpop.permute.xlu0 %5664
      %5667 = vset.pattern.permute.xlu0 9
      %5668 = vperm.xlu0 %5667, %v2778
      %v5669 = vpop.permute.xlu0 %5668
      %5671 = vset.pattern.permute.xlu0 9
      %5672 = vperm.xlu0 %5671, %v2780
      %v5673 = vpop.permute.xlu0 %5672
      %5675 = vset.pattern.permute.xlu0 9
      %5676 = vperm.xlu0 %5675, %v2782
      %v5677 = vpop.permute.xlu0 %5676
      %5679 = vset.pattern.permute.xlu0 9
      %5680 = vperm.xlu0 %5679, %v2784
      %v5681 = vpop.permute.xlu0 %5680
      %5683 = vset.pattern.permute.xlu0 9
      %5684 = vperm.xlu0 %5683, %v2786
      %v5685 = vpop.permute.xlu0 %5684
      %5687 = vset.pattern.permute.xlu0 9
      %5688 = vperm.xlu0 %5687, %v2788
      %v5689 = vpop.permute.xlu0 %5688
      %5691 = vset.pattern.permute.xlu0 9
      %5692 = vperm.xlu0 %5691, %v2790
      %v5693 = vpop.permute.xlu0 %5692
      %5695 = vset.pattern.permute.xlu0 9
      %5696 = vperm.xlu0 %5695, %v2792
      %v5697 = vpop.permute.xlu0 %5696
      %5699 = vset.pattern.permute.xlu0 9
      %5700 = vperm.xlu0 %5699, %v2794
      %v5701 = vpop.permute.xlu0 %5700
      %5703 = vset.pattern.permute.xlu0 9
      %5704 = vperm.xlu0 %5703, %v2796
      %v5705 = vpop.permute.xlu0 %5704
      %5707 = vset.pattern.permute.xlu0 9
      %5708 = vperm.xlu0 %5707, %v2798
      %v5709 = vpop.permute.xlu0 %5708
      %v5711 = vmul.f32 %v1837, %v5585
      %v5712 = vmul.f32 %v1838, %v5589
      %v5713 = vmul.f32 %v1839, %v5593
      %v5714 = vmul.f32 %v1840, %v5597
      %v5715 = vmul.f32 %v1841, %v5601
      %v5716 = vmul.f32 %v1842, %v5605
      %v5717 = vmul.f32 %v1843, %v5609
      %v5718 = vmul.f32 %v1844, %v5613
      %v5719 = vmul.f32 %v1845, %v5617
      %v5720 = vmul.f32 %v1846, %v5621
      %v5721 = vmul.f32 %v1847, %v5625
      %v5722 = vmul.f32 %v1848, %v5629
      %v5723 = vmul.f32 %v1849, %v5633
      %v5724 = vmul.f32 %v1850, %v5637
      %v5725 = vmul.f32 %v1851, %v5641
      %v5726 = vmul.f32 %v1852, %v5645
      %v5727 = vmul.f32 %v1853, %v5649
      %v5728 = vmul.f32 %v1854, %v5653
      %v5729 = vmul.f32 %v1855, %v5657
      %v5730 = vmul.f32 %v1856, %v5661
      %v5731 = vmul.f32 %v1857, %v5665
      %v5732 = vmul.f32 %v1858, %v5669
      %v5733 = vmul.f32 %v1859, %v5673
      %v5734 = vmul.f32 %v1860, %v5677
      %v5735 = vmul.f32 %v1861, %v5681
      %v5736 = vmul.f32 %v1862, %v5685
      %v5737 = vmul.f32 %v1863, %v5689
      %v5738 = vmul.f32 %v1864, %v5693
      %v5739 = vmul.f32 %v1865, %v5697
      %v5740 = vmul.f32 %v1866, %v5701
      %v5741 = vmul.f32 %v1867, %v5705
      %v5742 = vmul.f32 %v1868, %v5709
      %v5743 = vadd.f32 %v5711, 0.0
      %v5744 = vadd.f32 %v5712, 0.0
      %v5745 = vadd.f32 %v5713, 0.0
      %v5746 = vadd.f32 %v5714, 0.0
      %v5747 = vadd.f32 %v5715, 0.0
      %v5748 = vadd.f32 %v5716, 0.0
      %v5749 = vadd.f32 %v5717, 0.0
      %v5750 = vadd.f32 %v5718, 0.0
      %v5751 = vadd.f32 %v5719, 0.0
      %v5752 = vadd.f32 %v5720, 0.0
      %v5753 = vadd.f32 %v5721, 0.0
      %v5754 = vadd.f32 %v5722, 0.0
      %v5755 = vadd.f32 %v5723, 0.0
      %v5756 = vadd.f32 %v5724, 0.0
      %v5757 = vadd.f32 %v5725, 0.0
      %v5758 = vadd.f32 %v5726, 0.0
      %v5759 = vadd.f32 %v5727, 0.0
      %v5760 = vadd.f32 %v5728, 0.0
      %v5761 = vadd.f32 %v5729, 0.0
      %v5762 = vadd.f32 %v5730, 0.0
      %v5763 = vadd.f32 %v5731, 0.0
      %v5764 = vadd.f32 %v5732, 0.0
      %v5765 = vadd.f32 %v5733, 0.0
      %v5766 = vadd.f32 %v5734, 0.0
      %v5767 = vadd.f32 %v5735, 0.0
      %v5768 = vadd.f32 %v5736, 0.0
      %v5769 = vadd.f32 %v5737, 0.0
      %v5770 = vadd.f32 %v5738, 0.0
      %v5771 = vadd.f32 %v5739, 0.0
      %v5772 = vadd.f32 %v5740, 0.0
      %v5773 = vadd.f32 %v5741, 0.0
      %v5774 = vadd.f32 %v5742, 0.0
      %5775 = vset.pattern.permute.xlu0 10
      %5776 = vperm.xlu0 %5775, %v2736
      %v5777 = vpop.permute.xlu0 %5776
      %5779 = vset.pattern.permute.xlu0 10
      %5780 = vperm.xlu0 %5779, %v2738
      %v5781 = vpop.permute.xlu0 %5780
      %5783 = vset.pattern.permute.xlu0 10
      %5784 = vperm.xlu0 %5783, %v2740
      %v5785 = vpop.permute.xlu0 %5784
      %5787 = vset.pattern.permute.xlu0 10
      %5788 = vperm.xlu0 %5787, %v2742
      %v5789 = vpop.permute.xlu0 %5788
      %5791 = vset.pattern.permute.xlu0 10
      %5792 = vperm.xlu0 %5791, %v2744
      %v5793 = vpop.permute.xlu0 %5792
      %5795 = vset.pattern.permute.xlu0 10
      %5796 = vperm.xlu0 %5795, %v2746
      %v5797 = vpop.permute.xlu0 %5796
      %5799 = vset.pattern.permute.xlu0 10
      %5800 = vperm.xlu0 %5799, %v2748
      %v5801 = vpop.permute.xlu0 %5800
      %5803 = vset.pattern.permute.xlu0 10
      %5804 = vperm.xlu0 %5803, %v2750
      %v5805 = vpop.permute.xlu0 %5804
      %5807 = vset.pattern.permute.xlu0 10
      %5808 = vperm.xlu0 %5807, %v2752
      %v5809 = vpop.permute.xlu0 %5808
      %5811 = vset.pattern.permute.xlu0 10
      %5812 = vperm.xlu0 %5811, %v2754
      %v5813 = vpop.permute.xlu0 %5812
      %5815 = vset.pattern.permute.xlu0 10
      %5816 = vperm.xlu0 %5815, %v2756
      %v5817 = vpop.permute.xlu0 %5816
      %5819 = vset.pattern.permute.xlu0 10
      %5820 = vperm.xlu0 %5819, %v2758
      %v5821 = vpop.permute.xlu0 %5820
      %5823 = vset.pattern.permute.xlu0 10
      %5824 = vperm.xlu0 %5823, %v2760
      %v5825 = vpop.permute.xlu0 %5824
      %5827 = vset.pattern.permute.xlu0 10
      %5828 = vperm.xlu0 %5827, %v2762
      %v5829 = vpop.permute.xlu0 %5828
      %5831 = vset.pattern.permute.xlu0 10
      %5832 = vperm.xlu0 %5831, %v2764
      %v5833 = vpop.permute.xlu0 %5832
      %5835 = vset.pattern.permute.xlu0 10
      %5836 = vperm.xlu0 %5835, %v2766
      %v5837 = vpop.permute.xlu0 %5836
      %5839 = vset.pattern.permute.xlu0 10
      %5840 = vperm.xlu0 %5839, %v2768
      %v5841 = vpop.permute.xlu0 %5840
      %5843 = vset.pattern.permute.xlu0 10
      %5844 = vperm.xlu0 %5843, %v2770
      %v5845 = vpop.permute.xlu0 %5844
      %5847 = vset.pattern.permute.xlu0 10
      %5848 = vperm.xlu0 %5847, %v2772
      %v5849 = vpop.permute.xlu0 %5848
      %5851 = vset.pattern.permute.xlu0 10
      %5852 = vperm.xlu0 %5851, %v2774
      %v5853 = vpop.permute.xlu0 %5852
      %5855 = vset.pattern.permute.xlu0 10
      %5856 = vperm.xlu0 %5855, %v2776
      %v5857 = vpop.permute.xlu0 %5856
      %5859 = vset.pattern.permute.xlu0 10
      %5860 = vperm.xlu0 %5859, %v2778
      %v5861 = vpop.permute.xlu0 %5860
      %5863 = vset.pattern.permute.xlu0 10
      %5864 = vperm.xlu0 %5863, %v2780
      %v5865 = vpop.permute.xlu0 %5864
      %5867 = vset.pattern.permute.xlu0 10
      %5868 = vperm.xlu0 %5867, %v2782
      %v5869 = vpop.permute.xlu0 %5868
      %5871 = vset.pattern.permute.xlu0 10
      %5872 = vperm.xlu0 %5871, %v2784
      %v5873 = vpop.permute.xlu0 %5872
      %5875 = vset.pattern.permute.xlu0 10
      %5876 = vperm.xlu0 %5875, %v2786
      %v5877 = vpop.permute.xlu0 %5876
      %5879 = vset.pattern.permute.xlu0 10
      %5880 = vperm.xlu0 %5879, %v2788
      %v5881 = vpop.permute.xlu0 %5880
      %5883 = vset.pattern.permute.xlu0 10
      %5884 = vperm.xlu0 %5883, %v2790
      %v5885 = vpop.permute.xlu0 %5884
      %5887 = vset.pattern.permute.xlu0 10
      %5888 = vperm.xlu0 %5887, %v2792
      %v5889 = vpop.permute.xlu0 %5888
      %5891 = vset.pattern.permute.xlu0 10
      %5892 = vperm.xlu0 %5891, %v2794
      %v5893 = vpop.permute.xlu0 %5892
      %5895 = vset.pattern.permute.xlu0 10
      %5896 = vperm.xlu0 %5895, %v2796
      %v5897 = vpop.permute.xlu0 %5896
      %5899 = vset.pattern.permute.xlu0 10
      %5900 = vperm.xlu0 %5899, %v2798
      %v5901 = vpop.permute.xlu0 %5900
      %v5903 = vmul.f32 %v1837, %v5777
      %v5904 = vmul.f32 %v1838, %v5781
      %v5905 = vmul.f32 %v1839, %v5785
      %v5906 = vmul.f32 %v1840, %v5789
      %v5907 = vmul.f32 %v1841, %v5793
      %v5908 = vmul.f32 %v1842, %v5797
      %v5909 = vmul.f32 %v1843, %v5801
      %v5910 = vmul.f32 %v1844, %v5805
      %v5911 = vmul.f32 %v1845, %v5809
      %v5912 = vmul.f32 %v1846, %v5813
      %v5913 = vmul.f32 %v1847, %v5817
      %v5914 = vmul.f32 %v1848, %v5821
      %v5915 = vmul.f32 %v1849, %v5825
      %v5916 = vmul.f32 %v1850, %v5829
      %v5917 = vmul.f32 %v1851, %v5833
      %v5918 = vmul.f32 %v1852, %v5837
      %v5919 = vmul.f32 %v1853, %v5841
      %v5920 = vmul.f32 %v1854, %v5845
      %v5921 = vmul.f32 %v1855, %v5849
      %v5922 = vmul.f32 %v1856, %v5853
      %v5923 = vmul.f32 %v1857, %v5857
      %v5924 = vmul.f32 %v1858, %v5861
      %v5925 = vmul.f32 %v1859, %v5865
      %v5926 = vmul.f32 %v1860, %v5869
      %v5927 = vmul.f32 %v1861, %v5873
      %v5928 = vmul.f32 %v1862, %v5877
      %v5929 = vmul.f32 %v1863, %v5881
      %v5930 = vmul.f32 %v1864, %v5885
      %v5931 = vmul.f32 %v1865, %v5889
      %v5932 = vmul.f32 %v1866, %v5893
      %v5933 = vmul.f32 %v1867, %v5897
      %v5934 = vmul.f32 %v1868, %v5901
      %5967 = vrot.lane.b32.xlu0 %v5903, 124
      %v5968 = vpop.permute.xlu0 %5967
      %5969 = vrot.lane.b32.xlu0 %v5904, 124
      %v5970 = vpop.permute.xlu0 %5969
      %5971 = vrot.lane.b32.xlu0 %v5905, 124
      %v5972 = vpop.permute.xlu0 %5971
      %5973 = vrot.lane.b32.xlu0 %v5906, 124
      %v5974 = vpop.permute.xlu0 %5973
      %5975 = vrot.lane.b32.xlu0 %v5907, 124
      %v5976 = vpop.permute.xlu0 %5975
      %5977 = vrot.lane.b32.xlu0 %v5908, 124
      %v5978 = vpop.permute.xlu0 %5977
      %5979 = vrot.lane.b32.xlu0 %v5909, 124
      %v5980 = vpop.permute.xlu0 %5979
      %5981 = vrot.lane.b32.xlu0 %v5910, 124
      %v5982 = vpop.permute.xlu0 %5981
      %5983 = vrot.lane.b32.xlu0 %v5911, 124
      %v5984 = vpop.permute.xlu0 %5983
      %5985 = vrot.lane.b32.xlu0 %v5912, 124
      %v5986 = vpop.permute.xlu0 %5985
      %5987 = vrot.lane.b32.xlu0 %v5913, 124
      %v5988 = vpop.permute.xlu0 %5987
      %5989 = vrot.lane.b32.xlu0 %v5914, 124
      %v5990 = vpop.permute.xlu0 %5989
      %5991 = vrot.lane.b32.xlu0 %v5915, 124
      %v5992 = vpop.permute.xlu0 %5991
      %5993 = vrot.lane.b32.xlu0 %v5916, 124
      %v5994 = vpop.permute.xlu0 %5993
      %5995 = vrot.lane.b32.xlu0 %v5917, 124
      %v5996 = vpop.permute.xlu0 %5995
      %5997 = vrot.lane.b32.xlu0 %v5918, 124
      %v5998 = vpop.permute.xlu0 %5997
      %5999 = vrot.lane.b32.xlu0 %v5919, 124
      %v6000 = vpop.permute.xlu0 %5999
      %6001 = vrot.lane.b32.xlu0 %v5920, 124
      %v6002 = vpop.permute.xlu0 %6001
      %6003 = vrot.lane.b32.xlu0 %v5921, 124
      %v6004 = vpop.permute.xlu0 %6003
      %6005 = vrot.lane.b32.xlu0 %v5922, 124
      %v6006 = vpop.permute.xlu0 %6005
      %6007 = vrot.lane.b32.xlu0 %v5923, 124
      %v6008 = vpop.permute.xlu0 %6007
      %6009 = vrot.lane.b32.xlu0 %v5924, 124
      %v6010 = vpop.permute.xlu0 %6009
      %6011 = vrot.lane.b32.xlu0 %v5925, 124
      %v6012 = vpop.permute.xlu0 %6011
      %6013 = vrot.lane.b32.xlu0 %v5926, 124
      %v6014 = vpop.permute.xlu0 %6013
      %6015 = vrot.lane.b32.xlu0 %v5927, 124
      %v6016 = vpop.permute.xlu0 %6015
      %6017 = vrot.lane.b32.xlu0 %v5928, 124
      %v6018 = vpop.permute.xlu0 %6017
      %6019 = vrot.lane.b32.xlu0 %v5929, 124
      %v6020 = vpop.permute.xlu0 %6019
      %6021 = vrot.lane.b32.xlu0 %v5930, 124
      %v6022 = vpop.permute.xlu0 %6021
      %6023 = vrot.lane.b32.xlu0 %v5931, 124
      %v6024 = vpop.permute.xlu0 %6023
      %6025 = vrot.lane.b32.xlu0 %v5932, 124
      %v6026 = vpop.permute.xlu0 %6025
      %6027 = vrot.lane.b32.xlu0 %v5933, 124
      %v6028 = vpop.permute.xlu0 %6027
      %6029 = vrot.lane.b32.xlu0 %v5934, 124
      %v6030 = vpop.permute.xlu0 %6029
      %v6063 = vadd.f32 %v5743, %v5968
      %v6064 = vadd.f32 %v5744, %v5970
      %v6065 = vadd.f32 %v5745, %v5972
      %v6066 = vadd.f32 %v5746, %v5974
      %v6067 = vadd.f32 %v5747, %v5976
      %v6068 = vadd.f32 %v5748, %v5978
      %v6069 = vadd.f32 %v5749, %v5980
      %v6070 = vadd.f32 %v5750, %v5982
      %v6071 = vadd.f32 %v5751, %v5984
      %v6072 = vadd.f32 %v5752, %v5986
      %v6073 = vadd.f32 %v5753, %v5988
      %v6074 = vadd.f32 %v5754, %v5990
      %v6075 = vadd.f32 %v5755, %v5992
      %v6076 = vadd.f32 %v5756, %v5994
      %v6077 = vadd.f32 %v5757, %v5996
      %v6078 = vadd.f32 %v5758, %v5998
      %v6079 = vadd.f32 %v5759, %v6000
      %v6080 = vadd.f32 %v5760, %v6002
      %v6081 = vadd.f32 %v5761, %v6004
      %v6082 = vadd.f32 %v5762, %v6006
      %v6083 = vadd.f32 %v5763, %v6008
      %v6084 = vadd.f32 %v5764, %v6010
      %v6085 = vadd.f32 %v5765, %v6012
      %v6086 = vadd.f32 %v5766, %v6014
      %v6087 = vadd.f32 %v5767, %v6016
      %v6088 = vadd.f32 %v5768, %v6018
      %v6089 = vadd.f32 %v5769, %v6020
      %v6090 = vadd.f32 %v5770, %v6022
      %v6091 = vadd.f32 %v5771, %v6024
      %v6092 = vadd.f32 %v5772, %v6026
      %v6093 = vadd.f32 %v5773, %v6028
      %v6094 = vadd.f32 %v5774, %v6030
      %6095 = vset.pattern.permute.xlu0 11
      %6096 = vperm.xlu0 %6095, %v2736
      %v6097 = vpop.permute.xlu0 %6096
      %6099 = vset.pattern.permute.xlu0 11
      %6100 = vperm.xlu0 %6099, %v2738
      %v6101 = vpop.permute.xlu0 %6100
      %6103 = vset.pattern.permute.xlu0 11
      %6104 = vperm.xlu0 %6103, %v2740
      %v6105 = vpop.permute.xlu0 %6104
      %6107 = vset.pattern.permute.xlu0 11
      %6108 = vperm.xlu0 %6107, %v2742
      %v6109 = vpop.permute.xlu0 %6108
      %6111 = vset.pattern.permute.xlu0 11
      %6112 = vperm.xlu0 %6111, %v2744
      %v6113 = vpop.permute.xlu0 %6112
      %6115 = vset.pattern.permute.xlu0 11
      %6116 = vperm.xlu0 %6115, %v2746
      %v6117 = vpop.permute.xlu0 %6116
      %6119 = vset.pattern.permute.xlu0 11
      %6120 = vperm.xlu0 %6119, %v2748
      %v6121 = vpop.permute.xlu0 %6120
      %6123 = vset.pattern.permute.xlu0 11
      %6124 = vperm.xlu0 %6123, %v2750
      %v6125 = vpop.permute.xlu0 %6124
      %6127 = vset.pattern.permute.xlu0 11
      %6128 = vperm.xlu0 %6127, %v2752
      %v6129 = vpop.permute.xlu0 %6128
      %6131 = vset.pattern.permute.xlu0 11
      %6132 = vperm.xlu0 %6131, %v2754
      %v6133 = vpop.permute.xlu0 %6132
      %6135 = vset.pattern.permute.xlu0 11
      %6136 = vperm.xlu0 %6135, %v2756
      %v6137 = vpop.permute.xlu0 %6136
      %6139 = vset.pattern.permute.xlu0 11
      %6140 = vperm.xlu0 %6139, %v2758
      %v6141 = vpop.permute.xlu0 %6140
      %6143 = vset.pattern.permute.xlu0 11
      %6144 = vperm.xlu0 %6143, %v2760
      %v6145 = vpop.permute.xlu0 %6144
      %6147 = vset.pattern.permute.xlu0 11
      %6148 = vperm.xlu0 %6147, %v2762
      %v6149 = vpop.permute.xlu0 %6148
      %6151 = vset.pattern.permute.xlu0 11
      %6152 = vperm.xlu0 %6151, %v2764
      %v6153 = vpop.permute.xlu0 %6152
      %6155 = vset.pattern.permute.xlu0 11
      %6156 = vperm.xlu0 %6155, %v2766
      %v6157 = vpop.permute.xlu0 %6156
      %6159 = vset.pattern.permute.xlu0 11
      %6160 = vperm.xlu0 %6159, %v2768
      %v6161 = vpop.permute.xlu0 %6160
      %6163 = vset.pattern.permute.xlu0 11
      %6164 = vperm.xlu0 %6163, %v2770
      %v6165 = vpop.permute.xlu0 %6164
      %6167 = vset.pattern.permute.xlu0 11
      %6168 = vperm.xlu0 %6167, %v2772
      %v6169 = vpop.permute.xlu0 %6168
      %6171 = vset.pattern.permute.xlu0 11
      %6172 = vperm.xlu0 %6171, %v2774
      %v6173 = vpop.permute.xlu0 %6172
      %6175 = vset.pattern.permute.xlu0 11
      %6176 = vperm.xlu0 %6175, %v2776
      %v6177 = vpop.permute.xlu0 %6176
      %6179 = vset.pattern.permute.xlu0 11
      %6180 = vperm.xlu0 %6179, %v2778
      %v6181 = vpop.permute.xlu0 %6180
      %6183 = vset.pattern.permute.xlu0 11
      %6184 = vperm.xlu0 %6183, %v2780
      %v6185 = vpop.permute.xlu0 %6184
      %6187 = vset.pattern.permute.xlu0 11
      %6188 = vperm.xlu0 %6187, %v2782
      %v6189 = vpop.permute.xlu0 %6188
      %6191 = vset.pattern.permute.xlu0 11
      %6192 = vperm.xlu0 %6191, %v2784
      %v6193 = vpop.permute.xlu0 %6192
      %6195 = vset.pattern.permute.xlu0 11
      %6196 = vperm.xlu0 %6195, %v2786
      %v6197 = vpop.permute.xlu0 %6196
      %6199 = vset.pattern.permute.xlu0 11
      %6200 = vperm.xlu0 %6199, %v2788
      %v6201 = vpop.permute.xlu0 %6200
      %6203 = vset.pattern.permute.xlu0 11
      %6204 = vperm.xlu0 %6203, %v2790
      %v6205 = vpop.permute.xlu0 %6204
      %6207 = vset.pattern.permute.xlu0 11
      %6208 = vperm.xlu0 %6207, %v2792
      %v6209 = vpop.permute.xlu0 %6208
      %6211 = vset.pattern.permute.xlu0 11
      %6212 = vperm.xlu0 %6211, %v2794
      %v6213 = vpop.permute.xlu0 %6212
      %6215 = vset.pattern.permute.xlu0 11
      %6216 = vperm.xlu0 %6215, %v2796
      %v6217 = vpop.permute.xlu0 %6216
      %6219 = vset.pattern.permute.xlu0 11
      %6220 = vperm.xlu0 %6219, %v2798
      %v6221 = vpop.permute.xlu0 %6220
      %v6223 = vmul.f32 %v1837, %v6097
      %v6224 = vmul.f32 %v1838, %v6101
      %v6225 = vmul.f32 %v1839, %v6105
      %v6226 = vmul.f32 %v1840, %v6109
      %v6227 = vmul.f32 %v1841, %v6113
      %v6228 = vmul.f32 %v1842, %v6117
      %v6229 = vmul.f32 %v1843, %v6121
      %v6230 = vmul.f32 %v1844, %v6125
      %v6231 = vmul.f32 %v1845, %v6129
      %v6232 = vmul.f32 %v1846, %v6133
      %v6233 = vmul.f32 %v1847, %v6137
      %v6234 = vmul.f32 %v1848, %v6141
      %v6235 = vmul.f32 %v1849, %v6145
      %v6236 = vmul.f32 %v1850, %v6149
      %v6237 = vmul.f32 %v1851, %v6153
      %v6238 = vmul.f32 %v1852, %v6157
      %v6239 = vmul.f32 %v1853, %v6161
      %v6240 = vmul.f32 %v1854, %v6165
      %v6241 = vmul.f32 %v1855, %v6169
      %v6242 = vmul.f32 %v1856, %v6173
      %v6243 = vmul.f32 %v1857, %v6177
      %v6244 = vmul.f32 %v1858, %v6181
      %v6245 = vmul.f32 %v1859, %v6185
      %v6246 = vmul.f32 %v1860, %v6189
      %v6247 = vmul.f32 %v1861, %v6193
      %v6248 = vmul.f32 %v1862, %v6197
      %v6249 = vmul.f32 %v1863, %v6201
      %v6250 = vmul.f32 %v1864, %v6205
      %v6251 = vmul.f32 %v1865, %v6209
      %v6252 = vmul.f32 %v1866, %v6213
      %v6253 = vmul.f32 %v1867, %v6217
      %v6254 = vmul.f32 %v1868, %v6221
      %6287 = vrot.lane.b32.xlu0 %v6223, 120
      %v6288 = vpop.permute.xlu0 %6287
      %6289 = vrot.lane.b32.xlu0 %v6224, 120
      %v6290 = vpop.permute.xlu0 %6289
      %6291 = vrot.lane.b32.xlu0 %v6225, 120
      %v6292 = vpop.permute.xlu0 %6291
      %6293 = vrot.lane.b32.xlu0 %v6226, 120
      %v6294 = vpop.permute.xlu0 %6293
      %6295 = vrot.lane.b32.xlu0 %v6227, 120
      %v6296 = vpop.permute.xlu0 %6295
      %6297 = vrot.lane.b32.xlu0 %v6228, 120
      %v6298 = vpop.permute.xlu0 %6297
      %6299 = vrot.lane.b32.xlu0 %v6229, 120
      %v6300 = vpop.permute.xlu0 %6299
      %6301 = vrot.lane.b32.xlu0 %v6230, 120
      %v6302 = vpop.permute.xlu0 %6301
      %6303 = vrot.lane.b32.xlu0 %v6231, 120
      %v6304 = vpop.permute.xlu0 %6303
      %6305 = vrot.lane.b32.xlu0 %v6232, 120
      %v6306 = vpop.permute.xlu0 %6305
      %6307 = vrot.lane.b32.xlu0 %v6233, 120
      %v6308 = vpop.permute.xlu0 %6307
      %6309 = vrot.lane.b32.xlu0 %v6234, 120
      %v6310 = vpop.permute.xlu0 %6309
      %6311 = vrot.lane.b32.xlu0 %v6235, 120
      %v6312 = vpop.permute.xlu0 %6311
      %6313 = vrot.lane.b32.xlu0 %v6236, 120
      %v6314 = vpop.permute.xlu0 %6313
      %6315 = vrot.lane.b32.xlu0 %v6237, 120
      %v6316 = vpop.permute.xlu0 %6315
      %6317 = vrot.lane.b32.xlu0 %v6238, 120
      %v6318 = vpop.permute.xlu0 %6317
      %6319 = vrot.lane.b32.xlu0 %v6239, 120
      %v6320 = vpop.permute.xlu0 %6319
      %6321 = vrot.lane.b32.xlu0 %v6240, 120
      %v6322 = vpop.permute.xlu0 %6321
      %6323 = vrot.lane.b32.xlu0 %v6241, 120
      %v6324 = vpop.permute.xlu0 %6323
      %6325 = vrot.lane.b32.xlu0 %v6242, 120
      %v6326 = vpop.permute.xlu0 %6325
      %6327 = vrot.lane.b32.xlu0 %v6243, 120
      %v6328 = vpop.permute.xlu0 %6327
      %6329 = vrot.lane.b32.xlu0 %v6244, 120
      %v6330 = vpop.permute.xlu0 %6329
      %6331 = vrot.lane.b32.xlu0 %v6245, 120
      %v6332 = vpop.permute.xlu0 %6331
      %6333 = vrot.lane.b32.xlu0 %v6246, 120
      %v6334 = vpop.permute.xlu0 %6333
      %6335 = vrot.lane.b32.xlu0 %v6247, 120
      %v6336 = vpop.permute.xlu0 %6335
      %6337 = vrot.lane.b32.xlu0 %v6248, 120
      %v6338 = vpop.permute.xlu0 %6337
      %6339 = vrot.lane.b32.xlu0 %v6249, 120
      %v6340 = vpop.permute.xlu0 %6339
      %6341 = vrot.lane.b32.xlu0 %v6250, 120
      %v6342 = vpop.permute.xlu0 %6341
      %6343 = vrot.lane.b32.xlu0 %v6251, 120
      %v6344 = vpop.permute.xlu0 %6343
      %6345 = vrot.lane.b32.xlu0 %v6252, 120
      %v6346 = vpop.permute.xlu0 %6345
      %6347 = vrot.lane.b32.xlu0 %v6253, 120
      %v6348 = vpop.permute.xlu0 %6347
      %6349 = vrot.lane.b32.xlu0 %v6254, 120
      %v6350 = vpop.permute.xlu0 %6349
      %v6383 = vadd.f32 %v6063, %v6288
      %v6384 = vadd.f32 %v6064, %v6290
      %v6385 = vadd.f32 %v6065, %v6292
      %v6386 = vadd.f32 %v6066, %v6294
      %v6387 = vadd.f32 %v6067, %v6296
      %v6388 = vadd.f32 %v6068, %v6298
      %v6389 = vadd.f32 %v6069, %v6300
      %v6390 = vadd.f32 %v6070, %v6302
      %v6391 = vadd.f32 %v6071, %v6304
      %v6392 = vadd.f32 %v6072, %v6306
      %v6393 = vadd.f32 %v6073, %v6308
      %v6394 = vadd.f32 %v6074, %v6310
      %v6395 = vadd.f32 %v6075, %v6312
      %v6396 = vadd.f32 %v6076, %v6314
      %v6397 = vadd.f32 %v6077, %v6316
      %v6398 = vadd.f32 %v6078, %v6318
      %v6399 = vadd.f32 %v6079, %v6320
      %v6400 = vadd.f32 %v6080, %v6322
      %v6401 = vadd.f32 %v6081, %v6324
      %v6402 = vadd.f32 %v6082, %v6326
      %v6403 = vadd.f32 %v6083, %v6328
      %v6404 = vadd.f32 %v6084, %v6330
      %v6405 = vadd.f32 %v6085, %v6332
      %v6406 = vadd.f32 %v6086, %v6334
      %v6407 = vadd.f32 %v6087, %v6336
      %v6408 = vadd.f32 %v6088, %v6338
      %v6409 = vadd.f32 %v6089, %v6340
      %v6410 = vadd.f32 %v6090, %v6342
      %v6411 = vadd.f32 %v6091, %v6344
      %v6412 = vadd.f32 %v6092, %v6346
      %v6413 = vadd.f32 %v6093, %v6348
      %v6414 = vadd.f32 %v6094, %v6350
      %6415 = vset.pattern.permute.xlu0 12
      %6416 = vperm.xlu0 %6415, %v2736
      %v6417 = vpop.permute.xlu0 %6416
      %6419 = vset.pattern.permute.xlu0 12
      %6420 = vperm.xlu0 %6419, %v2738
      %v6421 = vpop.permute.xlu0 %6420
      %6423 = vset.pattern.permute.xlu0 12
      %6424 = vperm.xlu0 %6423, %v2740
      %v6425 = vpop.permute.xlu0 %6424
      %6427 = vset.pattern.permute.xlu0 12
      %6428 = vperm.xlu0 %6427, %v2742
      %v6429 = vpop.permute.xlu0 %6428
      %6431 = vset.pattern.permute.xlu0 12
      %6432 = vperm.xlu0 %6431, %v2744
      %v6433 = vpop.permute.xlu0 %6432
      %6435 = vset.pattern.permute.xlu0 12
      %6436 = vperm.xlu0 %6435, %v2746
      %v6437 = vpop.permute.xlu0 %6436
      %6439 = vset.pattern.permute.xlu0 12
      %6440 = vperm.xlu0 %6439, %v2748
      %v6441 = vpop.permute.xlu0 %6440
      %6443 = vset.pattern.permute.xlu0 12
      %6444 = vperm.xlu0 %6443, %v2750
      %v6445 = vpop.permute.xlu0 %6444
      %6447 = vset.pattern.permute.xlu0 12
      %6448 = vperm.xlu0 %6447, %v2752
      %v6449 = vpop.permute.xlu0 %6448
      %6451 = vset.pattern.permute.xlu0 12
      %6452 = vperm.xlu0 %6451, %v2754
      %v6453 = vpop.permute.xlu0 %6452
      %6455 = vset.pattern.permute.xlu0 12
      %6456 = vperm.xlu0 %6455, %v2756
      %v6457 = vpop.permute.xlu0 %6456
      %6459 = vset.pattern.permute.xlu0 12
      %6460 = vperm.xlu0 %6459, %v2758
      %v6461 = vpop.permute.xlu0 %6460
      %6463 = vset.pattern.permute.xlu0 12
      %6464 = vperm.xlu0 %6463, %v2760
      %v6465 = vpop.permute.xlu0 %6464
      %6467 = vset.pattern.permute.xlu0 12
      %6468 = vperm.xlu0 %6467, %v2762
      %v6469 = vpop.permute.xlu0 %6468
      %6471 = vset.pattern.permute.xlu0 12
      %6472 = vperm.xlu0 %6471, %v2764
      %v6473 = vpop.permute.xlu0 %6472
      %6475 = vset.pattern.permute.xlu0 12
      %6476 = vperm.xlu0 %6475, %v2766
      %v6477 = vpop.permute.xlu0 %6476
      %6479 = vset.pattern.permute.xlu0 12
      %6480 = vperm.xlu0 %6479, %v2768
      %v6481 = vpop.permute.xlu0 %6480
      %6483 = vset.pattern.permute.xlu0 12
      %6484 = vperm.xlu0 %6483, %v2770
      %v6485 = vpop.permute.xlu0 %6484
      %6487 = vset.pattern.permute.xlu0 12
      %6488 = vperm.xlu0 %6487, %v2772
      %v6489 = vpop.permute.xlu0 %6488
      %6491 = vset.pattern.permute.xlu0 12
      %6492 = vperm.xlu0 %6491, %v2774
      %v6493 = vpop.permute.xlu0 %6492
      %6495 = vset.pattern.permute.xlu0 12
      %6496 = vperm.xlu0 %6495, %v2776
      %v6497 = vpop.permute.xlu0 %6496
      %6499 = vset.pattern.permute.xlu0 12
      %6500 = vperm.xlu0 %6499, %v2778
      %v6501 = vpop.permute.xlu0 %6500
      %6503 = vset.pattern.permute.xlu0 12
      %6504 = vperm.xlu0 %6503, %v2780
      %v6505 = vpop.permute.xlu0 %6504
      %6507 = vset.pattern.permute.xlu0 12
      %6508 = vperm.xlu0 %6507, %v2782
      %v6509 = vpop.permute.xlu0 %6508
      %6511 = vset.pattern.permute.xlu0 12
      %6512 = vperm.xlu0 %6511, %v2784
      %v6513 = vpop.permute.xlu0 %6512
      %6515 = vset.pattern.permute.xlu0 12
      %6516 = vperm.xlu0 %6515, %v2786
      %v6517 = vpop.permute.xlu0 %6516
      %6519 = vset.pattern.permute.xlu0 12
      %6520 = vperm.xlu0 %6519, %v2788
      %v6521 = vpop.permute.xlu0 %6520
      %6523 = vset.pattern.permute.xlu0 12
      %6524 = vperm.xlu0 %6523, %v2790
      %v6525 = vpop.permute.xlu0 %6524
      %6527 = vset.pattern.permute.xlu0 12
      %6528 = vperm.xlu0 %6527, %v2792
      %v6529 = vpop.permute.xlu0 %6528
      %6531 = vset.pattern.permute.xlu0 12
      %6532 = vperm.xlu0 %6531, %v2794
      %v6533 = vpop.permute.xlu0 %6532
      %6535 = vset.pattern.permute.xlu0 12
      %6536 = vperm.xlu0 %6535, %v2796
      %v6537 = vpop.permute.xlu0 %6536
      %6539 = vset.pattern.permute.xlu0 12
      %6540 = vperm.xlu0 %6539, %v2798
      %v6541 = vpop.permute.xlu0 %6540
      %v6543 = vmul.f32 %v1837, %v6417
      %v6544 = vmul.f32 %v1838, %v6421
      %v6545 = vmul.f32 %v1839, %v6425
      %v6546 = vmul.f32 %v1840, %v6429
      %v6547 = vmul.f32 %v1841, %v6433
      %v6548 = vmul.f32 %v1842, %v6437
      %v6549 = vmul.f32 %v1843, %v6441
      %v6550 = vmul.f32 %v1844, %v6445
      %v6551 = vmul.f32 %v1845, %v6449
      %v6552 = vmul.f32 %v1846, %v6453
      %v6553 = vmul.f32 %v1847, %v6457
      %v6554 = vmul.f32 %v1848, %v6461
      %v6555 = vmul.f32 %v1849, %v6465
      %v6556 = vmul.f32 %v1850, %v6469
      %v6557 = vmul.f32 %v1851, %v6473
      %v6558 = vmul.f32 %v1852, %v6477
      %v6559 = vmul.f32 %v1853, %v6481
      %v6560 = vmul.f32 %v1854, %v6485
      %v6561 = vmul.f32 %v1855, %v6489
      %v6562 = vmul.f32 %v1856, %v6493
      %v6563 = vmul.f32 %v1857, %v6497
      %v6564 = vmul.f32 %v1858, %v6501
      %v6565 = vmul.f32 %v1859, %v6505
      %v6566 = vmul.f32 %v1860, %v6509
      %v6567 = vmul.f32 %v1861, %v6513
      %v6568 = vmul.f32 %v1862, %v6517
      %v6569 = vmul.f32 %v1863, %v6521
      %v6570 = vmul.f32 %v1864, %v6525
      %v6571 = vmul.f32 %v1865, %v6529
      %v6572 = vmul.f32 %v1866, %v6533
      %v6573 = vmul.f32 %v1867, %v6537
      %v6574 = vmul.f32 %v1868, %v6541
      %6607 = vrot.lane.b32.xlu0 %v6543, 116
      %v6608 = vpop.permute.xlu0 %6607
      %6609 = vrot.lane.b32.xlu0 %v6544, 116
      %v6610 = vpop.permute.xlu0 %6609
      %6611 = vrot.lane.b32.xlu0 %v6545, 116
      %v6612 = vpop.permute.xlu0 %6611
      %6613 = vrot.lane.b32.xlu0 %v6546, 116
      %v6614 = vpop.permute.xlu0 %6613
      %6615 = vrot.lane.b32.xlu0 %v6547, 116
      %v6616 = vpop.permute.xlu0 %6615
      %6617 = vrot.lane.b32.xlu0 %v6548, 116
      %v6618 = vpop.permute.xlu0 %6617
      %6619 = vrot.lane.b32.xlu0 %v6549, 116
      %v6620 = vpop.permute.xlu0 %6619
      %6621 = vrot.lane.b32.xlu0 %v6550, 116
      %v6622 = vpop.permute.xlu0 %6621
      %6623 = vrot.lane.b32.xlu0 %v6551, 116
      %v6624 = vpop.permute.xlu0 %6623
      %6625 = vrot.lane.b32.xlu0 %v6552, 116
      %v6626 = vpop.permute.xlu0 %6625
      %6627 = vrot.lane.b32.xlu0 %v6553, 116
      %v6628 = vpop.permute.xlu0 %6627
      %6629 = vrot.lane.b32.xlu0 %v6554, 116
      %v6630 = vpop.permute.xlu0 %6629
      %6631 = vrot.lane.b32.xlu0 %v6555, 116
      %v6632 = vpop.permute.xlu0 %6631
      %6633 = vrot.lane.b32.xlu0 %v6556, 116
      %v6634 = vpop.permute.xlu0 %6633
      %6635 = vrot.lane.b32.xlu0 %v6557, 116
      %v6636 = vpop.permute.xlu0 %6635
      %6637 = vrot.lane.b32.xlu0 %v6558, 116
      %v6638 = vpop.permute.xlu0 %6637
      %6639 = vrot.lane.b32.xlu0 %v6559, 116
      %v6640 = vpop.permute.xlu0 %6639
      %6641 = vrot.lane.b32.xlu0 %v6560, 116
      %v6642 = vpop.permute.xlu0 %6641
      %6643 = vrot.lane.b32.xlu0 %v6561, 116
      %v6644 = vpop.permute.xlu0 %6643
      %6645 = vrot.lane.b32.xlu0 %v6562, 116
      %v6646 = vpop.permute.xlu0 %6645
      %6647 = vrot.lane.b32.xlu0 %v6563, 116
      %v6648 = vpop.permute.xlu0 %6647
      %6649 = vrot.lane.b32.xlu0 %v6564, 116
      %v6650 = vpop.permute.xlu0 %6649
      %6651 = vrot.lane.b32.xlu0 %v6565, 116
      %v6652 = vpop.permute.xlu0 %6651
      %6653 = vrot.lane.b32.xlu0 %v6566, 116
      %v6654 = vpop.permute.xlu0 %6653
      %6655 = vrot.lane.b32.xlu0 %v6567, 116
      %v6656 = vpop.permute.xlu0 %6655
      %6657 = vrot.lane.b32.xlu0 %v6568, 116
      %v6658 = vpop.permute.xlu0 %6657
      %6659 = vrot.lane.b32.xlu0 %v6569, 116
      %v6660 = vpop.permute.xlu0 %6659
      %6661 = vrot.lane.b32.xlu0 %v6570, 116
      %v6662 = vpop.permute.xlu0 %6661
      %6663 = vrot.lane.b32.xlu0 %v6571, 116
      %v6664 = vpop.permute.xlu0 %6663
      %6665 = vrot.lane.b32.xlu0 %v6572, 116
      %v6666 = vpop.permute.xlu0 %6665
      %6667 = vrot.lane.b32.xlu0 %v6573, 116
      %v6668 = vpop.permute.xlu0 %6667
      %6669 = vrot.lane.b32.xlu0 %v6574, 116
      %v6670 = vpop.permute.xlu0 %6669
      %v6703 = vadd.f32 %v6383, %v6608
      %v6704 = vadd.f32 %v6384, %v6610
      %v6705 = vadd.f32 %v6385, %v6612
      %v6706 = vadd.f32 %v6386, %v6614
      %v6707 = vadd.f32 %v6387, %v6616
      %v6708 = vadd.f32 %v6388, %v6618
      %v6709 = vadd.f32 %v6389, %v6620
      %v6710 = vadd.f32 %v6390, %v6622
      %v6711 = vadd.f32 %v6391, %v6624
      %v6712 = vadd.f32 %v6392, %v6626
      %v6713 = vadd.f32 %v6393, %v6628
      %v6714 = vadd.f32 %v6394, %v6630
      %v6715 = vadd.f32 %v6395, %v6632
      %v6716 = vadd.f32 %v6396, %v6634
      %v6717 = vadd.f32 %v6397, %v6636
      %v6718 = vadd.f32 %v6398, %v6638
      %v6719 = vadd.f32 %v6399, %v6640
      %v6720 = vadd.f32 %v6400, %v6642
      %v6721 = vadd.f32 %v6401, %v6644
      %v6722 = vadd.f32 %v6402, %v6646
      %v6723 = vadd.f32 %v6403, %v6648
      %v6724 = vadd.f32 %v6404, %v6650
      %v6725 = vadd.f32 %v6405, %v6652
      %v6726 = vadd.f32 %v6406, %v6654
      %v6727 = vadd.f32 %v6407, %v6656
      %v6728 = vadd.f32 %v6408, %v6658
      %v6729 = vadd.f32 %v6409, %v6660
      %v6730 = vadd.f32 %v6410, %v6662
      %v6731 = vadd.f32 %v6411, %v6664
      %v6732 = vadd.f32 %v6412, %v6666
      %v6733 = vadd.f32 %v6413, %v6668
      %v6734 = vadd.f32 %v6414, %v6670
      %6735 = vset.pattern.permute.xlu0 13
      %6736 = vperm.xlu0 %6735, %v2736
      %v6737 = vpop.permute.xlu0 %6736
      %6739 = vset.pattern.permute.xlu0 13
      %6740 = vperm.xlu0 %6739, %v2738
      %v6741 = vpop.permute.xlu0 %6740
      %6743 = vset.pattern.permute.xlu0 13
      %6744 = vperm.xlu0 %6743, %v2740
      %v6745 = vpop.permute.xlu0 %6744
      %6747 = vset.pattern.permute.xlu0 13
      %6748 = vperm.xlu0 %6747, %v2742
      %v6749 = vpop.permute.xlu0 %6748
      %6751 = vset.pattern.permute.xlu0 13
      %6752 = vperm.xlu0 %6751, %v2744
      %v6753 = vpop.permute.xlu0 %6752
      %6755 = vset.pattern.permute.xlu0 13
      %6756 = vperm.xlu0 %6755, %v2746
      %v6757 = vpop.permute.xlu0 %6756
      %6759 = vset.pattern.permute.xlu0 13
      %6760 = vperm.xlu0 %6759, %v2748
      %v6761 = vpop.permute.xlu0 %6760
      %6763 = vset.pattern.permute.xlu0 13
      %6764 = vperm.xlu0 %6763, %v2750
      %v6765 = vpop.permute.xlu0 %6764
      %6767 = vset.pattern.permute.xlu0 13
      %6768 = vperm.xlu0 %6767, %v2752
      %v6769 = vpop.permute.xlu0 %6768
      %6771 = vset.pattern.permute.xlu0 13
      %6772 = vperm.xlu0 %6771, %v2754
      %v6773 = vpop.permute.xlu0 %6772
      %6775 = vset.pattern.permute.xlu0 13
      %6776 = vperm.xlu0 %6775, %v2756
      %v6777 = vpop.permute.xlu0 %6776
      %6779 = vset.pattern.permute.xlu0 13
      %6780 = vperm.xlu0 %6779, %v2758
      %v6781 = vpop.permute.xlu0 %6780
      %6783 = vset.pattern.permute.xlu0 13
      %6784 = vperm.xlu0 %6783, %v2760
      %v6785 = vpop.permute.xlu0 %6784
      %6787 = vset.pattern.permute.xlu0 13
      %6788 = vperm.xlu0 %6787, %v2762
      %v6789 = vpop.permute.xlu0 %6788
      %6791 = vset.pattern.permute.xlu0 13
      %6792 = vperm.xlu0 %6791, %v2764
      %v6793 = vpop.permute.xlu0 %6792
      %6795 = vset.pattern.permute.xlu0 13
      %6796 = vperm.xlu0 %6795, %v2766
      %v6797 = vpop.permute.xlu0 %6796
      %6799 = vset.pattern.permute.xlu0 13
      %6800 = vperm.xlu0 %6799, %v2768
      %v6801 = vpop.permute.xlu0 %6800
      %6803 = vset.pattern.permute.xlu0 13
      %6804 = vperm.xlu0 %6803, %v2770
      %v6805 = vpop.permute.xlu0 %6804
      %6807 = vset.pattern.permute.xlu0 13
      %6808 = vperm.xlu0 %6807, %v2772
      %v6809 = vpop.permute.xlu0 %6808
      %6811 = vset.pattern.permute.xlu0 13
      %6812 = vperm.xlu0 %6811, %v2774
      %v6813 = vpop.permute.xlu0 %6812
      %6815 = vset.pattern.permute.xlu0 13
      %6816 = vperm.xlu0 %6815, %v2776
      %v6817 = vpop.permute.xlu0 %6816
      %6819 = vset.pattern.permute.xlu0 13
      %6820 = vperm.xlu0 %6819, %v2778
      %v6821 = vpop.permute.xlu0 %6820
      %6823 = vset.pattern.permute.xlu0 13
      %6824 = vperm.xlu0 %6823, %v2780
      %v6825 = vpop.permute.xlu0 %6824
      %6827 = vset.pattern.permute.xlu0 13
      %6828 = vperm.xlu0 %6827, %v2782
      %v6829 = vpop.permute.xlu0 %6828
      %6831 = vset.pattern.permute.xlu0 13
      %6832 = vperm.xlu0 %6831, %v2784
      %v6833 = vpop.permute.xlu0 %6832
      %6835 = vset.pattern.permute.xlu0 13
      %6836 = vperm.xlu0 %6835, %v2786
      %v6837 = vpop.permute.xlu0 %6836
      %6839 = vset.pattern.permute.xlu0 13
      %6840 = vperm.xlu0 %6839, %v2788
      %v6841 = vpop.permute.xlu0 %6840
      %6843 = vset.pattern.permute.xlu0 13
      %6844 = vperm.xlu0 %6843, %v2790
      %v6845 = vpop.permute.xlu0 %6844
      %6847 = vset.pattern.permute.xlu0 13
      %6848 = vperm.xlu0 %6847, %v2792
      %v6849 = vpop.permute.xlu0 %6848
      %6851 = vset.pattern.permute.xlu0 13
      %6852 = vperm.xlu0 %6851, %v2794
      %v6853 = vpop.permute.xlu0 %6852
      %6855 = vset.pattern.permute.xlu0 13
      %6856 = vperm.xlu0 %6855, %v2796
      %v6857 = vpop.permute.xlu0 %6856
      %6859 = vset.pattern.permute.xlu0 13
      %6860 = vperm.xlu0 %6859, %v2798
      %v6861 = vpop.permute.xlu0 %6860
      %v6863 = vmul.f32 %v1837, %v6737
      %v6864 = vmul.f32 %v1838, %v6741
      %v6865 = vmul.f32 %v1839, %v6745
      %v6866 = vmul.f32 %v1840, %v6749
      %v6867 = vmul.f32 %v1841, %v6753
      %v6868 = vmul.f32 %v1842, %v6757
      %v6869 = vmul.f32 %v1843, %v6761
      %v6870 = vmul.f32 %v1844, %v6765
      %v6871 = vmul.f32 %v1845, %v6769
      %v6872 = vmul.f32 %v1846, %v6773
      %v6873 = vmul.f32 %v1847, %v6777
      %v6874 = vmul.f32 %v1848, %v6781
      %v6875 = vmul.f32 %v1849, %v6785
      %v6876 = vmul.f32 %v1850, %v6789
      %v6877 = vmul.f32 %v1851, %v6793
      %v6878 = vmul.f32 %v1852, %v6797
      %v6879 = vmul.f32 %v1853, %v6801
      %v6880 = vmul.f32 %v1854, %v6805
      %v6881 = vmul.f32 %v1855, %v6809
      %v6882 = vmul.f32 %v1856, %v6813
      %v6883 = vmul.f32 %v1857, %v6817
      %v6884 = vmul.f32 %v1858, %v6821
      %v6885 = vmul.f32 %v1859, %v6825
      %v6886 = vmul.f32 %v1860, %v6829
      %v6887 = vmul.f32 %v1861, %v6833
      %v6888 = vmul.f32 %v1862, %v6837
      %v6889 = vmul.f32 %v1863, %v6841
      %v6890 = vmul.f32 %v1864, %v6845
      %v6891 = vmul.f32 %v1865, %v6849
      %v6892 = vmul.f32 %v1866, %v6853
      %v6893 = vmul.f32 %v1867, %v6857
      %v6894 = vmul.f32 %v1868, %v6861
      %6927 = vrot.lane.b32.xlu0 %v6863, 112
      %v6928 = vpop.permute.xlu0 %6927
      %6929 = vrot.lane.b32.xlu0 %v6864, 112
      %v6930 = vpop.permute.xlu0 %6929
      %6931 = vrot.lane.b32.xlu0 %v6865, 112
      %v6932 = vpop.permute.xlu0 %6931
      %6933 = vrot.lane.b32.xlu0 %v6866, 112
      %v6934 = vpop.permute.xlu0 %6933
      %6935 = vrot.lane.b32.xlu0 %v6867, 112
      %v6936 = vpop.permute.xlu0 %6935
      %6937 = vrot.lane.b32.xlu0 %v6868, 112
      %v6938 = vpop.permute.xlu0 %6937
      %6939 = vrot.lane.b32.xlu0 %v6869, 112
      %v6940 = vpop.permute.xlu0 %6939
      %6941 = vrot.lane.b32.xlu0 %v6870, 112
      %v6942 = vpop.permute.xlu0 %6941
      %6943 = vrot.lane.b32.xlu0 %v6871, 112
      %v6944 = vpop.permute.xlu0 %6943
      %6945 = vrot.lane.b32.xlu0 %v6872, 112
      %v6946 = vpop.permute.xlu0 %6945
      %6947 = vrot.lane.b32.xlu0 %v6873, 112
      %v6948 = vpop.permute.xlu0 %6947
      %6949 = vrot.lane.b32.xlu0 %v6874, 112
      %v6950 = vpop.permute.xlu0 %6949
      %6951 = vrot.lane.b32.xlu0 %v6875, 112
      %v6952 = vpop.permute.xlu0 %6951
      %6953 = vrot.lane.b32.xlu0 %v6876, 112
      %v6954 = vpop.permute.xlu0 %6953
      %6955 = vrot.lane.b32.xlu0 %v6877, 112
      %v6956 = vpop.permute.xlu0 %6955
      %6957 = vrot.lane.b32.xlu0 %v6878, 112
      %v6958 = vpop.permute.xlu0 %6957
      %6959 = vrot.lane.b32.xlu0 %v6879, 112
      %v6960 = vpop.permute.xlu0 %6959
      %6961 = vrot.lane.b32.xlu0 %v6880, 112
      %v6962 = vpop.permute.xlu0 %6961
      %6963 = vrot.lane.b32.xlu0 %v6881, 112
      %v6964 = vpop.permute.xlu0 %6963
      %6965 = vrot.lane.b32.xlu0 %v6882, 112
      %v6966 = vpop.permute.xlu0 %6965
      %6967 = vrot.lane.b32.xlu0 %v6883, 112
      %v6968 = vpop.permute.xlu0 %6967
      %6969 = vrot.lane.b32.xlu0 %v6884, 112
      %v6970 = vpop.permute.xlu0 %6969
      %6971 = vrot.lane.b32.xlu0 %v6885, 112
      %v6972 = vpop.permute.xlu0 %6971
      %6973 = vrot.lane.b32.xlu0 %v6886, 112
      %v6974 = vpop.permute.xlu0 %6973
      %6975 = vrot.lane.b32.xlu0 %v6887, 112
      %v6976 = vpop.permute.xlu0 %6975
      %6977 = vrot.lane.b32.xlu0 %v6888, 112
      %v6978 = vpop.permute.xlu0 %6977
      %6979 = vrot.lane.b32.xlu0 %v6889, 112
      %v6980 = vpop.permute.xlu0 %6979
      %6981 = vrot.lane.b32.xlu0 %v6890, 112
      %v6982 = vpop.permute.xlu0 %6981
      %6983 = vrot.lane.b32.xlu0 %v6891, 112
      %v6984 = vpop.permute.xlu0 %6983
      %6985 = vrot.lane.b32.xlu0 %v6892, 112
      %v6986 = vpop.permute.xlu0 %6985
      %6987 = vrot.lane.b32.xlu0 %v6893, 112
      %v6988 = vpop.permute.xlu0 %6987
      %6989 = vrot.lane.b32.xlu0 %v6894, 112
      %v6990 = vpop.permute.xlu0 %6989
      %v7023 = vadd.f32 %v6703, %v6928
      %v7024 = vadd.f32 %v6704, %v6930
      %v7025 = vadd.f32 %v6705, %v6932
      %v7026 = vadd.f32 %v6706, %v6934
      %v7027 = vadd.f32 %v6707, %v6936
      %v7028 = vadd.f32 %v6708, %v6938
      %v7029 = vadd.f32 %v6709, %v6940
      %v7030 = vadd.f32 %v6710, %v6942
      %v7031 = vadd.f32 %v6711, %v6944
      %v7032 = vadd.f32 %v6712, %v6946
      %v7033 = vadd.f32 %v6713, %v6948
      %v7034 = vadd.f32 %v6714, %v6950
      %v7035 = vadd.f32 %v6715, %v6952
      %v7036 = vadd.f32 %v6716, %v6954
      %v7037 = vadd.f32 %v6717, %v6956
      %v7038 = vadd.f32 %v6718, %v6958
      %v7039 = vadd.f32 %v6719, %v6960
      %v7040 = vadd.f32 %v6720, %v6962
      %v7041 = vadd.f32 %v6721, %v6964
      %v7042 = vadd.f32 %v6722, %v6966
      %v7043 = vadd.f32 %v6723, %v6968
      %v7044 = vadd.f32 %v6724, %v6970
      %v7045 = vadd.f32 %v6725, %v6972
      %v7046 = vadd.f32 %v6726, %v6974
      %v7047 = vadd.f32 %v6727, %v6976
      %v7048 = vadd.f32 %v6728, %v6978
      %v7049 = vadd.f32 %v6729, %v6980
      %v7050 = vadd.f32 %v6730, %v6982
      %v7051 = vadd.f32 %v6731, %v6984
      %v7052 = vadd.f32 %v6732, %v6986
      %v7053 = vadd.f32 %v6733, %v6988
      %v7054 = vadd.f32 %v6734, %v6990
      %7055 = vset.pattern.permute.xlu0 14
      %7056 = vperm.xlu0 %7055, %v2736
      %v7057 = vpop.permute.xlu0 %7056
      %7059 = vset.pattern.permute.xlu0 14
      %7060 = vperm.xlu0 %7059, %v2738
      %v7061 = vpop.permute.xlu0 %7060
      %7063 = vset.pattern.permute.xlu0 14
      %7064 = vperm.xlu0 %7063, %v2740
      %v7065 = vpop.permute.xlu0 %7064
      %7067 = vset.pattern.permute.xlu0 14
      %7068 = vperm.xlu0 %7067, %v2742
      %v7069 = vpop.permute.xlu0 %7068
      %7071 = vset.pattern.permute.xlu0 14
      %7072 = vperm.xlu0 %7071, %v2744
      %v7073 = vpop.permute.xlu0 %7072
      %7075 = vset.pattern.permute.xlu0 14
      %7076 = vperm.xlu0 %7075, %v2746
      %v7077 = vpop.permute.xlu0 %7076
      %7079 = vset.pattern.permute.xlu0 14
      %7080 = vperm.xlu0 %7079, %v2748
      %v7081 = vpop.permute.xlu0 %7080
      %7083 = vset.pattern.permute.xlu0 14
      %7084 = vperm.xlu0 %7083, %v2750
      %v7085 = vpop.permute.xlu0 %7084
      %7087 = vset.pattern.permute.xlu0 14
      %7088 = vperm.xlu0 %7087, %v2752
      %v7089 = vpop.permute.xlu0 %7088
      %7091 = vset.pattern.permute.xlu0 14
      %7092 = vperm.xlu0 %7091, %v2754
      %v7093 = vpop.permute.xlu0 %7092
      %7095 = vset.pattern.permute.xlu0 14
      %7096 = vperm.xlu0 %7095, %v2756
      %v7097 = vpop.permute.xlu0 %7096
      %7099 = vset.pattern.permute.xlu0 14
      %7100 = vperm.xlu0 %7099, %v2758
      %v7101 = vpop.permute.xlu0 %7100
      %7103 = vset.pattern.permute.xlu0 14
      %7104 = vperm.xlu0 %7103, %v2760
      %v7105 = vpop.permute.xlu0 %7104
      %7107 = vset.pattern.permute.xlu0 14
      %7108 = vperm.xlu0 %7107, %v2762
      %v7109 = vpop.permute.xlu0 %7108
      %7111 = vset.pattern.permute.xlu0 14
      %7112 = vperm.xlu0 %7111, %v2764
      %v7113 = vpop.permute.xlu0 %7112
      %7115 = vset.pattern.permute.xlu0 14
      %7116 = vperm.xlu0 %7115, %v2766
      %v7117 = vpop.permute.xlu0 %7116
      %7119 = vset.pattern.permute.xlu0 14
      %7120 = vperm.xlu0 %7119, %v2768
      %v7121 = vpop.permute.xlu0 %7120
      %7123 = vset.pattern.permute.xlu0 14
      %7124 = vperm.xlu0 %7123, %v2770
      %v7125 = vpop.permute.xlu0 %7124
      %7127 = vset.pattern.permute.xlu0 14
      %7128 = vperm.xlu0 %7127, %v2772
      %v7129 = vpop.permute.xlu0 %7128
      %7131 = vset.pattern.permute.xlu0 14
      %7132 = vperm.xlu0 %7131, %v2774
      %v7133 = vpop.permute.xlu0 %7132
      %7135 = vset.pattern.permute.xlu0 14
      %7136 = vperm.xlu0 %7135, %v2776
      %v7137 = vpop.permute.xlu0 %7136
      %7139 = vset.pattern.permute.xlu0 14
      %7140 = vperm.xlu0 %7139, %v2778
      %v7141 = vpop.permute.xlu0 %7140
      %7143 = vset.pattern.permute.xlu0 14
      %7144 = vperm.xlu0 %7143, %v2780
      %v7145 = vpop.permute.xlu0 %7144
      %7147 = vset.pattern.permute.xlu0 14
      %7148 = vperm.xlu0 %7147, %v2782
      %v7149 = vpop.permute.xlu0 %7148
      %7151 = vset.pattern.permute.xlu0 14
      %7152 = vperm.xlu0 %7151, %v2784
      %v7153 = vpop.permute.xlu0 %7152
      %7155 = vset.pattern.permute.xlu0 14
      %7156 = vperm.xlu0 %7155, %v2786
      %v7157 = vpop.permute.xlu0 %7156
      %7159 = vset.pattern.permute.xlu0 14
      %7160 = vperm.xlu0 %7159, %v2788
      %v7161 = vpop.permute.xlu0 %7160
      %7163 = vset.pattern.permute.xlu0 14
      %7164 = vperm.xlu0 %7163, %v2790
      %v7165 = vpop.permute.xlu0 %7164
      %7167 = vset.pattern.permute.xlu0 14
      %7168 = vperm.xlu0 %7167, %v2792
      %v7169 = vpop.permute.xlu0 %7168
      %7171 = vset.pattern.permute.xlu0 14
      %7172 = vperm.xlu0 %7171, %v2794
      %v7173 = vpop.permute.xlu0 %7172
      %7175 = vset.pattern.permute.xlu0 14
      %7176 = vperm.xlu0 %7175, %v2796
      %v7177 = vpop.permute.xlu0 %7176
      %7179 = vset.pattern.permute.xlu0 14
      %7180 = vperm.xlu0 %7179, %v2798
      %v7181 = vpop.permute.xlu0 %7180
      %v7183 = vmul.f32 %v1837, %v7057
      %v7184 = vmul.f32 %v1838, %v7061
      %v7185 = vmul.f32 %v1839, %v7065
      %v7186 = vmul.f32 %v1840, %v7069
      %v7187 = vmul.f32 %v1841, %v7073
      %v7188 = vmul.f32 %v1842, %v7077
      %v7189 = vmul.f32 %v1843, %v7081
      %v7190 = vmul.f32 %v1844, %v7085
      %v7191 = vmul.f32 %v1845, %v7089
      %v7192 = vmul.f32 %v1846, %v7093
      %v7193 = vmul.f32 %v1847, %v7097
      %v7194 = vmul.f32 %v1848, %v7101
      %v7195 = vmul.f32 %v1849, %v7105
      %v7196 = vmul.f32 %v1850, %v7109
      %v7197 = vmul.f32 %v1851, %v7113
      %v7198 = vmul.f32 %v1852, %v7117
      %v7199 = vmul.f32 %v1853, %v7121
      %v7200 = vmul.f32 %v1854, %v7125
      %v7201 = vmul.f32 %v1855, %v7129
      %v7202 = vmul.f32 %v1856, %v7133
      %v7203 = vmul.f32 %v1857, %v7137
      %v7204 = vmul.f32 %v1858, %v7141
      %v7205 = vmul.f32 %v1859, %v7145
      %v7206 = vmul.f32 %v1860, %v7149
      %v7207 = vmul.f32 %v1861, %v7153
      %v7208 = vmul.f32 %v1862, %v7157
      %v7209 = vmul.f32 %v1863, %v7161
      %v7210 = vmul.f32 %v1864, %v7165
      %v7211 = vmul.f32 %v1865, %v7169
      %v7212 = vmul.f32 %v1866, %v7173
      %v7213 = vmul.f32 %v1867, %v7177
      %v7214 = vmul.f32 %v1868, %v7181
      %7247 = vrot.lane.b32.xlu0 %v7183, 108
      %v7248 = vpop.permute.xlu0 %7247
      %7249 = vrot.lane.b32.xlu0 %v7184, 108
      %v7250 = vpop.permute.xlu0 %7249
      %7251 = vrot.lane.b32.xlu0 %v7185, 108
      %v7252 = vpop.permute.xlu0 %7251
      %7253 = vrot.lane.b32.xlu0 %v7186, 108
      %v7254 = vpop.permute.xlu0 %7253
      %7255 = vrot.lane.b32.xlu0 %v7187, 108
      %v7256 = vpop.permute.xlu0 %7255
      %7257 = vrot.lane.b32.xlu0 %v7188, 108
      %v7258 = vpop.permute.xlu0 %7257
      %7259 = vrot.lane.b32.xlu0 %v7189, 108
      %v7260 = vpop.permute.xlu0 %7259
      %7261 = vrot.lane.b32.xlu0 %v7190, 108
      %v7262 = vpop.permute.xlu0 %7261
      %7263 = vrot.lane.b32.xlu0 %v7191, 108
      %v7264 = vpop.permute.xlu0 %7263
      %7265 = vrot.lane.b32.xlu0 %v7192, 108
      %v7266 = vpop.permute.xlu0 %7265
      %7267 = vrot.lane.b32.xlu0 %v7193, 108
      %v7268 = vpop.permute.xlu0 %7267
      %7269 = vrot.lane.b32.xlu0 %v7194, 108
      %v7270 = vpop.permute.xlu0 %7269
      %7271 = vrot.lane.b32.xlu0 %v7195, 108
      %v7272 = vpop.permute.xlu0 %7271
      %7273 = vrot.lane.b32.xlu0 %v7196, 108
      %v7274 = vpop.permute.xlu0 %7273
      %7275 = vrot.lane.b32.xlu0 %v7197, 108
      %v7276 = vpop.permute.xlu0 %7275
      %7277 = vrot.lane.b32.xlu0 %v7198, 108
      %v7278 = vpop.permute.xlu0 %7277
      %7279 = vrot.lane.b32.xlu0 %v7199, 108
      %v7280 = vpop.permute.xlu0 %7279
      %7281 = vrot.lane.b32.xlu0 %v7200, 108
      %v7282 = vpop.permute.xlu0 %7281
      %7283 = vrot.lane.b32.xlu0 %v7201, 108
      %v7284 = vpop.permute.xlu0 %7283
      %7285 = vrot.lane.b32.xlu0 %v7202, 108
      %v7286 = vpop.permute.xlu0 %7285
      %7287 = vrot.lane.b32.xlu0 %v7203, 108
      %v7288 = vpop.permute.xlu0 %7287
      %7289 = vrot.lane.b32.xlu0 %v7204, 108
      %v7290 = vpop.permute.xlu0 %7289
      %7291 = vrot.lane.b32.xlu0 %v7205, 108
      %v7292 = vpop.permute.xlu0 %7291
      %7293 = vrot.lane.b32.xlu0 %v7206, 108
      %v7294 = vpop.permute.xlu0 %7293
      %7295 = vrot.lane.b32.xlu0 %v7207, 108
      %v7296 = vpop.permute.xlu0 %7295
      %7297 = vrot.lane.b32.xlu0 %v7208, 108
      %v7298 = vpop.permute.xlu0 %7297
      %7299 = vrot.lane.b32.xlu0 %v7209, 108
      %v7300 = vpop.permute.xlu0 %7299
      %7301 = vrot.lane.b32.xlu0 %v7210, 108
      %v7302 = vpop.permute.xlu0 %7301
      %7303 = vrot.lane.b32.xlu0 %v7211, 108
      %v7304 = vpop.permute.xlu0 %7303
      %7305 = vrot.lane.b32.xlu0 %v7212, 108
      %v7306 = vpop.permute.xlu0 %7305
      %7307 = vrot.lane.b32.xlu0 %v7213, 108
      %v7308 = vpop.permute.xlu0 %7307
      %7309 = vrot.lane.b32.xlu0 %v7214, 108
      %v7310 = vpop.permute.xlu0 %7309
      %v7343 = vadd.f32 %v7023, %v7248
      %v7344 = vadd.f32 %v7024, %v7250
      %v7345 = vadd.f32 %v7025, %v7252
      %v7346 = vadd.f32 %v7026, %v7254
      %v7347 = vadd.f32 %v7027, %v7256
      %v7348 = vadd.f32 %v7028, %v7258
      %v7349 = vadd.f32 %v7029, %v7260
      %v7350 = vadd.f32 %v7030, %v7262
      %v7351 = vadd.f32 %v7031, %v7264
      %v7352 = vadd.f32 %v7032, %v7266
      %v7353 = vadd.f32 %v7033, %v7268
      %v7354 = vadd.f32 %v7034, %v7270
      %v7355 = vadd.f32 %v7035, %v7272
      %v7356 = vadd.f32 %v7036, %v7274
      %v7357 = vadd.f32 %v7037, %v7276
      %v7358 = vadd.f32 %v7038, %v7278
      %v7359 = vadd.f32 %v7039, %v7280
      %v7360 = vadd.f32 %v7040, %v7282
      %v7361 = vadd.f32 %v7041, %v7284
      %v7362 = vadd.f32 %v7042, %v7286
      %v7363 = vadd.f32 %v7043, %v7288
      %v7364 = vadd.f32 %v7044, %v7290
      %v7365 = vadd.f32 %v7045, %v7292
      %v7366 = vadd.f32 %v7046, %v7294
      %v7367 = vadd.f32 %v7047, %v7296
      %v7368 = vadd.f32 %v7048, %v7298
      %v7369 = vadd.f32 %v7049, %v7300
      %v7370 = vadd.f32 %v7050, %v7302
      %v7371 = vadd.f32 %v7051, %v7304
      %v7372 = vadd.f32 %v7052, %v7306
      %v7373 = vadd.f32 %v7053, %v7308
      %v7374 = vadd.f32 %v7054, %v7310
      %7375 = vset.pattern.permute.xlu0 15
      %7376 = vperm.xlu0 %7375, %v2736
      %v7377 = vpop.permute.xlu0 %7376
      %7379 = vset.pattern.permute.xlu0 15
      %7380 = vperm.xlu0 %7379, %v2738
      %v7381 = vpop.permute.xlu0 %7380
      %7383 = vset.pattern.permute.xlu0 15
      %7384 = vperm.xlu0 %7383, %v2740
      %v7385 = vpop.permute.xlu0 %7384
      %7387 = vset.pattern.permute.xlu0 15
      %7388 = vperm.xlu0 %7387, %v2742
      %v7389 = vpop.permute.xlu0 %7388
      %7391 = vset.pattern.permute.xlu0 15
      %7392 = vperm.xlu0 %7391, %v2744
      %v7393 = vpop.permute.xlu0 %7392
      %7395 = vset.pattern.permute.xlu0 15
      %7396 = vperm.xlu0 %7395, %v2746
      %v7397 = vpop.permute.xlu0 %7396
      %7399 = vset.pattern.permute.xlu0 15
      %7400 = vperm.xlu0 %7399, %v2748
      %v7401 = vpop.permute.xlu0 %7400
      %7403 = vset.pattern.permute.xlu0 15
      %7404 = vperm.xlu0 %7403, %v2750
      %v7405 = vpop.permute.xlu0 %7404
      %7407 = vset.pattern.permute.xlu0 15
      %7408 = vperm.xlu0 %7407, %v2752
      %v7409 = vpop.permute.xlu0 %7408
      %7411 = vset.pattern.permute.xlu0 15
      %7412 = vperm.xlu0 %7411, %v2754
      %v7413 = vpop.permute.xlu0 %7412
      %7415 = vset.pattern.permute.xlu0 15
      %7416 = vperm.xlu0 %7415, %v2756
      %v7417 = vpop.permute.xlu0 %7416
      %7419 = vset.pattern.permute.xlu0 15
      %7420 = vperm.xlu0 %7419, %v2758
      %v7421 = vpop.permute.xlu0 %7420
      %7423 = vset.pattern.permute.xlu0 15
      %7424 = vperm.xlu0 %7423, %v2760
      %v7425 = vpop.permute.xlu0 %7424
      %7427 = vset.pattern.permute.xlu0 15
      %7428 = vperm.xlu0 %7427, %v2762
      %v7429 = vpop.permute.xlu0 %7428
      %7431 = vset.pattern.permute.xlu0 15
      %7432 = vperm.xlu0 %7431, %v2764
      %v7433 = vpop.permute.xlu0 %7432
      %7435 = vset.pattern.permute.xlu0 15
      %7436 = vperm.xlu0 %7435, %v2766
      %v7437 = vpop.permute.xlu0 %7436
      %7439 = vset.pattern.permute.xlu0 15
      %7440 = vperm.xlu0 %7439, %v2768
      %v7441 = vpop.permute.xlu0 %7440
      %7443 = vset.pattern.permute.xlu0 15
      %7444 = vperm.xlu0 %7443, %v2770
      %v7445 = vpop.permute.xlu0 %7444
      %7447 = vset.pattern.permute.xlu0 15
      %7448 = vperm.xlu0 %7447, %v2772
      %v7449 = vpop.permute.xlu0 %7448
      %7451 = vset.pattern.permute.xlu0 15
      %7452 = vperm.xlu0 %7451, %v2774
      %v7453 = vpop.permute.xlu0 %7452
      %7455 = vset.pattern.permute.xlu0 15
      %7456 = vperm.xlu0 %7455, %v2776
      %v7457 = vpop.permute.xlu0 %7456
      %7459 = vset.pattern.permute.xlu0 15
      %7460 = vperm.xlu0 %7459, %v2778
      %v7461 = vpop.permute.xlu0 %7460
      %7463 = vset.pattern.permute.xlu0 15
      %7464 = vperm.xlu0 %7463, %v2780
      %v7465 = vpop.permute.xlu0 %7464
      %7467 = vset.pattern.permute.xlu0 15
      %7468 = vperm.xlu0 %7467, %v2782
      %v7469 = vpop.permute.xlu0 %7468
      %7471 = vset.pattern.permute.xlu0 15
      %7472 = vperm.xlu0 %7471, %v2784
      %v7473 = vpop.permute.xlu0 %7472
      %7475 = vset.pattern.permute.xlu0 15
      %7476 = vperm.xlu0 %7475, %v2786
      %v7477 = vpop.permute.xlu0 %7476
      %7479 = vset.pattern.permute.xlu0 15
      %7480 = vperm.xlu0 %7479, %v2788
      %v7481 = vpop.permute.xlu0 %7480
      %7483 = vset.pattern.permute.xlu0 15
      %7484 = vperm.xlu0 %7483, %v2790
      %v7485 = vpop.permute.xlu0 %7484
      %7487 = vset.pattern.permute.xlu0 15
      %7488 = vperm.xlu0 %7487, %v2792
      %v7489 = vpop.permute.xlu0 %7488
      %7491 = vset.pattern.permute.xlu0 15
      %7492 = vperm.xlu0 %7491, %v2794
      %v7493 = vpop.permute.xlu0 %7492
      %7495 = vset.pattern.permute.xlu0 15
      %7496 = vperm.xlu0 %7495, %v2796
      %v7497 = vpop.permute.xlu0 %7496
      %7499 = vset.pattern.permute.xlu0 15
      %7500 = vperm.xlu0 %7499, %v2798
      %v7501 = vpop.permute.xlu0 %7500
      %v7503 = vmul.f32 %v1837, %v7377
      %v7504 = vmul.f32 %v1838, %v7381
      %v7505 = vmul.f32 %v1839, %v7385
      %v7506 = vmul.f32 %v1840, %v7389
      %v7507 = vmul.f32 %v1841, %v7393
      %v7508 = vmul.f32 %v1842, %v7397
      %v7509 = vmul.f32 %v1843, %v7401
      %v7510 = vmul.f32 %v1844, %v7405
      %v7511 = vmul.f32 %v1845, %v7409
      %v7512 = vmul.f32 %v1846, %v7413
      %v7513 = vmul.f32 %v1847, %v7417
      %v7514 = vmul.f32 %v1848, %v7421
      %v7515 = vmul.f32 %v1849, %v7425
      %v7516 = vmul.f32 %v1850, %v7429
      %v7517 = vmul.f32 %v1851, %v7433
      %v7518 = vmul.f32 %v1852, %v7437
      %v7519 = vmul.f32 %v1853, %v7441
      %v7520 = vmul.f32 %v1854, %v7445
      %v7521 = vmul.f32 %v1855, %v7449
      %v7522 = vmul.f32 %v1856, %v7453
      %v7523 = vmul.f32 %v1857, %v7457
      %v7524 = vmul.f32 %v1858, %v7461
      %v7525 = vmul.f32 %v1859, %v7465
      %v7526 = vmul.f32 %v1860, %v7469
      %v7527 = vmul.f32 %v1861, %v7473
      %v7528 = vmul.f32 %v1862, %v7477
      %v7529 = vmul.f32 %v1863, %v7481
      %v7530 = vmul.f32 %v1864, %v7485
      %v7531 = vmul.f32 %v1865, %v7489
      %v7532 = vmul.f32 %v1866, %v7493
      %v7533 = vmul.f32 %v1867, %v7497
      %v7534 = vmul.f32 %v1868, %v7501
      %7567 = vrot.lane.b32.xlu0 %v7503, 104
      %v7568 = vpop.permute.xlu0 %7567
      %7569 = vrot.lane.b32.xlu0 %v7504, 104
      %v7570 = vpop.permute.xlu0 %7569
      %7571 = vrot.lane.b32.xlu0 %v7505, 104
      %v7572 = vpop.permute.xlu0 %7571
      %7573 = vrot.lane.b32.xlu0 %v7506, 104
      %v7574 = vpop.permute.xlu0 %7573
      %7575 = vrot.lane.b32.xlu0 %v7507, 104
      %v7576 = vpop.permute.xlu0 %7575
      %7577 = vrot.lane.b32.xlu0 %v7508, 104
      %v7578 = vpop.permute.xlu0 %7577
      %7579 = vrot.lane.b32.xlu0 %v7509, 104
      %v7580 = vpop.permute.xlu0 %7579
      %7581 = vrot.lane.b32.xlu0 %v7510, 104
      %v7582 = vpop.permute.xlu0 %7581
      %7583 = vrot.lane.b32.xlu0 %v7511, 104
      %v7584 = vpop.permute.xlu0 %7583
      %7585 = vrot.lane.b32.xlu0 %v7512, 104
      %v7586 = vpop.permute.xlu0 %7585
      %7587 = vrot.lane.b32.xlu0 %v7513, 104
      %v7588 = vpop.permute.xlu0 %7587
      %7589 = vrot.lane.b32.xlu0 %v7514, 104
      %v7590 = vpop.permute.xlu0 %7589
      %7591 = vrot.lane.b32.xlu0 %v7515, 104
      %v7592 = vpop.permute.xlu0 %7591
      %7593 = vrot.lane.b32.xlu0 %v7516, 104
      %v7594 = vpop.permute.xlu0 %7593
      %7595 = vrot.lane.b32.xlu0 %v7517, 104
      %v7596 = vpop.permute.xlu0 %7595
      %7597 = vrot.lane.b32.xlu0 %v7518, 104
      %v7598 = vpop.permute.xlu0 %7597
      %7599 = vrot.lane.b32.xlu0 %v7519, 104
      %v7600 = vpop.permute.xlu0 %7599
      %7601 = vrot.lane.b32.xlu0 %v7520, 104
      %v7602 = vpop.permute.xlu0 %7601
      %7603 = vrot.lane.b32.xlu0 %v7521, 104
      %v7604 = vpop.permute.xlu0 %7603
      %7605 = vrot.lane.b32.xlu0 %v7522, 104
      %v7606 = vpop.permute.xlu0 %7605
      %7607 = vrot.lane.b32.xlu0 %v7523, 104
      %v7608 = vpop.permute.xlu0 %7607
      %7609 = vrot.lane.b32.xlu0 %v7524, 104
      %v7610 = vpop.permute.xlu0 %7609
      %7611 = vrot.lane.b32.xlu0 %v7525, 104
      %v7612 = vpop.permute.xlu0 %7611
      %7613 = vrot.lane.b32.xlu0 %v7526, 104
      %v7614 = vpop.permute.xlu0 %7613
      %7615 = vrot.lane.b32.xlu0 %v7527, 104
      %v7616 = vpop.permute.xlu0 %7615
      %7617 = vrot.lane.b32.xlu0 %v7528, 104
      %v7618 = vpop.permute.xlu0 %7617
      %7619 = vrot.lane.b32.xlu0 %v7529, 104
      %v7620 = vpop.permute.xlu0 %7619
      %7621 = vrot.lane.b32.xlu0 %v7530, 104
      %v7622 = vpop.permute.xlu0 %7621
      %7623 = vrot.lane.b32.xlu0 %v7531, 104
      %v7624 = vpop.permute.xlu0 %7623
      %7625 = vrot.lane.b32.xlu0 %v7532, 104
      %v7626 = vpop.permute.xlu0 %7625
      %7627 = vrot.lane.b32.xlu0 %v7533, 104
      %v7628 = vpop.permute.xlu0 %7627
      %7629 = vrot.lane.b32.xlu0 %v7534, 104
      %v7630 = vpop.permute.xlu0 %7629
      %v7663 = vadd.f32 %v7343, %v7568
      %v7664 = vadd.f32 %v7344, %v7570
      %v7665 = vadd.f32 %v7345, %v7572
      %v7666 = vadd.f32 %v7346, %v7574
      %v7667 = vadd.f32 %v7347, %v7576
      %v7668 = vadd.f32 %v7348, %v7578
      %v7669 = vadd.f32 %v7349, %v7580
      %v7670 = vadd.f32 %v7350, %v7582
      %v7671 = vadd.f32 %v7351, %v7584
      %v7672 = vadd.f32 %v7352, %v7586
      %v7673 = vadd.f32 %v7353, %v7588
      %v7674 = vadd.f32 %v7354, %v7590
      %v7675 = vadd.f32 %v7355, %v7592
      %v7676 = vadd.f32 %v7356, %v7594
      %v7677 = vadd.f32 %v7357, %v7596
      %v7678 = vadd.f32 %v7358, %v7598
      %v7679 = vadd.f32 %v7359, %v7600
      %v7680 = vadd.f32 %v7360, %v7602
      %v7681 = vadd.f32 %v7361, %v7604
      %v7682 = vadd.f32 %v7362, %v7606
      %v7683 = vadd.f32 %v7363, %v7608
      %v7684 = vadd.f32 %v7364, %v7610
      %v7685 = vadd.f32 %v7365, %v7612
      %v7686 = vadd.f32 %v7366, %v7614
      %v7687 = vadd.f32 %v7367, %v7616
      %v7688 = vadd.f32 %v7368, %v7618
      %v7689 = vadd.f32 %v7369, %v7620
      %v7690 = vadd.f32 %v7370, %v7622
      %v7691 = vadd.f32 %v7371, %v7624
      %v7692 = vadd.f32 %v7372, %v7626
      %v7693 = vadd.f32 %v7373, %v7628
      %v7694 = vadd.f32 %v7374, %v7630
      %7695 = vset.pattern.permute.xlu0 16
      %7696 = vperm.xlu0 %7695, %v2736
      %v7697 = vpop.permute.xlu0 %7696
      %7699 = vset.pattern.permute.xlu0 16
      %7700 = vperm.xlu0 %7699, %v2738
      %v7701 = vpop.permute.xlu0 %7700
      %7703 = vset.pattern.permute.xlu0 16
      %7704 = vperm.xlu0 %7703, %v2740
      %v7705 = vpop.permute.xlu0 %7704
      %7707 = vset.pattern.permute.xlu0 16
      %7708 = vperm.xlu0 %7707, %v2742
      %v7709 = vpop.permute.xlu0 %7708
      %7711 = vset.pattern.permute.xlu0 16
      %7712 = vperm.xlu0 %7711, %v2744
      %v7713 = vpop.permute.xlu0 %7712
      %7715 = vset.pattern.permute.xlu0 16
      %7716 = vperm.xlu0 %7715, %v2746
      %v7717 = vpop.permute.xlu0 %7716
      %7719 = vset.pattern.permute.xlu0 16
      %7720 = vperm.xlu0 %7719, %v2748
      %v7721 = vpop.permute.xlu0 %7720
      %7723 = vset.pattern.permute.xlu0 16
      %7724 = vperm.xlu0 %7723, %v2750
      %v7725 = vpop.permute.xlu0 %7724
      %7727 = vset.pattern.permute.xlu0 16
      %7728 = vperm.xlu0 %7727, %v2752
      %v7729 = vpop.permute.xlu0 %7728
      %7731 = vset.pattern.permute.xlu0 16
      %7732 = vperm.xlu0 %7731, %v2754
      %v7733 = vpop.permute.xlu0 %7732
      %7735 = vset.pattern.permute.xlu0 16
      %7736 = vperm.xlu0 %7735, %v2756
      %v7737 = vpop.permute.xlu0 %7736
      %7739 = vset.pattern.permute.xlu0 16
      %7740 = vperm.xlu0 %7739, %v2758
      %v7741 = vpop.permute.xlu0 %7740
      %7743 = vset.pattern.permute.xlu0 16
      %7744 = vperm.xlu0 %7743, %v2760
      %v7745 = vpop.permute.xlu0 %7744
      %7747 = vset.pattern.permute.xlu0 16
      %7748 = vperm.xlu0 %7747, %v2762
      %v7749 = vpop.permute.xlu0 %7748
      %7751 = vset.pattern.permute.xlu0 16
      %7752 = vperm.xlu0 %7751, %v2764
      %v7753 = vpop.permute.xlu0 %7752
      %7755 = vset.pattern.permute.xlu0 16
      %7756 = vperm.xlu0 %7755, %v2766
      %v7757 = vpop.permute.xlu0 %7756
      %7759 = vset.pattern.permute.xlu0 16
      %7760 = vperm.xlu0 %7759, %v2768
      %v7761 = vpop.permute.xlu0 %7760
      %7763 = vset.pattern.permute.xlu0 16
      %7764 = vperm.xlu0 %7763, %v2770
      %v7765 = vpop.permute.xlu0 %7764
      %7767 = vset.pattern.permute.xlu0 16
      %7768 = vperm.xlu0 %7767, %v2772
      %v7769 = vpop.permute.xlu0 %7768
      %7771 = vset.pattern.permute.xlu0 16
      %7772 = vperm.xlu0 %7771, %v2774
      %v7773 = vpop.permute.xlu0 %7772
      %7775 = vset.pattern.permute.xlu0 16
      %7776 = vperm.xlu0 %7775, %v2776
      %v7777 = vpop.permute.xlu0 %7776
      %7779 = vset.pattern.permute.xlu0 16
      %7780 = vperm.xlu0 %7779, %v2778
      %v7781 = vpop.permute.xlu0 %7780
      %7783 = vset.pattern.permute.xlu0 16
      %7784 = vperm.xlu0 %7783, %v2780
      %v7785 = vpop.permute.xlu0 %7784
      %7787 = vset.pattern.permute.xlu0 16
      %7788 = vperm.xlu0 %7787, %v2782
      %v7789 = vpop.permute.xlu0 %7788
      %7791 = vset.pattern.permute.xlu0 16
      %7792 = vperm.xlu0 %7791, %v2784
      %v7793 = vpop.permute.xlu0 %7792
      %7795 = vset.pattern.permute.xlu0 16
      %7796 = vperm.xlu0 %7795, %v2786
      %v7797 = vpop.permute.xlu0 %7796
      %7799 = vset.pattern.permute.xlu0 16
      %7800 = vperm.xlu0 %7799, %v2788
      %v7801 = vpop.permute.xlu0 %7800
      %7803 = vset.pattern.permute.xlu0 16
      %7804 = vperm.xlu0 %7803, %v2790
      %v7805 = vpop.permute.xlu0 %7804
      %7807 = vset.pattern.permute.xlu0 16
      %7808 = vperm.xlu0 %7807, %v2792
      %v7809 = vpop.permute.xlu0 %7808
      %7811 = vset.pattern.permute.xlu0 16
      %7812 = vperm.xlu0 %7811, %v2794
      %v7813 = vpop.permute.xlu0 %7812
      %7815 = vset.pattern.permute.xlu0 16
      %7816 = vperm.xlu0 %7815, %v2796
      %v7817 = vpop.permute.xlu0 %7816
      %7819 = vset.pattern.permute.xlu0 16
      %7820 = vperm.xlu0 %7819, %v2798
      %v7821 = vpop.permute.xlu0 %7820
      %v7823 = vmul.f32 %v1837, %v7697
      %v7824 = vmul.f32 %v1838, %v7701
      %v7825 = vmul.f32 %v1839, %v7705
      %v7826 = vmul.f32 %v1840, %v7709
      %v7827 = vmul.f32 %v1841, %v7713
      %v7828 = vmul.f32 %v1842, %v7717
      %v7829 = vmul.f32 %v1843, %v7721
      %v7830 = vmul.f32 %v1844, %v7725
      %v7831 = vmul.f32 %v1845, %v7729
      %v7832 = vmul.f32 %v1846, %v7733
      %v7833 = vmul.f32 %v1847, %v7737
      %v7834 = vmul.f32 %v1848, %v7741
      %v7835 = vmul.f32 %v1849, %v7745
      %v7836 = vmul.f32 %v1850, %v7749
      %v7837 = vmul.f32 %v1851, %v7753
      %v7838 = vmul.f32 %v1852, %v7757
      %v7839 = vmul.f32 %v1853, %v7761
      %v7840 = vmul.f32 %v1854, %v7765
      %v7841 = vmul.f32 %v1855, %v7769
      %v7842 = vmul.f32 %v1856, %v7773
      %v7843 = vmul.f32 %v1857, %v7777
      %v7844 = vmul.f32 %v1858, %v7781
      %v7845 = vmul.f32 %v1859, %v7785
      %v7846 = vmul.f32 %v1860, %v7789
      %v7847 = vmul.f32 %v1861, %v7793
      %v7848 = vmul.f32 %v1862, %v7797
      %v7849 = vmul.f32 %v1863, %v7801
      %v7850 = vmul.f32 %v1864, %v7805
      %v7851 = vmul.f32 %v1865, %v7809
      %v7852 = vmul.f32 %v1866, %v7813
      %v7853 = vmul.f32 %v1867, %v7817
      %v7854 = vmul.f32 %v1868, %v7821
      %7887 = vrot.lane.b32.xlu0 %v7823, 100
      %v7888 = vpop.permute.xlu0 %7887
      %7889 = vrot.lane.b32.xlu0 %v7824, 100
      %v7890 = vpop.permute.xlu0 %7889
      %7891 = vrot.lane.b32.xlu0 %v7825, 100
      %v7892 = vpop.permute.xlu0 %7891
      %7893 = vrot.lane.b32.xlu0 %v7826, 100
      %v7894 = vpop.permute.xlu0 %7893
      %7895 = vrot.lane.b32.xlu0 %v7827, 100
      %v7896 = vpop.permute.xlu0 %7895
      %7897 = vrot.lane.b32.xlu0 %v7828, 100
      %v7898 = vpop.permute.xlu0 %7897
      %7899 = vrot.lane.b32.xlu0 %v7829, 100
      %v7900 = vpop.permute.xlu0 %7899
      %7901 = vrot.lane.b32.xlu0 %v7830, 100
      %v7902 = vpop.permute.xlu0 %7901
      %7903 = vrot.lane.b32.xlu0 %v7831, 100
      %v7904 = vpop.permute.xlu0 %7903
      %7905 = vrot.lane.b32.xlu0 %v7832, 100
      %v7906 = vpop.permute.xlu0 %7905
      %7907 = vrot.lane.b32.xlu0 %v7833, 100
      %v7908 = vpop.permute.xlu0 %7907
      %7909 = vrot.lane.b32.xlu0 %v7834, 100
      %v7910 = vpop.permute.xlu0 %7909
      %7911 = vrot.lane.b32.xlu0 %v7835, 100
      %v7912 = vpop.permute.xlu0 %7911
      %7913 = vrot.lane.b32.xlu0 %v7836, 100
      %v7914 = vpop.permute.xlu0 %7913
      %7915 = vrot.lane.b32.xlu0 %v7837, 100
      %v7916 = vpop.permute.xlu0 %7915
      %7917 = vrot.lane.b32.xlu0 %v7838, 100
      %v7918 = vpop.permute.xlu0 %7917
      %7919 = vrot.lane.b32.xlu0 %v7839, 100
      %v7920 = vpop.permute.xlu0 %7919
      %7921 = vrot.lane.b32.xlu0 %v7840, 100
      %v7922 = vpop.permute.xlu0 %7921
      %7923 = vrot.lane.b32.xlu0 %v7841, 100
      %v7924 = vpop.permute.xlu0 %7923
      %7925 = vrot.lane.b32.xlu0 %v7842, 100
      %v7926 = vpop.permute.xlu0 %7925
      %7927 = vrot.lane.b32.xlu0 %v7843, 100
      %v7928 = vpop.permute.xlu0 %7927
      %7929 = vrot.lane.b32.xlu0 %v7844, 100
      %v7930 = vpop.permute.xlu0 %7929
      %7931 = vrot.lane.b32.xlu0 %v7845, 100
      %v7932 = vpop.permute.xlu0 %7931
      %7933 = vrot.lane.b32.xlu0 %v7846, 100
      %v7934 = vpop.permute.xlu0 %7933
      %7935 = vrot.lane.b32.xlu0 %v7847, 100
      %v7936 = vpop.permute.xlu0 %7935
      %7937 = vrot.lane.b32.xlu0 %v7848, 100
      %v7938 = vpop.permute.xlu0 %7937
      %7939 = vrot.lane.b32.xlu0 %v7849, 100
      %v7940 = vpop.permute.xlu0 %7939
      %7941 = vrot.lane.b32.xlu0 %v7850, 100
      %v7942 = vpop.permute.xlu0 %7941
      %7943 = vrot.lane.b32.xlu0 %v7851, 100
      %v7944 = vpop.permute.xlu0 %7943
      %7945 = vrot.lane.b32.xlu0 %v7852, 100
      %v7946 = vpop.permute.xlu0 %7945
      %7947 = vrot.lane.b32.xlu0 %v7853, 100
      %v7948 = vpop.permute.xlu0 %7947
      %7949 = vrot.lane.b32.xlu0 %v7854, 100
      %v7950 = vpop.permute.xlu0 %7949
      %v7983 = vadd.f32 %v7663, %v7888
      %v7984 = vadd.f32 %v7664, %v7890
      %v7985 = vadd.f32 %v7665, %v7892
      %v7986 = vadd.f32 %v7666, %v7894
      %v7987 = vadd.f32 %v7667, %v7896
      %v7988 = vadd.f32 %v7668, %v7898
      %v7989 = vadd.f32 %v7669, %v7900
      %v7990 = vadd.f32 %v7670, %v7902
      %v7991 = vadd.f32 %v7671, %v7904
      %v7992 = vadd.f32 %v7672, %v7906
      %v7993 = vadd.f32 %v7673, %v7908
      %v7994 = vadd.f32 %v7674, %v7910
      %v7995 = vadd.f32 %v7675, %v7912
      %v7996 = vadd.f32 %v7676, %v7914
      %v7997 = vadd.f32 %v7677, %v7916
      %v7998 = vadd.f32 %v7678, %v7918
      %v7999 = vadd.f32 %v7679, %v7920
      %v8000 = vadd.f32 %v7680, %v7922
      %v8001 = vadd.f32 %v7681, %v7924
      %v8002 = vadd.f32 %v7682, %v7926
      %v8003 = vadd.f32 %v7683, %v7928
      %v8004 = vadd.f32 %v7684, %v7930
      %v8005 = vadd.f32 %v7685, %v7932
      %v8006 = vadd.f32 %v7686, %v7934
      %v8007 = vadd.f32 %v7687, %v7936
      %v8008 = vadd.f32 %v7688, %v7938
      %v8009 = vadd.f32 %v7689, %v7940
      %v8010 = vadd.f32 %v7690, %v7942
      %v8011 = vadd.f32 %v7691, %v7944
      %v8012 = vadd.f32 %v7692, %v7946
      %v8013 = vadd.f32 %v7693, %v7948
      %v8014 = vadd.f32 %v7694, %v7950
      %8015 = vset.pattern.permute.xlu0 17
      %8016 = vperm.xlu0 %8015, %v2736
      %v8017 = vpop.permute.xlu0 %8016
      %8019 = vset.pattern.permute.xlu0 17
      %8020 = vperm.xlu0 %8019, %v2738
      %v8021 = vpop.permute.xlu0 %8020
      %8023 = vset.pattern.permute.xlu0 17
      %8024 = vperm.xlu0 %8023, %v2740
      %v8025 = vpop.permute.xlu0 %8024
      %8027 = vset.pattern.permute.xlu0 17
      %8028 = vperm.xlu0 %8027, %v2742
      %v8029 = vpop.permute.xlu0 %8028
      %8031 = vset.pattern.permute.xlu0 17
      %8032 = vperm.xlu0 %8031, %v2744
      %v8033 = vpop.permute.xlu0 %8032
      %8035 = vset.pattern.permute.xlu0 17
      %8036 = vperm.xlu0 %8035, %v2746
      %v8037 = vpop.permute.xlu0 %8036
      %8039 = vset.pattern.permute.xlu0 17
      %8040 = vperm.xlu0 %8039, %v2748
      %v8041 = vpop.permute.xlu0 %8040
      %8043 = vset.pattern.permute.xlu0 17
      %8044 = vperm.xlu0 %8043, %v2750
      %v8045 = vpop.permute.xlu0 %8044
      %8047 = vset.pattern.permute.xlu0 17
      %8048 = vperm.xlu0 %8047, %v2752
      %v8049 = vpop.permute.xlu0 %8048
      %8051 = vset.pattern.permute.xlu0 17
      %8052 = vperm.xlu0 %8051, %v2754
      %v8053 = vpop.permute.xlu0 %8052
      %8055 = vset.pattern.permute.xlu0 17
      %8056 = vperm.xlu0 %8055, %v2756
      %v8057 = vpop.permute.xlu0 %8056
      %8059 = vset.pattern.permute.xlu0 17
      %8060 = vperm.xlu0 %8059, %v2758
      %v8061 = vpop.permute.xlu0 %8060
      %8063 = vset.pattern.permute.xlu0 17
      %8064 = vperm.xlu0 %8063, %v2760
      %v8065 = vpop.permute.xlu0 %8064
      %8067 = vset.pattern.permute.xlu0 17
      %8068 = vperm.xlu0 %8067, %v2762
      %v8069 = vpop.permute.xlu0 %8068
      %8071 = vset.pattern.permute.xlu0 17
      %8072 = vperm.xlu0 %8071, %v2764
      %v8073 = vpop.permute.xlu0 %8072
      %8075 = vset.pattern.permute.xlu0 17
      %8076 = vperm.xlu0 %8075, %v2766
      %v8077 = vpop.permute.xlu0 %8076
      %8079 = vset.pattern.permute.xlu0 17
      %8080 = vperm.xlu0 %8079, %v2768
      %v8081 = vpop.permute.xlu0 %8080
      %8083 = vset.pattern.permute.xlu0 17
      %8084 = vperm.xlu0 %8083, %v2770
      %v8085 = vpop.permute.xlu0 %8084
      %8087 = vset.pattern.permute.xlu0 17
      %8088 = vperm.xlu0 %8087, %v2772
      %v8089 = vpop.permute.xlu0 %8088
      %8091 = vset.pattern.permute.xlu0 17
      %8092 = vperm.xlu0 %8091, %v2774
      %v8093 = vpop.permute.xlu0 %8092
      %8095 = vset.pattern.permute.xlu0 17
      %8096 = vperm.xlu0 %8095, %v2776
      %v8097 = vpop.permute.xlu0 %8096
      %8099 = vset.pattern.permute.xlu0 17
      %8100 = vperm.xlu0 %8099, %v2778
      %v8101 = vpop.permute.xlu0 %8100
      %8103 = vset.pattern.permute.xlu0 17
      %8104 = vperm.xlu0 %8103, %v2780
      %v8105 = vpop.permute.xlu0 %8104
      %8107 = vset.pattern.permute.xlu0 17
      %8108 = vperm.xlu0 %8107, %v2782
      %v8109 = vpop.permute.xlu0 %8108
      %8111 = vset.pattern.permute.xlu0 17
      %8112 = vperm.xlu0 %8111, %v2784
      %v8113 = vpop.permute.xlu0 %8112
      %8115 = vset.pattern.permute.xlu0 17
      %8116 = vperm.xlu0 %8115, %v2786
      %v8117 = vpop.permute.xlu0 %8116
      %8119 = vset.pattern.permute.xlu0 17
      %8120 = vperm.xlu0 %8119, %v2788
      %v8121 = vpop.permute.xlu0 %8120
      %8123 = vset.pattern.permute.xlu0 17
      %8124 = vperm.xlu0 %8123, %v2790
      %v8125 = vpop.permute.xlu0 %8124
      %8127 = vset.pattern.permute.xlu0 17
      %8128 = vperm.xlu0 %8127, %v2792
      %v8129 = vpop.permute.xlu0 %8128
      %8131 = vset.pattern.permute.xlu0 17
      %8132 = vperm.xlu0 %8131, %v2794
      %v8133 = vpop.permute.xlu0 %8132
      %8135 = vset.pattern.permute.xlu0 17
      %8136 = vperm.xlu0 %8135, %v2796
      %v8137 = vpop.permute.xlu0 %8136
      %8139 = vset.pattern.permute.xlu0 17
      %8140 = vperm.xlu0 %8139, %v2798
      %v8141 = vpop.permute.xlu0 %8140
      %v8143 = vmul.f32 %v1837, %v8017
      %v8144 = vmul.f32 %v1838, %v8021
      %v8145 = vmul.f32 %v1839, %v8025
      %v8146 = vmul.f32 %v1840, %v8029
      %v8147 = vmul.f32 %v1841, %v8033
      %v8148 = vmul.f32 %v1842, %v8037
      %v8149 = vmul.f32 %v1843, %v8041
      %v8150 = vmul.f32 %v1844, %v8045
      %v8151 = vmul.f32 %v1845, %v8049
      %v8152 = vmul.f32 %v1846, %v8053
      %v8153 = vmul.f32 %v1847, %v8057
      %v8154 = vmul.f32 %v1848, %v8061
      %v8155 = vmul.f32 %v1849, %v8065
      %v8156 = vmul.f32 %v1850, %v8069
      %v8157 = vmul.f32 %v1851, %v8073
      %v8158 = vmul.f32 %v1852, %v8077
      %v8159 = vmul.f32 %v1853, %v8081
      %v8160 = vmul.f32 %v1854, %v8085
      %v8161 = vmul.f32 %v1855, %v8089
      %v8162 = vmul.f32 %v1856, %v8093
      %v8163 = vmul.f32 %v1857, %v8097
      %v8164 = vmul.f32 %v1858, %v8101
      %v8165 = vmul.f32 %v1859, %v8105
      %v8166 = vmul.f32 %v1860, %v8109
      %v8167 = vmul.f32 %v1861, %v8113
      %v8168 = vmul.f32 %v1862, %v8117
      %v8169 = vmul.f32 %v1863, %v8121
      %v8170 = vmul.f32 %v1864, %v8125
      %v8171 = vmul.f32 %v1865, %v8129
      %v8172 = vmul.f32 %v1866, %v8133
      %v8173 = vmul.f32 %v1867, %v8137
      %v8174 = vmul.f32 %v1868, %v8141
      %8207 = vrot.lane.b32.xlu0 %v8143, 96
      %v8208 = vpop.permute.xlu0 %8207
      %8209 = vrot.lane.b32.xlu0 %v8144, 96
      %v8210 = vpop.permute.xlu0 %8209
      %8211 = vrot.lane.b32.xlu0 %v8145, 96
      %v8212 = vpop.permute.xlu0 %8211
      %8213 = vrot.lane.b32.xlu0 %v8146, 96
      %v8214 = vpop.permute.xlu0 %8213
      %8215 = vrot.lane.b32.xlu0 %v8147, 96
      %v8216 = vpop.permute.xlu0 %8215
      %8217 = vrot.lane.b32.xlu0 %v8148, 96
      %v8218 = vpop.permute.xlu0 %8217
      %8219 = vrot.lane.b32.xlu0 %v8149, 96
      %v8220 = vpop.permute.xlu0 %8219
      %8221 = vrot.lane.b32.xlu0 %v8150, 96
      %v8222 = vpop.permute.xlu0 %8221
      %8223 = vrot.lane.b32.xlu0 %v8151, 96
      %v8224 = vpop.permute.xlu0 %8223
      %8225 = vrot.lane.b32.xlu0 %v8152, 96
      %v8226 = vpop.permute.xlu0 %8225
      %8227 = vrot.lane.b32.xlu0 %v8153, 96
      %v8228 = vpop.permute.xlu0 %8227
      %8229 = vrot.lane.b32.xlu0 %v8154, 96
      %v8230 = vpop.permute.xlu0 %8229
      %8231 = vrot.lane.b32.xlu0 %v8155, 96
      %v8232 = vpop.permute.xlu0 %8231
      %8233 = vrot.lane.b32.xlu0 %v8156, 96
      %v8234 = vpop.permute.xlu0 %8233
      %8235 = vrot.lane.b32.xlu0 %v8157, 96
      %v8236 = vpop.permute.xlu0 %8235
      %8237 = vrot.lane.b32.xlu0 %v8158, 96
      %v8238 = vpop.permute.xlu0 %8237
      %8239 = vrot.lane.b32.xlu0 %v8159, 96
      %v8240 = vpop.permute.xlu0 %8239
      %8241 = vrot.lane.b32.xlu0 %v8160, 96
      %v8242 = vpop.permute.xlu0 %8241
      %8243 = vrot.lane.b32.xlu0 %v8161, 96
      %v8244 = vpop.permute.xlu0 %8243
      %8245 = vrot.lane.b32.xlu0 %v8162, 96
      %v8246 = vpop.permute.xlu0 %8245
      %8247 = vrot.lane.b32.xlu0 %v8163, 96
      %v8248 = vpop.permute.xlu0 %8247
      %8249 = vrot.lane.b32.xlu0 %v8164, 96
      %v8250 = vpop.permute.xlu0 %8249
      %8251 = vrot.lane.b32.xlu0 %v8165, 96
      %v8252 = vpop.permute.xlu0 %8251
      %8253 = vrot.lane.b32.xlu0 %v8166, 96
      %v8254 = vpop.permute.xlu0 %8253
      %8255 = vrot.lane.b32.xlu0 %v8167, 96
      %v8256 = vpop.permute.xlu0 %8255
      %8257 = vrot.lane.b32.xlu0 %v8168, 96
      %v8258 = vpop.permute.xlu0 %8257
      %8259 = vrot.lane.b32.xlu0 %v8169, 96
      %v8260 = vpop.permute.xlu0 %8259
      %8261 = vrot.lane.b32.xlu0 %v8170, 96
      %v8262 = vpop.permute.xlu0 %8261
      %8263 = vrot.lane.b32.xlu0 %v8171, 96
      %v8264 = vpop.permute.xlu0 %8263
      %8265 = vrot.lane.b32.xlu0 %v8172, 96
      %v8266 = vpop.permute.xlu0 %8265
      %8267 = vrot.lane.b32.xlu0 %v8173, 96
      %v8268 = vpop.permute.xlu0 %8267
      %8269 = vrot.lane.b32.xlu0 %v8174, 96
      %v8270 = vpop.permute.xlu0 %8269
      %v8303 = vadd.f32 %v7983, %v8208
      %v8304 = vadd.f32 %v7984, %v8210
      %v8305 = vadd.f32 %v7985, %v8212
      %v8306 = vadd.f32 %v7986, %v8214
      %v8307 = vadd.f32 %v7987, %v8216
      %v8308 = vadd.f32 %v7988, %v8218
      %v8309 = vadd.f32 %v7989, %v8220
      %v8310 = vadd.f32 %v7990, %v8222
      %v8311 = vadd.f32 %v7991, %v8224
      %v8312 = vadd.f32 %v7992, %v8226
      %v8313 = vadd.f32 %v7993, %v8228
      %v8314 = vadd.f32 %v7994, %v8230
      %v8315 = vadd.f32 %v7995, %v8232
      %v8316 = vadd.f32 %v7996, %v8234
      %v8317 = vadd.f32 %v7997, %v8236
      %v8318 = vadd.f32 %v7998, %v8238
      %v8319 = vadd.f32 %v7999, %v8240
      %v8320 = vadd.f32 %v8000, %v8242
      %v8321 = vadd.f32 %v8001, %v8244
      %v8322 = vadd.f32 %v8002, %v8246
      %v8323 = vadd.f32 %v8003, %v8248
      %v8324 = vadd.f32 %v8004, %v8250
      %v8325 = vadd.f32 %v8005, %v8252
      %v8326 = vadd.f32 %v8006, %v8254
      %v8327 = vadd.f32 %v8007, %v8256
      %v8328 = vadd.f32 %v8008, %v8258
      %v8329 = vadd.f32 %v8009, %v8260
      %v8330 = vadd.f32 %v8010, %v8262
      %v8331 = vadd.f32 %v8011, %v8264
      %v8332 = vadd.f32 %v8012, %v8266
      %v8333 = vadd.f32 %v8013, %v8268
      %v8334 = vadd.f32 %v8014, %v8270
      %vm8335 = vcmask 15360
      %v8336 = vsel %vm8335, %v5551, %v8303
      %v8337 = vsel %vm8335, %v5552, %v8304
      %v8338 = vsel %vm8335, %v5553, %v8305
      %v8339 = vsel %vm8335, %v5554, %v8306
      %v8340 = vsel %vm8335, %v5555, %v8307
      %v8341 = vsel %vm8335, %v5556, %v8308
      %v8342 = vsel %vm8335, %v5557, %v8309
      %v8343 = vsel %vm8335, %v5558, %v8310
      %v8344 = vsel %vm8335, %v5559, %v8311
      %v8345 = vsel %vm8335, %v5560, %v8312
      %v8346 = vsel %vm8335, %v5561, %v8313
      %v8347 = vsel %vm8335, %v5562, %v8314
      %v8348 = vsel %vm8335, %v5563, %v8315
      %v8349 = vsel %vm8335, %v5564, %v8316
      %v8350 = vsel %vm8335, %v5565, %v8317
      %v8351 = vsel %vm8335, %v5566, %v8318
      %v8352 = vsel %vm8335, %v5567, %v8319
      %v8353 = vsel %vm8335, %v5568, %v8320
      %v8354 = vsel %vm8335, %v5569, %v8321
      %v8355 = vsel %vm8335, %v5570, %v8322
      %v8356 = vsel %vm8335, %v5571, %v8323
      %v8357 = vsel %vm8335, %v5572, %v8324
      %v8358 = vsel %vm8335, %v5573, %v8325
      %v8359 = vsel %vm8335, %v5574, %v8326
      %v8360 = vsel %vm8335, %v5575, %v8327
      %v8361 = vsel %vm8335, %v5576, %v8328
      %v8362 = vsel %vm8335, %v5577, %v8329
      %v8363 = vsel %vm8335, %v5578, %v8330
      %v8364 = vsel %vm8335, %v5579, %v8331
      %v8365 = vsel %vm8335, %v5580, %v8332
      %v8366 = vsel %vm8335, %v5581, %v8333
      %v8367 = vsel %vm8335, %v5582, %v8334
      %8368 = vst.msk [vmem:[%s143] sm:$0xff] %vm177, %v8336
      %8369 = vst.msk [vmem:[%s143 + $0x8] sm:$0xff] %vm177, %v8337
      %8370 = vst.msk [vmem:[%s143 + $0x10] sm:$0xff] %vm177, %v8338
      %8371 = vst.msk [vmem:[%s143 + $0x18] sm:$0xff] %vm177, %v8339
      %8372 = vst.msk [vmem:[%s143 + $0x20] sm:$0xff] %vm177, %v8340
      %8373 = vst.msk [vmem:[%s143 + $0x28] sm:$0xff] %vm177, %v8341
      %8374 = vst.msk [vmem:[%s143 + $0x30] sm:$0xff] %vm177, %v8342
      %8375 = vst.msk [vmem:[%s143 + $0x38] sm:$0xff] %vm177, %v8343
      %8376 = vst.msk [vmem:[%s143 + $0x40] sm:$0xff] %vm177, %v8344
      %8377 = vst.msk [vmem:[%s143 + $0x48] sm:$0xff] %vm177, %v8345
      %8378 = vst.msk [vmem:[%s143 + $0x50] sm:$0xff] %vm177, %v8346
      %8379 = vst.msk [vmem:[%s143 + $0x58] sm:$0xff] %vm177, %v8347
      %8380 = vst.msk [vmem:[%s143 + $0x60] sm:$0xff] %vm177, %v8348
      %8381 = vst.msk [vmem:[%s143 + $0x68] sm:$0xff] %vm177, %v8349
      %8382 = vst.msk [vmem:[%s143 + $0x70] sm:$0xff] %vm177, %v8350
      %8383 = vst.msk [vmem:[%s143 + $0x78] sm:$0xff] %vm177, %v8351
      %8384 = vst.msk [vmem:[%s143 + $0x80] sm:$0xff] %vm177, %v8352
      %8385 = vst.msk [vmem:[%s143 + $0x88] sm:$0xff] %vm177, %v8353
      %8386 = vst.msk [vmem:[%s143 + $0x90] sm:$0xff] %vm177, %v8354
      %8387 = vst.msk [vmem:[%s143 + $0x98] sm:$0xff] %vm177, %v8355
      %8388 = vst.msk [vmem:[%s143 + $0xa0] sm:$0xff] %vm177, %v8356
      %8389 = vst.msk [vmem:[%s143 + $0xa8] sm:$0xff] %vm177, %v8357
      %8390 = vst.msk [vmem:[%s143 + $0xb0] sm:$0xff] %vm177, %v8358
      %8391 = vst.msk [vmem:[%s143 + $0xb8] sm:$0xff] %vm177, %v8359
      %8392 = vst.msk [vmem:[%s143 + $0xc0] sm:$0xff] %vm177, %v8360
      %8393 = vst.msk [vmem:[%s143 + $0xc8] sm:$0xff] %vm177, %v8361
      %8394 = vst.msk [vmem:[%s143 + $0xd0] sm:$0xff] %vm177, %v8362
      %8395 = vst.msk [vmem:[%s143 + $0xd8] sm:$0xff] %vm177, %v8363
      %8396 = vst.msk [vmem:[%s143 + $0xe0] sm:$0xff] %vm177, %v8364
      %8397 = vst.msk [vmem:[%s143 + $0xe8] sm:$0xff] %vm177, %v8365
      %8398 = vst.msk [vmem:[%s143 + $0xf0] sm:$0xff] %vm177, %v8366
      %8399 = vst.msk [vmem:[%s143 + $0xf8] sm:$0xff] %vm177, %v8367
      %p8400 = scmp.lt.s32.totalorder %s13, 1
      %s8401 = scalar_select %p8400, %s13, 1
      %s8402 = smul.addr %s8401, 32
      %s8403 = smul.addr %s8402, 8
      %s8404 = scalar_lea.vmem %s2, %s8403
      // Predicated region
      $region29: #{pasa_downsample.1} parent=27 // pred_check
        %p8405 = pneg %p78
      $region30: #{pasa_downsample.1} parent=27 // pred_check_branch
        %8407 = sbr.rel (%p8405) target = $region32
      $region31: #{pasa_downsample.1} parent=27 // pred_region
        _
      $region32: #{pasa_downsample.1} parent=27 // pred_fallthru
        _
    $region28: #{pasa_downsample.1} parent=5 // pred_fallthru
      _
    %p8408 = scmp.le.s32.totalorder 2, %s8
    // Predicated region
    $region33: #{pasa_downsample.1} parent=5 // pred_check
      %p8409 = pneg %p8408
    $region34: #{pasa_downsample.1} parent=5 // pred_check_branch
      %8411 = sbr.rel (%p8409) target = $region36
    $region35: #{pasa_downsample.1} parent=5 // pred_region
      %s8412 = ssub.s32 %s8, 2
      // Predicated region
      $region37: #{pasa_downsample.1} parent=35 // pred_check
        %p8413 = pneg %p84
      $region38: #{pasa_downsample.1} parent=35 // pred_check_branch
        %8415 = sbr.rel (%p8413) target = $region40
      $region39: #{pasa_downsample.1} parent=35 // pred_region
        %p8416 = scmp.lt.s32.totalorder %s14, 1
        %s8417 = scalar_select %p8416, %s14, 1
        %s8418 = smul.addr %s8417, 32
        %s8419 = smul.addr %s8418, 8
        %s8420 = scalar_lea.vmem %s2, %s8419
      $region40: #{pasa_downsample.1} parent=35 // pred_fallthru
        _
    $region36: #{pasa_downsample.1} parent=5 // pred_fallthru
      _
  $region6: #{pasa_downsample.1} parent=0 // loop_footer
    %s12 = sadd.s32 1, %s8
  $region7: #{pasa_downsample.1} parent=0 // loop_footer_branch
    %7 = sbr.rel target = $region3
  $region8: #{pasa_downsample.1} parent=0 // loop_exit
    _

</llo_original>
